<compile_context>
chip_gen: v5e
topology: v5e:2x2
jax: 0.10.0
libtpu: 0.0.40
codegen_flags: <defaults>
</compile_context>

<pallas_src>
import numpy as np

import jax
import jax.numpy as jnp
from jax import lax
from jax.experimental import pallas as pl
from jax.experimental.pallas import tpu as pltpu

BN_EPS = 1e-5

STAGES = (
    # (Hin, Win, Cin, Cout) of each conv stage (spatial preserved by pad=1).
    (8, 8, 1, 32),
    (4, 4, 32, 64),
    (2, 2, 64, 128),
)


def no_w_net_kernel(x_ref,
                    m1_ref, b1_ref, g1_ref, be1_ref,
                    m2_ref, b2_ref, g2_ref, be2_ref,
                    m3_ref, b3_ref, g3_ref, be3_ref,
                    s1_ref, s2_ref,
                    fw1_ref, fb1_ref, fw2_ref, fb2_ref, fw3_ref, fb3_ref,
                    o_ref, feat_ref):
    """One grid step == one conv trunk (branch); fc head runs on the last step."""
    br = pl.program_id(0)
    n = x_ref.shape[1]

    def conv_relu(act, m_ref, b_ref):
        # One bf16 MXU matmul == conv3x3(pad=1) over every output pixel; output
        # columns ordered (di, dj, i, j, c) so 2x2 pooling groups are four
        # contiguous 128-aligned lane slabs.
        a = jnp.dot(act.astype(jnp.bfloat16), m_ref[0],
                    preferred_element_type=jnp.float32) + b_ref[0]
        return jnp.maximum(a, 0.0)

    def bn_pool_mxu(a, g_ref, be_ref, s_ref, n_pix):
        # BatchNorm2d with batch statistics (biased variance), two-pass.
        # Channel reductions and per-channel -> per-pixel broadcasts ride the
        # MXU against the constant 0/1 matrix S, and against S^T via a
        # transposed-RHS dot_general (so no separate T operand from HBM).
        inv_cnt = 1.0 / float(n * n_pix)
        trans_b = (((1,), (1,)), ((), ()))
        col_sum = jnp.sum(a, axis=0, keepdims=True)                       # (1, P*C)
        mean = jnp.dot(col_sum.astype(jnp.bfloat16), s_ref[...],
                       preferred_element_type=jnp.float32) * inv_cnt      # (1, C)
        mean_t = lax.dot_general(mean.astype(jnp.bfloat16), s_ref[...], trans_b,
                                 preferred_element_type=jnp.float32)      # (1, P*C)
        d = a - mean_t
        var = jnp.dot(jnp.sum(d * d, axis=0, keepdims=True).astype(jnp.bfloat16),
                      s_ref[...], preferred_element_type=jnp.float32) * inv_cnt
        scale = g_ref[0] * lax.rsqrt(var + BN_EPS)                         # (1, C)
        scale_t = lax.dot_general(scale.astype(jnp.bfloat16), s_ref[...], trans_b,
                                  preferred_element_type=jnp.float32)
        y = d * scale_t + be_ref[0]
        # MaxPool2d(2): max over the four (di, dj) slabs (128-aligned lanes).
        q = y.shape[1] // 4
        return jnp.maximum(jnp.maximum(y[:, 0:q], y[:, q:2 * q]),
                           jnp.maximum(y[:, 2 * q:3 * q], y[:, 3 * q:4 * q]))

    def bn_pool_vpu128(a, g_ref, be_ref):
        # Stage-3 special case: C == 128 and 4 output pixels, so each pixel is
        # exactly one 128-lane slab. BN reduction/broadcast and the pool are
        # pure VPU slab ops -> no MXU passes, no S3/T3 operands.
        inv_cnt = 1.0 / float(n * 4)
        s0, s1, s2, s3 = a[:, 0:128], a[:, 128:256], a[:, 256:384], a[:, 384:512]
        mean = jnp.sum(s0 + s1 + s2 + s3, axis=0, keepdims=True) * inv_cnt
        d0, d1, d2, d3 = s0 - mean, s1 - mean, s2 - mean, s3 - mean
        var = jnp.sum(d0 * d0 + d1 * d1 + d2 * d2 + d3 * d3,
                      axis=0, keepdims=True) * inv_cnt
        scale = g_ref[0] * lax.rsqrt(var + BN_EPS)
        beta = be_ref[0]
        y0, y1 = d0 * scale + beta, d1 * scale + beta
        y2, y3 = d2 * scale + beta, d3 * scale + beta
        return jnp.maximum(jnp.maximum(y0, y1), jnp.maximum(y2, y3))

    act = x_ref[0]                                                    # (N, 64)
    act = bn_pool_mxu(conv_relu(act, m1_ref, b1_ref), g1_ref, be1_ref, s1_ref, 64)
    act = bn_pool_mxu(conv_relu(act, m2_ref, b2_ref), g2_ref, be2_ref, s2_ref, 16)
    act = bn_pool_vpu128(conv_relu(act, m3_ref, b3_ref), g3_ref, be3_ref)  # (N,128)

    @pl.when(br == 0)
    def _():
        feat_ref[...] = act                                           # branch-0 feats

    @pl.when(br == pl.num_programs(0) - 1)
    def _():
        # fc head: cat(branch0, branch1) -> 256 -> 128 -> 128 -> 1 -> sigmoid.
        x3 = jnp.concatenate([feat_ref[...], act], axis=1)            # (N, 256)
        h1 = jnp.maximum(jnp.dot(x3.astype(jnp.bfloat16), fw1_ref[...],
                                 preferred_element_type=jnp.float32)
                         + fb1_ref[...], 0.0)
        h2 = jnp.maximum(jnp.dot(h1.astype(jnp.bfloat16), fw2_ref[...],
                                 preferred_element_type=jnp.float32)
                         + fb2_ref[...], 0.0)
        z = jnp.dot(h2.astype(jnp.bfloat16), fw3_ref[...],
                    preferred_element_type=jnp.float32) + fb3_ref[...]
        e = jnp.exp(-jnp.abs(z))                                      # stable sigmoid
        r = pl.reciprocal(1.0 + e, approx=True)                       # EUP divide
        o_ref[...] = jnp.where(z >= 0.0, r, e * r)


def _dense_conv_matrix(w_hwio, h_in, w_in):
    """Dense matrix of a 3x3 / stride-1 / pad-1 convolution.

    Rows: flattened input, (pixel row-major, channel fastest).
    Cols: flattened output, ordered (di, dj, i, j, c) with output pixel
          (y, x) = (2i+di, 2j+dj), so each 2x2 pooling window occupies four
          contiguous column slabs.
    """
    c_in, c_out = int(w_hwio.shape[2]), int(w_hwio.shape[3])
    h_out, w_out = h_in, w_in
    gath = np.zeros((9, h_out * w_out, h_in * w_in), np.float32)
    for y in range(h_out):
        for x in range(w_out):
            p_out = (((y % 2) * 2 + (x % 2)) * (h_out // 2) + (y // 2)) * (w_out // 2) \
                    + (x // 2)
            for ky in range(3):
                for kx in range(3):
                    yy, xx = y + ky - 1, x + kx - 1
                    if 0 <= yy < h_in and 0 <= xx < w_in:
                        gath[ky * 3 + kx, p_out, yy * w_in + xx] = 1.0
    w9 = jnp.asarray(w_hwio, jnp.float32).reshape(9, c_in, c_out)
    m = jnp.einsum('tqp,tco->pcqo', jnp.asarray(gath), w9)
    return m.reshape(h_in * w_in * c_in, h_out * w_out * c_out)


def init_raw_params(key):
    """Synthetic parameters with the shapes no_w_net.__init__ implies.

    Conv weights are HWIO (3,3,Cin,Cout); Linear weights are stored (in, out) so
    the kernel computes x @ W (== PyTorch's x @ W.T with W of shape (out, in)).
    BatchNorm affine params are at their PyTorch defaults (gamma=1, beta=0).
    """
    keys = iter(jax.random.split(key, 24))

    def conv_w(k, cin, cout):
        return jax.random.normal(k, (3, 3, cin, cout), jnp.float32) / (9.0 * cin) ** 0.5

    def lin_w(k, fin, fout):
        return jax.random.normal(k, (fin, fout), jnp.float32) / fin ** 0.5

    def trunk():
        t = {}
        for s, (_, _, cin, cout) in enumerate(STAGES, start=1):
            t[f"w{s}"] = conv_w(next(keys), cin, cout)
            t[f"b{s}"] = jax.random.normal(next(keys), (cout,), jnp.float32) * 0.01
            t[f"g{s}"] = jnp.ones((cout,), jnp.float32)
            t[f"be{s}"] = jnp.zeros((cout,), jnp.float32)
        return t

    branches = [trunk(), trunk()]      # conv1 / conv2 trunks (independent params)
    fc = dict(
        fw1=lin_w(next(keys), 256, 128),
        fb1=jax.random.normal(next(keys), (128,), jnp.float32) * 0.01,
        fw2=lin_w(next(keys), 128, 128),
        fb2=jax.random.normal(next(keys), (128,), jnp.float32) * 0.01,
        fw3=lin_w(next(keys), 128, 1),
        fb3=jax.random.normal(next(keys), (1,), jnp.float32) * 0.01,
    )
    return dict(branches=branches, fc=fc)


def build_kernel_operands(raw):
    """Precompute dense per-stage conv matrices (bf16) + constant sum matrices S."""
    last = len(STAGES)
    ops = {}
    for s, (h, w, _cin, cout) in enumerate(STAGES, start=1):
        n_pix = h * w
        ms, bs, gs, bes = [], [], [], []
        for t in raw["branches"]:
            ms.append(_dense_conv_matrix(t[f"w{s}"], h, w))
            bs.append(jnp.tile(t[f"b{s}"].reshape(1, cout), (1, n_pix)))
            gs.append(t[f"g{s}"].reshape(1, cout))
            if s == last:
                bes.append(t[f"be{s}"].reshape(1, cout))       # stage-3 VPU path
            else:
                bes.append(jnp.tile(t[f"be{s}"].reshape(1, cout), (1, n_pix)))
        ops[f"M{s}"] = jnp.stack(ms).astype(jnp.bfloat16)   # (2, Hin*Win*Cin, P*Cout)
        ops[f"b{s}"] = jnp.stack(bs)                         # (2, 1, P*Cout) f32
        ops[f"g{s}"] = jnp.stack(gs)                         # (2, 1, Cout)   f32
        ops[f"be{s}"] = jnp.stack(bes)                       # f32
        if s != last:
            eye = jnp.eye(cout, dtype=jnp.float32)
            # (P*Cout, Cout): sums over pixels; 0/1 -> exact in bf16.
            ops[f"S{s}"] = jnp.tile(eye, (n_pix, 1)).astype(jnp.bfloat16)
    fc = raw["fc"]
    ops["fw1"] = fc["fw1"].astype(jnp.bfloat16)
    ops["fw2"] = fc["fw2"].astype(jnp.bfloat16)
    ops["fw3"] = fc["fw3"].astype(jnp.bfloat16)
    ops["fb1"] = fc["fb1"].reshape(1, -1)
    ops["fb2"] = fc["fb2"].reshape(1, -1)
    ops["fb3"] = fc["fb3"].reshape(1, -1)
    return ops


# Per-branch (grid-indexed) vs. grid-resident operands.
_BRANCHED = ("M1", "b1", "g1", "be1", "M2", "b2", "g2", "be2",
             "M3", "b3", "g3", "be3")
_RESIDENT = ("S1", "S2", "fw1", "fb1", "fw2", "fb2", "fw3", "fb3")
_ORDER = _BRANCHED + _RESIDENT


@jax.jit
def no_w_net_forward(x_nchw, ops):
    """x_nchw: (N, 2, 8, 8) float32 (PyTorch NCHW) -> (N, 1) sigmoid outputs."""
    nb = x_nchw.shape[0]
    x = x_nchw.astype(jnp.float32)
    # Per-branch flattened single-channel images (pixels row-major): (2, N, 64).
    xb = jnp.stack([x[:, 0].reshape(nb, 64), x[:, 1].reshape(nb, 64)], axis=0)

    def branch_spec(arr):
        nd = arr.ndim
        return pl.BlockSpec((1,) + arr.shape[1:],
                            lambda b, _n=nd: (b,) + (0,) * (_n - 1))

    def resident_spec(arr):
        nd = arr.ndim
        return pl.BlockSpec(arr.shape, lambda b, _n=nd: (0,) * _n)

    args = (xb,) + tuple(ops[k] for k in _ORDER)
    in_specs = [branch_spec(xb)]
    for k in _ORDER:
        in_specs.append(branch_spec(ops[k]) if k in _BRANCHED else resident_spec(ops[k]))

    grid_spec = pltpu.PrefetchScalarGridSpec(
        num_scalar_prefetch=0,
        grid=(2,),                                   # one step per conv trunk
        in_specs=in_specs,
        out_specs=pl.BlockSpec((nb, 1), lambda b: (0, 0)),
        scratch_shapes=[pltpu.VMEM((nb, 128), jnp.float32)],   # branch-0 features
    )
    return pl.pallas_call(
        no_w_net_kernel,
        out_shape=jax.ShapeDtypeStruct((nb, 1), jnp.float32),
        grid_spec=grid_spec,
        compiler_params=pltpu.CompilerParams(
            # Branch axis carries state (feat scratch, resident output) -> arbitrary.
            dimension_semantics=("arbitrary",),
            # ~3.5 MiB working set + double-buffered branch weights; 32 MiB leaves
            # batch/pipelining headroom while staying well under v7x's 64 MiB.
            vmem_limit_bytes=32 << 20),
    )(*args)


def reference_forward(x_nchw, raw):
    """Pure-JAX (XLA) reference of no_w_net.forward in train mode (f32)."""
    x = x_nchw.astype(jnp.float32)

    def conv_block(img, w, b, g, be):
        out = jax.lax.conv_general_dilated(
            img, w, window_strides=(1, 1), padding="SAME",
            dimension_numbers=("NHWC", "HWIO", "NHWC"))
        out = jnp.maximum(out + b, 0.0)
        mean = jnp.mean(out, axis=(0, 1, 2))
        var = jnp.mean((out - mean) ** 2, axis=(0, 1, 2))
        out = (out - mean) * jax.lax.rsqrt(var + BN_EPS) * g + be
        nb, hh, ww, cc = out.shape
        return jnp.max(out.reshape(nb, hh // 2, 2, ww // 2, 2, cc), axis=(2, 4))

    feats = []
    for br in range(2):
        t = raw["branches"][br]
        h = x[:, br][..., None]                       # (N, 8, 8, 1)
        h = conv_block(h, t["w1"], t["b1"], t["g1"], t["be1"])
        h = conv_block(h, t["w2"], t["b2"], t["g2"], t["be2"])
        h = conv_block(h, t["w3"], t["b3"], t["g3"], t["be3"])
        feats.append(h.reshape(x.shape[0], -1))       # (N, 128)
    f = jnp.concatenate(feats, axis=1)                # (N, 256)
    fc = raw["fc"]
    h1 = jnp.maximum(f @ fc["fw1"] + fc["fb1"], 0.0)
    h2 = jnp.maximum(h1 @ fc["fw2"] + fc["fb2"], 0.0)
    return jax.nn.sigmoid(h2 @ fc["fw3"] + fc["fb3"])


if __name__ == "__main__":
    key = jax.random.PRNGKey(0)
    k_x, k_p = jax.random.split(key)

    # forward() implies (batch, 2 channels, 8, 8): each channel feeds its own
    # conv trunk ending at 1x1x128, and fc_net(256, 1, 1, ...) needs the
    # concatenated 2*128 = 256 flattened features.
    x = jax.random.normal(k_x, (2, 2, 8, 8), jnp.float32)
    raw = init_raw_params(k_p)
    ops = build_kernel_operands(raw)

    out = jax.block_until_ready(no_w_net_forward(x, ops))
    ref = jax.block_until_ready(reference_forward(x, raw))

    assert out.shape == (2, 1)
    assert bool(jnp.all(jnp.isfinite(out)))
    assert bool(jnp.all((out > 0.0) & (out < 1.0)))                 # sigmoid range
    # bf16 weights + f32 accumulation vs. f32 XLA reference: allow a few e-3.
    assert bool(jnp.max(jnp.abs(out - ref)) < 3e-2), (out, ref)
    print("KERNEL_OK")
</pallas_src>

<mosaic_0001>
module attributes {stable_mosaic.version = 11 : i64} {
  func.func @no_w_net_kernel(%arg0: i32, %arg1: memref<1x2x64xf32, #tpu.memory_space<vmem>>, %arg2: memref<1x64x2048xbf16, #tpu.memory_space<vmem>>, %arg3: memref<1x1x2048xf32, #tpu.memory_space<vmem>>, %arg4: memref<1x1x32xf32, #tpu.memory_space<vmem>>, %arg5: memref<1x1x2048xf32, #tpu.memory_space<vmem>>, %arg6: memref<1x512x1024xbf16, #tpu.memory_space<vmem>>, %arg7: memref<1x1x1024xf32, #tpu.memory_space<vmem>>, %arg8: memref<1x1x64xf32, #tpu.memory_space<vmem>>, %arg9: memref<1x1x1024xf32, #tpu.memory_space<vmem>>, %arg10: memref<1x256x512xbf16, #tpu.memory_space<vmem>>, %arg11: memref<1x1x512xf32, #tpu.memory_space<vmem>>, %arg12: memref<1x1x128xf32, #tpu.memory_space<vmem>>, %arg13: memref<1x1x128xf32, #tpu.memory_space<vmem>>, %arg14: memref<2048x32xbf16, #tpu.memory_space<vmem>>, %arg15: memref<1024x64xbf16, #tpu.memory_space<vmem>>, %arg16: memref<256x128xbf16, #tpu.memory_space<vmem>>, %arg17: memref<1x128xf32, #tpu.memory_space<vmem>>, %arg18: memref<128x128xbf16, #tpu.memory_space<vmem>>, %arg19: memref<1x128xf32, #tpu.memory_space<vmem>>, %arg20: memref<128x1xbf16, #tpu.memory_space<vmem>>, %arg21: memref<1x1xf32, #tpu.memory_space<vmem>>, %arg22: memref<2x1xf32, #tpu.memory_space<vmem>>, %arg23: memref<2x128xf32, #tpu.memory_space<vmem>>) attributes {dimension_semantics = [#tpu.dimension_semantics<arbitrary>], iteration_bounds = array<i64: 2>, scalar_prefetch = 0 : i64, scratch_operands = 1 : i64, tpu.core_type = #tpu.core_type<tc>, window_params = [{transform_indices = @transform_0, window_bounds = array<i64: 1, 2, 64>}, {transform_indices = @transform_1, window_bounds = array<i64: 1, 64, 2048>}, {transform_indices = @transform_2, window_bounds = array<i64: 1, 1, 2048>}, {transform_indices = @transform_3, window_bounds = array<i64: 1, 1, 32>}, {transform_indices = @transform_4, window_bounds = array<i64: 1, 1, 2048>}, {transform_indices = @transform_5, window_bounds = array<i64: 1, 512, 1024>}, {transform_indices = @transform_6, window_bounds = array<i64: 1, 1, 1024>}, {transform_indices = @transform_7, window_bounds = array<i64: 1, 1, 64>}, {transform_indices = @transform_8, window_bounds = array<i64: 1, 1, 1024>}, {transform_indices = @transform_9, window_bounds = array<i64: 1, 256, 512>}, {transform_indices = @transform_10, window_bounds = array<i64: 1, 1, 512>}, {transform_indices = @transform_11, window_bounds = array<i64: 1, 1, 128>}, {transform_indices = @transform_12, window_bounds = array<i64: 1, 1, 128>}, {pipeline_mode = #tpu.pipeline_mode<synchronous>, transform_indices = @transform_13, window_bounds = array<i64: 2048, 32>}, {pipeline_mode = #tpu.pipeline_mode<synchronous>, transform_indices = @transform_14, window_bounds = array<i64: 1024, 64>}, {pipeline_mode = #tpu.pipeline_mode<synchronous>, transform_indices = @transform_15, window_bounds = array<i64: 256, 128>}, {pipeline_mode = #tpu.pipeline_mode<synchronous>, transform_indices = @transform_16, window_bounds = array<i64: 1, 128>}, {pipeline_mode = #tpu.pipeline_mode<synchronous>, transform_indices = @transform_17, window_bounds = array<i64: 128, 128>}, {pipeline_mode = #tpu.pipeline_mode<synchronous>, transform_indices = @transform_18, window_bounds = array<i64: 1, 128>}, {pipeline_mode = #tpu.pipeline_mode<synchronous>, transform_indices = @transform_19, window_bounds = array<i64: 128, 1>}, {pipeline_mode = #tpu.pipeline_mode<synchronous>, transform_indices = @transform_20, window_bounds = array<i64: 1, 1>}, {pipeline_mode = #tpu.pipeline_mode<synchronous>, transform_indices = @transform_21, window_bounds = array<i64: 2, 1>}]} {
    %c0 = arith.constant 0 : index
    %c0_0 = arith.constant 0 : index
    %c0_1 = arith.constant 0 : index
    %0 = vector.load %arg1[%c0, %c0_0, %c0_1] : memref<1x2x64xf32, #tpu.memory_space<vmem>>, vector<1x2x64xf32>
    %1 = vector.shape_cast %0 : vector<1x2x64xf32> to vector<2x64xf32>
    %2 = arith.truncf %1 : vector<2x64xf32> to vector<2x64xbf16>
    %c0_2 = arith.constant 0 : index
    %c0_3 = arith.constant 0 : index
    %c0_4 = arith.constant 0 : index
    %3 = vector.load %arg2[%c0_2, %c0_3, %c0_4] : memref<1x64x2048xbf16, #tpu.memory_space<vmem>>, vector<1x64x2048xbf16>
    %4 = vector.shape_cast %3 : vector<1x64x2048xbf16> to vector<64x2048xbf16>
    %cst = arith.constant dense<0.000000e+00> : vector<2x2048xf32>
    %5 = tpu.matmul %2, %4, %cst {dimension_numbers = #tpu.dot_dimension_numbers<[1], [0], [0], [1], [0, 0, 1, 1], [], []>} : vector<2x64xbf16>, vector<64x2048xbf16>, vector<2x2048xf32> -> vector<2x2048xf32>
    %c0_5 = arith.constant 0 : index
    %c0_6 = arith.constant 0 : index
    %c0_7 = arith.constant 0 : index
    %6 = vector.load %arg3[%c0_5, %c0_6, %c0_7] : memref<1x1x2048xf32, #tpu.memory_space<vmem>>, vector<1x1x2048xf32>
    %7 = vector.shape_cast %6 : vector<1x1x2048xf32> to vector<1x2048xf32>
    %8 = vector.broadcast %7 : vector<1x2048xf32> to vector<2x2048xf32>
    %9 = arith.addf %5, %8 : vector<2x2048xf32>
    %cst_8 = arith.constant 0.000000e+00 : f32
    %10 = vector.broadcast %cst_8 : f32 to vector<2x2048xf32>
    %11 = arith.maximumf %9, %10 : vector<2x2048xf32>
    %cst_9 = arith.constant dense<0.000000e+00> : vector<2048xf32>
    %12 = vector.multi_reduction <add>, %11, %cst_9 [0] : vector<2x2048xf32> to vector<2048xf32>
    %13 = vector.shape_cast %12 : vector<2048xf32> to vector<1x2048xf32>
    %14 = arith.truncf %13 : vector<1x2048xf32> to vector<1x2048xbf16>
    %c0_10 = arith.constant 0 : index
    %c0_11 = arith.constant 0 : index
    %15 = vector.load %arg14[%c0_10, %c0_11] : memref<2048x32xbf16, #tpu.memory_space<vmem>>, vector<2048x32xbf16>
    %cst_12 = arith.constant dense<0.000000e+00> : vector<1x32xf32>
    %16 = tpu.matmul %14, %15, %cst_12 {dimension_numbers = #tpu.dot_dimension_numbers<[1], [0], [0], [1], [0, 0, 1, 1], [], []>} : vector<1x2048xbf16>, vector<2048x32xbf16>, vector<1x32xf32> -> vector<1x32xf32>
    %cst_13 = arith.constant 7.812500e-03 : f32
    %17 = vector.broadcast %cst_13 : f32 to vector<1x32xf32>
    %18 = arith.mulf %16, %17 : vector<1x32xf32>
    %19 = arith.truncf %18 : vector<1x32xf32> to vector<1x32xbf16>
    %c0_14 = arith.constant 0 : index
    %c0_15 = arith.constant 0 : index
    %20 = vector.load %arg14[%c0_14, %c0_15] : memref<2048x32xbf16, #tpu.memory_space<vmem>>, vector<2048x32xbf16>
    %cst_16 = arith.constant dense<0.000000e+00> : vector<1x2048xf32>
    %21 = tpu.matmul %19, %20, %cst_16 {dimension_numbers = #tpu.dot_dimension_numbers<[1], [1], [0], [0], [0, 0, 1, 0], [], []>} : vector<1x32xbf16>, vector<2048x32xbf16>, vector<1x2048xf32> -> vector<1x2048xf32>
    %22 = vector.broadcast %21 : vector<1x2048xf32> to vector<2x2048xf32>
    %23 = arith.subf %11, %22 : vector<2x2048xf32>
    %24 = arith.mulf %23, %23 : vector<2x2048xf32>
    %cst_17 = arith.constant dense<0.000000e+00> : vector<2048xf32>
    %25 = vector.multi_reduction <add>, %24, %cst_17 [0] : vector<2x2048xf32> to vector<2048xf32>
    %26 = vector.shape_cast %25 : vector<2048xf32> to vector<1x2048xf32>
    %27 = arith.truncf %26 : vector<1x2048xf32> to vector<1x2048xbf16>
    %c0_18 = arith.constant 0 : index
    %c0_19 = arith.constant 0 : index
    %28 = vector.load %arg14[%c0_18, %c0_19] : memref<2048x32xbf16, #tpu.memory_space<vmem>>, vector<2048x32xbf16>
    %cst_20 = arith.constant dense<0.000000e+00> : vector<1x32xf32>
    %29 = tpu.matmul %27, %28, %cst_20 {dimension_numbers = #tpu.dot_dimension_numbers<[1], [0], [0], [1], [0, 0, 1, 1], [], []>} : vector<1x2048xbf16>, vector<2048x32xbf16>, vector<1x32xf32> -> vector<1x32xf32>
    %cst_21 = arith.constant 7.812500e-03 : f32
    %30 = vector.broadcast %cst_21 : f32 to vector<1x32xf32>
    %31 = arith.mulf %29, %30 : vector<1x32xf32>
    %c0_22 = arith.constant 0 : index
    %c0_23 = arith.constant 0 : index
    %c0_24 = arith.constant 0 : index
    %32 = vector.load %arg4[%c0_22, %c0_23, %c0_24] : memref<1x1x32xf32, #tpu.memory_space<vmem>>, vector<1x1x32xf32>
    %33 = vector.shape_cast %32 : vector<1x1x32xf32> to vector<1x32xf32>
    %cst_25 = arith.constant 9.99999974E-6 : f32
    %34 = vector.broadcast %cst_25 : f32 to vector<1x32xf32>
    %35 = arith.addf %31, %34 : vector<1x32xf32>
    %36 = math.rsqrt %35 : vector<1x32xf32>
    %37 = arith.mulf %33, %36 : vector<1x32xf32>
    %38 = arith.truncf %37 : vector<1x32xf32> to vector<1x32xbf16>
    %c0_26 = arith.constant 0 : index
    %c0_27 = arith.constant 0 : index
    %39 = vector.load %arg14[%c0_26, %c0_27] : memref<2048x32xbf16, #tpu.memory_space<vmem>>, vector<2048x32xbf16>
    %cst_28 = arith.constant dense<0.000000e+00> : vector<1x2048xf32>
    %40 = tpu.matmul %38, %39, %cst_28 {dimension_numbers = #tpu.dot_dimension_numbers<[1], [1], [0], [0], [0, 0, 1, 0], [], []>} : vector<1x32xbf16>, vector<2048x32xbf16>, vector<1x2048xf32> -> vector<1x2048xf32>
    %41 = vector.broadcast %40 : vector<1x2048xf32> to vector<2x2048xf32>
    %42 = arith.mulf %23, %41 : vector<2x2048xf32>
    %c0_29 = arith.constant 0 : index
    %c0_30 = arith.constant 0 : index
    %c0_31 = arith.constant 0 : index
    %43 = vector.load %arg5[%c0_29, %c0_30, %c0_31] : memref<1x1x2048xf32, #tpu.memory_space<vmem>>, vector<1x1x2048xf32>
    %44 = vector.shape_cast %43 : vector<1x1x2048xf32> to vector<1x2048xf32>
    %45 = vector.broadcast %44 : vector<1x2048xf32> to vector<2x2048xf32>
    %46 = arith.addf %42, %45 : vector<2x2048xf32>
    %47 = vector.extract_strided_slice %46 {offsets = [0, 0], sizes = [2, 512], strides = [1, 1]} : vector<2x2048xf32> to vector<2x512xf32>
    %48 = vector.extract_strided_slice %46 {offsets = [0, 512], sizes = [2, 512], strides = [1, 1]} : vector<2x2048xf32> to vector<2x512xf32>
    %49 = arith.maximumf %47, %48 : vector<2x512xf32>
    %50 = vector.extract_strided_slice %46 {offsets = [0, 1024], sizes = [2, 512], strides = [1, 1]} : vector<2x2048xf32> to vector<2x512xf32>
    %51 = vector.extract_strided_slice %46 {offsets = [0, 1536], sizes = [2, 512], strides = [1, 1]} : vector<2x2048xf32> to vector<2x512xf32>
    %52 = arith.maximumf %50, %51 : vector<2x512xf32>
    %53 = arith.maximumf %49, %52 : vector<2x512xf32>
    %54 = arith.truncf %53 : vector<2x512xf32> to vector<2x512xbf16>
    %c0_32 = arith.constant 0 : index
    %c0_33 = arith.constant 0 : index
    %c0_34 = arith.constant 0 : index
    %55 = vector.load %arg6[%c0_32, %c0_33, %c0_34] : memref<1x512x1024xbf16, #tpu.memory_space<vmem>>, vector<1x512x1024xbf16>
    %56 = vector.shape_cast %55 : vector<1x512x1024xbf16> to vector<512x1024xbf16>
    %cst_35 = arith.constant dense<0.000000e+00> : vector<2x1024xf32>
    %57 = tpu.matmul %54, %56, %cst_35 {dimension_numbers = #tpu.dot_dimension_numbers<[1], [0], [0], [1], [0, 0, 1, 1], [], []>} : vector<2x512xbf16>, vector<512x1024xbf16>, vector<2x1024xf32> -> vector<2x1024xf32>
    %c0_36 = arith.constant 0 : index
    %c0_37 = arith.constant 0 : index
    %c0_38 = arith.constant 0 : index
    %58 = vector.load %arg7[%c0_36, %c0_37, %c0_38] : memref<1x1x1024xf32, #tpu.memory_space<vmem>>, vector<1x1x1024xf32>
    %59 = vector.shape_cast %58 : vector<1x1x1024xf32> to vector<1x1024xf32>
    %60 = vector.broadcast %59 : vector<1x1024xf32> to vector<2x1024xf32>
    %61 = arith.addf %57, %60 : vector<2x1024xf32>
    %cst_39 = arith.constant 0.000000e+00 : f32
    %62 = vector.broadcast %cst_39 : f32 to vector<2x1024xf32>
    %63 = arith.maximumf %61, %62 : vector<2x1024xf32>
    %cst_40 = arith.constant dense<0.000000e+00> : vector<1024xf32>
    %64 = vector.multi_reduction <add>, %63, %cst_40 [0] : vector<2x1024xf32> to vector<1024xf32>
    %65 = vector.shape_cast %64 : vector<1024xf32> to vector<1x1024xf32>
    %66 = arith.truncf %65 : vector<1x1024xf32> to vector<1x1024xbf16>
    %c0_41 = arith.constant 0 : index
    %c0_42 = arith.constant 0 : index
    %67 = vector.load %arg15[%c0_41, %c0_42] : memref<1024x64xbf16, #tpu.memory_space<vmem>>, vector<1024x64xbf16>
    %cst_43 = arith.constant dense<0.000000e+00> : vector<1x64xf32>
    %68 = tpu.matmul %66, %67, %cst_43 {dimension_numbers = #tpu.dot_dimension_numbers<[1], [0], [0], [1], [0, 0, 1, 1], [], []>} : vector<1x1024xbf16>, vector<1024x64xbf16>, vector<1x64xf32> -> vector<1x64xf32>
    %cst_44 = arith.constant 3.125000e-02 : f32
    %69 = vector.broadcast %cst_44 : f32 to vector<1x64xf32>
    %70 = arith.mulf %68, %69 : vector<1x64xf32>
    %71 = arith.truncf %70 : vector<1x64xf32> to vector<1x64xbf16>
    %c0_45 = arith.constant 0 : index
    %c0_46 = arith.constant 0 : index
    %72 = vector.load %arg15[%c0_45, %c0_46] : memref<1024x64xbf16, #tpu.memory_space<vmem>>, vector<1024x64xbf16>
    %cst_47 = arith.constant dense<0.000000e+00> : vector<1x1024xf32>
    %73 = tpu.matmul %71, %72, %cst_47 {dimension_numbers = #tpu.dot_dimension_numbers<[1], [1], [0], [0], [0, 0, 1, 0], [], []>} : vector<1x64xbf16>, vector<1024x64xbf16>, vector<1x1024xf32> -> vector<1x1024xf32>
    %74 = vector.broadcast %73 : vector<1x1024xf32> to vector<2x1024xf32>
    %75 = arith.subf %63, %74 : vector<2x1024xf32>
    %76 = arith.mulf %75, %75 : vector<2x1024xf32>
    %cst_48 = arith.constant dense<0.000000e+00> : vector<1024xf32>
    %77 = vector.multi_reduction <add>, %76, %cst_48 [0] : vector<2x1024xf32> to vector<1024xf32>
    %78 = vector.shape_cast %77 : vector<1024xf32> to vector<1x1024xf32>
    %79 = arith.truncf %78 : vector<1x1024xf32> to vector<1x1024xbf16>
    %c0_49 = arith.constant 0 : index
    %c0_50 = arith.constant 0 : index
    %80 = vector.load %arg15[%c0_49, %c0_50] : memref<1024x64xbf16, #tpu.memory_space<vmem>>, vector<1024x64xbf16>
    %cst_51 = arith.constant dense<0.000000e+00> : vector<1x64xf32>
    %81 = tpu.matmul %79, %80, %cst_51 {dimension_numbers = #tpu.dot_dimension_numbers<[1], [0], [0], [1], [0, 0, 1, 1], [], []>} : vector<1x1024xbf16>, vector<1024x64xbf16>, vector<1x64xf32> -> vector<1x64xf32>
    %cst_52 = arith.constant 3.125000e-02 : f32
    %82 = vector.broadcast %cst_52 : f32 to vector<1x64xf32>
    %83 = arith.mulf %81, %82 : vector<1x64xf32>
    %c0_53 = arith.constant 0 : index
    %c0_54 = arith.constant 0 : index
    %c0_55 = arith.constant 0 : index
    %84 = vector.load %arg8[%c0_53, %c0_54, %c0_55] : memref<1x1x64xf32, #tpu.memory_space<vmem>>, vector<1x1x64xf32>
    %85 = vector.shape_cast %84 : vector<1x1x64xf32> to vector<1x64xf32>
    %cst_56 = arith.constant 9.99999974E-6 : f32
    %86 = vector.broadcast %cst_56 : f32 to vector<1x64xf32>
    %87 = arith.addf %83, %86 : vector<1x64xf32>
    %88 = math.rsqrt %87 : vector<1x64xf32>
    %89 = arith.mulf %85, %88 : vector<1x64xf32>
    %90 = arith.truncf %89 : vector<1x64xf32> to vector<1x64xbf16>
    %c0_57 = arith.constant 0 : index
    %c0_58 = arith.constant 0 : index
    %91 = vector.load %arg15[%c0_57, %c0_58] : memref<1024x64xbf16, #tpu.memory_space<vmem>>, vector<1024x64xbf16>
    %cst_59 = arith.constant dense<0.000000e+00> : vector<1x1024xf32>
    %92 = tpu.matmul %90, %91, %cst_59 {dimension_numbers = #tpu.dot_dimension_numbers<[1], [1], [0], [0], [0, 0, 1, 0], [], []>} : vector<1x64xbf16>, vector<1024x64xbf16>, vector<1x1024xf32> -> vector<1x1024xf32>
    %93 = vector.broadcast %92 : vector<1x1024xf32> to vector<2x1024xf32>
    %94 = arith.mulf %75, %93 : vector<2x1024xf32>
    %c0_60 = arith.constant 0 : index
    %c0_61 = arith.constant 0 : index
    %c0_62 = arith.constant 0 : index
    %95 = vector.load %arg9[%c0_60, %c0_61, %c0_62] : memref<1x1x1024xf32, #tpu.memory_space<vmem>>, vector<1x1x1024xf32>
    %96 = vector.shape_cast %95 : vector<1x1x1024xf32> to vector<1x1024xf32>
    %97 = vector.broadcast %96 : vector<1x1024xf32> to vector<2x1024xf32>
    %98 = arith.addf %94, %97 : vector<2x1024xf32>
    %99 = vector.extract_strided_slice %98 {offsets = [0, 0], sizes = [2, 256], strides = [1, 1]} : vector<2x1024xf32> to vector<2x256xf32>
    %100 = vector.extract_strided_slice %98 {offsets = [0, 256], sizes = [2, 256], strides = [1, 1]} : vector<2x1024xf32> to vector<2x256xf32>
    %101 = arith.maximumf %99, %100 : vector<2x256xf32>
    %102 = vector.extract_strided_slice %98 {offsets = [0, 512], sizes = [2, 256], strides = [1, 1]} : vector<2x1024xf32> to vector<2x256xf32>
    %103 = vector.extract_strided_slice %98 {offsets = [0, 768], sizes = [2, 256], strides = [1, 1]} : vector<2x1024xf32> to vector<2x256xf32>
    %104 = arith.maximumf %102, %103 : vector<2x256xf32>
    %105 = arith.maximumf %101, %104 : vector<2x256xf32>
    %106 = arith.truncf %105 : vector<2x256xf32> to vector<2x256xbf16>
    %c0_63 = arith.constant 0 : index
    %c0_64 = arith.constant 0 : index
    %c0_65 = arith.constant 0 : index
    %107 = vector.load %arg10[%c0_63, %c0_64, %c0_65] : memref<1x256x512xbf16, #tpu.memory_space<vmem>>, vector<1x256x512xbf16>
    %108 = vector.shape_cast %107 : vector<1x256x512xbf16> to vector<256x512xbf16>
    %cst_66 = arith.constant dense<0.000000e+00> : vector<2x512xf32>
    %109 = tpu.matmul %106, %108, %cst_66 {dimension_numbers = #tpu.dot_dimension_numbers<[1], [0], [0], [1], [0, 0, 1, 1], [], []>} : vector<2x256xbf16>, vector<256x512xbf16>, vector<2x512xf32> -> vector<2x512xf32>
    %c0_67 = arith.constant 0 : index
    %c0_68 = arith.constant 0 : index
    %c0_69 = arith.constant 0 : index
    %110 = vector.load %arg11[%c0_67, %c0_68, %c0_69] : memref<1x1x512xf32, #tpu.memory_space<vmem>>, vector<1x1x512xf32>
    %111 = vector.shape_cast %110 : vector<1x1x512xf32> to vector<1x512xf32>
    %112 = vector.broadcast %111 : vector<1x512xf32> to vector<2x512xf32>
    %113 = arith.addf %109, %112 : vector<2x512xf32>
    %cst_70 = arith.constant 0.000000e+00 : f32
    %114 = vector.broadcast %cst_70 : f32 to vector<2x512xf32>
    %115 = arith.maximumf %113, %114 : vector<2x512xf32>
    %116 = vector.extract_strided_slice %115 {offsets = [0, 0], sizes = [2, 128], strides = [1, 1]} : vector<2x512xf32> to vector<2x128xf32>
    %117 = vector.extract_strided_slice %115 {offsets = [0, 128], sizes = [2, 128], strides = [1, 1]} : vector<2x512xf32> to vector<2x128xf32>
    %118 = vector.extract_strided_slice %115 {offsets = [0, 256], sizes = [2, 128], strides = [1, 1]} : vector<2x512xf32> to vector<2x128xf32>
    %119 = vector.extract_strided_slice %115 {offsets = [0, 384], sizes = [2, 128], strides = [1, 1]} : vector<2x512xf32> to vector<2x128xf32>
    %120 = arith.addf %116, %117 : vector<2x128xf32>
    %121 = arith.addf %120, %118 : vector<2x128xf32>
    %122 = arith.addf %121, %119 : vector<2x128xf32>
    %cst_71 = arith.constant dense<0.000000e+00> : vector<128xf32>
    %123 = vector.multi_reduction <add>, %122, %cst_71 [0] : vector<2x128xf32> to vector<128xf32>
    %124 = vector.shape_cast %123 : vector<128xf32> to vector<1x128xf32>
    %cst_72 = arith.constant 1.250000e-01 : f32
    %125 = vector.broadcast %cst_72 : f32 to vector<1x128xf32>
    %126 = arith.mulf %124, %125 : vector<1x128xf32>
    %127 = vector.broadcast %126 : vector<1x128xf32> to vector<2x128xf32>
    %128 = arith.subf %116, %127 : vector<2x128xf32>
    %129 = vector.broadcast %126 : vector<1x128xf32> to vector<2x128xf32>
    %130 = arith.subf %117, %129 : vector<2x128xf32>
    %131 = vector.broadcast %126 : vector<1x128xf32> to vector<2x128xf32>
    %132 = arith.subf %118, %131 : vector<2x128xf32>
    %133 = vector.broadcast %126 : vector<1x128xf32> to vector<2x128xf32>
    %134 = arith.subf %119, %133 : vector<2x128xf32>
    %135 = arith.mulf %128, %128 : vector<2x128xf32>
    %136 = arith.mulf %130, %130 : vector<2x128xf32>
    %137 = arith.addf %135, %136 : vector<2x128xf32>
    %138 = arith.mulf %132, %132 : vector<2x128xf32>
    %139 = arith.addf %137, %138 : vector<2x128xf32>
    %140 = arith.mulf %134, %134 : vector<2x128xf32>
    %141 = arith.addf %139, %140 : vector<2x128xf32>
    %cst_73 = arith.constant dense<0.000000e+00> : vector<128xf32>
    %142 = vector.multi_reduction <add>, %141, %cst_73 [0] : vector<2x128xf32> to vector<128xf32>
    %143 = vector.shape_cast %142 : vector<128xf32> to vector<1x128xf32>
    %cst_74 = arith.constant 1.250000e-01 : f32
    %144 = vector.broadcast %cst_74 : f32 to vector<1x128xf32>
    %145 = arith.mulf %143, %144 : vector<1x128xf32>
    %c0_75 = arith.constant 0 : index
    %c0_76 = arith.constant 0 : index
    %c0_77 = arith.constant 0 : index
    %146 = vector.load %arg12[%c0_75, %c0_76, %c0_77] : memref<1x1x128xf32, #tpu.memory_space<vmem>>, vector<1x1x128xf32>
    %147 = vector.shape_cast %146 : vector<1x1x128xf32> to vector<1x128xf32>
    %cst_78 = arith.constant 9.99999974E-6 : f32
    %148 = vector.broadcast %cst_78 : f32 to vector<1x128xf32>
    %149 = arith.addf %145, %148 : vector<1x128xf32>
    %150 = math.rsqrt %149 : vector<1x128xf32>
    %151 = arith.mulf %147, %150 : vector<1x128xf32>
    %c0_79 = arith.constant 0 : index
    %c0_80 = arith.constant 0 : index
    %c0_81 = arith.constant 0 : index
    %152 = vector.load %arg13[%c0_79, %c0_80, %c0_81] : memref<1x1x128xf32, #tpu.memory_space<vmem>>, vector<1x1x128xf32>
    %153 = vector.shape_cast %152 : vector<1x1x128xf32> to vector<1x128xf32>
    %154 = vector.broadcast %151 : vector<1x128xf32> to vector<2x128xf32>
    %155 = arith.mulf %128, %154 : vector<2x128xf32>
    %156 = vector.broadcast %153 : vector<1x128xf32> to vector<2x128xf32>
    %157 = arith.addf %155, %156 : vector<2x128xf32>
    %158 = vector.broadcast %151 : vector<1x128xf32> to vector<2x128xf32>
    %159 = arith.mulf %130, %158 : vector<2x128xf32>
    %160 = vector.broadcast %153 : vector<1x128xf32> to vector<2x128xf32>
    %161 = arith.addf %159, %160 : vector<2x128xf32>
    %162 = vector.broadcast %151 : vector<1x128xf32> to vector<2x128xf32>
    %163 = arith.mulf %132, %162 : vector<2x128xf32>
    %164 = vector.broadcast %153 : vector<1x128xf32> to vector<2x128xf32>
    %165 = arith.addf %163, %164 : vector<2x128xf32>
    %166 = vector.broadcast %151 : vector<1x128xf32> to vector<2x128xf32>
    %167 = arith.mulf %134, %166 : vector<2x128xf32>
    %168 = vector.broadcast %153 : vector<1x128xf32> to vector<2x128xf32>
    %169 = arith.addf %167, %168 : vector<2x128xf32>
    %170 = arith.maximumf %157, %161 : vector<2x128xf32>
    %171 = arith.maximumf %165, %169 : vector<2x128xf32>
    %172 = arith.maximumf %170, %171 : vector<2x128xf32>
    %c0_i32 = arith.constant 0 : i32
    %173 = arith.cmpi eq, %arg0, %c0_i32 : i32
    %174 = arith.extui %173 : i1 to i32
    %c0_i32_82 = arith.constant 0 : i32
    %175 = arith.cmpi ne, %174, %c0_i32_82 : i32
    scf.if %175 {
      %c0_84 = arith.constant 0 : index
      %c0_85 = arith.constant 0 : index
      %179 = vector.load %arg23[%c0_84, %c0_85] : memref<2x128xf32, #tpu.memory_space<vmem>>, vector<2x128xf32>
      tpu.vector_store %arg23[%c0_84, %c0_85], %172 {strides = array<i32>} : memref<2x128xf32, #tpu.memory_space<vmem>>, vector<2x128xf32>,
    } else {
    }
    %c1_i32 = arith.constant 1 : i32
    %176 = arith.cmpi eq, %arg0, %c1_i32 : i32
    %177 = arith.extui %176 : i1 to i32
    %c0_i32_83 = arith.constant 0 : i32
    %178 = arith.cmpi ne, %177, %c0_i32_83 : i32
    scf.if %178 {
      %c0_84 = arith.constant 0 : index
      %c0_85 = arith.constant 0 : index
      %179 = vector.load %arg23[%c0_84, %c0_85] : memref<2x128xf32, #tpu.memory_space<vmem>>, vector<2x128xf32>
      %180 = tpu.concatenate %179, %172 in 1 : vector<2x128xf32>, vector<2x128xf32> -> vector<2x256xf32>
      %181 = arith.truncf %180 : vector<2x256xf32> to vector<2x256xbf16>
      %c0_86 = arith.constant 0 : index
      %c0_87 = arith.constant 0 : index
      %182 = vector.load %arg16[%c0_86, %c0_87] : memref<256x128xbf16, #tpu.memory_space<vmem>>, vector<256x128xbf16>
      %cst_88 = arith.constant dense<0.000000e+00> : vector<2x128xf32>
      %183 = tpu.matmul %181, %182, %cst_88 {dimension_numbers = #tpu.dot_dimension_numbers<[1], [0], [0], [1], [0, 0, 1, 1], [], []>} : vector<2x256xbf16>, vector<256x128xbf16>, vector<2x128xf32> -> vector<2x128xf32>
      %c0_89 = arith.constant 0 : index
      %c0_90 = arith.constant 0 : index
      %184 = vector.load %arg17[%c0_89, %c0_90] : memref<1x128xf32, #tpu.memory_space<vmem>>, vector<1x128xf32>
      %185 = vector.broadcast %184 : vector<1x128xf32> to vector<2x128xf32>
      %186 = arith.addf %183, %185 : vector<2x128xf32>
      %cst_91 = arith.constant 0.000000e+00 : f32
      %187 = vector.broadcast %cst_91 : f32 to vector<2x128xf32>
      %188 = arith.maximumf %186, %187 : vector<2x128xf32>
      %189 = arith.truncf %188 : vector<2x128xf32> to vector<2x128xbf16>
      %c0_92 = arith.constant 0 : index
      %c0_93 = arith.constant 0 : index
      %190 = vector.load %arg18[%c0_92, %c0_93] : memref<128x128xbf16, #tpu.memory_space<vmem>>, vector<128x128xbf16>
      %cst_94 = arith.constant dense<0.000000e+00> : vector<2x128xf32>
      %191 = tpu.matmul %189, %190, %cst_94 {dimension_numbers = #tpu.dot_dimension_numbers<[1], [0], [0], [1], [0, 0, 1, 1], [], []>} : vector<2x128xbf16>, vector<128x128xbf16>, vector<2x128xf32> -> vector<2x128xf32>
      %c0_95 = arith.constant 0 : index
      %c0_96 = arith.constant 0 : index
      %192 = vector.load %arg19[%c0_95, %c0_96] : memref<1x128xf32, #tpu.memory_space<vmem>>, vector<1x128xf32>
      %193 = vector.broadcast %192 : vector<1x128xf32> to vector<2x128xf32>
      %194 = arith.addf %191, %193 : vector<2x128xf32>
      %cst_97 = arith.constant 0.000000e+00 : f32
      %195 = vector.broadcast %cst_97 : f32 to vector<2x128xf32>
      %196 = arith.maximumf %194, %195 : vector<2x128xf32>
      %197 = arith.truncf %196 : vector<2x128xf32> to vector<2x128xbf16>
      %c0_98 = arith.constant 0 : index
      %c0_99 = arith.constant 0 : index
      %198 = vector.load %arg20[%c0_98, %c0_99] : memref<128x1xbf16, #tpu.memory_space<vmem>>, vector<128x1xbf16>
      %cst_100 = arith.constant dense<0.000000e+00> : vector<2x1xf32>
      %199 = tpu.matmul %197, %198, %cst_100 {dimension_numbers = #tpu.dot_dimension_numbers<[1], [0], [0], [1], [0, 0, 1, 1], [], []>} : vector<2x128xbf16>, vector<128x1xbf16>, vector<2x1xf32> -> vector<2x1xf32>
      %c0_101 = arith.constant 0 : index
      %c0_102 = arith.constant 0 : index
      %200 = vector.load %arg21[%c0_101, %c0_102] : memref<1x1xf32, #tpu.memory_space<vmem>>, vector<1x1xf32>
      %201 = vector.broadcast %200 : vector<1x1xf32> to vector<2x1xf32>
      %202 = arith.addf %199, %201 : vector<2x1xf32>
      %203 = math.absf %202 : vector<2x1xf32>
      %cst_103 = arith.constant 0.000000e+00 : f32
      %204 = vector.broadcast %cst_103 : f32 to vector<2x1xf32>
      %205 = arith.subf %204, %203 : vector<2x1xf32>
      %206 = math.exp %205 : vector<2x1xf32>
      %cst_104 = arith.constant 1.000000e+00 : f32
      %207 = vector.broadcast %cst_104 : f32 to vector<2x1xf32>
      %208 = arith.addf %207, %206 : vector<2x1xf32>
      %209 = tpu.reciprocal %208 {approx = true} : vector<2x1xf32> -> vector<2x1xf32>
      %cst_105 = arith.constant 0.000000e+00 : f32
      %210 = vector.broadcast %cst_105 : f32 to vector<2x1xf32>
      %211 = arith.cmpf oge, %202, %210 : vector<2x1xf32>
      %212 = arith.mulf %206, %209 : vector<2x1xf32>
      %213 = arith.select %211, %209, %212 : vector<2x1xi1>, vector<2x1xf32>
      %c0_106 = arith.constant 0 : index
      %c0_107 = arith.constant 0 : index
      %214 = vector.load %arg22[%c0_106, %c0_107] : memref<2x1xf32, #tpu.memory_space<vmem>>, vector<2x1xf32>
      tpu.vector_store %arg22[%c0_106, %c0_107], %213 {strides = array<i32>} : memref<2x1xf32, #tpu.memory_space<vmem>>, vector<2x1xf32>,
    } else {
    }
    return
  }
  func.func @transform_0(%arg0: i32) -> (i32, i32, i32) {
    %c0_i32 = arith.constant 0 : i32
    %c0_i32_0 = arith.constant 0 : i32
    %c0_i32_1 = arith.constant 0 : i32
    return %arg0, %c0_i32, %c0_i32_0 : i32, i32, i32
  }
  func.func @transform_1(%arg0: i32) -> (i32, i32, i32) {
    %c0_i32 = arith.constant 0 : i32
    %c0_i32_0 = arith.constant 0 : i32
    %c0_i32_1 = arith.constant 0 : i32
    return %arg0, %c0_i32, %c0_i32_0 : i32, i32, i32
  }
  func.func @transform_2(%arg0: i32) -> (i32, i32, i32) {
    %c0_i32 = arith.constant 0 : i32
    %c0_i32_0 = arith.constant 0 : i32
    %c0_i32_1 = arith.constant 0 : i32
    return %arg0, %c0_i32, %c0_i32_0 : i32, i32, i32
  }
  func.func @transform_3(%arg0: i32) -> (i32, i32, i32) {
    %c0_i32 = arith.constant 0 : i32
    %c0_i32_0 = arith.constant 0 : i32
    %c0_i32_1 = arith.constant 0 : i32
    return %arg0, %c0_i32, %c0_i32_0 : i32, i32, i32
  }
  func.func @transform_4(%arg0: i32) -> (i32, i32, i32) {
    %c0_i32 = arith.constant 0 : i32
    %c0_i32_0 = arith.constant 0 : i32
    %c0_i32_1 = arith.constant 0 : i32
    return %arg0, %c0_i32, %c0_i32_0 : i32, i32, i32
  }
  func.func @transform_5(%arg0: i32) -> (i32, i32, i32) {
    %c0_i32 = arith.constant 0 : i32
    %c0_i32_0 = arith.constant 0 : i32
    %c0_i32_1 = arith.constant 0 : i32
    return %arg0, %c0_i32, %c0_i32_0 : i32, i32, i32
  }
  func.func @transform_6(%arg0: i32) -> (i32, i32, i32) {
    %c0_i32 = arith.constant 0 : i32
    %c0_i32_0 = arith.constant 0 : i32
    %c0_i32_1 = arith.constant 0 : i32
    return %arg0, %c0_i32, %c0_i32_0 : i32, i32, i32
  }
  func.func @transform_7(%arg0: i32) -> (i32, i32, i32) {
    %c0_i32 = arith.constant 0 : i32
    %c0_i32_0 = arith.constant 0 : i32
    %c0_i32_1 = arith.constant 0 : i32
    return %arg0, %c0_i32, %c0_i32_0 : i32, i32, i32
  }
  func.func @transform_8(%arg0: i32) -> (i32, i32, i32) {
    %c0_i32 = arith.constant 0 : i32
    %c0_i32_0 = arith.constant 0 : i32
    %c0_i32_1 = arith.constant 0 : i32
    return %arg0, %c0_i32, %c0_i32_0 : i32, i32, i32
  }
  func.func @transform_9(%arg0: i32) -> (i32, i32, i32) {
    %c0_i32 = arith.constant 0 : i32
    %c0_i32_0 = arith.constant 0 : i32
    %c0_i32_1 = arith.constant 0 : i32
    return %arg0, %c0_i32, %c0_i32_0 : i32, i32, i32
  }
  func.func @transform_10(%arg0: i32) -> (i32, i32, i32) {
    %c0_i32 = arith.constant 0 : i32
    %c0_i32_0 = arith.constant 0 : i32
    %c0_i32_1 = arith.constant 0 : i32
    return %arg0, %c0_i32, %c0_i32_0 : i32, i32, i32
  }
  func.func @transform_11(%arg0: i32) -> (i32, i32, i32) {
    %c0_i32 = arith.constant 0 : i32
    %c0_i32_0 = arith.constant 0 : i32
    %c0_i32_1 = arith.constant 0 : i32
    return %arg0, %c0_i32, %c0_i32_0 : i32, i32, i32
  }
  func.func @transform_12(%arg0: i32) -> (i32, i32, i32) {
    %c0_i32 = arith.constant 0 : i32
    %c0_i32_0 = arith.constant 0 : i32
    %c0_i32_1 = arith.constant 0 : i32
    return %arg0, %c0_i32, %c0_i32_0 : i32, i32, i32
  }
  func.func @transform_13(%arg0: i32) -> (i32, i32) {
    %c0_i32 = arith.constant 0 : i32
    %c0_i32_0 = arith.constant 0 : i32
    %c0_i32_1 = arith.constant 0 : i32
    return %c0_i32, %c0_i32_0 : i32, i32
  }
  func.func @transform_14(%arg0: i32) -> (i32, i32) {
    %c0_i32 = arith.constant 0 : i32
    %c0_i32_0 = arith.constant 0 : i32
    %c0_i32_1 = arith.constant 0 : i32
    return %c0_i32, %c0_i32_0 : i32, i32
  }
  func.func @transform_15(%arg0: i32) -> (i32, i32) {
    %c0_i32 = arith.constant 0 : i32
    %c0_i32_0 = arith.constant 0 : i32
    %c0_i32_1 = arith.constant 0 : i32
    return %c0_i32, %c0_i32_0 : i32, i32
  }
  func.func @transform_16(%arg0: i32) -> (i32, i32) {
    %c0_i32 = arith.constant 0 : i32
    %c0_i32_0 = arith.constant 0 : i32
    %c0_i32_1 = arith.constant 0 : i32
    return %c0_i32, %c0_i32_0 : i32, i32
  }
  func.func @transform_17(%arg0: i32) -> (i32, i32) {
    %c0_i32 = arith.constant 0 : i32
    %c0_i32_0 = arith.constant 0 : i32
    %c0_i32_1 = arith.constant 0 : i32
    return %c0_i32, %c0_i32_0 : i32, i32
  }
  func.func @transform_18(%arg0: i32) -> (i32, i32) {
    %c0_i32 = arith.constant 0 : i32
    %c0_i32_0 = arith.constant 0 : i32
    %c0_i32_1 = arith.constant 0 : i32
    return %c0_i32, %c0_i32_0 : i32, i32
  }
  func.func @transform_19(%arg0: i32) -> (i32, i32) {
    %c0_i32 = arith.constant 0 : i32
    %c0_i32_0 = arith.constant 0 : i32
    %c0_i32_1 = arith.constant 0 : i32
    return %c0_i32, %c0_i32_0 : i32, i32
  }
  func.func @transform_20(%arg0: i32) -> (i32, i32) {
    %c0_i32 = arith.constant 0 : i32
    %c0_i32_0 = arith.constant 0 : i32
    %c0_i32_1 = arith.constant 0 : i32
    return %c0_i32, %c0_i32_0 : i32, i32
  }
  func.func @transform_21(%arg0: i32) -> (i32, i32) {
    %c0_i32 = arith.constant 0 : i32
    %c0_i32_0 = arith.constant 0 : i32
    %c0_i32_1 = arith.constant 0 : i32
    return %c0_i32, %c0_i32_0 : i32, i32
  }
}

</mosaic_0001>

<llo_original>
// kernel: squeeze.2
$region0: #{squeeze.2}
  %s0 = inlined_call_operand.vmem [shape: f32[2,1,8,8], index: 0, kind: input, shape index: {}]
  %s1 = inlined_call_operand.vmem [shape: f32[1,2,64], index: 1, kind: output, shape index: {}]
  $region1: #{squeeze.2} parent=0
    #allocation0 [shape = 'u8[4096]{0}', space=vmem, size = 0x1000, scoped, tag = 'scoped mem for output reshape']
    %s2 = smov 3
    %v3 = vld [vmem:[%s0] ss:$8 sm:%s2]
    %vm4 = vcmask 64512
    %5 = vst.msk [vmem:[#allocation0] sm:$0x3] %vm4, %v3
    %s6 = scalar_lea.vmem %s0, 7
    %s7 = smov 3
    %v8 = vld [vmem:[%s6] ss:$8 sm:%s7]
    %9 = vrot.lane.b32.xlu0 %v8, 56
    %v10 = vpop.permute.xlu0 %9
    %vm11 = vcmask 523712
    %12 = vst.msk [vmem:[#allocation0] sm:$0x3] %vm11, %v10
    %s13 = scalar_lea.vmem %s0, 6
    %s14 = smov 3
    %v15 = vld [vmem:[%s13] ss:$8 sm:%s14]
    %16 = vrot.lane.b32.xlu0 %v15, 48
    %v17 = vpop.permute.xlu0 %16
    %vm18 = vcmask 458112
    %19 = vst.msk [vmem:[#allocation0] sm:$0x3] %vm18, %v17
    %s20 = scalar_lea.vmem %s0, 5
    %s21 = smov 3
    %v22 = vld [vmem:[%s20] ss:$8 sm:%s21]
    %23 = vrot.lane.b32.xlu0 %v22, 40
    %v24 = vpop.permute.xlu0 %23
    %vm25 = vcmask 392512
    %26 = vst.msk [vmem:[#allocation0] sm:$0x3] %vm25, %v24
    %s27 = scalar_lea.vmem %s0, 4
    %s28 = smov 3
    %v29 = vld [vmem:[%s27] ss:$8 sm:%s28]
    %30 = vrot.lane.b32.xlu0 %v29, 32
    %v31 = vpop.permute.xlu0 %30
    %vm32 = vcmask 326912
    %33 = vst.msk [vmem:[#allocation0] sm:$0x3] %vm32, %v31
    %s34 = scalar_lea.vmem %s0, 3
    %s35 = smov 3
    %v36 = vld [vmem:[%s34] ss:$8 sm:%s35]
    %37 = vrot.lane.b32.xlu0 %v36, 24
    %v38 = vpop.permute.xlu0 %37
    %vm39 = vcmask 261312
    %40 = vst.msk [vmem:[#allocation0] sm:$0x3] %vm39, %v38
    %s41 = scalar_lea.vmem %s0, 2
    %s42 = smov 3
    %v43 = vld [vmem:[%s41] ss:$8 sm:%s42]
    %44 = vrot.lane.b32.xlu0 %v43, 16
    %v45 = vpop.permute.xlu0 %44
    %vm46 = vcmask 195712
    %47 = vst.msk [vmem:[#allocation0] sm:$0x3] %vm46, %v45
    %s48 = scalar_lea.vmem %s0, 1
    %s49 = smov 3
    %v50 = vld [vmem:[%s48] ss:$8 sm:%s49]
    %51 = vrot.lane.b32.xlu0 %v50, 8
    %v52 = vpop.permute.xlu0 %51
    %vm53 = vcmask 130112
    %54 = vst.msk [vmem:[#allocation0] sm:$0x3] %vm53, %v52
    %s56 = ssub.s32 4, 1
    %v57 = vld [vmem:[#allocation0] sm:%s56]
    %s59 = ssub.s32 4, 1
    %60 = vst [vmem:[%s1] sm:%s59] %v57

// kernel: no_w_net_forward.1
$region0: #{no_w_net_forward.1}
  #allocation0 [shape = 'u32[]', space=smem, size = 0x4, offset = 0x4, fixed_abs, tag = 'smem constant byte address 0x4 - core index']
  #allocation1 [shape = 'u32[72,128]{1,0:T(1,128)}', space=vmem, size = 0x9000, scoped, tag = 'internal scratch']
  #allocation2 [shape = 'f32[2,128]{1,0:T(2,128)}', space=vmem, size = 0x400, scoped, tag = 'scratch operand']
  #allocation3 [shape = 'f32[1,1]{1,0:T(1,128)S(1)}', space=vmem, size = 0x200, scoped, tag = 'scoped memory for no_w_net_forward.1']
  %s0 = inlined_call_operand.vmem [shape: f32[2,2,64], index: 0, kind: input, shape index: {}]
  %s1 = inlined_call_operand.hbm [shape: bf16[2,64,2048], index: 1, kind: input, shape index: {}]
  %s2 = inlined_call_operand.hbm [shape: f32[2,1,2048], index: 2, kind: input, shape index: {}]
  %s3 = inlined_call_operand.hbm [shape: f32[2,1,32], index: 3, kind: input, shape index: {}]
  %s4 = inlined_call_operand.hbm [shape: f32[2,1,2048], index: 4, kind: input, shape index: {}]
  %s5 = inlined_call_operand.hbm [shape: bf16[2,512,1024], index: 5, kind: input, shape index: {}]
  %s6 = inlined_call_operand.hbm [shape: f32[2,1,1024], index: 6, kind: input, shape index: {}]
  %s7 = inlined_call_operand.hbm [shape: f32[2,1,64], index: 7, kind: input, shape index: {}]
  %s8 = inlined_call_operand.hbm [shape: f32[2,1,1024], index: 8, kind: input, shape index: {}]
  %s9 = inlined_call_operand.hbm [shape: bf16[2,256,512], index: 9, kind: input, shape index: {}]
  %s10 = inlined_call_operand.hbm [shape: f32[2,1,512], index: 10, kind: input, shape index: {}]
  %s11 = inlined_call_operand.hbm [shape: f32[2,1,128], index: 11, kind: input, shape index: {}]
  %s12 = inlined_call_operand.hbm [shape: f32[2,1,128], index: 12, kind: input, shape index: {}]
  %s13 = inlined_call_operand.vmem [shape: bf16[2048,32], index: 13, kind: input, shape index: {}]
  %s14 = inlined_call_operand.vmem [shape: bf16[1024,64], index: 14, kind: input, shape index: {}]
  %s15 = inlined_call_operand.hbm [shape: bf16[256,128], index: 15, kind: input, shape index: {}]
  %s16 = inlined_call_operand.hbm [shape: f32[1,128], index: 16, kind: input, shape index: {}]
  %s17 = inlined_call_operand.hbm [shape: bf16[128,128], index: 17, kind: input, shape index: {}]
  %s18 = inlined_call_operand.hbm [shape: f32[1,128], index: 18, kind: input, shape index: {}]
  %s19 = inlined_call_operand.vmem [shape: bf16[128,1], index: 19, kind: input, shape index: {}]
  %s20 = inlined_call_operand.<no memory space> [shape: f32[1,1], index: 20, kind: input, shape index: {}]
  %s21 = inlined_call_operand.vmem [shape: f32[2,1], index: 21, kind: output, shape index: {}]
  %s22 = sld [smem:[#allocation0]]
  $region189: #{no_w_net_forward.1} parent=0
    _
  %s24 = ssub.s32 1, %s22
  %s25 = scalar_select 0, %s24, %s22
  %v26 = vstv %s20
  %27 = vst [vmem:[#allocation3] sm:$0x1] %v26
  $region1: #{no_w_net_forward.1} parent=0
    #allocation4 [shape = 'u8[524288]{0}', space=vmem, size = 0x80000, scoped, tag = 'input window, operand 1']
    #allocation5 [shape = 's32[2]{0}', space=sflag, size = 0x8, scoped, tag = 'scoped memory for no_w_net_forward.1']
    #allocation6 [shape = 'u8[16384]{0}', space=vmem, size = 0x4000, scoped, tag = 'input window, operand 2']
    #allocation7 [shape = 's32[2]{0}', space=sflag, size = 0x8, scoped, tag = 'scoped memory for no_w_net_forward.1']
    #allocation8 [shape = 'u8[1024]{0}', space=vmem, size = 0x400, scoped, tag = 'input window, operand 3']
    #allocation9 [shape = 'u8[16384]{0}', space=vmem, size = 0x4000, scoped, tag = 'input window, operand 4']
    #allocation10 [shape = 's32[2]{0}', space=sflag, size = 0x8, scoped, tag = 'scoped memory for no_w_net_forward.1']
    #allocation11 [shape = 'u8[2097152]{0}', space=vmem, size = 0x200000, scoped, tag = 'input window, operand 5']
    #allocation12 [shape = 'u8[8192]{0}', space=vmem, size = 0x2000, scoped, tag = 'input window, operand 6']
    #allocation13 [shape = 's32[2]{0}', space=sflag, size = 0x8, scoped, tag = 'scoped memory for no_w_net_forward.1']
    #allocation14 [shape = 'u8[1024]{0}', space=vmem, size = 0x400, scoped, tag = 'input window, operand 7']
    #allocation15 [shape = 'u8[8192]{0}', space=vmem, size = 0x2000, scoped, tag = 'input window, operand 8']
    #allocation16 [shape = 's32[2]{0}', space=sflag, size = 0x8, scoped, tag = 'scoped memory for no_w_net_forward.1']
    #allocation17 [shape = 'u8[524288]{0}', space=vmem, size = 0x80000, scoped, tag = 'input window, operand 9']
    #allocation18 [shape = 'u8[4096]{0}', space=vmem, size = 0x1000, scoped, tag = 'input window, operand 10']
    #allocation19 [shape = 's32[2]{0}', space=sflag, size = 0x8, scoped, tag = 'scoped memory for no_w_net_forward.1']
    #allocation20 [shape = 'u8[1024]{0}', space=vmem, size = 0x400, scoped, tag = 'input window, operand 11']
    #allocation21 [shape = 'u8[1024]{0}', space=vmem, size = 0x400, scoped, tag = 'input window, operand 12']
    #allocation22 [shape = 's32[2]{0}', space=sflag, size = 0x8, scoped, tag = 'scoped memory for no_w_net_forward.1']
    #allocation23 [shape = 'u8[65536]{0}', space=vmem, size = 0x10000, scoped, tag = 'input window, operand 15, single buffered']
    #allocation24 [shape = 'u8[512]{0}', space=vmem, size = 0x400, scoped, tag = 'input window, operand 16, single buffered']
    #allocation25 [shape = 's32[1]{0}', space=sflag, size = 0x4, scoped, tag = 'scoped memory for no_w_net_forward.1']
    #allocation26 [shape = 'u8[32768]{0}', space=vmem, size = 0x8000, scoped, tag = 'input window, operand 17, single buffered']
    #allocation27 [shape = 'u8[512]{0}', space=vmem, size = 0x400, scoped, tag = 'input window, operand 18, single buffered']
    #allocation28 [shape = 's32[1]{0}', space=sflag, size = 0x4, scoped, tag = 'scoped memory for no_w_net_forward.1']
    %28 = vsyncpa [#allocation5], 0
    %s29 = scalar_lea.sflag [#allocation5], 1
    %30 = vsyncpa %s29, 0
    %31 = vsyncpa [#allocation7], 0
    %s32 = scalar_lea.sflag [#allocation7], 1
    %33 = vsyncpa %s32, 0
    %34 = vsyncpa [#allocation10], 0
    %s35 = scalar_lea.sflag [#allocation10], 1
    %36 = vsyncpa %s35, 0
    %37 = vsyncpa [#allocation13], 0
    %s38 = scalar_lea.sflag [#allocation13], 1
    %39 = vsyncpa %s38, 0
    %40 = vsyncpa [#allocation16], 0
    %s41 = scalar_lea.sflag [#allocation16], 1
    %42 = vsyncpa %s41, 0
    %43 = vsyncpa [#allocation19], 0
    %s44 = scalar_lea.sflag [#allocation19], 1
    %45 = vsyncpa %s44, 0
    %46 = vsyncpa [#allocation22], 0
    %s47 = scalar_lea.sflag [#allocation22], 1
    %48 = vsyncpa %s47, 0
    %49 = vsyncpa [#allocation25], 0
    %50 = vsyncpa [#allocation28], 0
    loop: start=0, step=1, limit=4
    $region2: #{no_w_net_forward.1} parent=1 // loop_pre_header
      _
    $region3: #{no_w_net_forward.1} parent=1 // loop_header
      %s52 = sphi 0, %s56
      %p53 = scmp.ge.s32.totalorder %s52, 4
      %s62 = sphi 0, %s64
      %s65 = sphi 0, %s62
      %s66 = sphi 0, %s65
      %s82 = sphi 0, %s66
      %s88 = sphi 0, %s90
      %s91 = sphi 0, %s88
      %s92 = sphi 0, %s91
      %s108 = sphi 0, %s92
      %s114 = sphi 0, %s116
      %s117 = sphi 0, %s114
      %s118 = sphi 0, %s117
      %s134 = sphi 0, %s118
      %s140 = sphi 0, %s142
      %s143 = sphi 0, %s140
      %s144 = sphi 0, %s143
      %s160 = sphi 0, %s144
      %s166 = sphi 0, %s168
      %s169 = sphi 0, %s166
      %s170 = sphi 0, %s169
      %s186 = sphi 0, %s170
      %s192 = sphi 0, %s194
      %s195 = sphi 0, %s192
      %s196 = sphi 0, %s195
      %s212 = sphi 0, %s196
      %s218 = sphi 0, %s220
      %s221 = sphi 0, %s218
      %s222 = sphi 0, %s221
      %s238 = sphi 0, %s222
      %s244 = sphi 0, %s246
      %s247 = sphi 0, %s244
      %s248 = sphi 0, %s247
      %s264 = sphi 0, %s248
      %s270 = sphi 0, %s272
      %s273 = sphi 0, %s270
      %s274 = sphi 0, %s273
      %s290 = sphi 0, %s274
      %s296 = sphi 0, %s298
      %s299 = sphi 0, %s296
      %s300 = sphi 0, %s299
      %s316 = sphi 0, %s300
      %s322 = sphi 0, %s324
      %s325 = sphi 0, %s322
      %s326 = sphi 0, %s325
      %s342 = sphi 0, %s326
      %s348 = sphi 0, %s350
      %s351 = sphi 0, %s348
      %s352 = sphi 0, %s351
      %s368 = sphi 0, %s352
      %s374 = sphi 0, %s376
      %s377 = sphi 0, %s374
      %s378 = sphi 0, %s377
      %s394 = sphi 0, %s378
      %s398 = sphi 0, %s398
      %s400 = sphi 0, %s398
      %s401 = sphi 0, %s400
      %s415 = sphi 0, %s401
      %s419 = sphi 0, %s419
      %s421 = sphi 0, %s419
      %s422 = sphi 0, %s421
      %s436 = sphi 0, %s422
      %s440 = sphi 0, %s440
      %s442 = sphi 0, %s440
      %s443 = sphi 0, %s442
      %s457 = sphi 0, %s443
      %s461 = sphi 0, %s461
      %s463 = sphi 0, %s461
      %s464 = sphi 0, %s463
      %s478 = sphi 0, %s464
      %s482 = sphi 0, %s482
      %s484 = sphi 0, %s482
      %s485 = sphi 0, %s484
      %s499 = sphi 0, %s485
      %s503 = sphi 0, %s503
      %s505 = sphi 0, %s503
      %s506 = sphi 0, %s505
      %s520 = sphi 0, %s506
      %s524 = sphi 0, %s524
      %s526 = sphi 0, %s524
      %s527 = sphi 0, %s526
      %s541 = sphi 0, %s527
      %s545 = sphi 0, %s545
      %s547 = sphi 0, %s545
      %s548 = sphi 0, %s547
      %s562 = sphi 0, %s548
      %s566 = sphi 0, %s566
      %s568 = sphi 0, %s566
      %s569 = sphi 0, %s568
      %s583 = sphi 0, %s569
    $region4: #{no_w_net_forward.1} parent=1 // loop_header_branch
      %55 = sbr.rel (%p53) target = $region8
    $region5: #{no_w_net_forward.1} parent=1 // loop_body
      %s57 = ssub.s32 %s52, 1
      %s58 = ssub.s32 %s52, 2
      %s59 = sadd.s32 %s52, 1
      %s60 = ssub.s32 %s52, %s59
      %p61 = scmp.eq.s32.totalorder %s60, 0
      %s63 = sadd.s32 %s62, 1
      %s64 = scalar_select %p61, %s62, %s63
      %p67 = pneg %p61
      %p68 = scmp.eq.s32.totalorder %s52, 1
      %p69 = por %p67, %p68
      %p70 = scmp.ne.s32.totalorder %s62, %s65
      %p71 = scmp.eq.s32.totalorder %s52, 0
      %p72 = por %p70, %p71
      %p73 = scmp.ne.s32.totalorder %s62, %s65
      %p74 = scmp.eq.s32.totalorder %s57, 1
      %p75 = por %p73, %p74
      %p76 = scmp.ne.s32.totalorder %s65, %s66
      %p77 = scmp.eq.s32.totalorder %s57, 0
      %p78 = por %p76, %p77
      %p79 = scmp.ne.s32.totalorder %s65, %s66
      %p80 = scmp.eq.s32.totalorder %s58, 1
      %p81 = por %p79, %p80
      %p83 = scmp.ne.s32.totalorder %s66, %s82
      %p84 = scmp.eq.s32.totalorder %s58, 0
      %p85 = por %p83, %p84
      %s86 = ssub.s32 %s52, %s59
      %p87 = scmp.eq.s32.totalorder %s86, 0
      %s89 = sadd.s32 %s88, 1
      %s90 = scalar_select %p87, %s88, %s89
      %p93 = pneg %p87
      %p94 = scmp.eq.s32.totalorder %s52, 1
      %p95 = por %p93, %p94
      %p96 = scmp.ne.s32.totalorder %s88, %s91
      %p97 = scmp.eq.s32.totalorder %s52, 0
      %p98 = por %p96, %p97
      %p99 = scmp.ne.s32.totalorder %s88, %s91
      %p100 = scmp.eq.s32.totalorder %s57, 1
      %p101 = por %p99, %p100
      %p102 = scmp.ne.s32.totalorder %s91, %s92
      %p103 = scmp.eq.s32.totalorder %s57, 0
      %p104 = por %p102, %p103
      %p105 = scmp.ne.s32.totalorder %s91, %s92
      %p106 = scmp.eq.s32.totalorder %s58, 1
      %p107 = por %p105, %p106
      %p109 = scmp.ne.s32.totalorder %s92, %s108
      %p110 = scmp.eq.s32.totalorder %s58, 0
      %p111 = por %p109, %p110
      %s112 = ssub.s32 %s52, %s59
      %p113 = scmp.eq.s32.totalorder %s112, 0
      %s115 = sadd.s32 %s114, 1
      %s116 = scalar_select %p113, %s114, %s115
      %p119 = pneg %p113
      %p120 = scmp.eq.s32.totalorder %s52, 1
      %p121 = por %p119, %p120
      %p122 = scmp.ne.s32.totalorder %s114, %s117
      %p123 = scmp.eq.s32.totalorder %s52, 0
      %p124 = por %p122, %p123
      %p125 = scmp.ne.s32.totalorder %s114, %s117
      %p126 = scmp.eq.s32.totalorder %s57, 1
      %p127 = por %p125, %p126
      %p128 = scmp.ne.s32.totalorder %s117, %s118
      %p129 = scmp.eq.s32.totalorder %s57, 0
      %p130 = por %p128, %p129
      %p131 = scmp.ne.s32.totalorder %s117, %s118
      %p132 = scmp.eq.s32.totalorder %s58, 1
      %p133 = por %p131, %p132
      %p135 = scmp.ne.s32.totalorder %s118, %s134
      %p136 = scmp.eq.s32.totalorder %s58, 0
      %p137 = por %p135, %p136
      %s138 = ssub.s32 %s52, %s59
      %p139 = scmp.eq.s32.totalorder %s138, 0
      %s141 = sadd.s32 %s140, 1
      %s142 = scalar_select %p139, %s140, %s141
      %p145 = pneg %p139
      %p146 = scmp.eq.s32.totalorder %s52, 1
      %p147 = por %p145, %p146
      %p148 = scmp.ne.s32.totalorder %s140, %s143
      %p149 = scmp.eq.s32.totalorder %s52, 0
      %p150 = por %p148, %p149
      %p151 = scmp.ne.s32.totalorder %s140, %s143
      %p152 = scmp.eq.s32.totalorder %s57, 1
      %p153 = por %p151, %p152
      %p154 = scmp.ne.s32.totalorder %s143, %s144
      %p155 = scmp.eq.s32.totalorder %s57, 0
      %p156 = por %p154, %p155
      %p157 = scmp.ne.s32.totalorder %s143, %s144
      %p158 = scmp.eq.s32.totalorder %s58, 1
      %p159 = por %p157, %p158
      %p161 = scmp.ne.s32.totalorder %s144, %s160
      %p162 = scmp.eq.s32.totalorder %s58, 0
      %p163 = por %p161, %p162
      %s164 = ssub.s32 %s52, %s59
      %p165 = scmp.eq.s32.totalorder %s164, 0
      %s167 = sadd.s32 %s166, 1
      %s168 = scalar_select %p165, %s166, %s167
      %p171 = pneg %p165
      %p172 = scmp.eq.s32.totalorder %s52, 1
      %p173 = por %p171, %p172
      %p174 = scmp.ne.s32.totalorder %s166, %s169
      %p175 = scmp.eq.s32.totalorder %s52, 0
      %p176 = por %p174, %p175
      %p177 = scmp.ne.s32.totalorder %s166, %s169
      %p178 = scmp.eq.s32.totalorder %s57, 1
      %p179 = por %p177, %p178
      %p180 = scmp.ne.s32.totalorder %s169, %s170
      %p181 = scmp.eq.s32.totalorder %s57, 0
      %p182 = por %p180, %p181
      %p183 = scmp.ne.s32.totalorder %s169, %s170
      %p184 = scmp.eq.s32.totalorder %s58, 1
      %p185 = por %p183, %p184
      %p187 = scmp.ne.s32.totalorder %s170, %s186
      %p188 = scmp.eq.s32.totalorder %s58, 0
      %p189 = por %p187, %p188
      %s190 = ssub.s32 %s52, %s59
      %p191 = scmp.eq.s32.totalorder %s190, 0
      %s193 = sadd.s32 %s192, 1
      %s194 = scalar_select %p191, %s192, %s193
      %p197 = pneg %p191
      %p198 = scmp.eq.s32.totalorder %s52, 1
      %p199 = por %p197, %p198
      %p200 = scmp.ne.s32.totalorder %s192, %s195
      %p201 = scmp.eq.s32.totalorder %s52, 0
      %p202 = por %p200, %p201
      %p203 = scmp.ne.s32.totalorder %s192, %s195
      %p204 = scmp.eq.s32.totalorder %s57, 1
      %p205 = por %p203, %p204
      %p206 = scmp.ne.s32.totalorder %s195, %s196
      %p207 = scmp.eq.s32.totalorder %s57, 0
      %p208 = por %p206, %p207
      %p209 = scmp.ne.s32.totalorder %s195, %s196
      %p210 = scmp.eq.s32.totalorder %s58, 1
      %p211 = por %p209, %p210
      %p213 = scmp.ne.s32.totalorder %s196, %s212
      %p214 = scmp.eq.s32.totalorder %s58, 0
      %p215 = por %p213, %p214
      %s216 = ssub.s32 %s52, %s59
      %p217 = scmp.eq.s32.totalorder %s216, 0
      %s219 = sadd.s32 %s218, 1
      %s220 = scalar_select %p217, %s218, %s219
      %p223 = pneg %p217
      %p224 = scmp.eq.s32.totalorder %s52, 1
      %p225 = por %p223, %p224
      %p226 = scmp.ne.s32.totalorder %s218, %s221
      %p227 = scmp.eq.s32.totalorder %s52, 0
      %p228 = por %p226, %p227
      %p229 = scmp.ne.s32.totalorder %s218, %s221
      %p230 = scmp.eq.s32.totalorder %s57, 1
      %p231 = por %p229, %p230
      %p232 = scmp.ne.s32.totalorder %s221, %s222
      %p233 = scmp.eq.s32.totalorder %s57, 0
      %p234 = por %p232, %p233
      %p235 = scmp.ne.s32.totalorder %s221, %s222
      %p236 = scmp.eq.s32.totalorder %s58, 1
      %p237 = por %p235, %p236
      %p239 = scmp.ne.s32.totalorder %s222, %s238
      %p240 = scmp.eq.s32.totalorder %s58, 0
      %p241 = por %p239, %p240
      %s242 = ssub.s32 %s52, %s59
      %p243 = scmp.eq.s32.totalorder %s242, 0
      %s245 = sadd.s32 %s244, 1
      %s246 = scalar_select %p243, %s244, %s245
      %p249 = pneg %p243
      %p250 = scmp.eq.s32.totalorder %s52, 1
      %p251 = por %p249, %p250
      %p252 = scmp.ne.s32.totalorder %s244, %s247
      %p253 = scmp.eq.s32.totalorder %s52, 0
      %p254 = por %p252, %p253
      %p255 = scmp.ne.s32.totalorder %s244, %s247
      %p256 = scmp.eq.s32.totalorder %s57, 1
      %p257 = por %p255, %p256
      %p258 = scmp.ne.s32.totalorder %s247, %s248
      %p259 = scmp.eq.s32.totalorder %s57, 0
      %p260 = por %p258, %p259
      %p261 = scmp.ne.s32.totalorder %s247, %s248
      %p262 = scmp.eq.s32.totalorder %s58, 1
      %p263 = por %p261, %p262
      %p265 = scmp.ne.s32.totalorder %s248, %s264
      %p266 = scmp.eq.s32.totalorder %s58, 0
      %p267 = por %p265, %p266
      %s268 = ssub.s32 %s52, %s59
      %p269 = scmp.eq.s32.totalorder %s268, 0
      %s271 = sadd.s32 %s270, 1
      %s272 = scalar_select %p269, %s270, %s271
      %p275 = pneg %p269
      %p276 = scmp.eq.s32.totalorder %s52, 1
      %p277 = por %p275, %p276
      %p278 = scmp.ne.s32.totalorder %s270, %s273
      %p279 = scmp.eq.s32.totalorder %s52, 0
      %p280 = por %p278, %p279
      %p281 = scmp.ne.s32.totalorder %s270, %s273
      %p282 = scmp.eq.s32.totalorder %s57, 1
      %p283 = por %p281, %p282
      %p284 = scmp.ne.s32.totalorder %s273, %s274
      %p285 = scmp.eq.s32.totalorder %s57, 0
      %p286 = por %p284, %p285
      %p287 = scmp.ne.s32.totalorder %s273, %s274
      %p288 = scmp.eq.s32.totalorder %s58, 1
      %p289 = por %p287, %p288
      %p291 = scmp.ne.s32.totalorder %s274, %s290
      %p292 = scmp.eq.s32.totalorder %s58, 0
      %p293 = por %p291, %p292
      %s294 = ssub.s32 %s52, %s59
      %p295 = scmp.eq.s32.totalorder %s294, 0
      %s297 = sadd.s32 %s296, 1
      %s298 = scalar_select %p295, %s296, %s297
      %p301 = pneg %p295
      %p302 = scmp.eq.s32.totalorder %s52, 1
      %p303 = por %p301, %p302
      %p304 = scmp.ne.s32.totalorder %s296, %s299
      %p305 = scmp.eq.s32.totalorder %s52, 0
      %p306 = por %p304, %p305
      %p307 = scmp.ne.s32.totalorder %s296, %s299
      %p308 = scmp.eq.s32.totalorder %s57, 1
      %p309 = por %p307, %p308
      %p310 = scmp.ne.s32.totalorder %s299, %s300
      %p311 = scmp.eq.s32.totalorder %s57, 0
      %p312 = por %p310, %p311
      %p313 = scmp.ne.s32.totalorder %s299, %s300
      %p314 = scmp.eq.s32.totalorder %s58, 1
      %p315 = por %p313, %p314
      %p317 = scmp.ne.s32.totalorder %s300, %s316
      %p318 = scmp.eq.s32.totalorder %s58, 0
      %p319 = por %p317, %p318
      %s320 = ssub.s32 %s52, %s59
      %p321 = scmp.eq.s32.totalorder %s320, 0
      %s323 = sadd.s32 %s322, 1
      %s324 = scalar_select %p321, %s322, %s323
      %p327 = pneg %p321
      %p328 = scmp.eq.s32.totalorder %s52, 1
      %p329 = por %p327, %p328
      %p330 = scmp.ne.s32.totalorder %s322, %s325
      %p331 = scmp.eq.s32.totalorder %s52, 0
      %p332 = por %p330, %p331
      %p333 = scmp.ne.s32.totalorder %s322, %s325
      %p334 = scmp.eq.s32.totalorder %s57, 1
      %p335 = por %p333, %p334
      %p336 = scmp.ne.s32.totalorder %s325, %s326
      %p337 = scmp.eq.s32.totalorder %s57, 0
      %p338 = por %p336, %p337
      %p339 = scmp.ne.s32.totalorder %s325, %s326
      %p340 = scmp.eq.s32.totalorder %s58, 1
      %p341 = por %p339, %p340
      %p343 = scmp.ne.s32.totalorder %s326, %s342
      %p344 = scmp.eq.s32.totalorder %s58, 0
      %p345 = por %p343, %p344
      %s346 = ssub.s32 %s52, %s59
      %p347 = scmp.eq.s32.totalorder %s346, 0
      %s349 = sadd.s32 %s348, 1
      %s350 = scalar_select %p347, %s348, %s349
      %p353 = pneg %p347
      %p354 = scmp.eq.s32.totalorder %s52, 1
      %p355 = por %p353, %p354
      %p356 = scmp.ne.s32.totalorder %s348, %s351
      %p357 = scmp.eq.s32.totalorder %s52, 0
      %p358 = por %p356, %p357
      %p359 = scmp.ne.s32.totalorder %s348, %s351
      %p360 = scmp.eq.s32.totalorder %s57, 1
      %p361 = por %p359, %p360
      %p362 = scmp.ne.s32.totalorder %s351, %s352
      %p363 = scmp.eq.s32.totalorder %s57, 0
      %p364 = por %p362, %p363
      %p365 = scmp.ne.s32.totalorder %s351, %s352
      %p366 = scmp.eq.s32.totalorder %s58, 1
      %p367 = por %p365, %p366
      %p369 = scmp.ne.s32.totalorder %s352, %s368
      %p370 = scmp.eq.s32.totalorder %s58, 0
      %p371 = por %p369, %p370
      %s372 = ssub.s32 %s52, %s59
      %p373 = scmp.eq.s32.totalorder %s372, 0
      %s375 = sadd.s32 %s374, 1
      %s376 = scalar_select %p373, %s374, %s375
      %p379 = pneg %p373
      %p380 = scmp.eq.s32.totalorder %s52, 1
      %p381 = por %p379, %p380
      %p382 = scmp.ne.s32.totalorder %s374, %s377
      %p383 = scmp.eq.s32.totalorder %s52, 0
      %p384 = por %p382, %p383
      %p385 = scmp.ne.s32.totalorder %s374, %s377
      %p386 = scmp.eq.s32.totalorder %s57, 1
      %p387 = por %p385, %p386
      %p388 = scmp.ne.s32.totalorder %s377, %s378
      %p389 = scmp.eq.s32.totalorder %s57, 0
      %p390 = por %p388, %p389
      %p391 = scmp.ne.s32.totalorder %s377, %s378
      %p392 = scmp.eq.s32.totalorder %s58, 1
      %p393 = por %p391, %p392
      %p395 = scmp.ne.s32.totalorder %s378, %s394
      %p396 = scmp.eq.s32.totalorder %s58, 0
      %p397 = por %p395, %p396
      %s399 = sadd.s32 %s398, 1
      %p402 = scmp.eq.s32.totalorder %s52, 1
      %p403 = scmp.ne.s32.totalorder %s398, %s400
      %p404 = scmp.eq.s32.totalorder %s52, 0
      %p405 = por %p403, %p404
      %p406 = scmp.ne.s32.totalorder %s398, %s400
      %p407 = scmp.eq.s32.totalorder %s57, 1
      %p408 = por %p406, %p407
      %p409 = scmp.ne.s32.totalorder %s400, %s401
      %p410 = scmp.eq.s32.totalorder %s57, 0
      %p411 = por %p409, %p410
      %p412 = scmp.ne.s32.totalorder %s400, %s401
      %p413 = scmp.eq.s32.totalorder %s58, 1
      %p414 = por %p412, %p413
      %p416 = scmp.ne.s32.totalorder %s401, %s415
      %p417 = scmp.eq.s32.totalorder %s58, 0
      %p418 = por %p416, %p417
      %s420 = sadd.s32 %s419, 1
      %p423 = scmp.eq.s32.totalorder %s52, 1
      %p424 = scmp.ne.s32.totalorder %s419, %s421
      %p425 = scmp.eq.s32.totalorder %s52, 0
      %p426 = por %p424, %p425
      %p427 = scmp.ne.s32.totalorder %s419, %s421
      %p428 = scmp.eq.s32.totalorder %s57, 1
      %p429 = por %p427, %p428
      %p430 = scmp.ne.s32.totalorder %s421, %s422
      %p431 = scmp.eq.s32.totalorder %s57, 0
      %p432 = por %p430, %p431
      %p433 = scmp.ne.s32.totalorder %s421, %s422
      %p434 = scmp.eq.s32.totalorder %s58, 1
      %p435 = por %p433, %p434
      %p437 = scmp.ne.s32.totalorder %s422, %s436
      %p438 = scmp.eq.s32.totalorder %s58, 0
      %p439 = por %p437, %p438
      %s441 = sadd.s32 %s440, 1
      %p444 = scmp.eq.s32.totalorder %s52, 1
      %p445 = scmp.ne.s32.totalorder %s440, %s442
      %p446 = scmp.eq.s32.totalorder %s52, 0
      %p447 = por %p445, %p446
      %p448 = scmp.ne.s32.totalorder %s440, %s442
      %p449 = scmp.eq.s32.totalorder %s57, 1
      %p450 = por %p448, %p449
      %p451 = scmp.ne.s32.totalorder %s442, %s443
      %p452 = scmp.eq.s32.totalorder %s57, 0
      %p453 = por %p451, %p452
      %p454 = scmp.ne.s32.totalorder %s442, %s443
      %p455 = scmp.eq.s32.totalorder %s58, 1
      %p456 = por %p454, %p455
      %p458 = scmp.ne.s32.totalorder %s443, %s457
      %p459 = scmp.eq.s32.totalorder %s58, 0
      %p460 = por %p458, %p459
      %s462 = sadd.s32 %s461, 1
      %p465 = scmp.eq.s32.totalorder %s52, 1
      %p466 = scmp.ne.s32.totalorder %s461, %s463
      %p467 = scmp.eq.s32.totalorder %s52, 0
      %p468 = por %p466, %p467
      %p469 = scmp.ne.s32.totalorder %s461, %s463
      %p470 = scmp.eq.s32.totalorder %s57, 1
      %p471 = por %p469, %p470
      %p472 = scmp.ne.s32.totalorder %s463, %s464
      %p473 = scmp.eq.s32.totalorder %s57, 0
      %p474 = por %p472, %p473
      %p475 = scmp.ne.s32.totalorder %s463, %s464
      %p476 = scmp.eq.s32.totalorder %s58, 1
      %p477 = por %p475, %p476
      %p479 = scmp.ne.s32.totalorder %s464, %s478
      %p480 = scmp.eq.s32.totalorder %s58, 0
      %p481 = por %p479, %p480
      %s483 = sadd.s32 %s482, 1
      %p486 = scmp.eq.s32.totalorder %s52, 1
      %p487 = scmp.ne.s32.totalorder %s482, %s484
      %p488 = scmp.eq.s32.totalorder %s52, 0
      %p489 = por %p487, %p488
      %p490 = scmp.ne.s32.totalorder %s482, %s484
      %p491 = scmp.eq.s32.totalorder %s57, 1
      %p492 = por %p490, %p491
      %p493 = scmp.ne.s32.totalorder %s484, %s485
      %p494 = scmp.eq.s32.totalorder %s57, 0
      %p495 = por %p493, %p494
      %p496 = scmp.ne.s32.totalorder %s484, %s485
      %p497 = scmp.eq.s32.totalorder %s58, 1
      %p498 = por %p496, %p497
      %p500 = scmp.ne.s32.totalorder %s485, %s499
      %p501 = scmp.eq.s32.totalorder %s58, 0
      %p502 = por %p500, %p501
      %s504 = sadd.s32 %s503, 1
      %p507 = scmp.eq.s32.totalorder %s52, 1
      %p508 = scmp.ne.s32.totalorder %s503, %s505
      %p509 = scmp.eq.s32.totalorder %s52, 0
      %p510 = por %p508, %p509
      %p511 = scmp.ne.s32.totalorder %s503, %s505
      %p512 = scmp.eq.s32.totalorder %s57, 1
      %p513 = por %p511, %p512
      %p514 = scmp.ne.s32.totalorder %s505, %s506
      %p515 = scmp.eq.s32.totalorder %s57, 0
      %p516 = por %p514, %p515
      %p517 = scmp.ne.s32.totalorder %s505, %s506
      %p518 = scmp.eq.s32.totalorder %s58, 1
      %p519 = por %p517, %p518
      %p521 = scmp.ne.s32.totalorder %s506, %s520
      %p522 = scmp.eq.s32.totalorder %s58, 0
      %p523 = por %p521, %p522
      %s525 = sadd.s32 %s524, 1
      %p528 = scmp.eq.s32.totalorder %s52, 1
      %p529 = scmp.ne.s32.totalorder %s524, %s526
      %p530 = scmp.eq.s32.totalorder %s52, 0
      %p531 = por %p529, %p530
      %p532 = scmp.ne.s32.totalorder %s524, %s526
      %p533 = scmp.eq.s32.totalorder %s57, 1
      %p534 = por %p532, %p533
      %p535 = scmp.ne.s32.totalorder %s526, %s527
      %p536 = scmp.eq.s32.totalorder %s57, 0
      %p537 = por %p535, %p536
      %p538 = scmp.ne.s32.totalorder %s526, %s527
      %p539 = scmp.eq.s32.totalorder %s58, 1
      %p540 = por %p538, %p539
      %p542 = scmp.ne.s32.totalorder %s527, %s541
      %p543 = scmp.eq.s32.totalorder %s58, 0
      %p544 = por %p542, %p543
      %s546 = sadd.s32 %s545, 1
      %p549 = scmp.eq.s32.totalorder %s52, 1
      %p550 = scmp.ne.s32.totalorder %s545, %s547
      %p551 = scmp.eq.s32.totalorder %s52, 0
      %p552 = por %p550, %p551
      %p553 = scmp.ne.s32.totalorder %s545, %s547
      %p554 = scmp.eq.s32.totalorder %s57, 1
      %p555 = por %p553, %p554
      %p556 = scmp.ne.s32.totalorder %s547, %s548
      %p557 = scmp.eq.s32.totalorder %s57, 0
      %p558 = por %p556, %p557
      %p559 = scmp.ne.s32.totalorder %s547, %s548
      %p560 = scmp.eq.s32.totalorder %s58, 1
      %p561 = por %p559, %p560
      %p563 = scmp.ne.s32.totalorder %s548, %s562
      %p564 = scmp.eq.s32.totalorder %s58, 0
      %p565 = por %p563, %p564
      %s567 = sadd.s32 %s566, 1
      %p570 = scmp.eq.s32.totalorder %s52, 1
      %p571 = scmp.ne.s32.totalorder %s566, %s568
      %p572 = scmp.eq.s32.totalorder %s52, 0
      %p573 = por %p571, %p572
      %p574 = scmp.ne.s32.totalorder %s566, %s568
      %p575 = scmp.eq.s32.totalorder %s57, 1
      %p576 = por %p574, %p575
      %p577 = scmp.ne.s32.totalorder %s568, %s569
      %p578 = scmp.eq.s32.totalorder %s57, 0
      %p579 = por %p577, %p578
      %p580 = scmp.ne.s32.totalorder %s568, %s569
      %p581 = scmp.eq.s32.totalorder %s58, 1
      %p582 = por %p580, %p581
      %p584 = scmp.ne.s32.totalorder %s569, %s583
      %p585 = scmp.eq.s32.totalorder %s58, 0
      %p586 = por %p584, %p585
      %p587 = scmp.le.s32.totalorder 1, %s52
      %p588 = scmp.lt.s32.totalorder %s52, 3
      %p589 = pnand %p587, %p588
      %p590 = pneg %p589
      // Predicated region
      $region9: #{no_w_net_forward.1} parent=5 // pred_check
        _
      $region10: #{no_w_net_forward.1} parent=5 // pred_check_branch
        %592 = sbr.rel (%p589) target = $region12
      $region11: #{no_w_net_forward.1} parent=5 // pred_region
        %s593 = ssub.s32 %s52, 1
        // Predicated region
        $region13: #{no_w_net_forward.1} parent=11 // pred_check
          %p594 = pneg %p411
        $region14: #{no_w_net_forward.1} parent=11 // pred_check_branch
          %596 = sbr.rel (%p594) target = $region16
        $region15: #{no_w_net_forward.1} parent=11 // pred_region
          _
        $region16: #{no_w_net_forward.1} parent=11 // pred_fallthru
          _
        // Predicated region
        $region17: #{no_w_net_forward.1} parent=11 // pred_check
          %p597 = pneg %p432
        $region18: #{no_w_net_forward.1} parent=11 // pred_check_branch
          %599 = sbr.rel (%p597) target = $region20
        $region19: #{no_w_net_forward.1} parent=11 // pred_region
          _
        $region20: #{no_w_net_forward.1} parent=11 // pred_fallthru
          _
        // Predicated region
        $region21: #{no_w_net_forward.1} parent=11 // pred_check
          %p600 = pneg %p453
        $region22: #{no_w_net_forward.1} parent=11 // pred_check_branch
          %602 = sbr.rel (%p600) target = $region24
        $region23: #{no_w_net_forward.1} parent=11 // pred_region
          %604 = vsyncadd [#allocation22], 0
          %s605 = sshll.u32 %s15, 4
          %s606 = int_to_ptr.hbm [resolvable:$true] %s605
          %s607 = sshll.u32 [#allocation23], 4
          %s608 = int_to_ptr.vmem [resolvable:$true] %s607
          %613 = dma.hbm_to_vmem [thread:$0]  %s606, 2048, %s608, [#allocation22], 64, 64, 4
        $region24: #{no_w_net_forward.1} parent=11 // pred_fallthru
          _
        // Predicated region
        $region25: #{no_w_net_forward.1} parent=11 // pred_check
          %p614 = pneg %p474
        $region26: #{no_w_net_forward.1} parent=11 // pred_check_branch
          %616 = sbr.rel (%p614) target = $region28
        $region27: #{no_w_net_forward.1} parent=11 // pred_region
          %618 = vsyncadd [#allocation25], 0
          %s620 = sshll.u32 %s16, 4
          %s621 = int_to_ptr.hbm [resolvable:$true] %s620
          %s622 = sshll.u32 [#allocation24], 4
          %s623 = int_to_ptr.vmem [resolvable:$true] %s622
          %625 = dma.hbm_to_vmem [thread:$0]  %s621, 16, %s623, [#allocation25]
        $region28: #{no_w_net_forward.1} parent=11 // pred_fallthru
          _
        // Predicated region
        $region29: #{no_w_net_forward.1} parent=11 // pred_check
          %p626 = pneg %p495
        $region30: #{no_w_net_forward.1} parent=11 // pred_check_branch
          %628 = sbr.rel (%p626) target = $region32
        $region31: #{no_w_net_forward.1} parent=11 // pred_region
          %630 = vsyncadd [#allocation25], 0
          %s631 = sshll.u32 %s17, 4
          %s632 = int_to_ptr.hbm [resolvable:$true] %s631
          %s633 = sshll.u32 [#allocation26], 4
          %s634 = int_to_ptr.vmem [resolvable:$true] %s633
          %639 = dma.hbm_to_vmem [thread:$0]  %s632, 1024, %s634, [#allocation25], 64, 64, 4
        $region32: #{no_w_net_forward.1} parent=11 // pred_fallthru
          _
        // Predicated region
        $region33: #{no_w_net_forward.1} parent=11 // pred_check
          %p640 = pneg %p516
        $region34: #{no_w_net_forward.1} parent=11 // pred_check_branch
          %642 = sbr.rel (%p640) target = $region36
        $region35: #{no_w_net_forward.1} parent=11 // pred_region
          %644 = vsyncadd [#allocation28], 0
          %s646 = sshll.u32 %s18, 4
          %s647 = int_to_ptr.hbm [resolvable:$true] %s646
          %s648 = sshll.u32 [#allocation27], 4
          %s649 = int_to_ptr.vmem [resolvable:$true] %s648
          %651 = dma.hbm_to_vmem [thread:$0]  %s647, 16, %s649, [#allocation28]
        $region36: #{no_w_net_forward.1} parent=11 // pred_fallthru
          _
        // Predicated region
        $region37: #{no_w_net_forward.1} parent=11 // pred_check
          %p652 = pneg %p537
        $region38: #{no_w_net_forward.1} parent=11 // pred_check_branch
          %654 = sbr.rel (%p652) target = $region40
        $region39: #{no_w_net_forward.1} parent=11 // pred_region
          _
        $region40: #{no_w_net_forward.1} parent=11 // pred_fallthru
          _
        // Predicated region
        $region41: #{no_w_net_forward.1} parent=11 // pred_check
          %p655 = pneg %p558
        $region42: #{no_w_net_forward.1} parent=11 // pred_check_branch
          %657 = sbr.rel (%p655) target = $region44
        $region43: #{no_w_net_forward.1} parent=11 // pred_region
          _
        $region44: #{no_w_net_forward.1} parent=11 // pred_fallthru
          _
      $region12: #{no_w_net_forward.1} parent=5 // pred_fallthru
        _
      %p658 = scmp.lt.s32.totalorder %s52, 2
      // Predicated region
      $region45: #{no_w_net_forward.1} parent=5 // pred_check
        %p659 = pneg %p658
      $region46: #{no_w_net_forward.1} parent=5 // pred_check_branch
        %661 = sbr.rel (%p659) target = $region48
      $region47: #{no_w_net_forward.1} parent=5 // pred_region
        // Predicated region
        $region49: #{no_w_net_forward.1} parent=47 // pred_check
          %p662 = pneg %p72
        $region50: #{no_w_net_forward.1} parent=47 // pred_check_branch
          %664 = sbr.rel (%p662) target = $region52
        $region51: #{no_w_net_forward.1} parent=47 // pred_region
          %p665 = scmp.lt.s32.totalorder %s52, 1
          %s666 = scalar_select %p665, %s52, 1
          %s667 = smul.addr %s666, 2
          %s668 = scalar_lea.vmem %s0, %s667
        $region52: #{no_w_net_forward.1} parent=47 // pred_fallthru
          _
        // Predicated region
        $region53: #{no_w_net_forward.1} parent=47 // pred_check
          %p669 = pneg %p98
        $region54: #{no_w_net_forward.1} parent=47 // pred_check_branch
          %671 = sbr.rel (%p669) target = $region56
        $region55: #{no_w_net_forward.1} parent=47 // pred_region
          %s672 = sand.u32 %s88, 1
          %s673 = scalar_lea.sflag [#allocation5], %s672
          %s674 = sand.u32 %s88, 1
          %s675 = smul.addr %s674, 512
          %s676 = scalar_lea.vmem [#allocation4], %s675
          %678 = vsyncadd %s673, 0
          %s679 = smul.addr %s52, 128
          %s680 = smul.addr %s679, 4
          %s681 = scalar_lea.hbm %s1, %s680
          %s682 = sshll.u32 %s681, 4
          %s683 = int_to_ptr.hbm [resolvable:$true] %s682
          %s684 = sshll.u32 %s676, 4
          %s685 = int_to_ptr.vmem [resolvable:$true] %s684
          %690 = dma.hbm_to_vmem [thread:$0]  %s683, 8192, %s685, %s673, 1024, 1024, 64
        $region56: #{no_w_net_forward.1} parent=47 // pred_fallthru
          _
        // Predicated region
        $region57: #{no_w_net_forward.1} parent=47 // pred_check
          %p691 = pneg %p124
        $region58: #{no_w_net_forward.1} parent=47 // pred_check_branch
          %693 = sbr.rel (%p691) target = $region60
        $region59: #{no_w_net_forward.1} parent=47 // pred_region
          %s694 = sand.u32 %s52, 1
          %s695 = scalar_lea.sflag [#allocation7], %s694
          %s696 = sand.u32 %s114, 1
          %s697 = smul.addr %s696, 16
          %s698 = scalar_lea.vmem [#allocation6], %s697
          %700 = vsyncadd %s695, 0
          %s701 = smul.addr %s52, 16
          %s702 = scalar_lea.hbm %s2, %s701
          %s704 = sshll.u32 %s702, 4
          %s705 = int_to_ptr.hbm [resolvable:$true] %s704
          %s706 = sshll.u32 %s698, 4
          %s707 = int_to_ptr.vmem [resolvable:$true] %s706
          %709 = dma.hbm_to_vmem [thread:$0]  %s705, 256, %s707, %s695
        $region60: #{no_w_net_forward.1} parent=47 // pred_fallthru
          _
        // Predicated region
        $region61: #{no_w_net_forward.1} parent=47 // pred_check
          %p710 = pneg %p150
        $region62: #{no_w_net_forward.1} parent=47 // pred_check_branch
          %712 = sbr.rel (%p710) target = $region64
        $region63: #{no_w_net_forward.1} parent=47 // pred_region
          %s713 = sand.u32 %s52, 1
          %s714 = scalar_lea.sflag [#allocation7], %s713
          %s715 = sand.u32 %s140, 1
          %s716 = scalar_lea.vmem [#allocation8], %s715
          %718 = vsyncadd %s714, 0
          %s719 = scalar_lea.hbm %s3, %s52
          %s721 = sshll.u32 %s719, 4
          %s722 = int_to_ptr.hbm [resolvable:$true] %s721
          %s723 = sshll.u32 %s716, 4
          %s724 = int_to_ptr.vmem [resolvable:$true] %s723
          %726 = dma.hbm_to_vmem [thread:$0]  %s722, 16, %s724, %s714
        $region64: #{no_w_net_forward.1} parent=47 // pred_fallthru
          _
        // Predicated region
        $region65: #{no_w_net_forward.1} parent=47 // pred_check
          %p727 = pneg %p176
        $region66: #{no_w_net_forward.1} parent=47 // pred_check_branch
          %729 = sbr.rel (%p727) target = $region68
        $region67: #{no_w_net_forward.1} parent=47 // pred_region
          %s730 = sand.u32 %s52, 1
          %s731 = scalar_lea.sflag [#allocation10], %s730
          %s732 = sand.u32 %s166, 1
          %s733 = smul.addr %s732, 16
          %s734 = scalar_lea.vmem [#allocation9], %s733
          %736 = vsyncadd %s731, 0
          %s737 = smul.addr %s52, 16
          %s738 = scalar_lea.hbm %s4, %s737
          %s740 = sshll.u32 %s738, 4
          %s741 = int_to_ptr.hbm [resolvable:$true] %s740
          %s742 = sshll.u32 %s734, 4
          %s743 = int_to_ptr.vmem [resolvable:$true] %s742
          %745 = dma.hbm_to_vmem [thread:$0]  %s741, 256, %s743, %s731
        $region68: #{no_w_net_forward.1} parent=47 // pred_fallthru
          _
        // Predicated region
        $region69: #{no_w_net_forward.1} parent=47 // pred_check
          %p746 = pneg %p202
        $region70: #{no_w_net_forward.1} parent=47 // pred_check_branch
          %748 = sbr.rel (%p746) target = $region72
        $region71: #{no_w_net_forward.1} parent=47 // pred_region
          %s749 = sand.u32 %s52, 1
          %s750 = scalar_lea.sflag [#allocation10], %s749
          %s751 = sand.u32 %s192, 1
          %s752 = smul.addr %s751, 2048
          %s753 = scalar_lea.vmem [#allocation11], %s752
          %755 = vsyncadd %s750, 0
          %s756 = smul.addr %s52, 512
          %s757 = smul.addr %s756, 4
          %s758 = scalar_lea.hbm %s5, %s757
          %s759 = sshll.u32 %s758, 4
          %s760 = int_to_ptr.hbm [resolvable:$true] %s759
          %s761 = sshll.u32 %s753, 4
          %s762 = int_to_ptr.vmem [resolvable:$true] %s761
          %767 = dma.hbm_to_vmem [thread:$0]  %s760, 32768, %s762, %s750, 512, 512, 32
        $region72: #{no_w_net_forward.1} parent=47 // pred_fallthru
          _
        // Predicated region
        $region73: #{no_w_net_forward.1} parent=47 // pred_check
          %p768 = pneg %p228
        $region74: #{no_w_net_forward.1} parent=47 // pred_check_branch
          %770 = sbr.rel (%p768) target = $region76
        $region75: #{no_w_net_forward.1} parent=47 // pred_region
          %s771 = sand.u32 %s52, 1
          %s772 = scalar_lea.sflag [#allocation13], %s771
          %s773 = sand.u32 %s218, 1
          %s774 = smul.addr %s773, 8
          %s775 = scalar_lea.vmem [#allocation12], %s774
          %777 = vsyncadd %s772, 0
          %s778 = smul.addr %s52, 8
          %s779 = scalar_lea.hbm %s6, %s778
          %s781 = sshll.u32 %s779, 4
          %s782 = int_to_ptr.hbm [resolvable:$true] %s781
          %s783 = sshll.u32 %s775, 4
          %s784 = int_to_ptr.vmem [resolvable:$true] %s783
          %786 = dma.hbm_to_vmem [thread:$0]  %s782, 128, %s784, %s772
        $region76: #{no_w_net_forward.1} parent=47 // pred_fallthru
          _
        // Predicated region
        $region77: #{no_w_net_forward.1} parent=47 // pred_check
          %p787 = pneg %p254
        $region78: #{no_w_net_forward.1} parent=47 // pred_check_branch
          %789 = sbr.rel (%p787) target = $region80
        $region79: #{no_w_net_forward.1} parent=47 // pred_region
          %s790 = sand.u32 %s52, 1
          %s791 = scalar_lea.sflag [#allocation13], %s790
          %s792 = sand.u32 %s244, 1
          %s793 = scalar_lea.vmem [#allocation14], %s792
          %795 = vsyncadd %s791, 0
          %s796 = scalar_lea.hbm %s7, %s52
          %s798 = sshll.u32 %s796, 4
          %s799 = int_to_ptr.hbm [resolvable:$true] %s798
          %s800 = sshll.u32 %s793, 4
          %s801 = int_to_ptr.vmem [resolvable:$true] %s800
          %803 = dma.hbm_to_vmem [thread:$0]  %s799, 16, %s801, %s791
        $region80: #{no_w_net_forward.1} parent=47 // pred_fallthru
          _
        // Predicated region
        $region81: #{no_w_net_forward.1} parent=47 // pred_check
          %p804 = pneg %p280
        $region82: #{no_w_net_forward.1} parent=47 // pred_check_branch
          %806 = sbr.rel (%p804) target = $region84
        $region83: #{no_w_net_forward.1} parent=47 // pred_region
          %s807 = sand.u32 %s52, 1
          %s808 = scalar_lea.sflag [#allocation16], %s807
          %s809 = sand.u32 %s270, 1
          %s810 = smul.addr %s809, 8
          %s811 = scalar_lea.vmem [#allocation15], %s810
          %813 = vsyncadd %s808, 0
          %s814 = smul.addr %s52, 8
          %s815 = scalar_lea.hbm %s8, %s814
          %s817 = sshll.u32 %s815, 4
          %s818 = int_to_ptr.hbm [resolvable:$true] %s817
          %s819 = sshll.u32 %s811, 4
          %s820 = int_to_ptr.vmem [resolvable:$true] %s819
          %822 = dma.hbm_to_vmem [thread:$0]  %s818, 128, %s820, %s808
        $region84: #{no_w_net_forward.1} parent=47 // pred_fallthru
          _
        // Predicated region
        $region85: #{no_w_net_forward.1} parent=47 // pred_check
          %p823 = pneg %p306
        $region86: #{no_w_net_forward.1} parent=47 // pred_check_branch
          %825 = sbr.rel (%p823) target = $region88
        $region87: #{no_w_net_forward.1} parent=47 // pred_region
          %s826 = sand.u32 %s52, 1
          %s827 = scalar_lea.sflag [#allocation16], %s826
          %s828 = sand.u32 %s296, 1
          %s829 = smul.addr %s828, 512
          %s830 = scalar_lea.vmem [#allocation17], %s829
          %832 = vsyncadd %s827, 0
          %s833 = smul.addr %s52, 128
          %s834 = smul.addr %s833, 4
          %s835 = scalar_lea.hbm %s9, %s834
          %s836 = sshll.u32 %s835, 4
          %s837 = int_to_ptr.hbm [resolvable:$true] %s836
          %s838 = sshll.u32 %s830, 4
          %s839 = int_to_ptr.vmem [resolvable:$true] %s838
          %844 = dma.hbm_to_vmem [thread:$0]  %s837, 8192, %s839, %s827, 256, 256, 16
        $region88: #{no_w_net_forward.1} parent=47 // pred_fallthru
          _
        // Predicated region
        $region89: #{no_w_net_forward.1} parent=47 // pred_check
          %p845 = pneg %p332
        $region90: #{no_w_net_forward.1} parent=47 // pred_check_branch
          %847 = sbr.rel (%p845) target = $region92
        $region91: #{no_w_net_forward.1} parent=47 // pred_region
          %s848 = sand.u32 %s52, 1
          %s849 = scalar_lea.sflag [#allocation19], %s848
          %s850 = sand.u32 %s322, 1
          %s851 = smul.addr %s850, 4
          %s852 = scalar_lea.vmem [#allocation18], %s851
          %854 = vsyncadd %s849, 0
          %s855 = smul.addr %s52, 4
          %s856 = scalar_lea.hbm %s10, %s855
          %s858 = sshll.u32 %s856, 4
          %s859 = int_to_ptr.hbm [resolvable:$true] %s858
          %s860 = sshll.u32 %s852, 4
          %s861 = int_to_ptr.vmem [resolvable:$true] %s860
          %863 = dma.hbm_to_vmem [thread:$0]  %s859, 64, %s861, %s849
        $region92: #{no_w_net_forward.1} parent=47 // pred_fallthru
          _
        // Predicated region
        $region93: #{no_w_net_forward.1} parent=47 // pred_check
          %p864 = pneg %p358
        $region94: #{no_w_net_forward.1} parent=47 // pred_check_branch
          %866 = sbr.rel (%p864) target = $region96
        $region95: #{no_w_net_forward.1} parent=47 // pred_region
          %s867 = sand.u32 %s52, 1
          %s868 = scalar_lea.sflag [#allocation19], %s867
          %s869 = sand.u32 %s348, 1
          %s870 = scalar_lea.vmem [#allocation20], %s869
          %872 = vsyncadd %s868, 0
          %s873 = scalar_lea.hbm %s11, %s52
          %s875 = sshll.u32 %s873, 4
          %s876 = int_to_ptr.hbm [resolvable:$true] %s875
          %s877 = sshll.u32 %s870, 4
          %s878 = int_to_ptr.vmem [resolvable:$true] %s877
          %880 = dma.hbm_to_vmem [thread:$0]  %s876, 16, %s878, %s868
        $region96: #{no_w_net_forward.1} parent=47 // pred_fallthru
          _
        // Predicated region
        $region97: #{no_w_net_forward.1} parent=47 // pred_check
          %p881 = pneg %p384
        $region98: #{no_w_net_forward.1} parent=47 // pred_check_branch
          %883 = sbr.rel (%p881) target = $region100
        $region99: #{no_w_net_forward.1} parent=47 // pred_region
          %s884 = sand.u32 %s52, 1
          %s885 = scalar_lea.sflag [#allocation22], %s884
          %s886 = sand.u32 %s374, 1
          %s887 = scalar_lea.vmem [#allocation21], %s886
          %889 = vsyncadd %s885, 0
          %s890 = scalar_lea.hbm %s12, %s52
          %s892 = sshll.u32 %s890, 4
          %s893 = int_to_ptr.hbm [resolvable:$true] %s892
          %s894 = sshll.u32 %s887, 4
          %s895 = int_to_ptr.vmem [resolvable:$true] %s894
          %897 = dma.hbm_to_vmem [thread:$0]  %s893, 16, %s895, %s885
        $region100: #{no_w_net_forward.1} parent=47 // pred_fallthru
          _
      $region48: #{no_w_net_forward.1} parent=5 // pred_fallthru
        _
      %p898 = scmp.le.s32.totalorder 1, %s52
      %p899 = scmp.lt.s32.totalorder %s52, 3
      %p900 = pnand %p898, %p899
      %p901 = pneg %p900
      // Predicated region
      $region101: #{no_w_net_forward.1} parent=5 // pred_check
        _
      $region102: #{no_w_net_forward.1} parent=5 // pred_check_branch
        %903 = sbr.rel (%p900) target = $region104
      $region103: #{no_w_net_forward.1} parent=5 // pred_region
        %s904 = ssub.s32 %s52, 1
        %s905 = sand.u32 %s91, 1
        %s906 = scalar_lea.sflag [#allocation5], %s905
        %s907 = sand.u32 %s91, 1
        %s908 = smul.addr %s907, 512
        %s909 = scalar_lea.vmem [#allocation4], %s908
        // Predicated region
        $region105: #{no_w_net_forward.1} parent=103 // pred_check
          %p910 = pneg %p104
        $region106: #{no_w_net_forward.1} parent=103 // pred_check_branch
          %912 = sbr.rel (%p910) target = $region108
        $region107: #{no_w_net_forward.1} parent=103 // pred_region
          %914 = dma.done %s906, 8192
        $region108: #{no_w_net_forward.1} parent=103 // pred_fallthru
          _
        %s915 = sand.u32 %s57, 1
        %s916 = scalar_lea.sflag [#allocation7], %s915
        %s917 = sand.u32 %s117, 1
        %s918 = smul.addr %s917, 16
        %s919 = scalar_lea.vmem [#allocation6], %s918
        // Predicated region
        $region109: #{no_w_net_forward.1} parent=103 // pred_check
          %p920 = pneg %p130
        $region110: #{no_w_net_forward.1} parent=103 // pred_check_branch
          %922 = sbr.rel (%p920) target = $region112
        $region111: #{no_w_net_forward.1} parent=103 // pred_region
          %924 = dma.done %s916, 256
        $region112: #{no_w_net_forward.1} parent=103 // pred_fallthru
          _
        %s925 = sand.u32 %s57, 1
        %s926 = scalar_lea.sflag [#allocation7], %s925
        %s927 = sand.u32 %s143, 1
        %s928 = scalar_lea.vmem [#allocation8], %s927
        // Predicated region
        $region113: #{no_w_net_forward.1} parent=103 // pred_check
          %p929 = pneg %p156
        $region114: #{no_w_net_forward.1} parent=103 // pred_check_branch
          %931 = sbr.rel (%p929) target = $region116
        $region115: #{no_w_net_forward.1} parent=103 // pred_region
          %933 = dma.done %s926, 16
        $region116: #{no_w_net_forward.1} parent=103 // pred_fallthru
          _
        %s934 = sand.u32 %s57, 1
        %s935 = scalar_lea.sflag [#allocation10], %s934
        %s936 = sand.u32 %s169, 1
        %s937 = smul.addr %s936, 16
        %s938 = scalar_lea.vmem [#allocation9], %s937
        // Predicated region
        $region117: #{no_w_net_forward.1} parent=103 // pred_check
          %p939 = pneg %p182
        $region118: #{no_w_net_forward.1} parent=103 // pred_check_branch
          %941 = sbr.rel (%p939) target = $region120
        $region119: #{no_w_net_forward.1} parent=103 // pred_region
          %943 = dma.done %s935, 256
        $region120: #{no_w_net_forward.1} parent=103 // pred_fallthru
          _
        %s944 = sand.u32 %s57, 1
        %s945 = scalar_lea.sflag [#allocation10], %s944
        %s946 = sand.u32 %s195, 1
        %s947 = smul.addr %s946, 2048
        %s948 = scalar_lea.vmem [#allocation11], %s947
        // Predicated region
        $region121: #{no_w_net_forward.1} parent=103 // pred_check
          %p949 = pneg %p208
        $region122: #{no_w_net_forward.1} parent=103 // pred_check_branch
          %951 = sbr.rel (%p949) target = $region124
        $region123: #{no_w_net_forward.1} parent=103 // pred_region
          %953 = dma.done %s945, 32768
        $region124: #{no_w_net_forward.1} parent=103 // pred_fallthru
          _
        %s954 = sand.u32 %s57, 1
        %s955 = scalar_lea.sflag [#allocation13], %s954
        %s956 = sand.u32 %s221, 1
        %s957 = smul.addr %s956, 8
        %s958 = scalar_lea.vmem [#allocation12], %s957
        // Predicated region
        $region125: #{no_w_net_forward.1} parent=103 // pred_check
          %p959 = pneg %p234
        $region126: #{no_w_net_forward.1} parent=103 // pred_check_branch
          %961 = sbr.rel (%p959) target = $region128
        $region127: #{no_w_net_forward.1} parent=103 // pred_region
          %963 = dma.done %s955, 128
        $region128: #{no_w_net_forward.1} parent=103 // pred_fallthru
          _
        %s964 = sand.u32 %s57, 1
        %s965 = scalar_lea.sflag [#allocation13], %s964
        %s966 = sand.u32 %s247, 1
        %s967 = scalar_lea.vmem [#allocation14], %s966
        // Predicated region
        $region129: #{no_w_net_forward.1} parent=103 // pred_check
          %p968 = pneg %p260
        $region130: #{no_w_net_forward.1} parent=103 // pred_check_branch
          %970 = sbr.rel (%p968) target = $region132
        $region131: #{no_w_net_forward.1} parent=103 // pred_region
          %972 = dma.done %s965, 16
        $region132: #{no_w_net_forward.1} parent=103 // pred_fallthru
          _
        %s973 = sand.u32 %s57, 1
        %s974 = scalar_lea.sflag [#allocation16], %s973
        %s975 = sand.u32 %s273, 1
        %s976 = smul.addr %s975, 8
        %s977 = scalar_lea.vmem [#allocation15], %s976
        // Predicated region
        $region133: #{no_w_net_forward.1} parent=103 // pred_check
          %p978 = pneg %p286
        $region134: #{no_w_net_forward.1} parent=103 // pred_check_branch
          %980 = sbr.rel (%p978) target = $region136
        $region135: #{no_w_net_forward.1} parent=103 // pred_region
          %982 = dma.done %s974, 128
        $region136: #{no_w_net_forward.1} parent=103 // pred_fallthru
          _
        %s983 = sand.u32 %s57, 1
        %s984 = scalar_lea.sflag [#allocation16], %s983
        %s985 = sand.u32 %s299, 1
        %s986 = smul.addr %s985, 512
        %s987 = scalar_lea.vmem [#allocation17], %s986
        // Predicated region
        $region137: #{no_w_net_forward.1} parent=103 // pred_check
          %p988 = pneg %p312
        $region138: #{no_w_net_forward.1} parent=103 // pred_check_branch
          %990 = sbr.rel (%p988) target = $region140
        $region139: #{no_w_net_forward.1} parent=103 // pred_region
          %992 = dma.done %s984, 8192
        $region140: #{no_w_net_forward.1} parent=103 // pred_fallthru
          _
        %s993 = sand.u32 %s57, 1
        %s994 = scalar_lea.sflag [#allocation19], %s993
        %s995 = sand.u32 %s325, 1
        %s996 = smul.addr %s995, 4
        %s997 = scalar_lea.vmem [#allocation18], %s996
        // Predicated region
        $region141: #{no_w_net_forward.1} parent=103 // pred_check
          %p998 = pneg %p338
        $region142: #{no_w_net_forward.1} parent=103 // pred_check_branch
          %1000 = sbr.rel (%p998) target = $region144
        $region143: #{no_w_net_forward.1} parent=103 // pred_region
          %1002 = dma.done %s994, 64
        $region144: #{no_w_net_forward.1} parent=103 // pred_fallthru
          _
        %s1003 = sand.u32 %s57, 1
        %s1004 = scalar_lea.sflag [#allocation19], %s1003
        %s1005 = sand.u32 %s351, 1
        %s1006 = scalar_lea.vmem [#allocation20], %s1005
        // Predicated region
        $region145: #{no_w_net_forward.1} parent=103 // pred_check
          %p1007 = pneg %p364
        $region146: #{no_w_net_forward.1} parent=103 // pred_check_branch
          %1009 = sbr.rel (%p1007) target = $region148
        $region147: #{no_w_net_forward.1} parent=103 // pred_region
          %1011 = dma.done %s1004, 16
        $region148: #{no_w_net_forward.1} parent=103 // pred_fallthru
          _
        %s1012 = sand.u32 %s57, 1
        %s1013 = scalar_lea.sflag [#allocation22], %s1012
        %s1014 = sand.u32 %s377, 1
        %s1015 = scalar_lea.vmem [#allocation21], %s1014
        // Predicated region
        $region149: #{no_w_net_forward.1} parent=103 // pred_check
          %p1016 = pneg %p390
        $region150: #{no_w_net_forward.1} parent=103 // pred_check_branch
          %1018 = sbr.rel (%p1016) target = $region152
        $region151: #{no_w_net_forward.1} parent=103 // pred_region
          %1020 = dma.done %s1013, 16
        $region152: #{no_w_net_forward.1} parent=103 // pred_fallthru
          _
        // Predicated region
        $region153: #{no_w_net_forward.1} parent=103 // pred_check
          %p1021 = pneg %p453
        $region154: #{no_w_net_forward.1} parent=103 // pred_check_branch
          %1023 = sbr.rel (%p1021) target = $region156
        $region155: #{no_w_net_forward.1} parent=103 // pred_region
          %1025 = dma.done [#allocation22], 2048
        $region156: #{no_w_net_forward.1} parent=103 // pred_fallthru
          _
        // Predicated region
        $region157: #{no_w_net_forward.1} parent=103 // pred_check
          %p1026 = pneg %p474
        $region158: #{no_w_net_forward.1} parent=103 // pred_check_branch
          %1028 = sbr.rel (%p1026) target = $region160
        $region159: #{no_w_net_forward.1} parent=103 // pred_region
          %1030 = dma.done [#allocation25], 16
        $region160: #{no_w_net_forward.1} parent=103 // pred_fallthru
          _
        // Predicated region
        $region161: #{no_w_net_forward.1} parent=103 // pred_check
          %p1031 = pneg %p495
        $region162: #{no_w_net_forward.1} parent=103 // pred_check_branch
          %1033 = sbr.rel (%p1031) target = $region164
        $region163: #{no_w_net_forward.1} parent=103 // pred_region
          %1035 = dma.done [#allocation25], 1024
        $region164: #{no_w_net_forward.1} parent=103 // pred_fallthru
          _
        // Predicated region
        $region165: #{no_w_net_forward.1} parent=103 // pred_check
          %p1036 = pneg %p516
        $region166: #{no_w_net_forward.1} parent=103 // pred_check_branch
          %1038 = sbr.rel (%p1036) target = $region168
        $region167: #{no_w_net_forward.1} parent=103 // pred_region
          %1040 = dma.done [#allocation28], 16
        $region168: #{no_w_net_forward.1} parent=103 // pred_fallthru
          _
        %p1041 = scmp.lt.s32.totalorder %s57, 1
        %s1042 = scalar_select %p1041, %s57, 1
        %s1043 = smul.addr %s1042, 2
        %s1044 = scalar_lea.vmem %s0, %s1043
        %p1045 = pneg %p78
        %p1046 = pneg %p75
        %s1047 = sand.u32 %s91, 1
        %s1048 = scalar_lea.sflag [#allocation5], %s1047
        %s1049 = sand.u32 %s91, 1
        %s1050 = smul.addr %s1049, 512
        %s1051 = scalar_lea.vmem [#allocation4], %s1050
        %p1052 = pneg %p104
        %p1053 = pneg %p101
        %s1054 = sand.u32 %s57, 1
        %s1055 = scalar_lea.sflag [#allocation7], %s1054
        %s1056 = sand.u32 %s117, 1
        %s1057 = smul.addr %s1056, 16
        %s1058 = scalar_lea.vmem [#allocation6], %s1057
        %p1059 = pneg %p130
        %p1060 = pneg %p127
        %s1061 = sand.u32 %s57, 1
        %s1062 = scalar_lea.sflag [#allocation7], %s1061
        %s1063 = sand.u32 %s143, 1
        %s1064 = scalar_lea.vmem [#allocation8], %s1063
        %p1065 = pneg %p156
        %p1066 = pneg %p153
        %s1067 = sand.u32 %s57, 1
        %s1068 = scalar_lea.sflag [#allocation10], %s1067
        %s1069 = sand.u32 %s169, 1
        %s1070 = smul.addr %s1069, 16
        %s1071 = scalar_lea.vmem [#allocation9], %s1070
        %p1072 = pneg %p182
        %p1073 = pneg %p179
        %s1074 = sand.u32 %s57, 1
        %s1075 = scalar_lea.sflag [#allocation10], %s1074
        %s1076 = sand.u32 %s195, 1
        %s1077 = smul.addr %s1076, 2048
        %s1078 = scalar_lea.vmem [#allocation11], %s1077
        %p1079 = pneg %p208
        %p1080 = pneg %p205
        %s1081 = sand.u32 %s57, 1
        %s1082 = scalar_lea.sflag [#allocation13], %s1081
        %s1083 = sand.u32 %s221, 1
        %s1084 = smul.addr %s1083, 8
        %s1085 = scalar_lea.vmem [#allocation12], %s1084
        %p1086 = pneg %p234
        %p1087 = pneg %p231
        %s1088 = sand.u32 %s57, 1
        %s1089 = scalar_lea.sflag [#allocation13], %s1088
        %s1090 = sand.u32 %s247, 1
        %s1091 = scalar_lea.vmem [#allocation14], %s1090
        %p1092 = pneg %p260
        %p1093 = pneg %p257
        %s1094 = sand.u32 %s57, 1
        %s1095 = scalar_lea.sflag [#allocation16], %s1094
        %s1096 = sand.u32 %s273, 1
        %s1097 = smul.addr %s1096, 8
        %s1098 = scalar_lea.vmem [#allocation15], %s1097
        %p1099 = pneg %p286
        %p1100 = pneg %p283
        %s1101 = sand.u32 %s57, 1
        %s1102 = scalar_lea.sflag [#allocation16], %s1101
        %s1103 = sand.u32 %s299, 1
        %s1104 = smul.addr %s1103, 512
        %s1105 = scalar_lea.vmem [#allocation17], %s1104
        %p1106 = pneg %p312
        %p1107 = pneg %p309
        %s1108 = sand.u32 %s57, 1
        %s1109 = scalar_lea.sflag [#allocation19], %s1108
        %s1110 = sand.u32 %s325, 1
        %s1111 = smul.addr %s1110, 4
        %s1112 = scalar_lea.vmem [#allocation18], %s1111
        %p1113 = pneg %p338
        %p1114 = pneg %p335
        %s1115 = sand.u32 %s57, 1
        %s1116 = scalar_lea.sflag [#allocation19], %s1115
        %s1117 = sand.u32 %s351, 1
        %s1118 = scalar_lea.vmem [#allocation20], %s1117
        %p1119 = pneg %p364
        %p1120 = pneg %p361
        %s1121 = sand.u32 %s57, 1
        %s1122 = scalar_lea.sflag [#allocation22], %s1121
        %s1123 = sand.u32 %s377, 1
        %s1124 = scalar_lea.vmem [#allocation21], %s1123
        %p1125 = pneg %p390
        %p1126 = pneg %p387
        %p1127 = pneg %p411
        %p1128 = pneg %p408
        %p1129 = pneg %p432
        %p1130 = pneg %p429
        %p1131 = pneg %p453
        %p1132 = pneg %p450
        %p1133 = pneg %p474
        %p1134 = pneg %p471
        %p1135 = pneg %p495
        %p1136 = pneg %p492
        %p1137 = pneg %p516
        %p1138 = pneg %p513
        %p1139 = pneg %p537
        %p1140 = pneg %p534
        %p1141 = pneg %p558
        %p1142 = pneg %p555
        %p1143 = pneg %p579
        %p1144 = pneg %p576
        %p1145 = scmp.lt.s32.totalorder %s57, 1
        %s1146 = scalar_select %p1145, %s57, 1
        %s1147 = smul.addr %s1146, 2
        %s1148 = scalar_lea.vmem %s0, %s1147
        %v1150 = vld [vmem:[%s1148] sm:$0x3]
        %v1151 = vpack.c.bf16 %v1150, %v1150
        %v1152 = vld [vmem:[%s909] sm:$0xff]
        %v1153 = vld [vmem:[%s909 + $0x8] sm:$0xff]
        %v1154 = vld [vmem:[%s909 + $0x10] sm:$0xff]
        %v1155 = vld [vmem:[%s909 + $0x18] sm:$0xff]
        %v1156 = vld [vmem:[%s909 + $0x20] sm:$0xff]
        %v1157 = vld [vmem:[%s909 + $0x28] sm:$0xff]
        %v1158 = vld [vmem:[%s909 + $0x30] sm:$0xff]
        %v1159 = vld [vmem:[%s909 + $0x38] sm:$0xff]
        %v1160 = vld [vmem:[%s909 + $0x40] sm:$0xff]
        %v1161 = vld [vmem:[%s909 + $0x48] sm:$0xff]
        %v1162 = vld [vmem:[%s909 + $0x50] sm:$0xff]
        %v1163 = vld [vmem:[%s909 + $0x58] sm:$0xff]
        %v1164 = vld [vmem:[%s909 + $0x60] sm:$0xff]
        %v1165 = vld [vmem:[%s909 + $0x68] sm:$0xff]
        %v1166 = vld [vmem:[%s909 + $0x70] sm:$0xff]
        %v1167 = vld [vmem:[%s909 + $0x78] sm:$0xff]
        %v1168 = vld [vmem:[%s909 + $0x80] sm:$0xff]
        %v1169 = vld [vmem:[%s909 + $0x88] sm:$0xff]
        %v1170 = vld [vmem:[%s909 + $0x90] sm:$0xff]
        %v1171 = vld [vmem:[%s909 + $0x98] sm:$0xff]
        %v1172 = vld [vmem:[%s909 + $0xa0] sm:$0xff]
        %v1173 = vld [vmem:[%s909 + $0xa8] sm:$0xff]
        %v1174 = vld [vmem:[%s909 + $0xb0] sm:$0xff]
        %v1175 = vld [vmem:[%s909 + $0xb8] sm:$0xff]
        %v1176 = vld [vmem:[%s909 + $0xc0] sm:$0xff]
        %v1177 = vld [vmem:[%s909 + $0xc8] sm:$0xff]
        %v1178 = vld [vmem:[%s909 + $0xd0] sm:$0xff]
        %v1179 = vld [vmem:[%s909 + $0xd8] sm:$0xff]
        %v1180 = vld [vmem:[%s909 + $0xe0] sm:$0xff]
        %v1181 = vld [vmem:[%s909 + $0xe8] sm:$0xff]
        %v1182 = vld [vmem:[%s909 + $0xf0] sm:$0xff]
        %v1183 = vld [vmem:[%s909 + $0xf8] sm:$0xff]
        %v1184 = vld [vmem:[%s909 + $0x100] sm:$0xff]
        %v1185 = vld [vmem:[%s909 + $0x108] sm:$0xff]
        %v1186 = vld [vmem:[%s909 + $0x110] sm:$0xff]
        %v1187 = vld [vmem:[%s909 + $0x118] sm:$0xff]
        %v1188 = vld [vmem:[%s909 + $0x120] sm:$0xff]
        %v1189 = vld [vmem:[%s909 + $0x128] sm:$0xff]
        %v1190 = vld [vmem:[%s909 + $0x130] sm:$0xff]
        %v1191 = vld [vmem:[%s909 + $0x138] sm:$0xff]
        %v1192 = vld [vmem:[%s909 + $0x140] sm:$0xff]
        %v1193 = vld [vmem:[%s909 + $0x148] sm:$0xff]
        %v1194 = vld [vmem:[%s909 + $0x150] sm:$0xff]
        %v1195 = vld [vmem:[%s909 + $0x158] sm:$0xff]
        %v1196 = vld [vmem:[%s909 + $0x160] sm:$0xff]
        %v1197 = vld [vmem:[%s909 + $0x168] sm:$0xff]
        %v1198 = vld [vmem:[%s909 + $0x170] sm:$0xff]
        %v1199 = vld [vmem:[%s909 + $0x178] sm:$0xff]
        %v1200 = vld [vmem:[%s909 + $0x180] sm:$0xff]
        %v1201 = vld [vmem:[%s909 + $0x188] sm:$0xff]
        %v1202 = vld [vmem:[%s909 + $0x190] sm:$0xff]
        %v1203 = vld [vmem:[%s909 + $0x198] sm:$0xff]
        %v1204 = vld [vmem:[%s909 + $0x1a0] sm:$0xff]
        %v1205 = vld [vmem:[%s909 + $0x1a8] sm:$0xff]
        %v1206 = vld [vmem:[%s909 + $0x1b0] sm:$0xff]
        %v1207 = vld [vmem:[%s909 + $0x1b8] sm:$0xff]
        %v1208 = vld [vmem:[%s909 + $0x1c0] sm:$0xff]
        %v1209 = vld [vmem:[%s909 + $0x1c8] sm:$0xff]
        %v1210 = vld [vmem:[%s909 + $0x1d0] sm:$0xff]
        %v1211 = vld [vmem:[%s909 + $0x1d8] sm:$0xff]
        %v1212 = vld [vmem:[%s909 + $0x1e0] sm:$0xff]
        %v1213 = vld [vmem:[%s909 + $0x1e8] sm:$0xff]
        %v1214 = vld [vmem:[%s909 + $0x1f0] sm:$0xff]
        %v1215 = vld [vmem:[%s909 + $0x1f8] sm:$0xff]
        %v1216 = vld [vmem:[%s919] sm:$0xff]
        %v1217 = vld [vmem:[%s919 + $0x8] sm:$0xff]
        %v1220 = vperm.slane %v1216, 0
        %v1221 = vperm.slane %v1216, 1
        %v1222 = vperm.slane %v1216, 2
        %v1223 = vperm.slane %v1216, 3
        %v1224 = vperm.slane %v1216, 4
        %v1225 = vperm.slane %v1216, 5
        %v1226 = vperm.slane %v1216, 6
        %v1227 = vperm.slane %v1216, 7
        %v1228 = vperm.slane %v1217, 0
        %v1229 = vperm.slane %v1217, 1
        %v1230 = vperm.slane %v1217, 2
        %v1231 = vperm.slane %v1217, 3
        %v1232 = vperm.slane %v1217, 4
        %v1233 = vperm.slane %v1217, 5
        %v1234 = vperm.slane %v1217, 6
        %v1235 = vperm.slane %v1217, 7
        %v1316 = vunpack.c.l.b16 %v1152
        %v1317 = vunpack.c.h.b16 %v1152
        %v1318 = vunpack.c.l.b16 %v1153
        %v1319 = vunpack.c.h.b16 %v1153
        %v1320 = vunpack.c.l.b16 %v1154
        %v1321 = vunpack.c.h.b16 %v1154
        %v1322 = vunpack.c.l.b16 %v1155
        %v1323 = vunpack.c.h.b16 %v1155
        %v1324 = vunpack.c.l.b16 %v1156
        %v1325 = vunpack.c.h.b16 %v1156
        %v1326 = vunpack.c.l.b16 %v1157
        %v1327 = vunpack.c.h.b16 %v1157
        %v1328 = vunpack.c.l.b16 %v1158
        %v1329 = vunpack.c.h.b16 %v1158
        %v1330 = vunpack.c.l.b16 %v1159
        %v1331 = vunpack.c.h.b16 %v1159
        %v1332 = vunpack.c.l.b16 %v1160
        %v1333 = vunpack.c.h.b16 %v1160
        %v1334 = vunpack.c.l.b16 %v1161
        %v1335 = vunpack.c.h.b16 %v1161
        %v1336 = vunpack.c.l.b16 %v1162
        %v1337 = vunpack.c.h.b16 %v1162
        %v1338 = vunpack.c.l.b16 %v1163
        %v1339 = vunpack.c.h.b16 %v1163
        %v1340 = vunpack.c.l.b16 %v1164
        %v1341 = vunpack.c.h.b16 %v1164
        %v1342 = vunpack.c.l.b16 %v1165
        %v1343 = vunpack.c.h.b16 %v1165
        %v1344 = vunpack.c.l.b16 %v1166
        %v1345 = vunpack.c.h.b16 %v1166
        %v1346 = vunpack.c.l.b16 %v1167
        %v1347 = vunpack.c.h.b16 %v1167
        %v1348 = vunpack.c.l.b16 %v1168
        %v1349 = vunpack.c.h.b16 %v1168
        %v1350 = vunpack.c.l.b16 %v1169
        %v1351 = vunpack.c.h.b16 %v1169
        %v1352 = vunpack.c.l.b16 %v1170
        %v1353 = vunpack.c.h.b16 %v1170
        %v1354 = vunpack.c.l.b16 %v1171
        %v1355 = vunpack.c.h.b16 %v1171
        %v1356 = vunpack.c.l.b16 %v1172
        %v1357 = vunpack.c.h.b16 %v1172
        %v1358 = vunpack.c.l.b16 %v1173
        %v1359 = vunpack.c.h.b16 %v1173
        %v1360 = vunpack.c.l.b16 %v1174
        %v1361 = vunpack.c.h.b16 %v1174
        %v1362 = vunpack.c.l.b16 %v1175
        %v1363 = vunpack.c.h.b16 %v1175
        %v1364 = vunpack.c.l.b16 %v1176
        %v1365 = vunpack.c.h.b16 %v1176
        %v1366 = vunpack.c.l.b16 %v1177
        %v1367 = vunpack.c.h.b16 %v1177
        %v1368 = vunpack.c.l.b16 %v1178
        %v1369 = vunpack.c.h.b16 %v1178
        %v1370 = vunpack.c.l.b16 %v1179
        %v1371 = vunpack.c.h.b16 %v1179
        %v1372 = vunpack.c.l.b16 %v1180
        %v1373 = vunpack.c.h.b16 %v1180
        %v1374 = vunpack.c.l.b16 %v1181
        %v1375 = vunpack.c.h.b16 %v1181
        %v1376 = vunpack.c.l.b16 %v1182
        %v1377 = vunpack.c.h.b16 %v1182
        %v1378 = vunpack.c.l.b16 %v1183
        %v1379 = vunpack.c.h.b16 %v1183
        %v1380 = vunpack.c.l.b16 %v1184
        %v1381 = vunpack.c.h.b16 %v1184
        %v1382 = vunpack.c.l.b16 %v1185
        %v1383 = vunpack.c.h.b16 %v1185
        %v1384 = vunpack.c.l.b16 %v1186
        %v1385 = vunpack.c.h.b16 %v1186
        %v1386 = vunpack.c.l.b16 %v1187
        %v1387 = vunpack.c.h.b16 %v1187
        %v1388 = vunpack.c.l.b16 %v1188
        %v1389 = vunpack.c.h.b16 %v1188
        %v1390 = vunpack.c.l.b16 %v1189
        %v1391 = vunpack.c.h.b16 %v1189
        %v1392 = vunpack.c.l.b16 %v1190
        %v1393 = vunpack.c.h.b16 %v1190
        %v1394 = vunpack.c.l.b16 %v1191
        %v1395 = vunpack.c.h.b16 %v1191
        %v1396 = vunpack.c.l.b16 %v1192
        %v1397 = vunpack.c.h.b16 %v1192
        %v1398 = vunpack.c.l.b16 %v1193
        %v1399 = vunpack.c.h.b16 %v1193
        %v1400 = vunpack.c.l.b16 %v1194
        %v1401 = vunpack.c.h.b16 %v1194
        %v1402 = vunpack.c.l.b16 %v1195
        %v1403 = vunpack.c.h.b16 %v1195
        %v1404 = vunpack.c.l.b16 %v1196
        %v1405 = vunpack.c.h.b16 %v1196
        %v1406 = vunpack.c.l.b16 %v1197
        %v1407 = vunpack.c.h.b16 %v1197
        %v1408 = vunpack.c.l.b16 %v1198
        %v1409 = vunpack.c.h.b16 %v1198
        %v1410 = vunpack.c.l.b16 %v1199
        %v1411 = vunpack.c.h.b16 %v1199
        %v1412 = vunpack.c.l.b16 %v1200
        %v1413 = vunpack.c.h.b16 %v1200
        %v1414 = vunpack.c.l.b16 %v1201
        %v1415 = vunpack.c.h.b16 %v1201
        %v1416 = vunpack.c.l.b16 %v1202
        %v1417 = vunpack.c.h.b16 %v1202
        %v1418 = vunpack.c.l.b16 %v1203
        %v1419 = vunpack.c.h.b16 %v1203
        %v1420 = vunpack.c.l.b16 %v1204
        %v1421 = vunpack.c.h.b16 %v1204
        %v1422 = vunpack.c.l.b16 %v1205
        %v1423 = vunpack.c.h.b16 %v1205
        %v1424 = vunpack.c.l.b16 %v1206
        %v1425 = vunpack.c.h.b16 %v1206
        %v1426 = vunpack.c.l.b16 %v1207
        %v1427 = vunpack.c.h.b16 %v1207
        %v1428 = vunpack.c.l.b16 %v1208
        %v1429 = vunpack.c.h.b16 %v1208
        %v1430 = vunpack.c.l.b16 %v1209
        %v1431 = vunpack.c.h.b16 %v1209
        %v1432 = vunpack.c.l.b16 %v1210
        %v1433 = vunpack.c.h.b16 %v1210
        %v1434 = vunpack.c.l.b16 %v1211
        %v1435 = vunpack.c.h.b16 %v1211
        %v1436 = vunpack.c.l.b16 %v1212
        %v1437 = vunpack.c.h.b16 %v1212
        %v1438 = vunpack.c.l.b16 %v1213
        %v1439 = vunpack.c.h.b16 %v1213
        %v1440 = vunpack.c.l.b16 %v1214
        %v1441 = vunpack.c.h.b16 %v1214
        %v1442 = vunpack.c.l.b16 %v1215
        %v1443 = vunpack.c.h.b16 %v1215
        %v1444 = vpack.c.b16 %v1332, %v1316
        %v1445 = vpack.c.b16 %v1333, %v1317
        %v1446 = vpack.c.b16 %v1334, %v1318
        %v1447 = vpack.c.b16 %v1335, %v1319
        %v1448 = vpack.c.b16 %v1336, %v1320
        %v1449 = vpack.c.b16 %v1337, %v1321
        %v1450 = vpack.c.b16 %v1338, %v1322
        %v1451 = vpack.c.b16 %v1339, %v1323
        %v1452 = vpack.c.b16 %v1340, %v1324
        %v1453 = vpack.c.b16 %v1341, %v1325
        %v1454 = vpack.c.b16 %v1342, %v1326
        %v1455 = vpack.c.b16 %v1343, %v1327
        %v1456 = vpack.c.b16 %v1344, %v1328
        %v1457 = vpack.c.b16 %v1345, %v1329
        %v1458 = vpack.c.b16 %v1346, %v1330
        %v1459 = vpack.c.b16 %v1347, %v1331
        %v1460 = vpack.c.b16 %v1364, %v1348
        %v1461 = vpack.c.b16 %v1365, %v1349
        %v1462 = vpack.c.b16 %v1366, %v1350
        %v1463 = vpack.c.b16 %v1367, %v1351
        %v1464 = vpack.c.b16 %v1368, %v1352
        %v1465 = vpack.c.b16 %v1369, %v1353
        %v1466 = vpack.c.b16 %v1370, %v1354
        %v1467 = vpack.c.b16 %v1371, %v1355
        %v1468 = vpack.c.b16 %v1372, %v1356
        %v1469 = vpack.c.b16 %v1373, %v1357
        %v1470 = vpack.c.b16 %v1374, %v1358
        %v1471 = vpack.c.b16 %v1375, %v1359
        %v1472 = vpack.c.b16 %v1376, %v1360
        %v1473 = vpack.c.b16 %v1377, %v1361
        %v1474 = vpack.c.b16 %v1378, %v1362
        %v1475 = vpack.c.b16 %v1379, %v1363
        %v1476 = vpack.c.b16 %v1396, %v1380
        %v1477 = vpack.c.b16 %v1397, %v1381
        %v1478 = vpack.c.b16 %v1398, %v1382
        %v1479 = vpack.c.b16 %v1399, %v1383
        %v1480 = vpack.c.b16 %v1400, %v1384
        %v1481 = vpack.c.b16 %v1401, %v1385
        %v1482 = vpack.c.b16 %v1402, %v1386
        %v1483 = vpack.c.b16 %v1403, %v1387
        %v1484 = vpack.c.b16 %v1404, %v1388
        %v1485 = vpack.c.b16 %v1405, %v1389
        %v1486 = vpack.c.b16 %v1406, %v1390
        %v1487 = vpack.c.b16 %v1407, %v1391
        %v1488 = vpack.c.b16 %v1408, %v1392
        %v1489 = vpack.c.b16 %v1409, %v1393
        %v1490 = vpack.c.b16 %v1410, %v1394
        %v1491 = vpack.c.b16 %v1411, %v1395
        %v1492 = vpack.c.b16 %v1428, %v1412
        %v1493 = vpack.c.b16 %v1429, %v1413
        %v1494 = vpack.c.b16 %v1430, %v1414
        %v1495 = vpack.c.b16 %v1431, %v1415
        %v1496 = vpack.c.b16 %v1432, %v1416
        %v1497 = vpack.c.b16 %v1433, %v1417
        %v1498 = vpack.c.b16 %v1434, %v1418
        %v1499 = vpack.c.b16 %v1435, %v1419
        %v1500 = vpack.c.b16 %v1436, %v1420
        %v1501 = vpack.c.b16 %v1437, %v1421
        %v1502 = vpack.c.b16 %v1438, %v1422
        %v1503 = vpack.c.b16 %v1439, %v1423
        %v1504 = vpack.c.b16 %v1440, %v1424
        %v1505 = vpack.c.b16 %v1441, %v1425
        %v1506 = vpack.c.b16 %v1442, %v1426
        %v1507 = vpack.c.b16 %v1443, %v1427
        %vm1572 = vcmask 523264
        %v1574 = vsel %vm1572, %v1151, 0
        %1576 = vmatpush.bf16.msra.mxu0 0
        %1577 = vmatpush.bf16.msra.mxu0 0
        %1578 = vmatpush.bf16.msra.mxu0 0
        %1579 = vmatpush.bf16.msra.mxu0 0
        %1580 = vmatpush.bf16.msra.mxu0 %v1492
        %1581 = vmatpush.bf16.msra.mxu0 %v1476
        %1582 = vmatpush.bf16.msra.mxu0 %v1460
        %1583 = vmatpush.bf16.msra.mxu0 %v1444
        %1584 = vmatmul.bf16.gmra.mxu0 %v1574
        %v1585 = vpop.f32.mrf.mxu0
        %v1586 = vadd.f32 %v1220, %v1585
        %v1587 = vpop.f32.mrf.mxu0
        %1588 = vdwg.mxu0
        %1589 = vmatpush.bf16.msra.mxu0 0
        %1590 = vmatpush.bf16.msra.mxu0 0
        %1591 = vmatpush.bf16.msra.mxu0 0
        %1592 = vmatpush.bf16.msra.mxu0 0
        %1593 = vmatpush.bf16.msra.mxu0 %v1493
        %1594 = vmatpush.bf16.msra.mxu0 %v1477
        %1595 = vmatpush.bf16.msra.mxu0 %v1461
        %1596 = vmatpush.bf16.msra.mxu0 %v1445
        %1597 = vmatmul.bf16.gmra.mxu0 %v1574
        %v1598 = vpop.f32.mrf.mxu0
        %v1599 = vadd.f32 %v1221, %v1598
        %v1600 = vpop.f32.mrf.mxu0
        %1601 = vdwg.mxu0
        %1602 = vmatpush.bf16.msra.mxu0 0
        %1603 = vmatpush.bf16.msra.mxu0 0
        %1604 = vmatpush.bf16.msra.mxu0 0
        %1605 = vmatpush.bf16.msra.mxu0 0
        %1606 = vmatpush.bf16.msra.mxu0 %v1494
        %1607 = vmatpush.bf16.msra.mxu0 %v1478
        %1608 = vmatpush.bf16.msra.mxu0 %v1462
        %1609 = vmatpush.bf16.msra.mxu0 %v1446
        %1610 = vmatmul.bf16.gmra.mxu0 %v1574
        %v1611 = vpop.f32.mrf.mxu0
        %v1612 = vadd.f32 %v1222, %v1611
        %v1613 = vpop.f32.mrf.mxu0
        %1614 = vdwg.mxu0
        %1615 = vmatpush.bf16.msra.mxu0 0
        %1616 = vmatpush.bf16.msra.mxu0 0
        %1617 = vmatpush.bf16.msra.mxu0 0
        %1618 = vmatpush.bf16.msra.mxu0 0
        %1619 = vmatpush.bf16.msra.mxu0 %v1495
        %1620 = vmatpush.bf16.msra.mxu0 %v1479
        %1621 = vmatpush.bf16.msra.mxu0 %v1463
        %1622 = vmatpush.bf16.msra.mxu0 %v1447
        %1623 = vmatmul.bf16.gmra.mxu0 %v1574
        %v1624 = vpop.f32.mrf.mxu0
        %v1625 = vadd.f32 %v1223, %v1624
        %v1626 = vpop.f32.mrf.mxu0
        %1627 = vdwg.mxu0
        %1628 = vmatpush.bf16.msra.mxu0 0
        %1629 = vmatpush.bf16.msra.mxu0 0
        %1630 = vmatpush.bf16.msra.mxu0 0
        %1631 = vmatpush.bf16.msra.mxu0 0
        %1632 = vmatpush.bf16.msra.mxu0 %v1496
        %1633 = vmatpush.bf16.msra.mxu0 %v1480
        %1634 = vmatpush.bf16.msra.mxu0 %v1464
        %1635 = vmatpush.bf16.msra.mxu0 %v1448
        %1636 = vmatmul.bf16.gmra.mxu0 %v1574
        %v1637 = vpop.f32.mrf.mxu0
        %v1638 = vadd.f32 %v1224, %v1637
        %v1639 = vpop.f32.mrf.mxu0
        %1640 = vdwg.mxu0
        %1641 = vmatpush.bf16.msra.mxu0 0
        %1642 = vmatpush.bf16.msra.mxu0 0
        %1643 = vmatpush.bf16.msra.mxu0 0
        %1644 = vmatpush.bf16.msra.mxu0 0
        %1645 = vmatpush.bf16.msra.mxu0 %v1497
        %1646 = vmatpush.bf16.msra.mxu0 %v1481
        %1647 = vmatpush.bf16.msra.mxu0 %v1465
        %1648 = vmatpush.bf16.msra.mxu0 %v1449
        %1649 = vmatmul.bf16.gmra.mxu0 %v1574
        %v1650 = vpop.f32.mrf.mxu0
        %v1651 = vadd.f32 %v1225, %v1650
        %v1652 = vpop.f32.mrf.mxu0
        %1653 = vdwg.mxu0
        %1654 = vmatpush.bf16.msra.mxu0 0
        %1655 = vmatpush.bf16.msra.mxu0 0
        %1656 = vmatpush.bf16.msra.mxu0 0
        %1657 = vmatpush.bf16.msra.mxu0 0
        %1658 = vmatpush.bf16.msra.mxu0 %v1498
        %1659 = vmatpush.bf16.msra.mxu0 %v1482
        %1660 = vmatpush.bf16.msra.mxu0 %v1466
        %1661 = vmatpush.bf16.msra.mxu0 %v1450
        %1662 = vmatmul.bf16.gmra.mxu0 %v1574
        %v1663 = vpop.f32.mrf.mxu0
        %v1664 = vadd.f32 %v1226, %v1663
        %v1665 = vpop.f32.mrf.mxu0
        %1666 = vdwg.mxu0
        %1667 = vmatpush.bf16.msra.mxu0 0
        %1668 = vmatpush.bf16.msra.mxu0 0
        %1669 = vmatpush.bf16.msra.mxu0 0
        %1670 = vmatpush.bf16.msra.mxu0 0
        %1671 = vmatpush.bf16.msra.mxu0 %v1499
        %1672 = vmatpush.bf16.msra.mxu0 %v1483
        %1673 = vmatpush.bf16.msra.mxu0 %v1467
        %1674 = vmatpush.bf16.msra.mxu0 %v1451
        %1675 = vmatmul.bf16.gmra.mxu0 %v1574
        %v1676 = vpop.f32.mrf.mxu0
        %v1677 = vadd.f32 %v1227, %v1676
        %v1678 = vpop.f32.mrf.mxu0
        %1679 = vdwg.mxu0
        %1680 = vmatpush.bf16.msra.mxu0 0
        %1681 = vmatpush.bf16.msra.mxu0 0
        %1682 = vmatpush.bf16.msra.mxu0 0
        %1683 = vmatpush.bf16.msra.mxu0 0
        %1684 = vmatpush.bf16.msra.mxu0 %v1500
        %1685 = vmatpush.bf16.msra.mxu0 %v1484
        %1686 = vmatpush.bf16.msra.mxu0 %v1468
        %1687 = vmatpush.bf16.msra.mxu0 %v1452
        %1688 = vmatmul.bf16.gmra.mxu0 %v1574
        %v1689 = vpop.f32.mrf.mxu0
        %v1690 = vadd.f32 %v1228, %v1689
        %v1691 = vpop.f32.mrf.mxu0
        %1692 = vdwg.mxu0
        %1693 = vmatpush.bf16.msra.mxu0 0
        %1694 = vmatpush.bf16.msra.mxu0 0
        %1695 = vmatpush.bf16.msra.mxu0 0
        %1696 = vmatpush.bf16.msra.mxu0 0
        %1697 = vmatpush.bf16.msra.mxu0 %v1501
        %1698 = vmatpush.bf16.msra.mxu0 %v1485
        %1699 = vmatpush.bf16.msra.mxu0 %v1469
        %1700 = vmatpush.bf16.msra.mxu0 %v1453
        %1701 = vmatmul.bf16.gmra.mxu0 %v1574
        %v1702 = vpop.f32.mrf.mxu0
        %v1703 = vadd.f32 %v1229, %v1702
        %v1704 = vpop.f32.mrf.mxu0
        %1705 = vdwg.mxu0
        %1706 = vmatpush.bf16.msra.mxu0 0
        %1707 = vmatpush.bf16.msra.mxu0 0
        %1708 = vmatpush.bf16.msra.mxu0 0
        %1709 = vmatpush.bf16.msra.mxu0 0
        %1710 = vmatpush.bf16.msra.mxu0 %v1502
        %1711 = vmatpush.bf16.msra.mxu0 %v1486
        %1712 = vmatpush.bf16.msra.mxu0 %v1470
        %1713 = vmatpush.bf16.msra.mxu0 %v1454
        %1714 = vmatmul.bf16.gmra.mxu0 %v1574
        %v1715 = vpop.f32.mrf.mxu0
        %v1716 = vadd.f32 %v1230, %v1715
        %v1717 = vpop.f32.mrf.mxu0
        %1718 = vdwg.mxu0
        %1719 = vmatpush.bf16.msra.mxu0 0
        %1720 = vmatpush.bf16.msra.mxu0 0
        %1721 = vmatpush.bf16.msra.mxu0 0
        %1722 = vmatpush.bf16.msra.mxu0 0
        %1723 = vmatpush.bf16.msra.mxu0 %v1503
        %1724 = vmatpush.bf16.msra.mxu0 %v1487
        %1725 = vmatpush.bf16.msra.mxu0 %v1471
        %1726 = vmatpush.bf16.msra.mxu0 %v1455
        %1727 = vmatmul.bf16.gmra.mxu0 %v1574
        %v1728 = vpop.f32.mrf.mxu0
        %v1729 = vadd.f32 %v1231, %v1728
        %v1730 = vpop.f32.mrf.mxu0
        %1731 = vdwg.mxu0
        %1732 = vmatpush.bf16.msra.mxu0 0
        %1733 = vmatpush.bf16.msra.mxu0 0
        %1734 = vmatpush.bf16.msra.mxu0 0
        %1735 = vmatpush.bf16.msra.mxu0 0
        %1736 = vmatpush.bf16.msra.mxu0 %v1504
        %1737 = vmatpush.bf16.msra.mxu0 %v1488
        %1738 = vmatpush.bf16.msra.mxu0 %v1472
        %1739 = vmatpush.bf16.msra.mxu0 %v1456
        %1740 = vmatmul.bf16.gmra.mxu0 %v1574
        %v1741 = vpop.f32.mrf.mxu0
        %v1742 = vadd.f32 %v1232, %v1741
        %v1743 = vpop.f32.mrf.mxu0
        %1744 = vdwg.mxu0
        %1745 = vmatpush.bf16.msra.mxu0 0
        %1746 = vmatpush.bf16.msra.mxu0 0
        %1747 = vmatpush.bf16.msra.mxu0 0
        %1748 = vmatpush.bf16.msra.mxu0 0
        %1749 = vmatpush.bf16.msra.mxu0 %v1505
        %1750 = vmatpush.bf16.msra.mxu0 %v1489
        %1751 = vmatpush.bf16.msra.mxu0 %v1473
        %1752 = vmatpush.bf16.msra.mxu0 %v1457
        %1753 = vmatmul.bf16.gmra.mxu0 %v1574
        %v1754 = vpop.f32.mrf.mxu0
        %v1755 = vadd.f32 %v1233, %v1754
        %v1756 = vpop.f32.mrf.mxu0
        %1757 = vdwg.mxu0
        %1758 = vmatpush.bf16.msra.mxu0 0
        %1759 = vmatpush.bf16.msra.mxu0 0
        %1760 = vmatpush.bf16.msra.mxu0 0
        %1761 = vmatpush.bf16.msra.mxu0 0
        %1762 = vmatpush.bf16.msra.mxu0 %v1506
        %1763 = vmatpush.bf16.msra.mxu0 %v1490
        %1764 = vmatpush.bf16.msra.mxu0 %v1474
        %1765 = vmatpush.bf16.msra.mxu0 %v1458
        %1766 = vmatmul.bf16.gmra.mxu0 %v1574
        %v1767 = vpop.f32.mrf.mxu0
        %v1768 = vadd.f32 %v1234, %v1767
        %v1769 = vpop.f32.mrf.mxu0
        %1770 = vdwg.mxu0
        %1771 = vmatpush.bf16.msra.mxu0 0
        %1772 = vmatpush.bf16.msra.mxu0 0
        %1773 = vmatpush.bf16.msra.mxu0 0
        %1774 = vmatpush.bf16.msra.mxu0 0
        %1775 = vmatpush.bf16.msra.mxu0 %v1507
        %1776 = vmatpush.bf16.msra.mxu0 %v1491
        %1777 = vmatpush.bf16.msra.mxu0 %v1475
        %1778 = vmatpush.bf16.msra.mxu0 %v1459
        %1779 = vmatmul.bf16.gmra.mxu0 %v1574
        %v1780 = vpop.f32.mrf.mxu0
        %v1781 = vadd.f32 %v1235, %v1780
        %v1782 = vpop.f32.mrf.mxu0
        %1783 = vdwg.mxu0
        %v1784 = vmax.f32 %v1586, 0.0
        %v1785 = vmax.f32 %v1599, 0.0
        %v1786 = vmax.f32 %v1612, 0.0
        %v1787 = vmax.f32 %v1625, 0.0
        %v1788 = vmax.f32 %v1638, 0.0
        %v1789 = vmax.f32 %v1651, 0.0
        %v1790 = vmax.f32 %v1664, 0.0
        %v1791 = vmax.f32 %v1677, 0.0
        %v1792 = vmax.f32 %v1690, 0.0
        %v1793 = vmax.f32 %v1703, 0.0
        %v1794 = vmax.f32 %v1716, 0.0
        %v1795 = vmax.f32 %v1729, 0.0
        %v1796 = vmax.f32 %v1742, 0.0
        %v1797 = vmax.f32 %v1755, 0.0
        %v1798 = vmax.f32 %v1768, 0.0
        %v1799 = vmax.f32 %v1781, 0.0
        %vm1800 = vcmask 1041408
        %v1801 = vsel %vm1800, %v1784, 0.0
        %v1802 = vrot.slane %v1801, 4
        %v1803 = vadd.f32 %v1801, %v1802
        %v1804 = vrot.slane %v1803, 2
        %v1805 = vadd.f32 %v1803, %v1804
        %v1806 = vrot.slane %v1805, 1
        %v1807 = vadd.f32 %v1805, %v1806
        %v1808 = vsel %vm1800, %v1785, 0.0
        %v1809 = vrot.slane %v1808, 4
        %v1810 = vadd.f32 %v1808, %v1809
        %v1811 = vrot.slane %v1810, 2
        %v1812 = vadd.f32 %v1810, %v1811
        %v1813 = vrot.slane %v1812, 1
        %v1814 = vadd.f32 %v1812, %v1813
        %v1815 = vsel %vm1800, %v1786, 0.0
        %v1816 = vrot.slane %v1815, 4
        %v1817 = vadd.f32 %v1815, %v1816
        %v1818 = vrot.slane %v1817, 2
        %v1819 = vadd.f32 %v1817, %v1818
        %v1820 = vrot.slane %v1819, 1
        %v1821 = vadd.f32 %v1819, %v1820
        %v1822 = vsel %vm1800, %v1787, 0.0
        %v1823 = vrot.slane %v1822, 4
        %v1824 = vadd.f32 %v1822, %v1823
        %v1825 = vrot.slane %v1824, 2
        %v1826 = vadd.f32 %v1824, %v1825
        %v1827 = vrot.slane %v1826, 1
        %v1828 = vadd.f32 %v1826, %v1827
        %v1829 = vsel %vm1800, %v1788, 0.0
        %v1830 = vrot.slane %v1829, 4
        %v1831 = vadd.f32 %v1829, %v1830
        %v1832 = vrot.slane %v1831, 2
        %v1833 = vadd.f32 %v1831, %v1832
        %v1834 = vrot.slane %v1833, 1
        %v1835 = vadd.f32 %v1833, %v1834
        %v1836 = vsel %vm1800, %v1789, 0.0
        %v1837 = vrot.slane %v1836, 4
        %v1838 = vadd.f32 %v1836, %v1837
        %v1839 = vrot.slane %v1838, 2
        %v1840 = vadd.f32 %v1838, %v1839
        %v1841 = vrot.slane %v1840, 1
        %v1842 = vadd.f32 %v1840, %v1841
        %v1843 = vsel %vm1800, %v1790, 0.0
        %v1844 = vrot.slane %v1843, 4
        %v1845 = vadd.f32 %v1843, %v1844
        %v1846 = vrot.slane %v1845, 2
        %v1847 = vadd.f32 %v1845, %v1846
        %v1848 = vrot.slane %v1847, 1
        %v1849 = vadd.f32 %v1847, %v1848
        %v1850 = vsel %vm1800, %v1791, 0.0
        %v1851 = vrot.slane %v1850, 4
        %v1852 = vadd.f32 %v1850, %v1851
        %v1853 = vrot.slane %v1852, 2
        %v1854 = vadd.f32 %v1852, %v1853
        %v1855 = vrot.slane %v1854, 1
        %v1856 = vadd.f32 %v1854, %v1855
        %v1857 = vsel %vm1800, %v1792, 0.0
        %v1858 = vrot.slane %v1857, 4
        %v1859 = vadd.f32 %v1857, %v1858
        %v1860 = vrot.slane %v1859, 2
        %v1861 = vadd.f32 %v1859, %v1860
        %v1862 = vrot.slane %v1861, 1
        %v1863 = vadd.f32 %v1861, %v1862
        %v1864 = vsel %vm1800, %v1793, 0.0
        %v1865 = vrot.slane %v1864, 4
        %v1866 = vadd.f32 %v1864, %v1865
        %v1867 = vrot.slane %v1866, 2
        %v1868 = vadd.f32 %v1866, %v1867
        %v1869 = vrot.slane %v1868, 1
        %v1870 = vadd.f32 %v1868, %v1869
        %v1871 = vsel %vm1800, %v1794, 0.0
        %v1872 = vrot.slane %v1871, 4
        %v1873 = vadd.f32 %v1871, %v1872
        %v1874 = vrot.slane %v1873, 2
        %v1875 = vadd.f32 %v1873, %v1874
        %v1876 = vrot.slane %v1875, 1
        %v1877 = vadd.f32 %v1875, %v1876
        %v1878 = vsel %vm1800, %v1795, 0.0
        %v1879 = vrot.slane %v1878, 4
        %v1880 = vadd.f32 %v1878, %v1879
        %v1881 = vrot.slane %v1880, 2
        %v1882 = vadd.f32 %v1880, %v1881
        %v1883 = vrot.slane %v1882, 1
        %v1884 = vadd.f32 %v1882, %v1883
        %v1885 = vsel %vm1800, %v1796, 0.0
        %v1886 = vrot.slane %v1885, 4
        %v1887 = vadd.f32 %v1885, %v1886
        %v1888 = vrot.slane %v1887, 2
        %v1889 = vadd.f32 %v1887, %v1888
        %v1890 = vrot.slane %v1889, 1
        %v1891 = vadd.f32 %v1889, %v1890
        %v1892 = vsel %vm1800, %v1797, 0.0
        %v1893 = vrot.slane %v1892, 4
        %v1894 = vadd.f32 %v1892, %v1893
        %v1895 = vrot.slane %v1894, 2
        %v1896 = vadd.f32 %v1894, %v1895
        %v1897 = vrot.slane %v1896, 1
        %v1898 = vadd.f32 %v1896, %v1897
        %v1899 = vsel %vm1800, %v1798, 0.0
        %v1900 = vrot.slane %v1899, 4
        %v1901 = vadd.f32 %v1899, %v1900
        %v1902 = vrot.slane %v1901, 2
        %v1903 = vadd.f32 %v1901, %v1902
        %v1904 = vrot.slane %v1903, 1
        %v1905 = vadd.f32 %v1903, %v1904
        %v1906 = vsel %vm1800, %v1799, 0.0
        %v1907 = vrot.slane %v1906, 4
        %v1908 = vadd.f32 %v1906, %v1907
        %v1909 = vrot.slane %v1908, 2
        %v1910 = vadd.f32 %v1908, %v1909
        %v1911 = vrot.slane %v1910, 1
        %v1912 = vadd.f32 %v1910, %v1911
        %v1913 = vpack.c.bf16 %v1807, %v1807
        %v1914 = vpack.c.bf16 %v1814, %v1814
        %v1915 = vpack.c.bf16 %v1821, %v1821
        %v1916 = vpack.c.bf16 %v1828, %v1828
        %v1917 = vpack.c.bf16 %v1835, %v1835
        %v1918 = vpack.c.bf16 %v1842, %v1842
        %v1919 = vpack.c.bf16 %v1849, %v1849
        %v1920 = vpack.c.bf16 %v1856, %v1856
        %v1921 = vpack.c.bf16 %v1863, %v1863
        %v1922 = vpack.c.bf16 %v1870, %v1870
        %v1923 = vpack.c.bf16 %v1877, %v1877
        %v1924 = vpack.c.bf16 %v1884, %v1884
        %v1925 = vpack.c.bf16 %v1891, %v1891
        %v1926 = vpack.c.bf16 %v1898, %v1898
        %v1927 = vpack.c.bf16 %v1905, %v1905
        %v1928 = vpack.c.bf16 %v1912, %v1912
        %v1929 = vld [vmem:[%s13] sm:$0xf]
        %v1930 = vld [vmem:[%s13 + $0x4] sm:$0xf]
        %v1931 = vld [vmem:[%s13 + $0x8] sm:$0xf]
        %v1932 = vld [vmem:[%s13 + $0xc] sm:$0xf]
        %v1933 = vld [vmem:[%s13 + $0x10] sm:$0xf]
        %v1934 = vld [vmem:[%s13 + $0x14] sm:$0xf]
        %v1935 = vld [vmem:[%s13 + $0x18] sm:$0xf]
        %v1936 = vld [vmem:[%s13 + $0x1c] sm:$0xf]
        %v1937 = vld [vmem:[%s13 + $0x20] sm:$0xf]
        %v1938 = vld [vmem:[%s13 + $0x24] sm:$0xf]
        %v1939 = vld [vmem:[%s13 + $0x28] sm:$0xf]
        %v1940 = vld [vmem:[%s13 + $0x2c] sm:$0xf]
        %v1941 = vld [vmem:[%s13 + $0x30] sm:$0xf]
        %v1942 = vld [vmem:[%s13 + $0x34] sm:$0xf]
        %v1943 = vld [vmem:[%s13 + $0x38] sm:$0xf]
        %v1944 = vld [vmem:[%s13 + $0x3c] sm:$0xf]
        %v1945 = vld [vmem:[%s13 + $0x40] sm:$0xf]
        %v1946 = vld [vmem:[%s13 + $0x44] sm:$0xf]
        %v1947 = vld [vmem:[%s13 + $0x48] sm:$0xf]
        %v1948 = vld [vmem:[%s13 + $0x4c] sm:$0xf]
        %v1949 = vld [vmem:[%s13 + $0x50] sm:$0xf]
        %v1950 = vld [vmem:[%s13 + $0x54] sm:$0xf]
        %v1951 = vld [vmem:[%s13 + $0x58] sm:$0xf]
        %v1952 = vld [vmem:[%s13 + $0x5c] sm:$0xf]
        %v1953 = vld [vmem:[%s13 + $0x60] sm:$0xf]
        %v1954 = vld [vmem:[%s13 + $0x64] sm:$0xf]
        %v1955 = vld [vmem:[%s13 + $0x68] sm:$0xf]
        %v1956 = vld [vmem:[%s13 + $0x6c] sm:$0xf]
        %v1957 = vld [vmem:[%s13 + $0x70] sm:$0xf]
        %v1958 = vld [vmem:[%s13 + $0x74] sm:$0xf]
        %v1959 = vld [vmem:[%s13 + $0x78] sm:$0xf]
        %v1960 = vld [vmem:[%s13 + $0x7c] sm:$0xf]
        %v1961 = vld [vmem:[%s13 + $0x80] sm:$0xf]
        %v1962 = vld [vmem:[%s13 + $0x84] sm:$0xf]
        %v1963 = vld [vmem:[%s13 + $0x88] sm:$0xf]
        %v1964 = vld [vmem:[%s13 + $0x8c] sm:$0xf]
        %v1965 = vld [vmem:[%s13 + $0x90] sm:$0xf]
        %v1966 = vld [vmem:[%s13 + $0x94] sm:$0xf]
        %v1967 = vld [vmem:[%s13 + $0x98] sm:$0xf]
        %v1968 = vld [vmem:[%s13 + $0x9c] sm:$0xf]
        %v1969 = vld [vmem:[%s13 + $0xa0] sm:$0xf]
        %v1970 = vld [vmem:[%s13 + $0xa4] sm:$0xf]
        %v1971 = vld [vmem:[%s13 + $0xa8] sm:$0xf]
        %v1972 = vld [vmem:[%s13 + $0xac] sm:$0xf]
        %v1973 = vld [vmem:[%s13 + $0xb0] sm:$0xf]
        %v1974 = vld [vmem:[%s13 + $0xb4] sm:$0xf]
        %v1975 = vld [vmem:[%s13 + $0xb8] sm:$0xf]
        %v1976 = vld [vmem:[%s13 + $0xbc] sm:$0xf]
        %v1977 = vld [vmem:[%s13 + $0xc0] sm:$0xf]
        %v1978 = vld [vmem:[%s13 + $0xc4] sm:$0xf]
        %v1979 = vld [vmem:[%s13 + $0xc8] sm:$0xf]
        %v1980 = vld [vmem:[%s13 + $0xcc] sm:$0xf]
        %v1981 = vld [vmem:[%s13 + $0xd0] sm:$0xf]
        %v1982 = vld [vmem:[%s13 + $0xd4] sm:$0xf]
        %v1983 = vld [vmem:[%s13 + $0xd8] sm:$0xf]
        %v1984 = vld [vmem:[%s13 + $0xdc] sm:$0xf]
        %v1985 = vld [vmem:[%s13 + $0xe0] sm:$0xf]
        %v1986 = vld [vmem:[%s13 + $0xe4] sm:$0xf]
        %v1987 = vld [vmem:[%s13 + $0xe8] sm:$0xf]
        %v1988 = vld [vmem:[%s13 + $0xec] sm:$0xf]
        %v1989 = vld [vmem:[%s13 + $0xf0] sm:$0xf]
        %v1990 = vld [vmem:[%s13 + $0xf4] sm:$0xf]
        %v1991 = vld [vmem:[%s13 + $0xf8] sm:$0xf]
        %v1992 = vld [vmem:[%s13 + $0xfc] sm:$0xf]
        %v1993 = vld [vmem:[%s13 + $0x100] sm:$0xf]
        %v1994 = vld [vmem:[%s13 + $0x104] sm:$0xf]
        %v1995 = vld [vmem:[%s13 + $0x108] sm:$0xf]
        %v1996 = vld [vmem:[%s13 + $0x10c] sm:$0xf]
        %v1997 = vld [vmem:[%s13 + $0x110] sm:$0xf]
        %v1998 = vld [vmem:[%s13 + $0x114] sm:$0xf]
        %v1999 = vld [vmem:[%s13 + $0x118] sm:$0xf]
        %v2000 = vld [vmem:[%s13 + $0x11c] sm:$0xf]
        %v2001 = vld [vmem:[%s13 + $0x120] sm:$0xf]
        %v2002 = vld [vmem:[%s13 + $0x124] sm:$0xf]
        %v2003 = vld [vmem:[%s13 + $0x128] sm:$0xf]
        %v2004 = vld [vmem:[%s13 + $0x12c] sm:$0xf]
        %v2005 = vld [vmem:[%s13 + $0x130] sm:$0xf]
        %v2006 = vld [vmem:[%s13 + $0x134] sm:$0xf]
        %v2007 = vld [vmem:[%s13 + $0x138] sm:$0xf]
        %v2008 = vld [vmem:[%s13 + $0x13c] sm:$0xf]
        %v2009 = vld [vmem:[%s13 + $0x140] sm:$0xf]
        %v2010 = vld [vmem:[%s13 + $0x144] sm:$0xf]
        %v2011 = vld [vmem:[%s13 + $0x148] sm:$0xf]
        %v2012 = vld [vmem:[%s13 + $0x14c] sm:$0xf]
        %v2013 = vld [vmem:[%s13 + $0x150] sm:$0xf]
        %v2014 = vld [vmem:[%s13 + $0x154] sm:$0xf]
        %v2015 = vld [vmem:[%s13 + $0x158] sm:$0xf]
        %v2016 = vld [vmem:[%s13 + $0x15c] sm:$0xf]
        %v2017 = vld [vmem:[%s13 + $0x160] sm:$0xf]
        %v2018 = vld [vmem:[%s13 + $0x164] sm:$0xf]
        %v2019 = vld [vmem:[%s13 + $0x168] sm:$0xf]
        %v2020 = vld [vmem:[%s13 + $0x16c] sm:$0xf]
        %v2021 = vld [vmem:[%s13 + $0x170] sm:$0xf]
        %v2022 = vld [vmem:[%s13 + $0x174] sm:$0xf]
        %v2023 = vld [vmem:[%s13 + $0x178] sm:$0xf]
        %v2024 = vld [vmem:[%s13 + $0x17c] sm:$0xf]
        %v2025 = vld [vmem:[%s13 + $0x180] sm:$0xf]
        %v2026 = vld [vmem:[%s13 + $0x184] sm:$0xf]
        %v2027 = vld [vmem:[%s13 + $0x188] sm:$0xf]
        %v2028 = vld [vmem:[%s13 + $0x18c] sm:$0xf]
        %v2029 = vld [vmem:[%s13 + $0x190] sm:$0xf]
        %v2030 = vld [vmem:[%s13 + $0x194] sm:$0xf]
        %v2031 = vld [vmem:[%s13 + $0x198] sm:$0xf]
        %v2032 = vld [vmem:[%s13 + $0x19c] sm:$0xf]
        %v2033 = vld [vmem:[%s13 + $0x1a0] sm:$0xf]
        %v2034 = vld [vmem:[%s13 + $0x1a4] sm:$0xf]
        %v2035 = vld [vmem:[%s13 + $0x1a8] sm:$0xf]
        %v2036 = vld [vmem:[%s13 + $0x1ac] sm:$0xf]
        %v2037 = vld [vmem:[%s13 + $0x1b0] sm:$0xf]
        %v2038 = vld [vmem:[%s13 + $0x1b4] sm:$0xf]
        %v2039 = vld [vmem:[%s13 + $0x1b8] sm:$0xf]
        %v2040 = vld [vmem:[%s13 + $0x1bc] sm:$0xf]
        %v2041 = vld [vmem:[%s13 + $0x1c0] sm:$0xf]
        %v2042 = vld [vmem:[%s13 + $0x1c4] sm:$0xf]
        %v2043 = vld [vmem:[%s13 + $0x1c8] sm:$0xf]
        %v2044 = vld [vmem:[%s13 + $0x1cc] sm:$0xf]
        %v2045 = vld [vmem:[%s13 + $0x1d0] sm:$0xf]
        %v2046 = vld [vmem:[%s13 + $0x1d4] sm:$0xf]
        %v2047 = vld [vmem:[%s13 + $0x1d8] sm:$0xf]
        %v2048 = vld [vmem:[%s13 + $0x1dc] sm:$0xf]
        %v2049 = vld [vmem:[%s13 + $0x1e0] sm:$0xf]
        %v2050 = vld [vmem:[%s13 + $0x1e4] sm:$0xf]
        %v2051 = vld [vmem:[%s13 + $0x1e8] sm:$0xf]
        %v2052 = vld [vmem:[%s13 + $0x1ec] sm:$0xf]
        %v2053 = vld [vmem:[%s13 + $0x1f0] sm:$0xf]
        %v2054 = vld [vmem:[%s13 + $0x1f4] sm:$0xf]
        %v2055 = vld [vmem:[%s13 + $0x1f8] sm:$0xf]
        %v2056 = vld [vmem:[%s13 + $0x1fc] sm:$0xf]
        %v2057 = vld [vmem:[%s13 + $0x200] sm:$0xf]
        %v2058 = vld [vmem:[%s13 + $0x204] sm:$0xf]
        %v2059 = vld [vmem:[%s13 + $0x208] sm:$0xf]
        %v2060 = vld [vmem:[%s13 + $0x20c] sm:$0xf]
        %v2061 = vld [vmem:[%s13 + $0x210] sm:$0xf]
        %v2062 = vld [vmem:[%s13 + $0x214] sm:$0xf]
        %v2063 = vld [vmem:[%s13 + $0x218] sm:$0xf]
        %v2064 = vld [vmem:[%s13 + $0x21c] sm:$0xf]
        %v2065 = vld [vmem:[%s13 + $0x220] sm:$0xf]
        %v2066 = vld [vmem:[%s13 + $0x224] sm:$0xf]
        %v2067 = vld [vmem:[%s13 + $0x228] sm:$0xf]
        %v2068 = vld [vmem:[%s13 + $0x22c] sm:$0xf]
        %v2069 = vld [vmem:[%s13 + $0x230] sm:$0xf]
        %v2070 = vld [vmem:[%s13 + $0x234] sm:$0xf]
        %v2071 = vld [vmem:[%s13 + $0x238] sm:$0xf]
        %v2072 = vld [vmem:[%s13 + $0x23c] sm:$0xf]
        %v2073 = vld [vmem:[%s13 + $0x240] sm:$0xf]
        %v2074 = vld [vmem:[%s13 + $0x244] sm:$0xf]
        %v2075 = vld [vmem:[%s13 + $0x248] sm:$0xf]
        %v2076 = vld [vmem:[%s13 + $0x24c] sm:$0xf]
        %v2077 = vld [vmem:[%s13 + $0x250] sm:$0xf]
        %v2078 = vld [vmem:[%s13 + $0x254] sm:$0xf]
        %v2079 = vld [vmem:[%s13 + $0x258] sm:$0xf]
        %v2080 = vld [vmem:[%s13 + $0x25c] sm:$0xf]
        %v2081 = vld [vmem:[%s13 + $0x260] sm:$0xf]
        %v2082 = vld [vmem:[%s13 + $0x264] sm:$0xf]
        %v2083 = vld [vmem:[%s13 + $0x268] sm:$0xf]
        %v2084 = vld [vmem:[%s13 + $0x26c] sm:$0xf]
        %v2085 = vld [vmem:[%s13 + $0x270] sm:$0xf]
        %v2086 = vld [vmem:[%s13 + $0x274] sm:$0xf]
        %v2087 = vld [vmem:[%s13 + $0x278] sm:$0xf]
        %v2088 = vld [vmem:[%s13 + $0x27c] sm:$0xf]
        %v2089 = vld [vmem:[%s13 + $0x280] sm:$0xf]
        %v2090 = vld [vmem:[%s13 + $0x284] sm:$0xf]
        %v2091 = vld [vmem:[%s13 + $0x288] sm:$0xf]
        %v2092 = vld [vmem:[%s13 + $0x28c] sm:$0xf]
        %v2093 = vld [vmem:[%s13 + $0x290] sm:$0xf]
        %v2094 = vld [vmem:[%s13 + $0x294] sm:$0xf]
        %v2095 = vld [vmem:[%s13 + $0x298] sm:$0xf]
        %v2096 = vld [vmem:[%s13 + $0x29c] sm:$0xf]
        %v2097 = vld [vmem:[%s13 + $0x2a0] sm:$0xf]
        %v2098 = vld [vmem:[%s13 + $0x2a4] sm:$0xf]
        %v2099 = vld [vmem:[%s13 + $0x2a8] sm:$0xf]
        %v2100 = vld [vmem:[%s13 + $0x2ac] sm:$0xf]
        %v2101 = vld [vmem:[%s13 + $0x2b0] sm:$0xf]
        %v2102 = vld [vmem:[%s13 + $0x2b4] sm:$0xf]
        %v2103 = vld [vmem:[%s13 + $0x2b8] sm:$0xf]
        %v2104 = vld [vmem:[%s13 + $0x2bc] sm:$0xf]
        %v2105 = vld [vmem:[%s13 + $0x2c0] sm:$0xf]
        %v2106 = vld [vmem:[%s13 + $0x2c4] sm:$0xf]
        %v2107 = vld [vmem:[%s13 + $0x2c8] sm:$0xf]
        %v2108 = vld [vmem:[%s13 + $0x2cc] sm:$0xf]
        %v2109 = vld [vmem:[%s13 + $0x2d0] sm:$0xf]
        %v2110 = vld [vmem:[%s13 + $0x2d4] sm:$0xf]
        %v2111 = vld [vmem:[%s13 + $0x2d8] sm:$0xf]
        %v2112 = vld [vmem:[%s13 + $0x2dc] sm:$0xf]
        %v2113 = vld [vmem:[%s13 + $0x2e0] sm:$0xf]
        %v2114 = vld [vmem:[%s13 + $0x2e4] sm:$0xf]
        %v2115 = vld [vmem:[%s13 + $0x2e8] sm:$0xf]
        %v2116 = vld [vmem:[%s13 + $0x2ec] sm:$0xf]
        %v2117 = vld [vmem:[%s13 + $0x2f0] sm:$0xf]
        %v2118 = vld [vmem:[%s13 + $0x2f4] sm:$0xf]
        %v2119 = vld [vmem:[%s13 + $0x2f8] sm:$0xf]
        %v2120 = vld [vmem:[%s13 + $0x2fc] sm:$0xf]
        %v2121 = vld [vmem:[%s13 + $0x300] sm:$0xf]
        %v2122 = vld [vmem:[%s13 + $0x304] sm:$0xf]
        %v2123 = vld [vmem:[%s13 + $0x308] sm:$0xf]
        %v2124 = vld [vmem:[%s13 + $0x30c] sm:$0xf]
        %v2125 = vld [vmem:[%s13 + $0x310] sm:$0xf]
        %v2126 = vld [vmem:[%s13 + $0x314] sm:$0xf]
        %v2127 = vld [vmem:[%s13 + $0x318] sm:$0xf]
        %v2128 = vld [vmem:[%s13 + $0x31c] sm:$0xf]
        %v2129 = vld [vmem:[%s13 + $0x320] sm:$0xf]
        %v2130 = vld [vmem:[%s13 + $0x324] sm:$0xf]
        %v2131 = vld [vmem:[%s13 + $0x328] sm:$0xf]
        %v2132 = vld [vmem:[%s13 + $0x32c] sm:$0xf]
        %v2133 = vld [vmem:[%s13 + $0x330] sm:$0xf]
        %v2134 = vld [vmem:[%s13 + $0x334] sm:$0xf]
        %v2135 = vld [vmem:[%s13 + $0x338] sm:$0xf]
        %v2136 = vld [vmem:[%s13 + $0x33c] sm:$0xf]
        %v2137 = vld [vmem:[%s13 + $0x340] sm:$0xf]
        %v2138 = vld [vmem:[%s13 + $0x344] sm:$0xf]
        %v2139 = vld [vmem:[%s13 + $0x348] sm:$0xf]
        %v2140 = vld [vmem:[%s13 + $0x34c] sm:$0xf]
        %v2141 = vld [vmem:[%s13 + $0x350] sm:$0xf]
        %v2142 = vld [vmem:[%s13 + $0x354] sm:$0xf]
        %v2143 = vld [vmem:[%s13 + $0x358] sm:$0xf]
        %v2144 = vld [vmem:[%s13 + $0x35c] sm:$0xf]
        %v2145 = vld [vmem:[%s13 + $0x360] sm:$0xf]
        %v2146 = vld [vmem:[%s13 + $0x364] sm:$0xf]
        %v2147 = vld [vmem:[%s13 + $0x368] sm:$0xf]
        %v2148 = vld [vmem:[%s13 + $0x36c] sm:$0xf]
        %v2149 = vld [vmem:[%s13 + $0x370] sm:$0xf]
        %v2150 = vld [vmem:[%s13 + $0x374] sm:$0xf]
        %v2151 = vld [vmem:[%s13 + $0x378] sm:$0xf]
        %v2152 = vld [vmem:[%s13 + $0x37c] sm:$0xf]
        %v2153 = vld [vmem:[%s13 + $0x380] sm:$0xf]
        %v2154 = vld [vmem:[%s13 + $0x384] sm:$0xf]
        %v2155 = vld [vmem:[%s13 + $0x388] sm:$0xf]
        %v2156 = vld [vmem:[%s13 + $0x38c] sm:$0xf]
        %v2157 = vld [vmem:[%s13 + $0x390] sm:$0xf]
        %v2158 = vld [vmem:[%s13 + $0x394] sm:$0xf]
        %v2159 = vld [vmem:[%s13 + $0x398] sm:$0xf]
        %v2160 = vld [vmem:[%s13 + $0x39c] sm:$0xf]
        %v2161 = vld [vmem:[%s13 + $0x3a0] sm:$0xf]
        %v2162 = vld [vmem:[%s13 + $0x3a4] sm:$0xf]
        %v2163 = vld [vmem:[%s13 + $0x3a8] sm:$0xf]
        %v2164 = vld [vmem:[%s13 + $0x3ac] sm:$0xf]
        %v2165 = vld [vmem:[%s13 + $0x3b0] sm:$0xf]
        %v2166 = vld [vmem:[%s13 + $0x3b4] sm:$0xf]
        %v2167 = vld [vmem:[%s13 + $0x3b8] sm:$0xf]
        %v2168 = vld [vmem:[%s13 + $0x3bc] sm:$0xf]
        %v2169 = vld [vmem:[%s13 + $0x3c0] sm:$0xf]
        %v2170 = vld [vmem:[%s13 + $0x3c4] sm:$0xf]
        %v2171 = vld [vmem:[%s13 + $0x3c8] sm:$0xf]
        %v2172 = vld [vmem:[%s13 + $0x3cc] sm:$0xf]
        %v2173 = vld [vmem:[%s13 + $0x3d0] sm:$0xf]
        %v2174 = vld [vmem:[%s13 + $0x3d4] sm:$0xf]
        %v2175 = vld [vmem:[%s13 + $0x3d8] sm:$0xf]
        %v2176 = vld [vmem:[%s13 + $0x3dc] sm:$0xf]
        %v2177 = vld [vmem:[%s13 + $0x3e0] sm:$0xf]
        %v2178 = vld [vmem:[%s13 + $0x3e4] sm:$0xf]
        %v2179 = vld [vmem:[%s13 + $0x3e8] sm:$0xf]
        %v2180 = vld [vmem:[%s13 + $0x3ec] sm:$0xf]
        %v2181 = vld [vmem:[%s13 + $0x3f0] sm:$0xf]
        %v2182 = vld [vmem:[%s13 + $0x3f4] sm:$0xf]
        %v2183 = vld [vmem:[%s13 + $0x3f8] sm:$0xf]
        %v2184 = vld [vmem:[%s13 + $0x3fc] sm:$0xf]
        %v2441 = vunpack.c.l.b16 %v1929
        %v2442 = vunpack.c.l.b16 %v1930
        %v2443 = vunpack.c.l.b16 %v1931
        %v2444 = vunpack.c.l.b16 %v1932
        %v2445 = vunpack.c.l.b16 %v1933
        %v2446 = vunpack.c.l.b16 %v1934
        %v2447 = vunpack.c.l.b16 %v1935
        %v2448 = vunpack.c.l.b16 %v1936
        %v2449 = vunpack.c.l.b16 %v1937
        %v2450 = vunpack.c.l.b16 %v1938
        %v2451 = vunpack.c.l.b16 %v1939
        %v2452 = vunpack.c.l.b16 %v1940
        %v2453 = vunpack.c.l.b16 %v1941
        %v2454 = vunpack.c.l.b16 %v1942
        %v2455 = vunpack.c.l.b16 %v1943
        %v2456 = vunpack.c.l.b16 %v1944
        %v2457 = vunpack.c.l.b16 %v1945
        %v2458 = vunpack.c.l.b16 %v1946
        %v2459 = vunpack.c.l.b16 %v1947
        %v2460 = vunpack.c.l.b16 %v1948
        %v2461 = vunpack.c.l.b16 %v1949
        %v2462 = vunpack.c.l.b16 %v1950
        %v2463 = vunpack.c.l.b16 %v1951
        %v2464 = vunpack.c.l.b16 %v1952
        %v2465 = vunpack.c.l.b16 %v1953
        %v2466 = vunpack.c.l.b16 %v1954
        %v2467 = vunpack.c.l.b16 %v1955
        %v2468 = vunpack.c.l.b16 %v1956
        %v2469 = vunpack.c.l.b16 %v1957
        %v2470 = vunpack.c.l.b16 %v1958
        %v2471 = vunpack.c.l.b16 %v1959
        %v2472 = vunpack.c.l.b16 %v1960
        %v2473 = vunpack.c.l.b16 %v1961
        %v2474 = vunpack.c.l.b16 %v1962
        %v2475 = vunpack.c.l.b16 %v1963
        %v2476 = vunpack.c.l.b16 %v1964
        %v2477 = vunpack.c.l.b16 %v1965
        %v2478 = vunpack.c.l.b16 %v1966
        %v2479 = vunpack.c.l.b16 %v1967
        %v2480 = vunpack.c.l.b16 %v1968
        %v2481 = vunpack.c.l.b16 %v1969
        %v2482 = vunpack.c.l.b16 %v1970
        %v2483 = vunpack.c.l.b16 %v1971
        %v2484 = vunpack.c.l.b16 %v1972
        %v2485 = vunpack.c.l.b16 %v1973
        %v2486 = vunpack.c.l.b16 %v1974
        %v2487 = vunpack.c.l.b16 %v1975
        %v2488 = vunpack.c.l.b16 %v1976
        %v2489 = vunpack.c.l.b16 %v1977
        %v2490 = vunpack.c.l.b16 %v1978
        %v2491 = vunpack.c.l.b16 %v1979
        %v2492 = vunpack.c.l.b16 %v1980
        %v2493 = vunpack.c.l.b16 %v1981
        %v2494 = vunpack.c.l.b16 %v1982
        %v2495 = vunpack.c.l.b16 %v1983
        %v2496 = vunpack.c.l.b16 %v1984
        %v2497 = vunpack.c.l.b16 %v1985
        %v2498 = vunpack.c.l.b16 %v1986
        %v2499 = vunpack.c.l.b16 %v1987
        %v2500 = vunpack.c.l.b16 %v1988
        %v2501 = vunpack.c.l.b16 %v1989
        %v2502 = vunpack.c.l.b16 %v1990
        %v2503 = vunpack.c.l.b16 %v1991
        %v2504 = vunpack.c.l.b16 %v1992
        %v2505 = vunpack.c.l.b16 %v1993
        %v2506 = vunpack.c.l.b16 %v1994
        %v2507 = vunpack.c.l.b16 %v1995
        %v2508 = vunpack.c.l.b16 %v1996
        %v2509 = vunpack.c.l.b16 %v1997
        %v2510 = vunpack.c.l.b16 %v1998
        %v2511 = vunpack.c.l.b16 %v1999
        %v2512 = vunpack.c.l.b16 %v2000
        %v2513 = vunpack.c.l.b16 %v2001
        %v2514 = vunpack.c.l.b16 %v2002
        %v2515 = vunpack.c.l.b16 %v2003
        %v2516 = vunpack.c.l.b16 %v2004
        %v2517 = vunpack.c.l.b16 %v2005
        %v2518 = vunpack.c.l.b16 %v2006
        %v2519 = vunpack.c.l.b16 %v2007
        %v2520 = vunpack.c.l.b16 %v2008
        %v2521 = vunpack.c.l.b16 %v2009
        %v2522 = vunpack.c.l.b16 %v2010
        %v2523 = vunpack.c.l.b16 %v2011
        %v2524 = vunpack.c.l.b16 %v2012
        %v2525 = vunpack.c.l.b16 %v2013
        %v2526 = vunpack.c.l.b16 %v2014
        %v2527 = vunpack.c.l.b16 %v2015
        %v2528 = vunpack.c.l.b16 %v2016
        %v2529 = vunpack.c.l.b16 %v2017
        %v2530 = vunpack.c.l.b16 %v2018
        %v2531 = vunpack.c.l.b16 %v2019
        %v2532 = vunpack.c.l.b16 %v2020
        %v2533 = vunpack.c.l.b16 %v2021
        %v2534 = vunpack.c.l.b16 %v2022
        %v2535 = vunpack.c.l.b16 %v2023
        %v2536 = vunpack.c.l.b16 %v2024
        %v2537 = vunpack.c.l.b16 %v2025
        %v2538 = vunpack.c.l.b16 %v2026
        %v2539 = vunpack.c.l.b16 %v2027
        %v2540 = vunpack.c.l.b16 %v2028
        %v2541 = vunpack.c.l.b16 %v2029
        %v2542 = vunpack.c.l.b16 %v2030
        %v2543 = vunpack.c.l.b16 %v2031
        %v2544 = vunpack.c.l.b16 %v2032
        %v2545 = vunpack.c.l.b16 %v2033
        %v2546 = vunpack.c.l.b16 %v2034
        %v2547 = vunpack.c.l.b16 %v2035
        %v2548 = vunpack.c.l.b16 %v2036
        %v2549 = vunpack.c.l.b16 %v2037
        %v2550 = vunpack.c.l.b16 %v2038
        %v2551 = vunpack.c.l.b16 %v2039
        %v2552 = vunpack.c.l.b16 %v2040
        %v2553 = vunpack.c.l.b16 %v2041
        %v2554 = vunpack.c.l.b16 %v2042
        %v2555 = vunpack.c.l.b16 %v2043
        %v2556 = vunpack.c.l.b16 %v2044
        %v2557 = vunpack.c.l.b16 %v2045
        %v2558 = vunpack.c.l.b16 %v2046
        %v2559 = vunpack.c.l.b16 %v2047
        %v2560 = vunpack.c.l.b16 %v2048
        %v2561 = vunpack.c.l.b16 %v2049
        %v2562 = vunpack.c.l.b16 %v2050
        %v2563 = vunpack.c.l.b16 %v2051
        %v2564 = vunpack.c.l.b16 %v2052
        %v2565 = vunpack.c.l.b16 %v2053
        %v2566 = vunpack.c.l.b16 %v2054
        %v2567 = vunpack.c.l.b16 %v2055
        %v2568 = vunpack.c.l.b16 %v2056
        %v2569 = vunpack.c.l.b16 %v2057
        %v2570 = vunpack.c.l.b16 %v2058
        %v2571 = vunpack.c.l.b16 %v2059
        %v2572 = vunpack.c.l.b16 %v2060
        %v2573 = vunpack.c.l.b16 %v2061
        %v2574 = vunpack.c.l.b16 %v2062
        %v2575 = vunpack.c.l.b16 %v2063
        %v2576 = vunpack.c.l.b16 %v2064
        %v2577 = vunpack.c.l.b16 %v2065
        %v2578 = vunpack.c.l.b16 %v2066
        %v2579 = vunpack.c.l.b16 %v2067
        %v2580 = vunpack.c.l.b16 %v2068
        %v2581 = vunpack.c.l.b16 %v2069
        %v2582 = vunpack.c.l.b16 %v2070
        %v2583 = vunpack.c.l.b16 %v2071
        %v2584 = vunpack.c.l.b16 %v2072
        %v2585 = vunpack.c.l.b16 %v2073
        %v2586 = vunpack.c.l.b16 %v2074
        %v2587 = vunpack.c.l.b16 %v2075
        %v2588 = vunpack.c.l.b16 %v2076
        %v2589 = vunpack.c.l.b16 %v2077
        %v2590 = vunpack.c.l.b16 %v2078
        %v2591 = vunpack.c.l.b16 %v2079
        %v2592 = vunpack.c.l.b16 %v2080
        %v2593 = vunpack.c.l.b16 %v2081
        %v2594 = vunpack.c.l.b16 %v2082
        %v2595 = vunpack.c.l.b16 %v2083
        %v2596 = vunpack.c.l.b16 %v2084
        %v2597 = vunpack.c.l.b16 %v2085
        %v2598 = vunpack.c.l.b16 %v2086
        %v2599 = vunpack.c.l.b16 %v2087
        %v2600 = vunpack.c.l.b16 %v2088
        %v2601 = vunpack.c.l.b16 %v2089
        %v2602 = vunpack.c.l.b16 %v2090
        %v2603 = vunpack.c.l.b16 %v2091
        %v2604 = vunpack.c.l.b16 %v2092
        %v2605 = vunpack.c.l.b16 %v2093
        %v2606 = vunpack.c.l.b16 %v2094
        %v2607 = vunpack.c.l.b16 %v2095
        %v2608 = vunpack.c.l.b16 %v2096
        %v2609 = vunpack.c.l.b16 %v2097
        %v2610 = vunpack.c.l.b16 %v2098
        %v2611 = vunpack.c.l.b16 %v2099
        %v2612 = vunpack.c.l.b16 %v2100
        %v2613 = vunpack.c.l.b16 %v2101
        %v2614 = vunpack.c.l.b16 %v2102
        %v2615 = vunpack.c.l.b16 %v2103
        %v2616 = vunpack.c.l.b16 %v2104
        %v2617 = vunpack.c.l.b16 %v2105
        %v2618 = vunpack.c.l.b16 %v2106
        %v2619 = vunpack.c.l.b16 %v2107
        %v2620 = vunpack.c.l.b16 %v2108
        %v2621 = vunpack.c.l.b16 %v2109
        %v2622 = vunpack.c.l.b16 %v2110
        %v2623 = vunpack.c.l.b16 %v2111
        %v2624 = vunpack.c.l.b16 %v2112
        %v2625 = vunpack.c.l.b16 %v2113
        %v2626 = vunpack.c.l.b16 %v2114
        %v2627 = vunpack.c.l.b16 %v2115
        %v2628 = vunpack.c.l.b16 %v2116
        %v2629 = vunpack.c.l.b16 %v2117
        %v2630 = vunpack.c.l.b16 %v2118
        %v2631 = vunpack.c.l.b16 %v2119
        %v2632 = vunpack.c.l.b16 %v2120
        %v2633 = vunpack.c.l.b16 %v2121
        %v2634 = vunpack.c.l.b16 %v2122
        %v2635 = vunpack.c.l.b16 %v2123
        %v2636 = vunpack.c.l.b16 %v2124
        %v2637 = vunpack.c.l.b16 %v2125
        %v2638 = vunpack.c.l.b16 %v2126
        %v2639 = vunpack.c.l.b16 %v2127
        %v2640 = vunpack.c.l.b16 %v2128
        %v2641 = vunpack.c.l.b16 %v2129
        %v2642 = vunpack.c.l.b16 %v2130
        %v2643 = vunpack.c.l.b16 %v2131
        %v2644 = vunpack.c.l.b16 %v2132
        %v2645 = vunpack.c.l.b16 %v2133
        %v2646 = vunpack.c.l.b16 %v2134
        %v2647 = vunpack.c.l.b16 %v2135
        %v2648 = vunpack.c.l.b16 %v2136
        %v2649 = vunpack.c.l.b16 %v2137
        %v2650 = vunpack.c.l.b16 %v2138
        %v2651 = vunpack.c.l.b16 %v2139
        %v2652 = vunpack.c.l.b16 %v2140
        %v2653 = vunpack.c.l.b16 %v2141
        %v2654 = vunpack.c.l.b16 %v2142
        %v2655 = vunpack.c.l.b16 %v2143
        %v2656 = vunpack.c.l.b16 %v2144
        %v2657 = vunpack.c.l.b16 %v2145
        %v2658 = vunpack.c.l.b16 %v2146
        %v2659 = vunpack.c.l.b16 %v2147
        %v2660 = vunpack.c.l.b16 %v2148
        %v2661 = vunpack.c.l.b16 %v2149
        %v2662 = vunpack.c.l.b16 %v2150
        %v2663 = vunpack.c.l.b16 %v2151
        %v2664 = vunpack.c.l.b16 %v2152
        %v2665 = vunpack.c.l.b16 %v2153
        %v2666 = vunpack.c.l.b16 %v2154
        %v2667 = vunpack.c.l.b16 %v2155
        %v2668 = vunpack.c.l.b16 %v2156
        %v2669 = vunpack.c.l.b16 %v2157
        %v2670 = vunpack.c.l.b16 %v2158
        %v2671 = vunpack.c.l.b16 %v2159
        %v2672 = vunpack.c.l.b16 %v2160
        %v2673 = vunpack.c.l.b16 %v2161
        %v2674 = vunpack.c.l.b16 %v2162
        %v2675 = vunpack.c.l.b16 %v2163
        %v2676 = vunpack.c.l.b16 %v2164
        %v2677 = vunpack.c.l.b16 %v2165
        %v2678 = vunpack.c.l.b16 %v2166
        %v2679 = vunpack.c.l.b16 %v2167
        %v2680 = vunpack.c.l.b16 %v2168
        %v2681 = vunpack.c.l.b16 %v2169
        %v2682 = vunpack.c.l.b16 %v2170
        %v2683 = vunpack.c.l.b16 %v2171
        %v2684 = vunpack.c.l.b16 %v2172
        %v2685 = vunpack.c.l.b16 %v2173
        %v2686 = vunpack.c.l.b16 %v2174
        %v2687 = vunpack.c.l.b16 %v2175
        %v2688 = vunpack.c.l.b16 %v2176
        %v2689 = vunpack.c.l.b16 %v2177
        %v2690 = vunpack.c.l.b16 %v2178
        %v2691 = vunpack.c.l.b16 %v2179
        %v2692 = vunpack.c.l.b16 %v2180
        %v2693 = vunpack.c.l.b16 %v2181
        %v2694 = vunpack.c.l.b16 %v2182
        %v2695 = vunpack.c.l.b16 %v2183
        %v2696 = vunpack.c.l.b16 %v2184
        %v2697 = vpack.c.b16 %v2442, %v2441
        %v2698 = vpack.c.b16 %v2444, %v2443
        %v2699 = vpack.c.b16 %v2446, %v2445
        %v2700 = vpack.c.b16 %v2448, %v2447
        %v2701 = vpack.c.b16 %v2450, %v2449
        %v2702 = vpack.c.b16 %v2452, %v2451
        %v2703 = vpack.c.b16 %v2454, %v2453
        %v2704 = vpack.c.b16 %v2456, %v2455
        %v2705 = vpack.c.b16 %v2458, %v2457
        %v2706 = vpack.c.b16 %v2460, %v2459
        %v2707 = vpack.c.b16 %v2462, %v2461
        %v2708 = vpack.c.b16 %v2464, %v2463
        %v2709 = vpack.c.b16 %v2466, %v2465
        %v2710 = vpack.c.b16 %v2468, %v2467
        %v2711 = vpack.c.b16 %v2470, %v2469
        %v2712 = vpack.c.b16 %v2472, %v2471
        %v2713 = vpack.c.b16 %v2474, %v2473
        %v2714 = vpack.c.b16 %v2476, %v2475
        %v2715 = vpack.c.b16 %v2478, %v2477
        %v2716 = vpack.c.b16 %v2480, %v2479
        %v2717 = vpack.c.b16 %v2482, %v2481
        %v2718 = vpack.c.b16 %v2484, %v2483
        %v2719 = vpack.c.b16 %v2486, %v2485
        %v2720 = vpack.c.b16 %v2488, %v2487
        %v2721 = vpack.c.b16 %v2490, %v2489
        %v2722 = vpack.c.b16 %v2492, %v2491
        %v2723 = vpack.c.b16 %v2494, %v2493
        %v2724 = vpack.c.b16 %v2496, %v2495
        %v2725 = vpack.c.b16 %v2498, %v2497
        %v2726 = vpack.c.b16 %v2500, %v2499
        %v2727 = vpack.c.b16 %v2502, %v2501
        %v2728 = vpack.c.b16 %v2504, %v2503
        %v2729 = vpack.c.b16 %v2506, %v2505
        %v2730 = vpack.c.b16 %v2508, %v2507
        %v2731 = vpack.c.b16 %v2510, %v2509
        %v2732 = vpack.c.b16 %v2512, %v2511
        %v2733 = vpack.c.b16 %v2514, %v2513
        %v2734 = vpack.c.b16 %v2516, %v2515
        %v2735 = vpack.c.b16 %v2518, %v2517
        %v2736 = vpack.c.b16 %v2520, %v2519
        %v2737 = vpack.c.b16 %v2522, %v2521
        %v2738 = vpack.c.b16 %v2524, %v2523
        %v2739 = vpack.c.b16 %v2526, %v2525
        %v2740 = vpack.c.b16 %v2528, %v2527
        %v2741 = vpack.c.b16 %v2530, %v2529
        %v2742 = vpack.c.b16 %v2532, %v2531
        %v2743 = vpack.c.b16 %v2534, %v2533
        %v2744 = vpack.c.b16 %v2536, %v2535
        %v2745 = vpack.c.b16 %v2538, %v2537
        %v2746 = vpack.c.b16 %v2540, %v2539
        %v2747 = vpack.c.b16 %v2542, %v2541
        %v2748 = vpack.c.b16 %v2544, %v2543
        %v2749 = vpack.c.b16 %v2546, %v2545
        %v2750 = vpack.c.b16 %v2548, %v2547
        %v2751 = vpack.c.b16 %v2550, %v2549
        %v2752 = vpack.c.b16 %v2552, %v2551
        %v2753 = vpack.c.b16 %v2554, %v2553
        %v2754 = vpack.c.b16 %v2556, %v2555
        %v2755 = vpack.c.b16 %v2558, %v2557
        %v2756 = vpack.c.b16 %v2560, %v2559
        %v2757 = vpack.c.b16 %v2562, %v2561
        %v2758 = vpack.c.b16 %v2564, %v2563
        %v2759 = vpack.c.b16 %v2566, %v2565
        %v2760 = vpack.c.b16 %v2568, %v2567
        %v2761 = vpack.c.b16 %v2570, %v2569
        %v2762 = vpack.c.b16 %v2572, %v2571
        %v2763 = vpack.c.b16 %v2574, %v2573
        %v2764 = vpack.c.b16 %v2576, %v2575
        %v2765 = vpack.c.b16 %v2578, %v2577
        %v2766 = vpack.c.b16 %v2580, %v2579
        %v2767 = vpack.c.b16 %v2582, %v2581
        %v2768 = vpack.c.b16 %v2584, %v2583
        %v2769 = vpack.c.b16 %v2586, %v2585
        %v2770 = vpack.c.b16 %v2588, %v2587
        %v2771 = vpack.c.b16 %v2590, %v2589
        %v2772 = vpack.c.b16 %v2592, %v2591
        %v2773 = vpack.c.b16 %v2594, %v2593
        %v2774 = vpack.c.b16 %v2596, %v2595
        %v2775 = vpack.c.b16 %v2598, %v2597
        %v2776 = vpack.c.b16 %v2600, %v2599
        %v2777 = vpack.c.b16 %v2602, %v2601
        %v2778 = vpack.c.b16 %v2604, %v2603
        %v2779 = vpack.c.b16 %v2606, %v2605
        %v2780 = vpack.c.b16 %v2608, %v2607
        %v2781 = vpack.c.b16 %v2610, %v2609
        %v2782 = vpack.c.b16 %v2612, %v2611
        %v2783 = vpack.c.b16 %v2614, %v2613
        %v2784 = vpack.c.b16 %v2616, %v2615
        %v2785 = vpack.c.b16 %v2618, %v2617
        %v2786 = vpack.c.b16 %v2620, %v2619
        %v2787 = vpack.c.b16 %v2622, %v2621
        %v2788 = vpack.c.b16 %v2624, %v2623
        %v2789 = vpack.c.b16 %v2626, %v2625
        %v2790 = vpack.c.b16 %v2628, %v2627
        %v2791 = vpack.c.b16 %v2630, %v2629
        %v2792 = vpack.c.b16 %v2632, %v2631
        %v2793 = vpack.c.b16 %v2634, %v2633
        %v2794 = vpack.c.b16 %v2636, %v2635
        %v2795 = vpack.c.b16 %v2638, %v2637
        %v2796 = vpack.c.b16 %v2640, %v2639
        %v2797 = vpack.c.b16 %v2642, %v2641
        %v2798 = vpack.c.b16 %v2644, %v2643
        %v2799 = vpack.c.b16 %v2646, %v2645
        %v2800 = vpack.c.b16 %v2648, %v2647
        %v2801 = vpack.c.b16 %v2650, %v2649
        %v2802 = vpack.c.b16 %v2652, %v2651
        %v2803 = vpack.c.b16 %v2654, %v2653
        %v2804 = vpack.c.b16 %v2656, %v2655
        %v2805 = vpack.c.b16 %v2658, %v2657
        %v2806 = vpack.c.b16 %v2660, %v2659
        %v2807 = vpack.c.b16 %v2662, %v2661
        %v2808 = vpack.c.b16 %v2664, %v2663
        %v2809 = vpack.c.b16 %v2666, %v2665
        %v2810 = vpack.c.b16 %v2668, %v2667
        %v2811 = vpack.c.b16 %v2670, %v2669
        %v2812 = vpack.c.b16 %v2672, %v2671
        %v2813 = vpack.c.b16 %v2674, %v2673
        %v2814 = vpack.c.b16 %v2676, %v2675
        %v2815 = vpack.c.b16 %v2678, %v2677
        %v2816 = vpack.c.b16 %v2680, %v2679
        %v2817 = vpack.c.b16 %v2682, %v2681
        %v2818 = vpack.c.b16 %v2684, %v2683
        %v2819 = vpack.c.b16 %v2686, %v2685
        %v2820 = vpack.c.b16 %v2688, %v2687
        %v2821 = vpack.c.b16 %v2690, %v2689
        %v2822 = vpack.c.b16 %v2692, %v2691
        %v2823 = vpack.c.b16 %v2694, %v2693
        %v2824 = vpack.c.b16 %v2696, %v2695
        %2953 = vmatpush.bf16.msra.mxu0 %v2704
        %2954 = vmatpush.bf16.msra.mxu0 %v2703
        %2955 = vmatpush.bf16.msra.mxu0 %v2702
        %2956 = vmatpush.bf16.msra.mxu0 %v2701
        %2957 = vmatpush.bf16.msra.mxu0 %v2700
        %2958 = vmatpush.bf16.msra.mxu0 %v2699
        %2959 = vmatpush.bf16.msra.mxu0 %v2698
        %2960 = vmatpush.bf16.msra.mxu0 %v2697
        %2961 = vmatmul.bf16.gmra.mxu0 %v1913
        %v2962 = vpop.f32.mrf.mxu0
        %v2963 = vadd.f32 0.0, %v2962
        %v2964 = vpop.f32.mrf.mxu0
        %2965 = vdwg.mxu0
        %2966 = vmatpush.bf16.msra.mxu0 %v2712
        %2967 = vmatpush.bf16.msra.mxu0 %v2711
        %2968 = vmatpush.bf16.msra.mxu0 %v2710
        %2969 = vmatpush.bf16.msra.mxu0 %v2709
        %2970 = vmatpush.bf16.msra.mxu0 %v2708
        %2971 = vmatpush.bf16.msra.mxu0 %v2707
        %2972 = vmatpush.bf16.msra.mxu0 %v2706
        %2973 = vmatpush.bf16.msra.mxu0 %v2705
        %2974 = vmatmul.bf16.gmra.mxu0 %v1914
        %v2975 = vpop.f32.mrf.mxu0
        %v2976 = vadd.f32 %v2963, %v2975
        %v2977 = vpop.f32.mrf.mxu0
        %2978 = vdwg.mxu0
        %2979 = vmatpush.bf16.msra.mxu0 %v2720
        %2980 = vmatpush.bf16.msra.mxu0 %v2719
        %2981 = vmatpush.bf16.msra.mxu0 %v2718
        %2982 = vmatpush.bf16.msra.mxu0 %v2717
        %2983 = vmatpush.bf16.msra.mxu0 %v2716
        %2984 = vmatpush.bf16.msra.mxu0 %v2715
        %2985 = vmatpush.bf16.msra.mxu0 %v2714
        %2986 = vmatpush.bf16.msra.mxu0 %v2713
        %2987 = vmatmul.bf16.gmra.mxu0 %v1915
        %v2988 = vpop.f32.mrf.mxu0
        %v2989 = vadd.f32 %v2976, %v2988
        %v2990 = vpop.f32.mrf.mxu0
        %2991 = vdwg.mxu0
        %2992 = vmatpush.bf16.msra.mxu0 %v2728
        %2993 = vmatpush.bf16.msra.mxu0 %v2727
        %2994 = vmatpush.bf16.msra.mxu0 %v2726
        %2995 = vmatpush.bf16.msra.mxu0 %v2725
        %2996 = vmatpush.bf16.msra.mxu0 %v2724
        %2997 = vmatpush.bf16.msra.mxu0 %v2723
        %2998 = vmatpush.bf16.msra.mxu0 %v2722
        %2999 = vmatpush.bf16.msra.mxu0 %v2721
        %3000 = vmatmul.bf16.gmra.mxu0 %v1916
        %v3001 = vpop.f32.mrf.mxu0
        %v3002 = vadd.f32 %v2989, %v3001
        %v3003 = vpop.f32.mrf.mxu0
        %3004 = vdwg.mxu0
        %3005 = vmatpush.bf16.msra.mxu0 %v2736
        %3006 = vmatpush.bf16.msra.mxu0 %v2735
        %3007 = vmatpush.bf16.msra.mxu0 %v2734
        %3008 = vmatpush.bf16.msra.mxu0 %v2733
        %3009 = vmatpush.bf16.msra.mxu0 %v2732
        %3010 = vmatpush.bf16.msra.mxu0 %v2731
        %3011 = vmatpush.bf16.msra.mxu0 %v2730
        %3012 = vmatpush.bf16.msra.mxu0 %v2729
        %3013 = vmatmul.bf16.gmra.mxu0 %v1917
        %v3014 = vpop.f32.mrf.mxu0
        %v3015 = vadd.f32 %v3002, %v3014
        %v3016 = vpop.f32.mrf.mxu0
        %3017 = vdwg.mxu0
        %3018 = vmatpush.bf16.msra.mxu0 %v2744
        %3019 = vmatpush.bf16.msra.mxu0 %v2743
        %3020 = vmatpush.bf16.msra.mxu0 %v2742
        %3021 = vmatpush.bf16.msra.mxu0 %v2741
        %3022 = vmatpush.bf16.msra.mxu0 %v2740
        %3023 = vmatpush.bf16.msra.mxu0 %v2739
        %3024 = vmatpush.bf16.msra.mxu0 %v2738
        %3025 = vmatpush.bf16.msra.mxu0 %v2737
        %3026 = vmatmul.bf16.gmra.mxu0 %v1918
        %v3027 = vpop.f32.mrf.mxu0
        %v3028 = vadd.f32 %v3015, %v3027
        %v3029 = vpop.f32.mrf.mxu0
        %3030 = vdwg.mxu0
        %3031 = vmatpush.bf16.msra.mxu0 %v2752
        %3032 = vmatpush.bf16.msra.mxu0 %v2751
        %3033 = vmatpush.bf16.msra.mxu0 %v2750
        %3034 = vmatpush.bf16.msra.mxu0 %v2749
        %3035 = vmatpush.bf16.msra.mxu0 %v2748
        %3036 = vmatpush.bf16.msra.mxu0 %v2747
        %3037 = vmatpush.bf16.msra.mxu0 %v2746
        %3038 = vmatpush.bf16.msra.mxu0 %v2745
        %3039 = vmatmul.bf16.gmra.mxu0 %v1919
        %v3040 = vpop.f32.mrf.mxu0
        %v3041 = vadd.f32 %v3028, %v3040
        %v3042 = vpop.f32.mrf.mxu0
        %3043 = vdwg.mxu0
        %3044 = vmatpush.bf16.msra.mxu0 %v2760
        %3045 = vmatpush.bf16.msra.mxu0 %v2759
        %3046 = vmatpush.bf16.msra.mxu0 %v2758
        %3047 = vmatpush.bf16.msra.mxu0 %v2757
        %3048 = vmatpush.bf16.msra.mxu0 %v2756
        %3049 = vmatpush.bf16.msra.mxu0 %v2755
        %3050 = vmatpush.bf16.msra.mxu0 %v2754
        %3051 = vmatpush.bf16.msra.mxu0 %v2753
        %3052 = vmatmul.bf16.gmra.mxu0 %v1920
        %v3053 = vpop.f32.mrf.mxu0
        %v3054 = vadd.f32 %v3041, %v3053
        %v3055 = vpop.f32.mrf.mxu0
        %3056 = vdwg.mxu0
        %3057 = vmatpush.bf16.msra.mxu0 %v2768
        %3058 = vmatpush.bf16.msra.mxu0 %v2767
        %3059 = vmatpush.bf16.msra.mxu0 %v2766
        %3060 = vmatpush.bf16.msra.mxu0 %v2765
        %3061 = vmatpush.bf16.msra.mxu0 %v2764
        %3062 = vmatpush.bf16.msra.mxu0 %v2763
        %3063 = vmatpush.bf16.msra.mxu0 %v2762
        %3064 = vmatpush.bf16.msra.mxu0 %v2761
        %3065 = vmatmul.bf16.gmra.mxu0 %v1921
        %v3066 = vpop.f32.mrf.mxu0
        %v3067 = vadd.f32 %v3054, %v3066
        %v3068 = vpop.f32.mrf.mxu0
        %3069 = vdwg.mxu0
        %3070 = vmatpush.bf16.msra.mxu0 %v2776
        %3071 = vmatpush.bf16.msra.mxu0 %v2775
        %3072 = vmatpush.bf16.msra.mxu0 %v2774
        %3073 = vmatpush.bf16.msra.mxu0 %v2773
        %3074 = vmatpush.bf16.msra.mxu0 %v2772
        %3075 = vmatpush.bf16.msra.mxu0 %v2771
        %3076 = vmatpush.bf16.msra.mxu0 %v2770
        %3077 = vmatpush.bf16.msra.mxu0 %v2769
        %3078 = vmatmul.bf16.gmra.mxu0 %v1922
        %v3079 = vpop.f32.mrf.mxu0
        %v3080 = vadd.f32 %v3067, %v3079
        %v3081 = vpop.f32.mrf.mxu0
        %3082 = vdwg.mxu0
        %3083 = vmatpush.bf16.msra.mxu0 %v2784
        %3084 = vmatpush.bf16.msra.mxu0 %v2783
        %3085 = vmatpush.bf16.msra.mxu0 %v2782
        %3086 = vmatpush.bf16.msra.mxu0 %v2781
        %3087 = vmatpush.bf16.msra.mxu0 %v2780
        %3088 = vmatpush.bf16.msra.mxu0 %v2779
        %3089 = vmatpush.bf16.msra.mxu0 %v2778
        %3090 = vmatpush.bf16.msra.mxu0 %v2777
        %3091 = vmatmul.bf16.gmra.mxu0 %v1923
        %v3092 = vpop.f32.mrf.mxu0
        %v3093 = vadd.f32 %v3080, %v3092
        %v3094 = vpop.f32.mrf.mxu0
        %3095 = vdwg.mxu0
        %3096 = vmatpush.bf16.msra.mxu0 %v2792
        %3097 = vmatpush.bf16.msra.mxu0 %v2791
        %3098 = vmatpush.bf16.msra.mxu0 %v2790
        %3099 = vmatpush.bf16.msra.mxu0 %v2789
        %3100 = vmatpush.bf16.msra.mxu0 %v2788
        %3101 = vmatpush.bf16.msra.mxu0 %v2787
        %3102 = vmatpush.bf16.msra.mxu0 %v2786
        %3103 = vmatpush.bf16.msra.mxu0 %v2785
        %3104 = vmatmul.bf16.gmra.mxu0 %v1924
        %v3105 = vpop.f32.mrf.mxu0
        %v3106 = vadd.f32 %v3093, %v3105
        %v3107 = vpop.f32.mrf.mxu0
        %3108 = vdwg.mxu0
        %3109 = vmatpush.bf16.msra.mxu0 %v2800
        %3110 = vmatpush.bf16.msra.mxu0 %v2799
        %3111 = vmatpush.bf16.msra.mxu0 %v2798
        %3112 = vmatpush.bf16.msra.mxu0 %v2797
        %3113 = vmatpush.bf16.msra.mxu0 %v2796
        %3114 = vmatpush.bf16.msra.mxu0 %v2795
        %3115 = vmatpush.bf16.msra.mxu0 %v2794
        %3116 = vmatpush.bf16.msra.mxu0 %v2793
        %3117 = vmatmul.bf16.gmra.mxu0 %v1925
        %v3118 = vpop.f32.mrf.mxu0
        %v3119 = vadd.f32 %v3106, %v3118
        %v3120 = vpop.f32.mrf.mxu0
        %3121 = vdwg.mxu0
        %3122 = vmatpush.bf16.msra.mxu0 %v2808
        %3123 = vmatpush.bf16.msra.mxu0 %v2807
        %3124 = vmatpush.bf16.msra.mxu0 %v2806
        %3125 = vmatpush.bf16.msra.mxu0 %v2805
        %3126 = vmatpush.bf16.msra.mxu0 %v2804
        %3127 = vmatpush.bf16.msra.mxu0 %v2803
        %3128 = vmatpush.bf16.msra.mxu0 %v2802
        %3129 = vmatpush.bf16.msra.mxu0 %v2801
        %3130 = vmatmul.bf16.gmra.mxu0 %v1926
        %v3131 = vpop.f32.mrf.mxu0
        %v3132 = vadd.f32 %v3119, %v3131
        %v3133 = vpop.f32.mrf.mxu0
        %3134 = vdwg.mxu0
        %3135 = vmatpush.bf16.msra.mxu0 %v2816
        %3136 = vmatpush.bf16.msra.mxu0 %v2815
        %3137 = vmatpush.bf16.msra.mxu0 %v2814
        %3138 = vmatpush.bf16.msra.mxu0 %v2813
        %3139 = vmatpush.bf16.msra.mxu0 %v2812
        %3140 = vmatpush.bf16.msra.mxu0 %v2811
        %3141 = vmatpush.bf16.msra.mxu0 %v2810
        %3142 = vmatpush.bf16.msra.mxu0 %v2809
        %3143 = vmatmul.bf16.gmra.mxu0 %v1927
        %v3144 = vpop.f32.mrf.mxu0
        %v3145 = vadd.f32 %v3132, %v3144
        %v3146 = vpop.f32.mrf.mxu0
        %3147 = vdwg.mxu0
        %3148 = vmatpush.bf16.msra.mxu0 %v2824
        %3149 = vmatpush.bf16.msra.mxu0 %v2823
        %3150 = vmatpush.bf16.msra.mxu0 %v2822
        %3151 = vmatpush.bf16.msra.mxu0 %v2821
        %3152 = vmatpush.bf16.msra.mxu0 %v2820
        %3153 = vmatpush.bf16.msra.mxu0 %v2819
        %3154 = vmatpush.bf16.msra.mxu0 %v2818
        %3155 = vmatpush.bf16.msra.mxu0 %v2817
        %3156 = vmatmul.bf16.gmra.mxu0 %v1928
        %v3157 = vpop.f32.mrf.mxu0
        %v3158 = vadd.f32 %v3145, %v3157
        %v3159 = vpop.f32.mrf.mxu0
        %3160 = vdwg.mxu0
        %v3161 = vmul.f32 %v3158, 0.0078125
        %v3162 = vpack.c.bf16 %v3161, %v3161
        %vm3163 = vcmask 261120
        %v3165 = vsel %vm3163, %v3162, 0
        %v3168 = vsel %vm3163, %v2697, 0
        %v3171 = vsel %vm3163, %v2698, 0
        %v3174 = vsel %vm3163, %v2699, 0
        %v3177 = vsel %vm3163, %v2700, 0
        %v3180 = vsel %vm3163, %v2701, 0
        %v3183 = vsel %vm3163, %v2702, 0
        %v3186 = vsel %vm3163, %v2703, 0
        %v3189 = vsel %vm3163, %v2704, 0
        %v3192 = vsel %vm3163, %v2705, 0
        %v3195 = vsel %vm3163, %v2706, 0
        %v3198 = vsel %vm3163, %v2707, 0
        %v3201 = vsel %vm3163, %v2708, 0
        %v3204 = vsel %vm3163, %v2709, 0
        %v3207 = vsel %vm3163, %v2710, 0
        %v3210 = vsel %vm3163, %v2711, 0
        %v3213 = vsel %vm3163, %v2712, 0
        %v3216 = vsel %vm3163, %v2713, 0
        %v3219 = vsel %vm3163, %v2714, 0
        %v3222 = vsel %vm3163, %v2715, 0
        %v3225 = vsel %vm3163, %v2716, 0
        %v3228 = vsel %vm3163, %v2717, 0
        %v3231 = vsel %vm3163, %v2718, 0
        %v3234 = vsel %vm3163, %v2719, 0
        %v3237 = vsel %vm3163, %v2720, 0
        %v3240 = vsel %vm3163, %v2721, 0
        %v3243 = vsel %vm3163, %v2722, 0
        %v3246 = vsel %vm3163, %v2723, 0
        %v3249 = vsel %vm3163, %v2724, 0
        %v3252 = vsel %vm3163, %v2725, 0
        %v3255 = vsel %vm3163, %v2726, 0
        %v3258 = vsel %vm3163, %v2727, 0
        %v3261 = vsel %vm3163, %v2728, 0
        %v3264 = vsel %vm3163, %v2729, 0
        %v3267 = vsel %vm3163, %v2730, 0
        %v3270 = vsel %vm3163, %v2731, 0
        %v3273 = vsel %vm3163, %v2732, 0
        %v3276 = vsel %vm3163, %v2733, 0
        %v3279 = vsel %vm3163, %v2734, 0
        %v3282 = vsel %vm3163, %v2735, 0
        %v3285 = vsel %vm3163, %v2736, 0
        %v3288 = vsel %vm3163, %v2737, 0
        %v3291 = vsel %vm3163, %v2738, 0
        %v3294 = vsel %vm3163, %v2739, 0
        %v3297 = vsel %vm3163, %v2740, 0
        %v3300 = vsel %vm3163, %v2741, 0
        %v3303 = vsel %vm3163, %v2742, 0
        %v3306 = vsel %vm3163, %v2743, 0
        %v3309 = vsel %vm3163, %v2744, 0
        %v3312 = vsel %vm3163, %v2745, 0
        %v3315 = vsel %vm3163, %v2746, 0
        %v3318 = vsel %vm3163, %v2747, 0
        %v3321 = vsel %vm3163, %v2748, 0
        %v3324 = vsel %vm3163, %v2749, 0
        %v3327 = vsel %vm3163, %v2750, 0
        %v3330 = vsel %vm3163, %v2751, 0
        %v3333 = vsel %vm3163, %v2752, 0
        %v3336 = vsel %vm3163, %v2753, 0
        %v3339 = vsel %vm3163, %v2754, 0
        %v3342 = vsel %vm3163, %v2755, 0
        %v3345 = vsel %vm3163, %v2756, 0
        %v3348 = vsel %vm3163, %v2757, 0
        %v3351 = vsel %vm3163, %v2758, 0
        %v3354 = vsel %vm3163, %v2759, 0
        %v3357 = vsel %vm3163, %v2760, 0
        %v3360 = vsel %vm3163, %v2761, 0
        %v3363 = vsel %vm3163, %v2762, 0
        %v3366 = vsel %vm3163, %v2763, 0
        %v3369 = vsel %vm3163, %v2764, 0
        %v3372 = vsel %vm3163, %v2765, 0
        %v3375 = vsel %vm3163, %v2766, 0
        %v3378 = vsel %vm3163, %v2767, 0
        %v3381 = vsel %vm3163, %v2768, 0
        %v3384 = vsel %vm3163, %v2769, 0
        %v3387 = vsel %vm3163, %v2770, 0
        %v3390 = vsel %vm3163, %v2771, 0
        %v3393 = vsel %vm3163, %v2772, 0
        %v3396 = vsel %vm3163, %v2773, 0
        %v3399 = vsel %vm3163, %v2774, 0
        %v3402 = vsel %vm3163, %v2775, 0
        %v3405 = vsel %vm3163, %v2776, 0
        %v3408 = vsel %vm3163, %v2777, 0
        %v3411 = vsel %vm3163, %v2778, 0
        %v3414 = vsel %vm3163, %v2779, 0
        %v3417 = vsel %vm3163, %v2780, 0
        %v3420 = vsel %vm3163, %v2781, 0
        %v3423 = vsel %vm3163, %v2782, 0
        %v3426 = vsel %vm3163, %v2783, 0
        %v3429 = vsel %vm3163, %v2784, 0
        %v3432 = vsel %vm3163, %v2785, 0
        %v3435 = vsel %vm3163, %v2786, 0
        %v3438 = vsel %vm3163, %v2787, 0
        %v3441 = vsel %vm3163, %v2788, 0
        %v3444 = vsel %vm3163, %v2789, 0
        %v3447 = vsel %vm3163, %v2790, 0
        %v3450 = vsel %vm3163, %v2791, 0
        %v3453 = vsel %vm3163, %v2792, 0
        %v3456 = vsel %vm3163, %v2793, 0
        %v3459 = vsel %vm3163, %v2794, 0
        %v3462 = vsel %vm3163, %v2795, 0
        %v3465 = vsel %vm3163, %v2796, 0
        %v3468 = vsel %vm3163, %v2797, 0
        %v3471 = vsel %vm3163, %v2798, 0
        %v3474 = vsel %vm3163, %v2799, 0
        %v3477 = vsel %vm3163, %v2800, 0
        %v3480 = vsel %vm3163, %v2801, 0
        %v3483 = vsel %vm3163, %v2802, 0
        %v3486 = vsel %vm3163, %v2803, 0
        %v3489 = vsel %vm3163, %v2804, 0
        %v3492 = vsel %vm3163, %v2805, 0
        %v3495 = vsel %vm3163, %v2806, 0
        %v3498 = vsel %vm3163, %v2807, 0
        %v3501 = vsel %vm3163, %v2808, 0
        %v3504 = vsel %vm3163, %v2809, 0
        %v3507 = vsel %vm3163, %v2810, 0
        %v3510 = vsel %vm3163, %v2811, 0
        %v3513 = vsel %vm3163, %v2812, 0
        %v3516 = vsel %vm3163, %v2813, 0
        %v3519 = vsel %vm3163, %v2814, 0
        %v3522 = vsel %vm3163, %v2815, 0
        %v3525 = vsel %vm3163, %v2816, 0
        %v3528 = vsel %vm3163, %v2817, 0
        %v3531 = vsel %vm3163, %v2818, 0
        %v3534 = vsel %vm3163, %v2819, 0
        %v3537 = vsel %vm3163, %v2820, 0
        %v3540 = vsel %vm3163, %v2821, 0
        %v3543 = vsel %vm3163, %v2822, 0
        %v3546 = vsel %vm3163, %v2823, 0
        %v3549 = vsel %vm3163, %v2824, 0
        %3551 = vmatpush.bf16.xpose.msra.mxu0 %v3189
        %3552 = vmatpush.bf16.xpose.msra.mxu0 %v3186
        %3553 = vmatpush.bf16.xpose.msra.mxu0 %v3183
        %3554 = vmatpush.bf16.xpose.msra.mxu0 %v3180
        %3555 = vmatpush.bf16.xpose.msra.mxu0 %v3177
        %3556 = vmatpush.bf16.xpose.msra.mxu0 %v3174
        %3557 = vmatpush.bf16.xpose.msra.mxu0 %v3171
        %3558 = vmatpush.bf16.xpose.msra.mxu0 %v3168
        %3559 = vmatmul.bf16.gmra.mxu0 %v3165
        %v3560 = vpop.f32.mrf.mxu0
        %v3561 = vadd.f32 0.0, %v3560
        %v3562 = vpop.f32.mrf.mxu0
        %3563 = vdwg.mxu0
        %3564 = vmatpush.bf16.xpose.msra.mxu0 %v3213
        %3565 = vmatpush.bf16.xpose.msra.mxu0 %v3210
        %3566 = vmatpush.bf16.xpose.msra.mxu0 %v3207
        %3567 = vmatpush.bf16.xpose.msra.mxu0 %v3204
        %3568 = vmatpush.bf16.xpose.msra.mxu0 %v3201
        %3569 = vmatpush.bf16.xpose.msra.mxu0 %v3198
        %3570 = vmatpush.bf16.xpose.msra.mxu0 %v3195
        %3571 = vmatpush.bf16.xpose.msra.mxu0 %v3192
        %3572 = vmatmul.bf16.gmra.mxu0 %v3165
        %v3573 = vpop.f32.mrf.mxu0
        %v3574 = vadd.f32 0.0, %v3573
        %v3575 = vpop.f32.mrf.mxu0
        %3576 = vdwg.mxu0
        %3577 = vmatpush.bf16.xpose.msra.mxu0 %v3237
        %3578 = vmatpush.bf16.xpose.msra.mxu0 %v3234
        %3579 = vmatpush.bf16.xpose.msra.mxu0 %v3231
        %3580 = vmatpush.bf16.xpose.msra.mxu0 %v3228
        %3581 = vmatpush.bf16.xpose.msra.mxu0 %v3225
        %3582 = vmatpush.bf16.xpose.msra.mxu0 %v3222
        %3583 = vmatpush.bf16.xpose.msra.mxu0 %v3219
        %3584 = vmatpush.bf16.xpose.msra.mxu0 %v3216
        %3585 = vmatmul.bf16.gmra.mxu0 %v3165
        %v3586 = vpop.f32.mrf.mxu0
        %v3587 = vadd.f32 0.0, %v3586
        %v3588 = vpop.f32.mrf.mxu0
        %3589 = vdwg.mxu0
        %3590 = vmatpush.bf16.xpose.msra.mxu0 %v3261
        %3591 = vmatpush.bf16.xpose.msra.mxu0 %v3258
        %3592 = vmatpush.bf16.xpose.msra.mxu0 %v3255
        %3593 = vmatpush.bf16.xpose.msra.mxu0 %v3252
        %3594 = vmatpush.bf16.xpose.msra.mxu0 %v3249
        %3595 = vmatpush.bf16.xpose.msra.mxu0 %v3246
        %3596 = vmatpush.bf16.xpose.msra.mxu0 %v3243
        %3597 = vmatpush.bf16.xpose.msra.mxu0 %v3240
        %3598 = vmatmul.bf16.gmra.mxu0 %v3165
        %v3599 = vpop.f32.mrf.mxu0
        %v3600 = vadd.f32 0.0, %v3599
        %v3601 = vpop.f32.mrf.mxu0
        %3602 = vdwg.mxu0
        %3603 = vmatpush.bf16.xpose.msra.mxu0 %v3285
        %3604 = vmatpush.bf16.xpose.msra.mxu0 %v3282
        %3605 = vmatpush.bf16.xpose.msra.mxu0 %v3279
        %3606 = vmatpush.bf16.xpose.msra.mxu0 %v3276
        %3607 = vmatpush.bf16.xpose.msra.mxu0 %v3273
        %3608 = vmatpush.bf16.xpose.msra.mxu0 %v3270
        %3609 = vmatpush.bf16.xpose.msra.mxu0 %v3267
        %3610 = vmatpush.bf16.xpose.msra.mxu0 %v3264
        %3611 = vmatmul.bf16.gmra.mxu0 %v3165
        %v3612 = vpop.f32.mrf.mxu0
        %v3613 = vadd.f32 0.0, %v3612
        %v3614 = vpop.f32.mrf.mxu0
        %3615 = vdwg.mxu0
        %3616 = vmatpush.bf16.xpose.msra.mxu0 %v3309
        %3617 = vmatpush.bf16.xpose.msra.mxu0 %v3306
        %3618 = vmatpush.bf16.xpose.msra.mxu0 %v3303
        %3619 = vmatpush.bf16.xpose.msra.mxu0 %v3300
        %3620 = vmatpush.bf16.xpose.msra.mxu0 %v3297
        %3621 = vmatpush.bf16.xpose.msra.mxu0 %v3294
        %3622 = vmatpush.bf16.xpose.msra.mxu0 %v3291
        %3623 = vmatpush.bf16.xpose.msra.mxu0 %v3288
        %3624 = vmatmul.bf16.gmra.mxu0 %v3165
        %v3625 = vpop.f32.mrf.mxu0
        %v3626 = vadd.f32 0.0, %v3625
        %v3627 = vpop.f32.mrf.mxu0
        %3628 = vdwg.mxu0
        %3629 = vmatpush.bf16.xpose.msra.mxu0 %v3333
        %3630 = vmatpush.bf16.xpose.msra.mxu0 %v3330
        %3631 = vmatpush.bf16.xpose.msra.mxu0 %v3327
        %3632 = vmatpush.bf16.xpose.msra.mxu0 %v3324
        %3633 = vmatpush.bf16.xpose.msra.mxu0 %v3321
        %3634 = vmatpush.bf16.xpose.msra.mxu0 %v3318
        %3635 = vmatpush.bf16.xpose.msra.mxu0 %v3315
        %3636 = vmatpush.bf16.xpose.msra.mxu0 %v3312
        %3637 = vmatmul.bf16.gmra.mxu0 %v3165
        %v3638 = vpop.f32.mrf.mxu0
        %v3639 = vadd.f32 0.0, %v3638
        %v3640 = vpop.f32.mrf.mxu0
        %3641 = vdwg.mxu0
        %3642 = vmatpush.bf16.xpose.msra.mxu0 %v3357
        %3643 = vmatpush.bf16.xpose.msra.mxu0 %v3354
        %3644 = vmatpush.bf16.xpose.msra.mxu0 %v3351
        %3645 = vmatpush.bf16.xpose.msra.mxu0 %v3348
        %3646 = vmatpush.bf16.xpose.msra.mxu0 %v3345
        %3647 = vmatpush.bf16.xpose.msra.mxu0 %v3342
        %3648 = vmatpush.bf16.xpose.msra.mxu0 %v3339
        %3649 = vmatpush.bf16.xpose.msra.mxu0 %v3336
        %3650 = vmatmul.bf16.gmra.mxu0 %v3165
        %v3651 = vpop.f32.mrf.mxu0
        %v3652 = vadd.f32 0.0, %v3651
        %v3653 = vpop.f32.mrf.mxu0
        %3654 = vdwg.mxu0
        %3655 = vmatpush.bf16.xpose.msra.mxu0 %v3381
        %3656 = vmatpush.bf16.xpose.msra.mxu0 %v3378
        %3657 = vmatpush.bf16.xpose.msra.mxu0 %v3375
        %3658 = vmatpush.bf16.xpose.msra.mxu0 %v3372
        %3659 = vmatpush.bf16.xpose.msra.mxu0 %v3369
        %3660 = vmatpush.bf16.xpose.msra.mxu0 %v3366
        %3661 = vmatpush.bf16.xpose.msra.mxu0 %v3363
        %3662 = vmatpush.bf16.xpose.msra.mxu0 %v3360
        %3663 = vmatmul.bf16.gmra.mxu0 %v3165
        %v3664 = vpop.f32.mrf.mxu0
        %v3665 = vadd.f32 0.0, %v3664
        %v3666 = vpop.f32.mrf.mxu0
        %3667 = vdwg.mxu0
        %3668 = vmatpush.bf16.xpose.msra.mxu0 %v3405
        %3669 = vmatpush.bf16.xpose.msra.mxu0 %v3402
        %3670 = vmatpush.bf16.xpose.msra.mxu0 %v3399
        %3671 = vmatpush.bf16.xpose.msra.mxu0 %v3396
        %3672 = vmatpush.bf16.xpose.msra.mxu0 %v3393
        %3673 = vmatpush.bf16.xpose.msra.mxu0 %v3390
        %3674 = vmatpush.bf16.xpose.msra.mxu0 %v3387
        %3675 = vmatpush.bf16.xpose.msra.mxu0 %v3384
        %3676 = vmatmul.bf16.gmra.mxu0 %v3165
        %v3677 = vpop.f32.mrf.mxu0
        %v3678 = vadd.f32 0.0, %v3677
        %v3679 = vpop.f32.mrf.mxu0
        %3680 = vdwg.mxu0
        %3681 = vmatpush.bf16.xpose.msra.mxu0 %v3429
        %3682 = vmatpush.bf16.xpose.msra.mxu0 %v3426
        %3683 = vmatpush.bf16.xpose.msra.mxu0 %v3423
        %3684 = vmatpush.bf16.xpose.msra.mxu0 %v3420
        %3685 = vmatpush.bf16.xpose.msra.mxu0 %v3417
        %3686 = vmatpush.bf16.xpose.msra.mxu0 %v3414
        %3687 = vmatpush.bf16.xpose.msra.mxu0 %v3411
        %3688 = vmatpush.bf16.xpose.msra.mxu0 %v3408
        %3689 = vmatmul.bf16.gmra.mxu0 %v3165
        %v3690 = vpop.f32.mrf.mxu0
        %v3691 = vadd.f32 0.0, %v3690
        %v3692 = vpop.f32.mrf.mxu0
        %3693 = vdwg.mxu0
        %3694 = vmatpush.bf16.xpose.msra.mxu0 %v3453
        %3695 = vmatpush.bf16.xpose.msra.mxu0 %v3450
        %3696 = vmatpush.bf16.xpose.msra.mxu0 %v3447
        %3697 = vmatpush.bf16.xpose.msra.mxu0 %v3444
        %3698 = vmatpush.bf16.xpose.msra.mxu0 %v3441
        %3699 = vmatpush.bf16.xpose.msra.mxu0 %v3438
        %3700 = vmatpush.bf16.xpose.msra.mxu0 %v3435
        %3701 = vmatpush.bf16.xpose.msra.mxu0 %v3432
        %3702 = vmatmul.bf16.gmra.mxu0 %v3165
        %v3703 = vpop.f32.mrf.mxu0
        %v3704 = vadd.f32 0.0, %v3703
        %v3705 = vpop.f32.mrf.mxu0
        %3706 = vdwg.mxu0
        %3707 = vmatpush.bf16.xpose.msra.mxu0 %v3477
        %3708 = vmatpush.bf16.xpose.msra.mxu0 %v3474
        %3709 = vmatpush.bf16.xpose.msra.mxu0 %v3471
        %3710 = vmatpush.bf16.xpose.msra.mxu0 %v3468
        %3711 = vmatpush.bf16.xpose.msra.mxu0 %v3465
        %3712 = vmatpush.bf16.xpose.msra.mxu0 %v3462
        %3713 = vmatpush.bf16.xpose.msra.mxu0 %v3459
        %3714 = vmatpush.bf16.xpose.msra.mxu0 %v3456
        %3715 = vmatmul.bf16.gmra.mxu0 %v3165
        %v3716 = vpop.f32.mrf.mxu0
        %v3717 = vadd.f32 0.0, %v3716
        %v3718 = vpop.f32.mrf.mxu0
        %3719 = vdwg.mxu0
        %3720 = vmatpush.bf16.xpose.msra.mxu0 %v3501
        %3721 = vmatpush.bf16.xpose.msra.mxu0 %v3498
        %3722 = vmatpush.bf16.xpose.msra.mxu0 %v3495
        %3723 = vmatpush.bf16.xpose.msra.mxu0 %v3492
        %3724 = vmatpush.bf16.xpose.msra.mxu0 %v3489
        %3725 = vmatpush.bf16.xpose.msra.mxu0 %v3486
        %3726 = vmatpush.bf16.xpose.msra.mxu0 %v3483
        %3727 = vmatpush.bf16.xpose.msra.mxu0 %v3480
        %3728 = vmatmul.bf16.gmra.mxu0 %v3165
        %v3729 = vpop.f32.mrf.mxu0
        %v3730 = vadd.f32 0.0, %v3729
        %v3731 = vpop.f32.mrf.mxu0
        %3732 = vdwg.mxu0
        %3733 = vmatpush.bf16.xpose.msra.mxu0 %v3525
        %3734 = vmatpush.bf16.xpose.msra.mxu0 %v3522
        %3735 = vmatpush.bf16.xpose.msra.mxu0 %v3519
        %3736 = vmatpush.bf16.xpose.msra.mxu0 %v3516
        %3737 = vmatpush.bf16.xpose.msra.mxu0 %v3513
        %3738 = vmatpush.bf16.xpose.msra.mxu0 %v3510
        %3739 = vmatpush.bf16.xpose.msra.mxu0 %v3507
        %3740 = vmatpush.bf16.xpose.msra.mxu0 %v3504
        %3741 = vmatmul.bf16.gmra.mxu0 %v3165
        %v3742 = vpop.f32.mrf.mxu0
        %v3743 = vadd.f32 0.0, %v3742
        %v3744 = vpop.f32.mrf.mxu0
        %3745 = vdwg.mxu0
        %3746 = vmatpush.bf16.xpose.msra.mxu0 %v3549
        %3747 = vmatpush.bf16.xpose.msra.mxu0 %v3546
        %3748 = vmatpush.bf16.xpose.msra.mxu0 %v3543
        %3749 = vmatpush.bf16.xpose.msra.mxu0 %v3540
        %3750 = vmatpush.bf16.xpose.msra.mxu0 %v3537
        %3751 = vmatpush.bf16.xpose.msra.mxu0 %v3534
        %3752 = vmatpush.bf16.xpose.msra.mxu0 %v3531
        %3753 = vmatpush.bf16.xpose.msra.mxu0 %v3528
        %3754 = vmatmul.bf16.gmra.mxu0 %v3165
        %v3755 = vpop.f32.mrf.mxu0
        %v3756 = vadd.f32 0.0, %v3755
        %v3757 = vpop.f32.mrf.mxu0
        %3758 = vdwg.mxu0
        %v3759 = vperm.slane %v3561, 0
        %v3760 = vperm.slane %v3574, 0
        %v3761 = vperm.slane %v3587, 0
        %v3762 = vperm.slane %v3600, 0
        %v3763 = vperm.slane %v3613, 0
        %v3764 = vperm.slane %v3626, 0
        %v3765 = vperm.slane %v3639, 0
        %v3766 = vperm.slane %v3652, 0
        %v3767 = vperm.slane %v3665, 0
        %v3768 = vperm.slane %v3678, 0
        %v3769 = vperm.slane %v3691, 0
        %v3770 = vperm.slane %v3704, 0
        %v3771 = vperm.slane %v3717, 0
        %v3772 = vperm.slane %v3730, 0
        %v3773 = vperm.slane %v3743, 0
        %v3774 = vperm.slane %v3756, 0
        %v3775 = vsub.f32 %v1784, %v3759
        %v3776 = vsub.f32 %v1785, %v3760
        %v3777 = vsub.f32 %v1786, %v3761
        %v3778 = vsub.f32 %v1787, %v3762
        %v3779 = vsub.f32 %v1788, %v3763
        %v3780 = vsub.f32 %v1789, %v3764
        %v3781 = vsub.f32 %v1790, %v3765
        %v3782 = vsub.f32 %v1791, %v3766
        %v3783 = vsub.f32 %v1792, %v3767
        %v3784 = vsub.f32 %v1793, %v3768
        %v3785 = vsub.f32 %v1794, %v3769
        %v3786 = vsub.f32 %v1795, %v3770
        %v3787 = vsub.f32 %v1796, %v3771
        %v3788 = vsub.f32 %v1797, %v3772
        %v3789 = vsub.f32 %v1798, %v3773
        %v3790 = vsub.f32 %v1799, %v3774
        %v3791 = vmul.f32 %v3775, %v3775
        %v3792 = vmul.f32 %v3776, %v3776
        %v3793 = vmul.f32 %v3777, %v3777
        %v3794 = vmul.f32 %v3778, %v3778
        %v3795 = vmul.f32 %v3779, %v3779
        %v3796 = vmul.f32 %v3780, %v3780
        %v3797 = vmul.f32 %v3781, %v3781
        %v3798 = vmul.f32 %v3782, %v3782
        %v3799 = vmul.f32 %v3783, %v3783
        %v3800 = vmul.f32 %v3784, %v3784
        %v3801 = vmul.f32 %v3785, %v3785
        %v3802 = vmul.f32 %v3786, %v3786
        %v3803 = vmul.f32 %v3787, %v3787
        %v3804 = vmul.f32 %v3788, %v3788
        %v3805 = vmul.f32 %v3789, %v3789
        %v3806 = vmul.f32 %v3790, %v3790
        %v3807 = vsel %vm1800, %v3791, 0.0
        %v3808 = vrot.slane %v3807, 4
        %v3809 = vadd.f32 %v3807, %v3808
        %v3810 = vrot.slane %v3809, 2
        %v3811 = vadd.f32 %v3809, %v3810
        %v3812 = vrot.slane %v3811, 1
        %v3813 = vadd.f32 %v3811, %v3812
        %v3814 = vsel %vm1800, %v3792, 0.0
        %v3815 = vrot.slane %v3814, 4
        %v3816 = vadd.f32 %v3814, %v3815
        %v3817 = vrot.slane %v3816, 2
        %v3818 = vadd.f32 %v3816, %v3817
        %v3819 = vrot.slane %v3818, 1
        %v3820 = vadd.f32 %v3818, %v3819
        %v3821 = vsel %vm1800, %v3793, 0.0
        %v3822 = vrot.slane %v3821, 4
        %v3823 = vadd.f32 %v3821, %v3822
        %v3824 = vrot.slane %v3823, 2
        %v3825 = vadd.f32 %v3823, %v3824
        %v3826 = vrot.slane %v3825, 1
        %v3827 = vadd.f32 %v3825, %v3826
        %v3828 = vsel %vm1800, %v3794, 0.0
        %v3829 = vrot.slane %v3828, 4
        %v3830 = vadd.f32 %v3828, %v3829
        %v3831 = vrot.slane %v3830, 2
        %v3832 = vadd.f32 %v3830, %v3831
        %v3833 = vrot.slane %v3832, 1
        %v3834 = vadd.f32 %v3832, %v3833
        %v3835 = vsel %vm1800, %v3795, 0.0
        %v3836 = vrot.slane %v3835, 4
        %v3837 = vadd.f32 %v3835, %v3836
        %v3838 = vrot.slane %v3837, 2
        %v3839 = vadd.f32 %v3837, %v3838
        %v3840 = vrot.slane %v3839, 1
        %v3841 = vadd.f32 %v3839, %v3840
        %v3842 = vsel %vm1800, %v3796, 0.0
        %v3843 = vrot.slane %v3842, 4
        %v3844 = vadd.f32 %v3842, %v3843
        %v3845 = vrot.slane %v3844, 2
        %v3846 = vadd.f32 %v3844, %v3845
        %v3847 = vrot.slane %v3846, 1
        %v3848 = vadd.f32 %v3846, %v3847
        %v3849 = vsel %vm1800, %v3797, 0.0
        %v3850 = vrot.slane %v3849, 4
        %v3851 = vadd.f32 %v3849, %v3850
        %v3852 = vrot.slane %v3851, 2
        %v3853 = vadd.f32 %v3851, %v3852
        %v3854 = vrot.slane %v3853, 1
        %v3855 = vadd.f32 %v3853, %v3854
        %v3856 = vsel %vm1800, %v3798, 0.0
        %v3857 = vrot.slane %v3856, 4
        %v3858 = vadd.f32 %v3856, %v3857
        %v3859 = vrot.slane %v3858, 2
        %v3860 = vadd.f32 %v3858, %v3859
        %v3861 = vrot.slane %v3860, 1
        %v3862 = vadd.f32 %v3860, %v3861
        %v3863 = vsel %vm1800, %v3799, 0.0
        %v3864 = vrot.slane %v3863, 4
        %v3865 = vadd.f32 %v3863, %v3864
        %v3866 = vrot.slane %v3865, 2
        %v3867 = vadd.f32 %v3865, %v3866
        %v3868 = vrot.slane %v3867, 1
        %v3869 = vadd.f32 %v3867, %v3868
        %v3870 = vsel %vm1800, %v3800, 0.0
        %v3871 = vrot.slane %v3870, 4
        %v3872 = vadd.f32 %v3870, %v3871
        %v3873 = vrot.slane %v3872, 2
        %v3874 = vadd.f32 %v3872, %v3873
        %v3875 = vrot.slane %v3874, 1
        %v3876 = vadd.f32 %v3874, %v3875
        %v3877 = vsel %vm1800, %v3801, 0.0
        %v3878 = vrot.slane %v3877, 4
        %v3879 = vadd.f32 %v3877, %v3878
        %v3880 = vrot.slane %v3879, 2
        %v3881 = vadd.f32 %v3879, %v3880
        %v3882 = vrot.slane %v3881, 1
        %v3883 = vadd.f32 %v3881, %v3882
        %v3884 = vsel %vm1800, %v3802, 0.0
        %v3885 = vrot.slane %v3884, 4
        %v3886 = vadd.f32 %v3884, %v3885
        %v3887 = vrot.slane %v3886, 2
        %v3888 = vadd.f32 %v3886, %v3887
        %v3889 = vrot.slane %v3888, 1
        %v3890 = vadd.f32 %v3888, %v3889
        %v3891 = vsel %vm1800, %v3803, 0.0
        %v3892 = vrot.slane %v3891, 4
        %v3893 = vadd.f32 %v3891, %v3892
        %v3894 = vrot.slane %v3893, 2
        %v3895 = vadd.f32 %v3893, %v3894
        %v3896 = vrot.slane %v3895, 1
        %v3897 = vadd.f32 %v3895, %v3896
        %v3898 = vsel %vm1800, %v3804, 0.0
        %v3899 = vrot.slane %v3898, 4
        %v3900 = vadd.f32 %v3898, %v3899
        %v3901 = vrot.slane %v3900, 2
        %v3902 = vadd.f32 %v3900, %v3901
        %v3903 = vrot.slane %v3902, 1
        %v3904 = vadd.f32 %v3902, %v3903
        %v3905 = vsel %vm1800, %v3805, 0.0
        %v3906 = vrot.slane %v3905, 4
        %v3907 = vadd.f32 %v3905, %v3906
        %v3908 = vrot.slane %v3907, 2
        %v3909 = vadd.f32 %v3907, %v3908
        %v3910 = vrot.slane %v3909, 1
        %v3911 = vadd.f32 %v3909, %v3910
        %v3912 = vsel %vm1800, %v3806, 0.0
        %v3913 = vrot.slane %v3912, 4
        %v3914 = vadd.f32 %v3912, %v3913
        %v3915 = vrot.slane %v3914, 2
        %v3916 = vadd.f32 %v3914, %v3915
        %v3917 = vrot.slane %v3916, 1
        %v3918 = vadd.f32 %v3916, %v3917
        %v3919 = vpack.c.bf16 %v3813, %v3813
        %v3920 = vpack.c.bf16 %v3820, %v3820
        %v3921 = vpack.c.bf16 %v3827, %v3827
        %v3922 = vpack.c.bf16 %v3834, %v3834
        %v3923 = vpack.c.bf16 %v3841, %v3841
        %v3924 = vpack.c.bf16 %v3848, %v3848
        %v3925 = vpack.c.bf16 %v3855, %v3855
        %v3926 = vpack.c.bf16 %v3862, %v3862
        %v3927 = vpack.c.bf16 %v3869, %v3869
        %v3928 = vpack.c.bf16 %v3876, %v3876
        %v3929 = vpack.c.bf16 %v3883, %v3883
        %v3930 = vpack.c.bf16 %v3890, %v3890
        %v3931 = vpack.c.bf16 %v3897, %v3897
        %v3932 = vpack.c.bf16 %v3904, %v3904
        %v3933 = vpack.c.bf16 %v3911, %v3911
        %v3934 = vpack.c.bf16 %v3918, %v3918
        %3935 = vmatpush.bf16.msra.mxu0 %v2704
        %3936 = vmatpush.bf16.msra.mxu0 %v2703
        %3937 = vmatpush.bf16.msra.mxu0 %v2702
        %3938 = vmatpush.bf16.msra.mxu0 %v2701
        %3939 = vmatpush.bf16.msra.mxu0 %v2700
        %3940 = vmatpush.bf16.msra.mxu0 %v2699
        %3941 = vmatpush.bf16.msra.mxu0 %v2698
        %3942 = vmatpush.bf16.msra.mxu0 %v2697
        %3943 = vmatmul.bf16.gmra.mxu0 %v3919
        %v3944 = vpop.f32.mrf.mxu0
        %v3945 = vadd.f32 0.0, %v3944
        %v3946 = vpop.f32.mrf.mxu0
        %3947 = vdwg.mxu0
        %3948 = vmatpush.bf16.msra.mxu0 %v2712
        %3949 = vmatpush.bf16.msra.mxu0 %v2711
        %3950 = vmatpush.bf16.msra.mxu0 %v2710
        %3951 = vmatpush.bf16.msra.mxu0 %v2709
        %3952 = vmatpush.bf16.msra.mxu0 %v2708
        %3953 = vmatpush.bf16.msra.mxu0 %v2707
        %3954 = vmatpush.bf16.msra.mxu0 %v2706
        %3955 = vmatpush.bf16.msra.mxu0 %v2705
        %3956 = vmatmul.bf16.gmra.mxu0 %v3920
        %v3957 = vpop.f32.mrf.mxu0
        %v3958 = vadd.f32 %v3945, %v3957
        %v3959 = vpop.f32.mrf.mxu0
        %3960 = vdwg.mxu0
        %3961 = vmatpush.bf16.msra.mxu0 %v2720
        %3962 = vmatpush.bf16.msra.mxu0 %v2719
        %3963 = vmatpush.bf16.msra.mxu0 %v2718
        %3964 = vmatpush.bf16.msra.mxu0 %v2717
        %3965 = vmatpush.bf16.msra.mxu0 %v2716
        %3966 = vmatpush.bf16.msra.mxu0 %v2715
        %3967 = vmatpush.bf16.msra.mxu0 %v2714
        %3968 = vmatpush.bf16.msra.mxu0 %v2713
        %3969 = vmatmul.bf16.gmra.mxu0 %v3921
        %v3970 = vpop.f32.mrf.mxu0
        %v3971 = vadd.f32 %v3958, %v3970
        %v3972 = vpop.f32.mrf.mxu0
        %3973 = vdwg.mxu0
        %3974 = vmatpush.bf16.msra.mxu0 %v2728
        %3975 = vmatpush.bf16.msra.mxu0 %v2727
        %3976 = vmatpush.bf16.msra.mxu0 %v2726
        %3977 = vmatpush.bf16.msra.mxu0 %v2725
        %3978 = vmatpush.bf16.msra.mxu0 %v2724
        %3979 = vmatpush.bf16.msra.mxu0 %v2723
        %3980 = vmatpush.bf16.msra.mxu0 %v2722
        %3981 = vmatpush.bf16.msra.mxu0 %v2721
        %3982 = vmatmul.bf16.gmra.mxu0 %v3922
        %v3983 = vpop.f32.mrf.mxu0
        %v3984 = vadd.f32 %v3971, %v3983
        %v3985 = vpop.f32.mrf.mxu0
        %3986 = vdwg.mxu0
        %3987 = vmatpush.bf16.msra.mxu0 %v2736
        %3988 = vmatpush.bf16.msra.mxu0 %v2735
        %3989 = vmatpush.bf16.msra.mxu0 %v2734
        %3990 = vmatpush.bf16.msra.mxu0 %v2733
        %3991 = vmatpush.bf16.msra.mxu0 %v2732
        %3992 = vmatpush.bf16.msra.mxu0 %v2731
        %3993 = vmatpush.bf16.msra.mxu0 %v2730
        %3994 = vmatpush.bf16.msra.mxu0 %v2729
        %3995 = vmatmul.bf16.gmra.mxu0 %v3923
        %v3996 = vpop.f32.mrf.mxu0
        %v3997 = vadd.f32 %v3984, %v3996
        %v3998 = vpop.f32.mrf.mxu0
        %3999 = vdwg.mxu0
        %4000 = vmatpush.bf16.msra.mxu0 %v2744
        %4001 = vmatpush.bf16.msra.mxu0 %v2743
        %4002 = vmatpush.bf16.msra.mxu0 %v2742
        %4003 = vmatpush.bf16.msra.mxu0 %v2741
        %4004 = vmatpush.bf16.msra.mxu0 %v2740
        %4005 = vmatpush.bf16.msra.mxu0 %v2739
        %4006 = vmatpush.bf16.msra.mxu0 %v2738
        %4007 = vmatpush.bf16.msra.mxu0 %v2737
        %4008 = vmatmul.bf16.gmra.mxu0 %v3924
        %v4009 = vpop.f32.mrf.mxu0
        %v4010 = vadd.f32 %v3997, %v4009
        %v4011 = vpop.f32.mrf.mxu0
        %4012 = vdwg.mxu0
        %4013 = vmatpush.bf16.msra.mxu0 %v2752
        %4014 = vmatpush.bf16.msra.mxu0 %v2751
        %4015 = vmatpush.bf16.msra.mxu0 %v2750
        %4016 = vmatpush.bf16.msra.mxu0 %v2749
        %4017 = vmatpush.bf16.msra.mxu0 %v2748
        %4018 = vmatpush.bf16.msra.mxu0 %v2747
        %4019 = vmatpush.bf16.msra.mxu0 %v2746
        %4020 = vmatpush.bf16.msra.mxu0 %v2745
        %4021 = vmatmul.bf16.gmra.mxu0 %v3925
        %v4022 = vpop.f32.mrf.mxu0
        %v4023 = vadd.f32 %v4010, %v4022
        %v4024 = vpop.f32.mrf.mxu0
        %4025 = vdwg.mxu0
        %4026 = vmatpush.bf16.msra.mxu0 %v2760
        %4027 = vmatpush.bf16.msra.mxu0 %v2759
        %4028 = vmatpush.bf16.msra.mxu0 %v2758
        %4029 = vmatpush.bf16.msra.mxu0 %v2757
        %4030 = vmatpush.bf16.msra.mxu0 %v2756
        %4031 = vmatpush.bf16.msra.mxu0 %v2755
        %4032 = vmatpush.bf16.msra.mxu0 %v2754
        %4033 = vmatpush.bf16.msra.mxu0 %v2753
        %4034 = vmatmul.bf16.gmra.mxu0 %v3926
        %v4035 = vpop.f32.mrf.mxu0
        %v4036 = vadd.f32 %v4023, %v4035
        %v4037 = vpop.f32.mrf.mxu0
        %4038 = vdwg.mxu0
        %4039 = vmatpush.bf16.msra.mxu0 %v2768
        %4040 = vmatpush.bf16.msra.mxu0 %v2767
        %4041 = vmatpush.bf16.msra.mxu0 %v2766
        %4042 = vmatpush.bf16.msra.mxu0 %v2765
        %4043 = vmatpush.bf16.msra.mxu0 %v2764
        %4044 = vmatpush.bf16.msra.mxu0 %v2763
        %4045 = vmatpush.bf16.msra.mxu0 %v2762
        %4046 = vmatpush.bf16.msra.mxu0 %v2761
        %4047 = vmatmul.bf16.gmra.mxu0 %v3927
        %v4048 = vpop.f32.mrf.mxu0
        %v4049 = vadd.f32 %v4036, %v4048
        %v4050 = vpop.f32.mrf.mxu0
        %4051 = vdwg.mxu0
        %4052 = vmatpush.bf16.msra.mxu0 %v2776
        %4053 = vmatpush.bf16.msra.mxu0 %v2775
        %4054 = vmatpush.bf16.msra.mxu0 %v2774
        %4055 = vmatpush.bf16.msra.mxu0 %v2773
        %4056 = vmatpush.bf16.msra.mxu0 %v2772
        %4057 = vmatpush.bf16.msra.mxu0 %v2771
        %4058 = vmatpush.bf16.msra.mxu0 %v2770
        %4059 = vmatpush.bf16.msra.mxu0 %v2769
        %4060 = vmatmul.bf16.gmra.mxu0 %v3928
        %v4061 = vpop.f32.mrf.mxu0
        %v4062 = vadd.f32 %v4049, %v4061
        %v4063 = vpop.f32.mrf.mxu0
        %4064 = vdwg.mxu0
        %4065 = vmatpush.bf16.msra.mxu0 %v2784
        %4066 = vmatpush.bf16.msra.mxu0 %v2783
        %4067 = vmatpush.bf16.msra.mxu0 %v2782
        %4068 = vmatpush.bf16.msra.mxu0 %v2781
        %4069 = vmatpush.bf16.msra.mxu0 %v2780
        %4070 = vmatpush.bf16.msra.mxu0 %v2779
        %4071 = vmatpush.bf16.msra.mxu0 %v2778
        %4072 = vmatpush.bf16.msra.mxu0 %v2777
        %4073 = vmatmul.bf16.gmra.mxu0 %v3929
        %v4074 = vpop.f32.mrf.mxu0
        %v4075 = vadd.f32 %v4062, %v4074
        %v4076 = vpop.f32.mrf.mxu0
        %4077 = vdwg.mxu0
        %4078 = vmatpush.bf16.msra.mxu0 %v2792
        %4079 = vmatpush.bf16.msra.mxu0 %v2791
        %4080 = vmatpush.bf16.msra.mxu0 %v2790
        %4081 = vmatpush.bf16.msra.mxu0 %v2789
        %4082 = vmatpush.bf16.msra.mxu0 %v2788
        %4083 = vmatpush.bf16.msra.mxu0 %v2787
        %4084 = vmatpush.bf16.msra.mxu0 %v2786
        %4085 = vmatpush.bf16.msra.mxu0 %v2785
        %4086 = vmatmul.bf16.gmra.mxu0 %v3930
        %v4087 = vpop.f32.mrf.mxu0
        %v4088 = vadd.f32 %v4075, %v4087
        %v4089 = vpop.f32.mrf.mxu0
        %4090 = vdwg.mxu0
        %4091 = vmatpush.bf16.msra.mxu0 %v2800
        %4092 = vmatpush.bf16.msra.mxu0 %v2799
        %4093 = vmatpush.bf16.msra.mxu0 %v2798
        %4094 = vmatpush.bf16.msra.mxu0 %v2797
        %4095 = vmatpush.bf16.msra.mxu0 %v2796
        %4096 = vmatpush.bf16.msra.mxu0 %v2795
        %4097 = vmatpush.bf16.msra.mxu0 %v2794
        %4098 = vmatpush.bf16.msra.mxu0 %v2793
        %4099 = vmatmul.bf16.gmra.mxu0 %v3931
        %v4100 = vpop.f32.mrf.mxu0
        %v4101 = vadd.f32 %v4088, %v4100
        %v4102 = vpop.f32.mrf.mxu0
        %4103 = vdwg.mxu0
        %4104 = vmatpush.bf16.msra.mxu0 %v2808
        %4105 = vmatpush.bf16.msra.mxu0 %v2807
        %4106 = vmatpush.bf16.msra.mxu0 %v2806
        %4107 = vmatpush.bf16.msra.mxu0 %v2805
        %4108 = vmatpush.bf16.msra.mxu0 %v2804
        %4109 = vmatpush.bf16.msra.mxu0 %v2803
        %4110 = vmatpush.bf16.msra.mxu0 %v2802
        %4111 = vmatpush.bf16.msra.mxu0 %v2801
        %4112 = vmatmul.bf16.gmra.mxu0 %v3932
        %v4113 = vpop.f32.mrf.mxu0
        %v4114 = vadd.f32 %v4101, %v4113
        %v4115 = vpop.f32.mrf.mxu0
        %4116 = vdwg.mxu0
        %4117 = vmatpush.bf16.msra.mxu0 %v2816
        %4118 = vmatpush.bf16.msra.mxu0 %v2815
        %4119 = vmatpush.bf16.msra.mxu0 %v2814
        %4120 = vmatpush.bf16.msra.mxu0 %v2813
        %4121 = vmatpush.bf16.msra.mxu0 %v2812
        %4122 = vmatpush.bf16.msra.mxu0 %v2811
        %4123 = vmatpush.bf16.msra.mxu0 %v2810
        %4124 = vmatpush.bf16.msra.mxu0 %v2809
        %4125 = vmatmul.bf16.gmra.mxu0 %v3933
        %v4126 = vpop.f32.mrf.mxu0
        %v4127 = vadd.f32 %v4114, %v4126
        %v4128 = vpop.f32.mrf.mxu0
        %4129 = vdwg.mxu0
        %4130 = vmatpush.bf16.msra.mxu0 %v2824
        %4131 = vmatpush.bf16.msra.mxu0 %v2823
        %4132 = vmatpush.bf16.msra.mxu0 %v2822
        %4133 = vmatpush.bf16.msra.mxu0 %v2821
        %4134 = vmatpush.bf16.msra.mxu0 %v2820
        %4135 = vmatpush.bf16.msra.mxu0 %v2819
        %4136 = vmatpush.bf16.msra.mxu0 %v2818
        %4137 = vmatpush.bf16.msra.mxu0 %v2817
        %4138 = vmatmul.bf16.gmra.mxu0 %v3934
        %v4139 = vpop.f32.mrf.mxu0
        %v4140 = vadd.f32 %v4127, %v4139
        %v4141 = vpop.f32.mrf.mxu0
        %4142 = vdwg.mxu0
        %v4143 = vmul.f32 %v4140, 0.0078125
        %v4144 = vld [vmem:[%s928] sm:$0x1]
        %v4145 = vadd.f32 %v4143, 1e-05
        %v4146 = vrsqrt.pop %v4145
        %v4147 = vmul.f32 %v4146, %v4145
        %v4148 = vmul.f32 %v4147, %v4146
        %v4149 = vmul.f32 0.5, %v4148
        %v4150 = vsub.f32 1.5, %v4149
        %v4151 = vmul.f32 %v4146, %v4150
        %vm4152 = vweird.f32 %v4145
        %vm4153 = vweird.f32 %v4146
        %vm4154 = vmor %vm4152, %vm4153
        %v4155 = vsel %vm4154, %v4146, %v4151
        %v4156 = vmul.f32 %v4144, %v4155
        %v4157 = vpack.c.bf16 %v4156, %v4156
        %v4159 = vsel %vm3163, %v4157, 0
        %4161 = vmatpush.bf16.xpose.msra.mxu0 %v3189
        %4162 = vmatpush.bf16.xpose.msra.mxu0 %v3186
        %4163 = vmatpush.bf16.xpose.msra.mxu0 %v3183
        %4164 = vmatpush.bf16.xpose.msra.mxu0 %v3180
        %4165 = vmatpush.bf16.xpose.msra.mxu0 %v3177
        %4166 = vmatpush.bf16.xpose.msra.mxu0 %v3174
        %4167 = vmatpush.bf16.xpose.msra.mxu0 %v3171
        %4168 = vmatpush.bf16.xpose.msra.mxu0 %v3168
        %4169 = vmatmul.bf16.gmra.mxu0 %v4159
        %v4170 = vpop.f32.mrf.mxu0
        %v4171 = vadd.f32 0.0, %v4170
        %v4172 = vpop.f32.mrf.mxu0
        %4173 = vdwg.mxu0
        %4174 = vmatpush.bf16.xpose.msra.mxu0 %v3213
        %4175 = vmatpush.bf16.xpose.msra.mxu0 %v3210
        %4176 = vmatpush.bf16.xpose.msra.mxu0 %v3207
        %4177 = vmatpush.bf16.xpose.msra.mxu0 %v3204
        %4178 = vmatpush.bf16.xpose.msra.mxu0 %v3201
        %4179 = vmatpush.bf16.xpose.msra.mxu0 %v3198
        %4180 = vmatpush.bf16.xpose.msra.mxu0 %v3195
        %4181 = vmatpush.bf16.xpose.msra.mxu0 %v3192
        %4182 = vmatmul.bf16.gmra.mxu0 %v4159
        %v4183 = vpop.f32.mrf.mxu0
        %v4184 = vadd.f32 0.0, %v4183
        %v4185 = vpop.f32.mrf.mxu0
        %4186 = vdwg.mxu0
        %4187 = vmatpush.bf16.xpose.msra.mxu0 %v3237
        %4188 = vmatpush.bf16.xpose.msra.mxu0 %v3234
        %4189 = vmatpush.bf16.xpose.msra.mxu0 %v3231
        %4190 = vmatpush.bf16.xpose.msra.mxu0 %v3228
        %4191 = vmatpush.bf16.xpose.msra.mxu0 %v3225
        %4192 = vmatpush.bf16.xpose.msra.mxu0 %v3222
        %4193 = vmatpush.bf16.xpose.msra.mxu0 %v3219
        %4194 = vmatpush.bf16.xpose.msra.mxu0 %v3216
        %4195 = vmatmul.bf16.gmra.mxu0 %v4159
        %v4196 = vpop.f32.mrf.mxu0
        %v4197 = vadd.f32 0.0, %v4196
        %v4198 = vpop.f32.mrf.mxu0
        %4199 = vdwg.mxu0
        %4200 = vmatpush.bf16.xpose.msra.mxu0 %v3261
        %4201 = vmatpush.bf16.xpose.msra.mxu0 %v3258
        %4202 = vmatpush.bf16.xpose.msra.mxu0 %v3255
        %4203 = vmatpush.bf16.xpose.msra.mxu0 %v3252
        %4204 = vmatpush.bf16.xpose.msra.mxu0 %v3249
        %4205 = vmatpush.bf16.xpose.msra.mxu0 %v3246
        %4206 = vmatpush.bf16.xpose.msra.mxu0 %v3243
        %4207 = vmatpush.bf16.xpose.msra.mxu0 %v3240
        %4208 = vmatmul.bf16.gmra.mxu0 %v4159
        %v4209 = vpop.f32.mrf.mxu0
        %v4210 = vadd.f32 0.0, %v4209
        %v4211 = vpop.f32.mrf.mxu0
        %4212 = vdwg.mxu0
        %4213 = vmatpush.bf16.xpose.msra.mxu0 %v3285
        %4214 = vmatpush.bf16.xpose.msra.mxu0 %v3282
        %4215 = vmatpush.bf16.xpose.msra.mxu0 %v3279
        %4216 = vmatpush.bf16.xpose.msra.mxu0 %v3276
        %4217 = vmatpush.bf16.xpose.msra.mxu0 %v3273
        %4218 = vmatpush.bf16.xpose.msra.mxu0 %v3270
        %4219 = vmatpush.bf16.xpose.msra.mxu0 %v3267
        %4220 = vmatpush.bf16.xpose.msra.mxu0 %v3264
        %4221 = vmatmul.bf16.gmra.mxu0 %v4159
        %v4222 = vpop.f32.mrf.mxu0
        %v4223 = vadd.f32 0.0, %v4222
        %v4224 = vpop.f32.mrf.mxu0
        %4225 = vdwg.mxu0
        %4226 = vmatpush.bf16.xpose.msra.mxu0 %v3309
        %4227 = vmatpush.bf16.xpose.msra.mxu0 %v3306
        %4228 = vmatpush.bf16.xpose.msra.mxu0 %v3303
        %4229 = vmatpush.bf16.xpose.msra.mxu0 %v3300
        %4230 = vmatpush.bf16.xpose.msra.mxu0 %v3297
        %4231 = vmatpush.bf16.xpose.msra.mxu0 %v3294
        %4232 = vmatpush.bf16.xpose.msra.mxu0 %v3291
        %4233 = vmatpush.bf16.xpose.msra.mxu0 %v3288
        %4234 = vmatmul.bf16.gmra.mxu0 %v4159
        %v4235 = vpop.f32.mrf.mxu0
        %v4236 = vadd.f32 0.0, %v4235
        %v4237 = vpop.f32.mrf.mxu0
        %4238 = vdwg.mxu0
        %4239 = vmatpush.bf16.xpose.msra.mxu0 %v3333
        %4240 = vmatpush.bf16.xpose.msra.mxu0 %v3330
        %4241 = vmatpush.bf16.xpose.msra.mxu0 %v3327
        %4242 = vmatpush.bf16.xpose.msra.mxu0 %v3324
        %4243 = vmatpush.bf16.xpose.msra.mxu0 %v3321
        %4244 = vmatpush.bf16.xpose.msra.mxu0 %v3318
        %4245 = vmatpush.bf16.xpose.msra.mxu0 %v3315
        %4246 = vmatpush.bf16.xpose.msra.mxu0 %v3312
        %4247 = vmatmul.bf16.gmra.mxu0 %v4159
        %v4248 = vpop.f32.mrf.mxu0
        %v4249 = vadd.f32 0.0, %v4248
        %v4250 = vpop.f32.mrf.mxu0
        %4251 = vdwg.mxu0
        %4252 = vmatpush.bf16.xpose.msra.mxu0 %v3357
        %4253 = vmatpush.bf16.xpose.msra.mxu0 %v3354
        %4254 = vmatpush.bf16.xpose.msra.mxu0 %v3351
        %4255 = vmatpush.bf16.xpose.msra.mxu0 %v3348
        %4256 = vmatpush.bf16.xpose.msra.mxu0 %v3345
        %4257 = vmatpush.bf16.xpose.msra.mxu0 %v3342
        %4258 = vmatpush.bf16.xpose.msra.mxu0 %v3339
        %4259 = vmatpush.bf16.xpose.msra.mxu0 %v3336
        %4260 = vmatmul.bf16.gmra.mxu0 %v4159
        %v4261 = vpop.f32.mrf.mxu0
        %v4262 = vadd.f32 0.0, %v4261
        %v4263 = vpop.f32.mrf.mxu0
        %4264 = vdwg.mxu0
        %4265 = vmatpush.bf16.xpose.msra.mxu0 %v3381
        %4266 = vmatpush.bf16.xpose.msra.mxu0 %v3378
        %4267 = vmatpush.bf16.xpose.msra.mxu0 %v3375
        %4268 = vmatpush.bf16.xpose.msra.mxu0 %v3372
        %4269 = vmatpush.bf16.xpose.msra.mxu0 %v3369
        %4270 = vmatpush.bf16.xpose.msra.mxu0 %v3366
        %4271 = vmatpush.bf16.xpose.msra.mxu0 %v3363
        %4272 = vmatpush.bf16.xpose.msra.mxu0 %v3360
        %4273 = vmatmul.bf16.gmra.mxu0 %v4159
        %v4274 = vpop.f32.mrf.mxu0
        %v4275 = vadd.f32 0.0, %v4274
        %v4276 = vpop.f32.mrf.mxu0
        %4277 = vdwg.mxu0
        %4278 = vmatpush.bf16.xpose.msra.mxu0 %v3405
        %4279 = vmatpush.bf16.xpose.msra.mxu0 %v3402
        %4280 = vmatpush.bf16.xpose.msra.mxu0 %v3399
        %4281 = vmatpush.bf16.xpose.msra.mxu0 %v3396
        %4282 = vmatpush.bf16.xpose.msra.mxu0 %v3393
        %4283 = vmatpush.bf16.xpose.msra.mxu0 %v3390
        %4284 = vmatpush.bf16.xpose.msra.mxu0 %v3387
        %4285 = vmatpush.bf16.xpose.msra.mxu0 %v3384
        %4286 = vmatmul.bf16.gmra.mxu0 %v4159
        %v4287 = vpop.f32.mrf.mxu0
        %v4288 = vadd.f32 0.0, %v4287
        %v4289 = vpop.f32.mrf.mxu0
        %4290 = vdwg.mxu0
        %4291 = vmatpush.bf16.xpose.msra.mxu0 %v3429
        %4292 = vmatpush.bf16.xpose.msra.mxu0 %v3426
        %4293 = vmatpush.bf16.xpose.msra.mxu0 %v3423
        %4294 = vmatpush.bf16.xpose.msra.mxu0 %v3420
        %4295 = vmatpush.bf16.xpose.msra.mxu0 %v3417
        %4296 = vmatpush.bf16.xpose.msra.mxu0 %v3414
        %4297 = vmatpush.bf16.xpose.msra.mxu0 %v3411
        %4298 = vmatpush.bf16.xpose.msra.mxu0 %v3408
        %4299 = vmatmul.bf16.gmra.mxu0 %v4159
        %v4300 = vpop.f32.mrf.mxu0
        %v4301 = vadd.f32 0.0, %v4300
        %v4302 = vpop.f32.mrf.mxu0
        %4303 = vdwg.mxu0
        %4304 = vmatpush.bf16.xpose.msra.mxu0 %v3453
        %4305 = vmatpush.bf16.xpose.msra.mxu0 %v3450
        %4306 = vmatpush.bf16.xpose.msra.mxu0 %v3447
        %4307 = vmatpush.bf16.xpose.msra.mxu0 %v3444
        %4308 = vmatpush.bf16.xpose.msra.mxu0 %v3441
        %4309 = vmatpush.bf16.xpose.msra.mxu0 %v3438
        %4310 = vmatpush.bf16.xpose.msra.mxu0 %v3435
        %4311 = vmatpush.bf16.xpose.msra.mxu0 %v3432
        %4312 = vmatmul.bf16.gmra.mxu0 %v4159
        %v4313 = vpop.f32.mrf.mxu0
        %v4314 = vadd.f32 0.0, %v4313
        %v4315 = vpop.f32.mrf.mxu0
        %4316 = vdwg.mxu0
        %4317 = vmatpush.bf16.xpose.msra.mxu0 %v3477
        %4318 = vmatpush.bf16.xpose.msra.mxu0 %v3474
        %4319 = vmatpush.bf16.xpose.msra.mxu0 %v3471
        %4320 = vmatpush.bf16.xpose.msra.mxu0 %v3468
        %4321 = vmatpush.bf16.xpose.msra.mxu0 %v3465
        %4322 = vmatpush.bf16.xpose.msra.mxu0 %v3462
        %4323 = vmatpush.bf16.xpose.msra.mxu0 %v3459
        %4324 = vmatpush.bf16.xpose.msra.mxu0 %v3456
        %4325 = vmatmul.bf16.gmra.mxu0 %v4159
        %v4326 = vpop.f32.mrf.mxu0
        %v4327 = vadd.f32 0.0, %v4326
        %v4328 = vpop.f32.mrf.mxu0
        %4329 = vdwg.mxu0
        %4330 = vmatpush.bf16.xpose.msra.mxu0 %v3501
        %4331 = vmatpush.bf16.xpose.msra.mxu0 %v3498
        %4332 = vmatpush.bf16.xpose.msra.mxu0 %v3495
        %4333 = vmatpush.bf16.xpose.msra.mxu0 %v3492
        %4334 = vmatpush.bf16.xpose.msra.mxu0 %v3489
        %4335 = vmatpush.bf16.xpose.msra.mxu0 %v3486
        %4336 = vmatpush.bf16.xpose.msra.mxu0 %v3483
        %4337 = vmatpush.bf16.xpose.msra.mxu0 %v3480
        %4338 = vmatmul.bf16.gmra.mxu0 %v4159
        %v4339 = vpop.f32.mrf.mxu0
        %v4340 = vadd.f32 0.0, %v4339
        %v4341 = vpop.f32.mrf.mxu0
        %4342 = vdwg.mxu0
        %4343 = vmatpush.bf16.xpose.msra.mxu0 %v3525
        %4344 = vmatpush.bf16.xpose.msra.mxu0 %v3522
        %4345 = vmatpush.bf16.xpose.msra.mxu0 %v3519
        %4346 = vmatpush.bf16.xpose.msra.mxu0 %v3516
        %4347 = vmatpush.bf16.xpose.msra.mxu0 %v3513
        %4348 = vmatpush.bf16.xpose.msra.mxu0 %v3510
        %4349 = vmatpush.bf16.xpose.msra.mxu0 %v3507
        %4350 = vmatpush.bf16.xpose.msra.mxu0 %v3504
        %4351 = vmatmul.bf16.gmra.mxu0 %v4159
        %v4352 = vpop.f32.mrf.mxu0
        %v4353 = vadd.f32 0.0, %v4352
        %v4354 = vpop.f32.mrf.mxu0
        %4355 = vdwg.mxu0
        %4356 = vmatpush.bf16.xpose.msra.mxu0 %v3549
        %4357 = vmatpush.bf16.xpose.msra.mxu0 %v3546
        %4358 = vmatpush.bf16.xpose.msra.mxu0 %v3543
        %4359 = vmatpush.bf16.xpose.msra.mxu0 %v3540
        %4360 = vmatpush.bf16.xpose.msra.mxu0 %v3537
        %4361 = vmatpush.bf16.xpose.msra.mxu0 %v3534
        %4362 = vmatpush.bf16.xpose.msra.mxu0 %v3531
        %4363 = vmatpush.bf16.xpose.msra.mxu0 %v3528
        %4364 = vmatmul.bf16.gmra.mxu0 %v4159
        %v4365 = vpop.f32.mrf.mxu0
        %v4366 = vadd.f32 0.0, %v4365
        %v4367 = vpop.f32.mrf.mxu0
        %4368 = vdwg.mxu0
        %v4369 = vperm.slane %v4171, 0
        %v4370 = vperm.slane %v4184, 0
        %v4371 = vperm.slane %v4197, 0
        %v4372 = vperm.slane %v4210, 0
        %v4373 = vperm.slane %v4223, 0
        %v4374 = vperm.slane %v4236, 0
        %v4375 = vperm.slane %v4249, 0
        %v4376 = vperm.slane %v4262, 0
        %v4377 = vperm.slane %v4275, 0
        %v4378 = vperm.slane %v4288, 0
        %v4379 = vperm.slane %v4301, 0
        %v4380 = vperm.slane %v4314, 0
        %v4381 = vperm.slane %v4327, 0
        %v4382 = vperm.slane %v4340, 0
        %v4383 = vperm.slane %v4353, 0
        %v4384 = vperm.slane %v4366, 0
        %v4385 = vmul.f32 %v3775, %v4369
        %v4386 = vmul.f32 %v3776, %v4370
        %v4387 = vmul.f32 %v3777, %v4371
        %v4388 = vmul.f32 %v3778, %v4372
        %v4389 = vmul.f32 %v3779, %v4373
        %v4390 = vmul.f32 %v3780, %v4374
        %v4391 = vmul.f32 %v3781, %v4375
        %v4392 = vmul.f32 %v3782, %v4376
        %v4393 = vmul.f32 %v3783, %v4377
        %v4394 = vmul.f32 %v3784, %v4378
        %v4395 = vmul.f32 %v3785, %v4379
        %v4396 = vmul.f32 %v3786, %v4380
        %v4397 = vmul.f32 %v3787, %v4381
        %v4398 = vmul.f32 %v3788, %v4382
        %v4399 = vmul.f32 %v3789, %v4383
        %v4400 = vmul.f32 %v3790, %v4384
        %v4401 = vld [vmem:[%s938] sm:$0xff]
        %v4402 = vld [vmem:[%s938 + $0x8] sm:$0xff]
        %v4405 = vperm.slane %v4401, 0
        %v4406 = vperm.slane %v4401, 1
        %v4407 = vperm.slane %v4401, 2
        %v4408 = vperm.slane %v4401, 3
        %v4409 = vperm.slane %v4401, 4
        %v4410 = vperm.slane %v4401, 5
        %v4411 = vperm.slane %v4401, 6
        %v4412 = vperm.slane %v4401, 7
        %v4413 = vperm.slane %v4402, 0
        %v4414 = vperm.slane %v4402, 1
        %v4415 = vperm.slane %v4402, 2
        %v4416 = vperm.slane %v4402, 3
        %v4417 = vperm.slane %v4402, 4
        %v4418 = vperm.slane %v4402, 5
        %v4419 = vperm.slane %v4402, 6
        %v4420 = vperm.slane %v4402, 7
        %v4437 = vadd.f32 %v4385, %v4405
        %v4438 = vadd.f32 %v4386, %v4406
        %v4439 = vadd.f32 %v4387, %v4407
        %v4440 = vadd.f32 %v4388, %v4408
        %v4441 = vadd.f32 %v4389, %v4409
        %v4442 = vadd.f32 %v4390, %v4410
        %v4443 = vadd.f32 %v4391, %v4411
        %v4444 = vadd.f32 %v4392, %v4412
        %v4445 = vadd.f32 %v4393, %v4413
        %v4446 = vadd.f32 %v4394, %v4414
        %v4447 = vadd.f32 %v4395, %v4415
        %v4448 = vadd.f32 %v4396, %v4416
        %v4449 = vadd.f32 %v4397, %v4417
        %v4450 = vadd.f32 %v4398, %v4418
        %v4451 = vadd.f32 %v4399, %v4419
        %v4452 = vadd.f32 %v4400, %v4420
        %v4453 = vmax.f32 %v4437, %v4441
        %v4454 = vmax.f32 %v4438, %v4442
        %v4455 = vmax.f32 %v4439, %v4443
        %v4456 = vmax.f32 %v4440, %v4444
        %v4457 = vmax.f32 %v4445, %v4449
        %v4458 = vmax.f32 %v4446, %v4450
        %v4459 = vmax.f32 %v4447, %v4451
        %v4460 = vmax.f32 %v4448, %v4452
        %v4461 = vmax.f32 %v4453, %v4457
        %v4462 = vmax.f32 %v4454, %v4458
        %v4463 = vmax.f32 %v4455, %v4459
        %v4464 = vmax.f32 %v4456, %v4460
        %v4465 = vpack.c.bf16 %v4461, %v4461
        %v4466 = vpack.c.bf16 %v4462, %v4462
        %v4467 = vpack.c.bf16 %v4463, %v4463
        %v4468 = vpack.c.bf16 %v4464, %v4464
        %v4469 = vld [vmem:[%s948] sm:$0xff]
        %v4470 = vld [vmem:[%s948 + $0x8] sm:$0xff]
        %v4471 = vld [vmem:[%s948 + $0x10] sm:$0xff]
        %v4472 = vld [vmem:[%s948 + $0x18] sm:$0xff]
        %v4473 = vld [vmem:[%s948 + $0x20] sm:$0xff]
        %v4474 = vld [vmem:[%s948 + $0x28] sm:$0xff]
        %v4475 = vld [vmem:[%s948 + $0x30] sm:$0xff]
        %v4476 = vld [vmem:[%s948 + $0x38] sm:$0xff]
        %v4477 = vld [vmem:[%s948 + $0x40] sm:$0xff]
        %v4478 = vld [vmem:[%s948 + $0x48] sm:$0xff]
        %v4479 = vld [vmem:[%s948 + $0x50] sm:$0xff]
        %v4480 = vld [vmem:[%s948 + $0x58] sm:$0xff]
        %v4481 = vld [vmem:[%s948 + $0x60] sm:$0xff]
        %v4482 = vld [vmem:[%s948 + $0x68] sm:$0xff]
        %v4483 = vld [vmem:[%s948 + $0x70] sm:$0xff]
        %v4484 = vld [vmem:[%s948 + $0x78] sm:$0xff]
        %v4485 = vld [vmem:[%s948 + $0x80] sm:$0xff]
        %v4486 = vld [vmem:[%s948 + $0x88] sm:$0xff]
        %v4487 = vld [vmem:[%s948 + $0x90] sm:$0xff]
        %v4488 = vld [vmem:[%s948 + $0x98] sm:$0xff]
        %v4489 = vld [vmem:[%s948 + $0xa0] sm:$0xff]
        %v4490 = vld [vmem:[%s948 + $0xa8] sm:$0xff]
        %v4491 = vld [vmem:[%s948 + $0xb0] sm:$0xff]
        %v4492 = vld [vmem:[%s948 + $0xb8] sm:$0xff]
        %v4493 = vld [vmem:[%s948 + $0xc0] sm:$0xff]
        %v4494 = vld [vmem:[%s948 + $0xc8] sm:$0xff]
        %v4495 = vld [vmem:[%s948 + $0xd0] sm:$0xff]
        %v4496 = vld [vmem:[%s948 + $0xd8] sm:$0xff]
        %v4497 = vld [vmem:[%s948 + $0xe0] sm:$0xff]
        %v4498 = vld [vmem:[%s948 + $0xe8] sm:$0xff]
        %v4499 = vld [vmem:[%s948 + $0xf0] sm:$0xff]
        %v4500 = vld [vmem:[%s948 + $0xf8] sm:$0xff]
        %v4501 = vld [vmem:[%s948 + $0x100] sm:$0xff]
        %v4502 = vld [vmem:[%s948 + $0x108] sm:$0xff]
        %v4503 = vld [vmem:[%s948 + $0x110] sm:$0xff]
        %v4504 = vld [vmem:[%s948 + $0x118] sm:$0xff]
        %v4505 = vld [vmem:[%s948 + $0x120] sm:$0xff]
        %v4506 = vld [vmem:[%s948 + $0x128] sm:$0xff]
        %v4507 = vld [vmem:[%s948 + $0x130] sm:$0xff]
        %v4508 = vld [vmem:[%s948 + $0x138] sm:$0xff]
        %v4509 = vld [vmem:[%s948 + $0x140] sm:$0xff]
        %v4510 = vld [vmem:[%s948 + $0x148] sm:$0xff]
        %v4511 = vld [vmem:[%s948 + $0x150] sm:$0xff]
        %v4512 = vld [vmem:[%s948 + $0x158] sm:$0xff]
        %v4513 = vld [vmem:[%s948 + $0x160] sm:$0xff]
        %v4514 = vld [vmem:[%s948 + $0x168] sm:$0xff]
        %v4515 = vld [vmem:[%s948 + $0x170] sm:$0xff]
        %v4516 = vld [vmem:[%s948 + $0x178] sm:$0xff]
        %v4517 = vld [vmem:[%s948 + $0x180] sm:$0xff]
        %v4518 = vld [vmem:[%s948 + $0x188] sm:$0xff]
        %v4519 = vld [vmem:[%s948 + $0x190] sm:$0xff]
        %v4520 = vld [vmem:[%s948 + $0x198] sm:$0xff]
        %v4521 = vld [vmem:[%s948 + $0x1a0] sm:$0xff]
        %v4522 = vld [vmem:[%s948 + $0x1a8] sm:$0xff]
        %v4523 = vld [vmem:[%s948 + $0x1b0] sm:$0xff]
        %v4524 = vld [vmem:[%s948 + $0x1b8] sm:$0xff]
        %v4525 = vld [vmem:[%s948 + $0x1c0] sm:$0xff]
        %v4526 = vld [vmem:[%s948 + $0x1c8] sm:$0xff]
        %v4527 = vld [vmem:[%s948 + $0x1d0] sm:$0xff]
        %v4528 = vld [vmem:[%s948 + $0x1d8] sm:$0xff]
        %v4529 = vld [vmem:[%s948 + $0x1e0] sm:$0xff]
        %v4530 = vld [vmem:[%s948 + $0x1e8] sm:$0xff]
        %v4531 = vld [vmem:[%s948 + $0x1f0] sm:$0xff]
        %v4532 = vld [vmem:[%s948 + $0x1f8] sm:$0xff]
        %v4533 = vld [vmem:[%s948 + $0x200] sm:$0xff]
        %v4534 = vld [vmem:[%s948 + $0x208] sm:$0xff]
        %v4535 = vld [vmem:[%s948 + $0x210] sm:$0xff]
        %v4536 = vld [vmem:[%s948 + $0x218] sm:$0xff]
        %v4537 = vld [vmem:[%s948 + $0x220] sm:$0xff]
        %v4538 = vld [vmem:[%s948 + $0x228] sm:$0xff]
        %v4539 = vld [vmem:[%s948 + $0x230] sm:$0xff]
        %v4540 = vld [vmem:[%s948 + $0x238] sm:$0xff]
        %v4541 = vld [vmem:[%s948 + $0x240] sm:$0xff]
        %v4542 = vld [vmem:[%s948 + $0x248] sm:$0xff]
        %v4543 = vld [vmem:[%s948 + $0x250] sm:$0xff]
        %v4544 = vld [vmem:[%s948 + $0x258] sm:$0xff]
        %v4545 = vld [vmem:[%s948 + $0x260] sm:$0xff]
        %v4546 = vld [vmem:[%s948 + $0x268] sm:$0xff]
        %v4547 = vld [vmem:[%s948 + $0x270] sm:$0xff]
        %v4548 = vld [vmem:[%s948 + $0x278] sm:$0xff]
        %v4549 = vld [vmem:[%s948 + $0x280] sm:$0xff]
        %v4550 = vld [vmem:[%s948 + $0x288] sm:$0xff]
        %v4551 = vld [vmem:[%s948 + $0x290] sm:$0xff]
        %v4552 = vld [vmem:[%s948 + $0x298] sm:$0xff]
        %v4553 = vld [vmem:[%s948 + $0x2a0] sm:$0xff]
        %v4554 = vld [vmem:[%s948 + $0x2a8] sm:$0xff]
        %v4555 = vld [vmem:[%s948 + $0x2b0] sm:$0xff]
        %v4556 = vld [vmem:[%s948 + $0x2b8] sm:$0xff]
        %v4557 = vld [vmem:[%s948 + $0x2c0] sm:$0xff]
        %v4558 = vld [vmem:[%s948 + $0x2c8] sm:$0xff]
        %v4559 = vld [vmem:[%s948 + $0x2d0] sm:$0xff]
        %v4560 = vld [vmem:[%s948 + $0x2d8] sm:$0xff]
        %v4561 = vld [vmem:[%s948 + $0x2e0] sm:$0xff]
        %v4562 = vld [vmem:[%s948 + $0x2e8] sm:$0xff]
        %v4563 = vld [vmem:[%s948 + $0x2f0] sm:$0xff]
        %v4564 = vld [vmem:[%s948 + $0x2f8] sm:$0xff]
        %v4565 = vld [vmem:[%s948 + $0x300] sm:$0xff]
        %v4566 = vld [vmem:[%s948 + $0x308] sm:$0xff]
        %v4567 = vld [vmem:[%s948 + $0x310] sm:$0xff]
        %v4568 = vld [vmem:[%s948 + $0x318] sm:$0xff]
        %v4569 = vld [vmem:[%s948 + $0x320] sm:$0xff]
        %v4570 = vld [vmem:[%s948 + $0x328] sm:$0xff]
        %v4571 = vld [vmem:[%s948 + $0x330] sm:$0xff]
        %v4572 = vld [vmem:[%s948 + $0x338] sm:$0xff]
        %v4573 = vld [vmem:[%s948 + $0x340] sm:$0xff]
        %v4574 = vld [vmem:[%s948 + $0x348] sm:$0xff]
        %v4575 = vld [vmem:[%s948 + $0x350] sm:$0xff]
        %v4576 = vld [vmem:[%s948 + $0x358] sm:$0xff]
        %v4577 = vld [vmem:[%s948 + $0x360] sm:$0xff]
        %v4578 = vld [vmem:[%s948 + $0x368] sm:$0xff]
        %v4579 = vld [vmem:[%s948 + $0x370] sm:$0xff]
        %v4580 = vld [vmem:[%s948 + $0x378] sm:$0xff]
        %v4581 = vld [vmem:[%s948 + $0x380] sm:$0xff]
        %v4582 = vld [vmem:[%s948 + $0x388] sm:$0xff]
        %v4583 = vld [vmem:[%s948 + $0x390] sm:$0xff]
        %v4584 = vld [vmem:[%s948 + $0x398] sm:$0xff]
        %v4585 = vld [vmem:[%s948 + $0x3a0] sm:$0xff]
        %v4586 = vld [vmem:[%s948 + $0x3a8] sm:$0xff]
        %v4587 = vld [vmem:[%s948 + $0x3b0] sm:$0xff]
        %v4588 = vld [vmem:[%s948 + $0x3b8] sm:$0xff]
        %v4589 = vld [vmem:[%s948 + $0x3c0] sm:$0xff]
        %v4590 = vld [vmem:[%s948 + $0x3c8] sm:$0xff]
        %v4591 = vld [vmem:[%s948 + $0x3d0] sm:$0xff]
        %v4592 = vld [vmem:[%s948 + $0x3d8] sm:$0xff]
        %v4593 = vld [vmem:[%s948 + $0x3e0] sm:$0xff]
        %v4594 = vld [vmem:[%s948 + $0x3e8] sm:$0xff]
        %v4595 = vld [vmem:[%s948 + $0x3f0] sm:$0xff]
        %v4596 = vld [vmem:[%s948 + $0x3f8] sm:$0xff]
        %v4597 = vld [vmem:[%s948 + $0x400] sm:$0xff]
        %v4598 = vld [vmem:[%s948 + $0x408] sm:$0xff]
        %v4599 = vld [vmem:[%s948 + $0x410] sm:$0xff]
        %v4600 = vld [vmem:[%s948 + $0x418] sm:$0xff]
        %v4601 = vld [vmem:[%s948 + $0x420] sm:$0xff]
        %v4602 = vld [vmem:[%s948 + $0x428] sm:$0xff]
        %v4603 = vld [vmem:[%s948 + $0x430] sm:$0xff]
        %v4604 = vld [vmem:[%s948 + $0x438] sm:$0xff]
        %v4605 = vld [vmem:[%s948 + $0x440] sm:$0xff]
        %v4606 = vld [vmem:[%s948 + $0x448] sm:$0xff]
        %v4607 = vld [vmem:[%s948 + $0x450] sm:$0xff]
        %v4608 = vld [vmem:[%s948 + $0x458] sm:$0xff]
        %v4609 = vld [vmem:[%s948 + $0x460] sm:$0xff]
        %v4610 = vld [vmem:[%s948 + $0x468] sm:$0xff]
        %v4611 = vld [vmem:[%s948 + $0x470] sm:$0xff]
        %v4612 = vld [vmem:[%s948 + $0x478] sm:$0xff]
        %v4613 = vld [vmem:[%s948 + $0x480] sm:$0xff]
        %v4614 = vld [vmem:[%s948 + $0x488] sm:$0xff]
        %v4615 = vld [vmem:[%s948 + $0x490] sm:$0xff]
        %v4616 = vld [vmem:[%s948 + $0x498] sm:$0xff]
        %v4617 = vld [vmem:[%s948 + $0x4a0] sm:$0xff]
        %v4618 = vld [vmem:[%s948 + $0x4a8] sm:$0xff]
        %v4619 = vld [vmem:[%s948 + $0x4b0] sm:$0xff]
        %v4620 = vld [vmem:[%s948 + $0x4b8] sm:$0xff]
        %v4621 = vld [vmem:[%s948 + $0x4c0] sm:$0xff]
        %v4622 = vld [vmem:[%s948 + $0x4c8] sm:$0xff]
        %v4623 = vld [vmem:[%s948 + $0x4d0] sm:$0xff]
        %v4624 = vld [vmem:[%s948 + $0x4d8] sm:$0xff]
        %v4625 = vld [vmem:[%s948 + $0x4e0] sm:$0xff]
        %v4626 = vld [vmem:[%s948 + $0x4e8] sm:$0xff]
        %v4627 = vld [vmem:[%s948 + $0x4f0] sm:$0xff]
        %v4628 = vld [vmem:[%s948 + $0x4f8] sm:$0xff]
        %v4629 = vld [vmem:[%s948 + $0x500] sm:$0xff]
        %v4630 = vld [vmem:[%s948 + $0x508] sm:$0xff]
        %v4631 = vld [vmem:[%s948 + $0x510] sm:$0xff]
        %v4632 = vld [vmem:[%s948 + $0x518] sm:$0xff]
        %v4633 = vld [vmem:[%s948 + $0x520] sm:$0xff]
        %v4634 = vld [vmem:[%s948 + $0x528] sm:$0xff]
        %v4635 = vld [vmem:[%s948 + $0x530] sm:$0xff]
        %v4636 = vld [vmem:[%s948 + $0x538] sm:$0xff]
        %v4637 = vld [vmem:[%s948 + $0x540] sm:$0xff]
        %v4638 = vld [vmem:[%s948 + $0x548] sm:$0xff]
        %v4639 = vld [vmem:[%s948 + $0x550] sm:$0xff]
        %v4640 = vld [vmem:[%s948 + $0x558] sm:$0xff]
        %v4641 = vld [vmem:[%s948 + $0x560] sm:$0xff]
        %v4642 = vld [vmem:[%s948 + $0x568] sm:$0xff]
        %v4643 = vld [vmem:[%s948 + $0x570] sm:$0xff]
        %v4644 = vld [vmem:[%s948 + $0x578] sm:$0xff]
        %v4645 = vld [vmem:[%s948 + $0x580] sm:$0xff]
        %v4646 = vld [vmem:[%s948 + $0x588] sm:$0xff]
        %v4647 = vld [vmem:[%s948 + $0x590] sm:$0xff]
        %v4648 = vld [vmem:[%s948 + $0x598] sm:$0xff]
        %v4649 = vld [vmem:[%s948 + $0x5a0] sm:$0xff]
        %v4650 = vld [vmem:[%s948 + $0x5a8] sm:$0xff]
        %v4651 = vld [vmem:[%s948 + $0x5b0] sm:$0xff]
        %v4652 = vld [vmem:[%s948 + $0x5b8] sm:$0xff]
        %v4653 = vld [vmem:[%s948 + $0x5c0] sm:$0xff]
        %v4654 = vld [vmem:[%s948 + $0x5c8] sm:$0xff]
        %v4655 = vld [vmem:[%s948 + $0x5d0] sm:$0xff]
        %v4656 = vld [vmem:[%s948 + $0x5d8] sm:$0xff]
        %v4657 = vld [vmem:[%s948 + $0x5e0] sm:$0xff]
        %v4658 = vld [vmem:[%s948 + $0x5e8] sm:$0xff]
        %v4659 = vld [vmem:[%s948 + $0x5f0] sm:$0xff]
        %v4660 = vld [vmem:[%s948 + $0x5f8] sm:$0xff]
        %v4661 = vld [vmem:[%s948 + $0x600] sm:$0xff]
        %v4662 = vld [vmem:[%s948 + $0x608] sm:$0xff]
        %v4663 = vld [vmem:[%s948 + $0x610] sm:$0xff]
        %v4664 = vld [vmem:[%s948 + $0x618] sm:$0xff]
        %v4665 = vld [vmem:[%s948 + $0x620] sm:$0xff]
        %v4666 = vld [vmem:[%s948 + $0x628] sm:$0xff]
        %v4667 = vld [vmem:[%s948 + $0x630] sm:$0xff]
        %v4668 = vld [vmem:[%s948 + $0x638] sm:$0xff]
        %v4669 = vld [vmem:[%s948 + $0x640] sm:$0xff]
        %v4670 = vld [vmem:[%s948 + $0x648] sm:$0xff]
        %v4671 = vld [vmem:[%s948 + $0x650] sm:$0xff]
        %v4672 = vld [vmem:[%s948 + $0x658] sm:$0xff]
        %v4673 = vld [vmem:[%s948 + $0x660] sm:$0xff]
        %v4674 = vld [vmem:[%s948 + $0x668] sm:$0xff]
        %v4675 = vld [vmem:[%s948 + $0x670] sm:$0xff]
        %v4676 = vld [vmem:[%s948 + $0x678] sm:$0xff]
        %v4677 = vld [vmem:[%s948 + $0x680] sm:$0xff]
        %v4678 = vld [vmem:[%s948 + $0x688] sm:$0xff]
        %v4679 = vld [vmem:[%s948 + $0x690] sm:$0xff]
        %v4680 = vld [vmem:[%s948 + $0x698] sm:$0xff]
        %v4681 = vld [vmem:[%s948 + $0x6a0] sm:$0xff]
        %v4682 = vld [vmem:[%s948 + $0x6a8] sm:$0xff]
        %v4683 = vld [vmem:[%s948 + $0x6b0] sm:$0xff]
        %v4684 = vld [vmem:[%s948 + $0x6b8] sm:$0xff]
        %v4685 = vld [vmem:[%s948 + $0x6c0] sm:$0xff]
        %v4686 = vld [vmem:[%s948 + $0x6c8] sm:$0xff]
        %v4687 = vld [vmem:[%s948 + $0x6d0] sm:$0xff]
        %v4688 = vld [vmem:[%s948 + $0x6d8] sm:$0xff]
        %v4689 = vld [vmem:[%s948 + $0x6e0] sm:$0xff]
        %v4690 = vld [vmem:[%s948 + $0x6e8] sm:$0xff]
        %v4691 = vld [vmem:[%s948 + $0x6f0] sm:$0xff]
        %v4692 = vld [vmem:[%s948 + $0x6f8] sm:$0xff]
        %v4693 = vld [vmem:[%s948 + $0x700] sm:$0xff]
        %v4694 = vld [vmem:[%s948 + $0x708] sm:$0xff]
        %v4695 = vld [vmem:[%s948 + $0x710] sm:$0xff]
        %v4696 = vld [vmem:[%s948 + $0x718] sm:$0xff]
        %v4697 = vld [vmem:[%s948 + $0x720] sm:$0xff]
        %v4698 = vld [vmem:[%s948 + $0x728] sm:$0xff]
        %v4699 = vld [vmem:[%s948 + $0x730] sm:$0xff]
        %v4700 = vld [vmem:[%s948 + $0x738] sm:$0xff]
        %v4701 = vld [vmem:[%s948 + $0x740] sm:$0xff]
        %v4702 = vld [vmem:[%s948 + $0x748] sm:$0xff]
        %v4703 = vld [vmem:[%s948 + $0x750] sm:$0xff]
        %v4704 = vld [vmem:[%s948 + $0x758] sm:$0xff]
        %v4705 = vld [vmem:[%s948 + $0x760] sm:$0xff]
        %v4706 = vld [vmem:[%s948 + $0x768] sm:$0xff]
        %v4707 = vld [vmem:[%s948 + $0x770] sm:$0xff]
        %v4708 = vld [vmem:[%s948 + $0x778] sm:$0xff]
        %v4709 = vld [vmem:[%s948 + $0x780] sm:$0xff]
        %v4710 = vld [vmem:[%s948 + $0x788] sm:$0xff]
        %v4711 = vld [vmem:[%s948 + $0x790] sm:$0xff]
        %v4712 = vld [vmem:[%s948 + $0x798] sm:$0xff]
        %v4713 = vld [vmem:[%s948 + $0x7a0] sm:$0xff]
        %v4714 = vld [vmem:[%s948 + $0x7a8] sm:$0xff]
        %v4715 = vld [vmem:[%s948 + $0x7b0] sm:$0xff]
        %v4716 = vld [vmem:[%s948 + $0x7b8] sm:$0xff]
        %v4717 = vld [vmem:[%s948 + $0x7c0] sm:$0xff]
        %v4718 = vld [vmem:[%s948 + $0x7c8] sm:$0xff]
        %v4719 = vld [vmem:[%s948 + $0x7d0] sm:$0xff]
        %v4720 = vld [vmem:[%s948 + $0x7d8] sm:$0xff]
        %v4721 = vld [vmem:[%s948 + $0x7e0] sm:$0xff]
        %v4722 = vld [vmem:[%s948 + $0x7e8] sm:$0xff]
        %v4723 = vld [vmem:[%s948 + $0x7f0] sm:$0xff]
        %v4724 = vld [vmem:[%s948 + $0x7f8] sm:$0xff]
        %v4725 = vld [vmem:[%s958] sm:$0xff]
        %v4727 = vperm.slane %v4725, 0
        %v4728 = vperm.slane %v4725, 1
        %v4729 = vperm.slane %v4725, 2
        %v4730 = vperm.slane %v4725, 3
        %v4731 = vperm.slane %v4725, 4
        %v4732 = vperm.slane %v4725, 5
        %v4733 = vperm.slane %v4725, 6
        %v4734 = vperm.slane %v4725, 7
        %v4999 = vunpack.c.l.b16 %v4469
        %v5000 = vunpack.c.h.b16 %v4469
        %v5001 = vunpack.c.l.b16 %v4470
        %v5002 = vunpack.c.h.b16 %v4470
        %v5003 = vunpack.c.l.b16 %v4471
        %v5004 = vunpack.c.h.b16 %v4471
        %v5005 = vunpack.c.l.b16 %v4472
        %v5006 = vunpack.c.h.b16 %v4472
        %v5007 = vunpack.c.l.b16 %v4473
        %v5008 = vunpack.c.h.b16 %v4473
        %v5009 = vunpack.c.l.b16 %v4474
        %v5010 = vunpack.c.h.b16 %v4474
        %v5011 = vunpack.c.l.b16 %v4475
        %v5012 = vunpack.c.h.b16 %v4475
        %v5013 = vunpack.c.l.b16 %v4476
        %v5014 = vunpack.c.h.b16 %v4476
        %v5015 = vunpack.c.l.b16 %v4477
        %v5016 = vunpack.c.h.b16 %v4477
        %v5017 = vunpack.c.l.b16 %v4478
        %v5018 = vunpack.c.h.b16 %v4478
        %v5019 = vunpack.c.l.b16 %v4479
        %v5020 = vunpack.c.h.b16 %v4479
        %v5021 = vunpack.c.l.b16 %v4480
        %v5022 = vunpack.c.h.b16 %v4480
        %v5023 = vunpack.c.l.b16 %v4481
        %v5024 = vunpack.c.h.b16 %v4481
        %v5025 = vunpack.c.l.b16 %v4482
        %v5026 = vunpack.c.h.b16 %v4482
        %v5027 = vunpack.c.l.b16 %v4483
        %v5028 = vunpack.c.h.b16 %v4483
        %v5029 = vunpack.c.l.b16 %v4484
        %v5030 = vunpack.c.h.b16 %v4484
        %v5031 = vunpack.c.l.b16 %v4485
        %v5032 = vunpack.c.h.b16 %v4485
        %v5033 = vunpack.c.l.b16 %v4486
        %v5034 = vunpack.c.h.b16 %v4486
        %v5035 = vunpack.c.l.b16 %v4487
        %v5036 = vunpack.c.h.b16 %v4487
        %v5037 = vunpack.c.l.b16 %v4488
        %v5038 = vunpack.c.h.b16 %v4488
        %v5039 = vunpack.c.l.b16 %v4489
        %v5040 = vunpack.c.h.b16 %v4489
        %v5041 = vunpack.c.l.b16 %v4490
        %v5042 = vunpack.c.h.b16 %v4490
        %v5043 = vunpack.c.l.b16 %v4491
        %v5044 = vunpack.c.h.b16 %v4491
        %v5045 = vunpack.c.l.b16 %v4492
        %v5046 = vunpack.c.h.b16 %v4492
        %v5047 = vunpack.c.l.b16 %v4493
        %v5048 = vunpack.c.h.b16 %v4493
        %v5049 = vunpack.c.l.b16 %v4494
        %v5050 = vunpack.c.h.b16 %v4494
        %v5051 = vunpack.c.l.b16 %v4495
        %v5052 = vunpack.c.h.b16 %v4495
        %v5053 = vunpack.c.l.b16 %v4496
        %v5054 = vunpack.c.h.b16 %v4496
        %v5055 = vunpack.c.l.b16 %v4497
        %v5056 = vunpack.c.h.b16 %v4497
        %v5057 = vunpack.c.l.b16 %v4498
        %v5058 = vunpack.c.h.b16 %v4498
        %v5059 = vunpack.c.l.b16 %v4499
        %v5060 = vunpack.c.h.b16 %v4499
        %v5061 = vunpack.c.l.b16 %v4500
        %v5062 = vunpack.c.h.b16 %v4500
        %v5063 = vunpack.c.l.b16 %v4501
        %v5064 = vunpack.c.h.b16 %v4501
        %v5065 = vunpack.c.l.b16 %v4502
        %v5066 = vunpack.c.h.b16 %v4502
        %v5067 = vunpack.c.l.b16 %v4503
        %v5068 = vunpack.c.h.b16 %v4503
        %v5069 = vunpack.c.l.b16 %v4504
        %v5070 = vunpack.c.h.b16 %v4504
        %v5071 = vunpack.c.l.b16 %v4505
        %v5072 = vunpack.c.h.b16 %v4505
        %v5073 = vunpack.c.l.b16 %v4506
        %v5074 = vunpack.c.h.b16 %v4506
        %v5075 = vunpack.c.l.b16 %v4507
        %v5076 = vunpack.c.h.b16 %v4507
        %v5077 = vunpack.c.l.b16 %v4508
        %v5078 = vunpack.c.h.b16 %v4508
        %v5079 = vunpack.c.l.b16 %v4509
        %v5080 = vunpack.c.h.b16 %v4509
        %v5081 = vunpack.c.l.b16 %v4510
        %v5082 = vunpack.c.h.b16 %v4510
        %v5083 = vunpack.c.l.b16 %v4511
        %v5084 = vunpack.c.h.b16 %v4511
        %v5085 = vunpack.c.l.b16 %v4512
        %v5086 = vunpack.c.h.b16 %v4512
        %v5087 = vunpack.c.l.b16 %v4513
        %v5088 = vunpack.c.h.b16 %v4513
        %v5089 = vunpack.c.l.b16 %v4514
        %v5090 = vunpack.c.h.b16 %v4514
        %v5091 = vunpack.c.l.b16 %v4515
        %v5092 = vunpack.c.h.b16 %v4515
        %v5093 = vunpack.c.l.b16 %v4516
        %v5094 = vunpack.c.h.b16 %v4516
        %v5095 = vunpack.c.l.b16 %v4517
        %v5096 = vunpack.c.h.b16 %v4517
        %v5097 = vunpack.c.l.b16 %v4518
        %v5098 = vunpack.c.h.b16 %v4518
        %v5099 = vunpack.c.l.b16 %v4519
        %v5100 = vunpack.c.h.b16 %v4519
        %v5101 = vunpack.c.l.b16 %v4520
        %v5102 = vunpack.c.h.b16 %v4520
        %v5103 = vunpack.c.l.b16 %v4521
        %v5104 = vunpack.c.h.b16 %v4521
        %v5105 = vunpack.c.l.b16 %v4522
        %v5106 = vunpack.c.h.b16 %v4522
        %v5107 = vunpack.c.l.b16 %v4523
        %v5108 = vunpack.c.h.b16 %v4523
        %v5109 = vunpack.c.l.b16 %v4524
        %v5110 = vunpack.c.h.b16 %v4524
        %v5111 = vunpack.c.l.b16 %v4525
        %v5112 = vunpack.c.h.b16 %v4525
        %v5113 = vunpack.c.l.b16 %v4526
        %v5114 = vunpack.c.h.b16 %v4526
        %v5115 = vunpack.c.l.b16 %v4527
        %v5116 = vunpack.c.h.b16 %v4527
        %v5117 = vunpack.c.l.b16 %v4528
        %v5118 = vunpack.c.h.b16 %v4528
        %v5119 = vunpack.c.l.b16 %v4529
        %v5120 = vunpack.c.h.b16 %v4529
        %v5121 = vunpack.c.l.b16 %v4530
        %v5122 = vunpack.c.h.b16 %v4530
        %v5123 = vunpack.c.l.b16 %v4531
        %v5124 = vunpack.c.h.b16 %v4531
        %v5125 = vunpack.c.l.b16 %v4532
        %v5126 = vunpack.c.h.b16 %v4532
        %v5127 = vunpack.c.l.b16 %v4533
        %v5128 = vunpack.c.h.b16 %v4533
        %v5129 = vunpack.c.l.b16 %v4534
        %v5130 = vunpack.c.h.b16 %v4534
        %v5131 = vunpack.c.l.b16 %v4535
        %v5132 = vunpack.c.h.b16 %v4535
        %v5133 = vunpack.c.l.b16 %v4536
        %v5134 = vunpack.c.h.b16 %v4536
        %v5135 = vunpack.c.l.b16 %v4537
        %v5136 = vunpack.c.h.b16 %v4537
        %v5137 = vunpack.c.l.b16 %v4538
        %v5138 = vunpack.c.h.b16 %v4538
        %v5139 = vunpack.c.l.b16 %v4539
        %v5140 = vunpack.c.h.b16 %v4539
        %v5141 = vunpack.c.l.b16 %v4540
        %v5142 = vunpack.c.h.b16 %v4540
        %v5143 = vunpack.c.l.b16 %v4541
        %v5144 = vunpack.c.h.b16 %v4541
        %v5145 = vunpack.c.l.b16 %v4542
        %v5146 = vunpack.c.h.b16 %v4542
        %v5147 = vunpack.c.l.b16 %v4543
        %v5148 = vunpack.c.h.b16 %v4543
        %v5149 = vunpack.c.l.b16 %v4544
        %v5150 = vunpack.c.h.b16 %v4544
        %v5151 = vunpack.c.l.b16 %v4545
        %v5152 = vunpack.c.h.b16 %v4545
        %v5153 = vunpack.c.l.b16 %v4546
        %v5154 = vunpack.c.h.b16 %v4546
        %v5155 = vunpack.c.l.b16 %v4547
        %v5156 = vunpack.c.h.b16 %v4547
        %v5157 = vunpack.c.l.b16 %v4548
        %v5158 = vunpack.c.h.b16 %v4548
        %v5159 = vunpack.c.l.b16 %v4549
        %v5160 = vunpack.c.h.b16 %v4549
        %v5161 = vunpack.c.l.b16 %v4550
        %v5162 = vunpack.c.h.b16 %v4550
        %v5163 = vunpack.c.l.b16 %v4551
        %v5164 = vunpack.c.h.b16 %v4551
        %v5165 = vunpack.c.l.b16 %v4552
        %v5166 = vunpack.c.h.b16 %v4552
        %v5167 = vunpack.c.l.b16 %v4553
        %v5168 = vunpack.c.h.b16 %v4553
        %v5169 = vunpack.c.l.b16 %v4554
        %v5170 = vunpack.c.h.b16 %v4554
        %v5171 = vunpack.c.l.b16 %v4555
        %v5172 = vunpack.c.h.b16 %v4555
        %v5173 = vunpack.c.l.b16 %v4556
        %v5174 = vunpack.c.h.b16 %v4556
        %v5175 = vunpack.c.l.b16 %v4557
        %v5176 = vunpack.c.h.b16 %v4557
        %v5177 = vunpack.c.l.b16 %v4558
        %v5178 = vunpack.c.h.b16 %v4558
        %v5179 = vunpack.c.l.b16 %v4559
        %v5180 = vunpack.c.h.b16 %v4559
        %v5181 = vunpack.c.l.b16 %v4560
        %v5182 = vunpack.c.h.b16 %v4560
        %v5183 = vunpack.c.l.b16 %v4561
        %v5184 = vunpack.c.h.b16 %v4561
        %v5185 = vunpack.c.l.b16 %v4562
        %v5186 = vunpack.c.h.b16 %v4562
        %v5187 = vunpack.c.l.b16 %v4563
        %v5188 = vunpack.c.h.b16 %v4563
        %v5189 = vunpack.c.l.b16 %v4564
        %v5190 = vunpack.c.h.b16 %v4564
        %v5191 = vunpack.c.l.b16 %v4565
        %v5192 = vunpack.c.h.b16 %v4565
        %v5193 = vunpack.c.l.b16 %v4566
        %v5194 = vunpack.c.h.b16 %v4566
        %v5195 = vunpack.c.l.b16 %v4567
        %v5196 = vunpack.c.h.b16 %v4567
        %v5197 = vunpack.c.l.b16 %v4568
        %v5198 = vunpack.c.h.b16 %v4568
        %v5199 = vunpack.c.l.b16 %v4569
        %v5200 = vunpack.c.h.b16 %v4569
        %v5201 = vunpack.c.l.b16 %v4570
        %v5202 = vunpack.c.h.b16 %v4570
        %v5203 = vunpack.c.l.b16 %v4571
        %v5204 = vunpack.c.h.b16 %v4571
        %v5205 = vunpack.c.l.b16 %v4572
        %v5206 = vunpack.c.h.b16 %v4572
        %v5207 = vunpack.c.l.b16 %v4573
        %v5208 = vunpack.c.h.b16 %v4573
        %v5209 = vunpack.c.l.b16 %v4574
        %v5210 = vunpack.c.h.b16 %v4574
        %v5211 = vunpack.c.l.b16 %v4575
        %v5212 = vunpack.c.h.b16 %v4575
        %v5213 = vunpack.c.l.b16 %v4576
        %v5214 = vunpack.c.h.b16 %v4576
        %v5215 = vunpack.c.l.b16 %v4577
        %v5216 = vunpack.c.h.b16 %v4577
        %v5217 = vunpack.c.l.b16 %v4578
        %v5218 = vunpack.c.h.b16 %v4578
        %v5219 = vunpack.c.l.b16 %v4579
        %v5220 = vunpack.c.h.b16 %v4579
        %v5221 = vunpack.c.l.b16 %v4580
        %v5222 = vunpack.c.h.b16 %v4580
        %v5223 = vunpack.c.l.b16 %v4581
        %v5224 = vunpack.c.h.b16 %v4581
        %v5225 = vunpack.c.l.b16 %v4582
        %v5226 = vunpack.c.h.b16 %v4582
        %v5227 = vunpack.c.l.b16 %v4583
        %v5228 = vunpack.c.h.b16 %v4583
        %v5229 = vunpack.c.l.b16 %v4584
        %v5230 = vunpack.c.h.b16 %v4584
        %v5231 = vunpack.c.l.b16 %v4585
        %v5232 = vunpack.c.h.b16 %v4585
        %v5233 = vunpack.c.l.b16 %v4586
        %v5234 = vunpack.c.h.b16 %v4586
        %v5235 = vunpack.c.l.b16 %v4587
        %v5236 = vunpack.c.h.b16 %v4587
        %v5237 = vunpack.c.l.b16 %v4588
        %v5238 = vunpack.c.h.b16 %v4588
        %v5239 = vunpack.c.l.b16 %v4589
        %v5240 = vunpack.c.h.b16 %v4589
        %v5241 = vunpack.c.l.b16 %v4590
        %v5242 = vunpack.c.h.b16 %v4590
        %v5243 = vunpack.c.l.b16 %v4591
        %v5244 = vunpack.c.h.b16 %v4591
        %v5245 = vunpack.c.l.b16 %v4592
        %v5246 = vunpack.c.h.b16 %v4592
        %v5247 = vunpack.c.l.b16 %v4593
        %v5248 = vunpack.c.h.b16 %v4593
        %v5249 = vunpack.c.l.b16 %v4594
        %v5250 = vunpack.c.h.b16 %v4594
        %v5251 = vunpack.c.l.b16 %v4595
        %v5252 = vunpack.c.h.b16 %v4595
        %v5253 = vunpack.c.l.b16 %v4596
        %v5254 = vunpack.c.h.b16 %v4596
        %v5255 = vunpack.c.l.b16 %v4597
        %v5256 = vunpack.c.h.b16 %v4597
        %v5257 = vunpack.c.l.b16 %v4598
        %v5258 = vunpack.c.h.b16 %v4598
        %v5259 = vunpack.c.l.b16 %v4599
        %v5260 = vunpack.c.h.b16 %v4599
        %v5261 = vunpack.c.l.b16 %v4600
        %v5262 = vunpack.c.h.b16 %v4600
        %v5263 = vunpack.c.l.b16 %v4601
        %v5264 = vunpack.c.h.b16 %v4601
        %v5265 = vunpack.c.l.b16 %v4602
        %v5266 = vunpack.c.h.b16 %v4602
        %v5267 = vunpack.c.l.b16 %v4603
        %v5268 = vunpack.c.h.b16 %v4603
        %v5269 = vunpack.c.l.b16 %v4604
        %v5270 = vunpack.c.h.b16 %v4604
        %v5271 = vunpack.c.l.b16 %v4605
        %v5272 = vunpack.c.h.b16 %v4605
        %v5273 = vunpack.c.l.b16 %v4606
        %v5274 = vunpack.c.h.b16 %v4606
        %v5275 = vunpack.c.l.b16 %v4607
        %v5276 = vunpack.c.h.b16 %v4607
        %v5277 = vunpack.c.l.b16 %v4608
        %v5278 = vunpack.c.h.b16 %v4608
        %v5279 = vunpack.c.l.b16 %v4609
        %v5280 = vunpack.c.h.b16 %v4609
        %v5281 = vunpack.c.l.b16 %v4610
        %v5282 = vunpack.c.h.b16 %v4610
        %v5283 = vunpack.c.l.b16 %v4611
        %v5284 = vunpack.c.h.b16 %v4611
        %v5285 = vunpack.c.l.b16 %v4612
        %v5286 = vunpack.c.h.b16 %v4612
        %v5287 = vunpack.c.l.b16 %v4613
        %v5288 = vunpack.c.h.b16 %v4613
        %v5289 = vunpack.c.l.b16 %v4614
        %v5290 = vunpack.c.h.b16 %v4614
        %v5291 = vunpack.c.l.b16 %v4615
        %v5292 = vunpack.c.h.b16 %v4615
        %v5293 = vunpack.c.l.b16 %v4616
        %v5294 = vunpack.c.h.b16 %v4616
        %v5295 = vunpack.c.l.b16 %v4617
        %v5296 = vunpack.c.h.b16 %v4617
        %v5297 = vunpack.c.l.b16 %v4618
        %v5298 = vunpack.c.h.b16 %v4618
        %v5299 = vunpack.c.l.b16 %v4619
        %v5300 = vunpack.c.h.b16 %v4619
        %v5301 = vunpack.c.l.b16 %v4620
        %v5302 = vunpack.c.h.b16 %v4620
        %v5303 = vunpack.c.l.b16 %v4621
        %v5304 = vunpack.c.h.b16 %v4621
        %v5305 = vunpack.c.l.b16 %v4622
        %v5306 = vunpack.c.h.b16 %v4622
        %v5307 = vunpack.c.l.b16 %v4623
        %v5308 = vunpack.c.h.b16 %v4623
        %v5309 = vunpack.c.l.b16 %v4624
        %v5310 = vunpack.c.h.b16 %v4624
        %v5311 = vunpack.c.l.b16 %v4625
        %v5312 = vunpack.c.h.b16 %v4625
        %v5313 = vunpack.c.l.b16 %v4626
        %v5314 = vunpack.c.h.b16 %v4626
        %v5315 = vunpack.c.l.b16 %v4627
        %v5316 = vunpack.c.h.b16 %v4627
        %v5317 = vunpack.c.l.b16 %v4628
        %v5318 = vunpack.c.h.b16 %v4628
        %v5319 = vunpack.c.l.b16 %v4629
        %v5320 = vunpack.c.h.b16 %v4629
        %v5321 = vunpack.c.l.b16 %v4630
        %v5322 = vunpack.c.h.b16 %v4630
        %v5323 = vunpack.c.l.b16 %v4631
        %v5324 = vunpack.c.h.b16 %v4631
        %v5325 = vunpack.c.l.b16 %v4632
        %v5326 = vunpack.c.h.b16 %v4632
        %v5327 = vunpack.c.l.b16 %v4633
        %v5328 = vunpack.c.h.b16 %v4633
        %v5329 = vunpack.c.l.b16 %v4634
        %v5330 = vunpack.c.h.b16 %v4634
        %v5331 = vunpack.c.l.b16 %v4635
        %v5332 = vunpack.c.h.b16 %v4635
        %v5333 = vunpack.c.l.b16 %v4636
        %v5334 = vunpack.c.h.b16 %v4636
        %v5335 = vunpack.c.l.b16 %v4637
        %v5336 = vunpack.c.h.b16 %v4637
        %v5337 = vunpack.c.l.b16 %v4638
        %v5338 = vunpack.c.h.b16 %v4638
        %v5339 = vunpack.c.l.b16 %v4639
        %v5340 = vunpack.c.h.b16 %v4639
        %v5341 = vunpack.c.l.b16 %v4640
        %v5342 = vunpack.c.h.b16 %v4640
        %v5343 = vunpack.c.l.b16 %v4641
        %v5344 = vunpack.c.h.b16 %v4641
        %v5345 = vunpack.c.l.b16 %v4642
        %v5346 = vunpack.c.h.b16 %v4642
        %v5347 = vunpack.c.l.b16 %v4643
        %v5348 = vunpack.c.h.b16 %v4643
        %v5349 = vunpack.c.l.b16 %v4644
        %v5350 = vunpack.c.h.b16 %v4644
        %v5351 = vunpack.c.l.b16 %v4645
        %v5352 = vunpack.c.h.b16 %v4645
        %v5353 = vunpack.c.l.b16 %v4646
        %v5354 = vunpack.c.h.b16 %v4646
        %v5355 = vunpack.c.l.b16 %v4647
        %v5356 = vunpack.c.h.b16 %v4647
        %v5357 = vunpack.c.l.b16 %v4648
        %v5358 = vunpack.c.h.b16 %v4648
        %v5359 = vunpack.c.l.b16 %v4649
        %v5360 = vunpack.c.h.b16 %v4649
        %v5361 = vunpack.c.l.b16 %v4650
        %v5362 = vunpack.c.h.b16 %v4650
        %v5363 = vunpack.c.l.b16 %v4651
        %v5364 = vunpack.c.h.b16 %v4651
        %v5365 = vunpack.c.l.b16 %v4652
        %v5366 = vunpack.c.h.b16 %v4652
        %v5367 = vunpack.c.l.b16 %v4653
        %v5368 = vunpack.c.h.b16 %v4653
        %v5369 = vunpack.c.l.b16 %v4654
        %v5370 = vunpack.c.h.b16 %v4654
        %v5371 = vunpack.c.l.b16 %v4655
        %v5372 = vunpack.c.h.b16 %v4655
        %v5373 = vunpack.c.l.b16 %v4656
        %v5374 = vunpack.c.h.b16 %v4656
        %v5375 = vunpack.c.l.b16 %v4657
        %v5376 = vunpack.c.h.b16 %v4657
        %v5377 = vunpack.c.l.b16 %v4658
        %v5378 = vunpack.c.h.b16 %v4658
        %v5379 = vunpack.c.l.b16 %v4659
        %v5380 = vunpack.c.h.b16 %v4659
        %v5381 = vunpack.c.l.b16 %v4660
        %v5382 = vunpack.c.h.b16 %v4660
        %v5383 = vunpack.c.l.b16 %v4661
        %v5384 = vunpack.c.h.b16 %v4661
        %v5385 = vunpack.c.l.b16 %v4662
        %v5386 = vunpack.c.h.b16 %v4662
        %v5387 = vunpack.c.l.b16 %v4663
        %v5388 = vunpack.c.h.b16 %v4663
        %v5389 = vunpack.c.l.b16 %v4664
        %v5390 = vunpack.c.h.b16 %v4664
        %v5391 = vunpack.c.l.b16 %v4665
        %v5392 = vunpack.c.h.b16 %v4665
        %v5393 = vunpack.c.l.b16 %v4666
        %v5394 = vunpack.c.h.b16 %v4666
        %v5395 = vunpack.c.l.b16 %v4667
        %v5396 = vunpack.c.h.b16 %v4667
        %v5397 = vunpack.c.l.b16 %v4668
        %v5398 = vunpack.c.h.b16 %v4668
        %v5399 = vunpack.c.l.b16 %v4669
        %v5400 = vunpack.c.h.b16 %v4669
        %v5401 = vunpack.c.l.b16 %v4670
        %v5402 = vunpack.c.h.b16 %v4670
        %v5403 = vunpack.c.l.b16 %v4671
        %v5404 = vunpack.c.h.b16 %v4671
        %v5405 = vunpack.c.l.b16 %v4672
        %v5406 = vunpack.c.h.b16 %v4672
        %v5407 = vunpack.c.l.b16 %v4673
        %v5408 = vunpack.c.h.b16 %v4673
        %v5409 = vunpack.c.l.b16 %v4674
        %v5410 = vunpack.c.h.b16 %v4674
        %v5411 = vunpack.c.l.b16 %v4675
        %v5412 = vunpack.c.h.b16 %v4675
        %v5413 = vunpack.c.l.b16 %v4676
        %v5414 = vunpack.c.h.b16 %v4676
        %v5415 = vunpack.c.l.b16 %v4677
        %v5416 = vunpack.c.h.b16 %v4677
        %v5417 = vunpack.c.l.b16 %v4678
        %v5418 = vunpack.c.h.b16 %v4678
        %v5419 = vunpack.c.l.b16 %v4679
        %v5420 = vunpack.c.h.b16 %v4679
        %v5421 = vunpack.c.l.b16 %v4680
        %v5422 = vunpack.c.h.b16 %v4680
        %v5423 = vunpack.c.l.b16 %v4681
        %v5424 = vunpack.c.h.b16 %v4681
        %v5425 = vunpack.c.l.b16 %v4682
        %v5426 = vunpack.c.h.b16 %v4682
        %v5427 = vunpack.c.l.b16 %v4683
        %v5428 = vunpack.c.h.b16 %v4683
        %v5429 = vunpack.c.l.b16 %v4684
        %v5430 = vunpack.c.h.b16 %v4684
        %v5431 = vunpack.c.l.b16 %v4685
        %v5432 = vunpack.c.h.b16 %v4685
        %v5433 = vunpack.c.l.b16 %v4686
        %v5434 = vunpack.c.h.b16 %v4686
        %v5435 = vunpack.c.l.b16 %v4687
        %v5436 = vunpack.c.h.b16 %v4687
        %v5437 = vunpack.c.l.b16 %v4688
        %v5438 = vunpack.c.h.b16 %v4688
        %v5439 = vunpack.c.l.b16 %v4689
        %v5440 = vunpack.c.h.b16 %v4689
        %v5441 = vunpack.c.l.b16 %v4690
        %v5442 = vunpack.c.h.b16 %v4690
        %v5443 = vunpack.c.l.b16 %v4691
        %v5444 = vunpack.c.h.b16 %v4691
        %v5445 = vunpack.c.l.b16 %v4692
        %v5446 = vunpack.c.h.b16 %v4692
        %v5447 = vunpack.c.l.b16 %v4693
        %v5448 = vunpack.c.h.b16 %v4693
        %v5449 = vunpack.c.l.b16 %v4694
        %v5450 = vunpack.c.h.b16 %v4694
        %v5451 = vunpack.c.l.b16 %v4695
        %v5452 = vunpack.c.h.b16 %v4695
        %v5453 = vunpack.c.l.b16 %v4696
        %v5454 = vunpack.c.h.b16 %v4696
        %v5455 = vunpack.c.l.b16 %v4697
        %v5456 = vunpack.c.h.b16 %v4697
        %v5457 = vunpack.c.l.b16 %v4698
        %v5458 = vunpack.c.h.b16 %v4698
        %v5459 = vunpack.c.l.b16 %v4699
        %v5460 = vunpack.c.h.b16 %v4699
        %v5461 = vunpack.c.l.b16 %v4700
        %v5462 = vunpack.c.h.b16 %v4700
        %v5463 = vunpack.c.l.b16 %v4701
        %v5464 = vunpack.c.h.b16 %v4701
        %v5465 = vunpack.c.l.b16 %v4702
        %v5466 = vunpack.c.h.b16 %v4702
        %v5467 = vunpack.c.l.b16 %v4703
        %v5468 = vunpack.c.h.b16 %v4703
        %v5469 = vunpack.c.l.b16 %v4704
        %v5470 = vunpack.c.h.b16 %v4704
        %v5471 = vunpack.c.l.b16 %v4705
        %v5472 = vunpack.c.h.b16 %v4705
        %v5473 = vunpack.c.l.b16 %v4706
        %v5474 = vunpack.c.h.b16 %v4706
        %v5475 = vunpack.c.l.b16 %v4707
        %v5476 = vunpack.c.h.b16 %v4707
        %v5477 = vunpack.c.l.b16 %v4708
        %v5478 = vunpack.c.h.b16 %v4708
        %v5479 = vunpack.c.l.b16 %v4709
        %v5480 = vunpack.c.h.b16 %v4709
        %v5481 = vunpack.c.l.b16 %v4710
        %v5482 = vunpack.c.h.b16 %v4710
        %v5483 = vunpack.c.l.b16 %v4711
        %v5484 = vunpack.c.h.b16 %v4711
        %v5485 = vunpack.c.l.b16 %v4712
        %v5486 = vunpack.c.h.b16 %v4712
        %v5487 = vunpack.c.l.b16 %v4713
        %v5488 = vunpack.c.h.b16 %v4713
        %v5489 = vunpack.c.l.b16 %v4714
        %v5490 = vunpack.c.h.b16 %v4714
        %v5491 = vunpack.c.l.b16 %v4715
        %v5492 = vunpack.c.h.b16 %v4715
        %v5493 = vunpack.c.l.b16 %v4716
        %v5494 = vunpack.c.h.b16 %v4716
        %v5495 = vunpack.c.l.b16 %v4717
        %v5496 = vunpack.c.h.b16 %v4717
        %v5497 = vunpack.c.l.b16 %v4718
        %v5498 = vunpack.c.h.b16 %v4718
        %v5499 = vunpack.c.l.b16 %v4719
        %v5500 = vunpack.c.h.b16 %v4719
        %v5501 = vunpack.c.l.b16 %v4720
        %v5502 = vunpack.c.h.b16 %v4720
        %v5503 = vunpack.c.l.b16 %v4721
        %v5504 = vunpack.c.h.b16 %v4721
        %v5505 = vunpack.c.l.b16 %v4722
        %v5506 = vunpack.c.h.b16 %v4722
        %v5507 = vunpack.c.l.b16 %v4723
        %v5508 = vunpack.c.h.b16 %v4723
        %v5509 = vunpack.c.l.b16 %v4724
        %v5510 = vunpack.c.h.b16 %v4724
        %v5511 = vpack.c.b16 %v5007, %v4999
        %v5512 = vpack.c.b16 %v5008, %v5000
        %v5513 = vpack.c.b16 %v5009, %v5001
        %v5514 = vpack.c.b16 %v5010, %v5002
        %v5515 = vpack.c.b16 %v5011, %v5003
        %v5516 = vpack.c.b16 %v5012, %v5004
        %v5517 = vpack.c.b16 %v5013, %v5005
        %v5518 = vpack.c.b16 %v5014, %v5006
        %v5519 = vpack.c.b16 %v5023, %v5015
        %v5520 = vpack.c.b16 %v5024, %v5016
        %v5521 = vpack.c.b16 %v5025, %v5017
        %v5522 = vpack.c.b16 %v5026, %v5018
        %v5523 = vpack.c.b16 %v5027, %v5019
        %v5524 = vpack.c.b16 %v5028, %v5020
        %v5525 = vpack.c.b16 %v5029, %v5021
        %v5526 = vpack.c.b16 %v5030, %v5022
        %v5527 = vpack.c.b16 %v5039, %v5031
        %v5528 = vpack.c.b16 %v5040, %v5032
        %v5529 = vpack.c.b16 %v5041, %v5033
        %v5530 = vpack.c.b16 %v5042, %v5034
        %v5531 = vpack.c.b16 %v5043, %v5035
        %v5532 = vpack.c.b16 %v5044, %v5036
        %v5533 = vpack.c.b16 %v5045, %v5037
        %v5534 = vpack.c.b16 %v5046, %v5038
        %v5535 = vpack.c.b16 %v5055, %v5047
        %v5536 = vpack.c.b16 %v5056, %v5048
        %v5537 = vpack.c.b16 %v5057, %v5049
        %v5538 = vpack.c.b16 %v5058, %v5050
        %v5539 = vpack.c.b16 %v5059, %v5051
        %v5540 = vpack.c.b16 %v5060, %v5052
        %v5541 = vpack.c.b16 %v5061, %v5053
        %v5542 = vpack.c.b16 %v5062, %v5054
        %v5543 = vpack.c.b16 %v5071, %v5063
        %v5544 = vpack.c.b16 %v5072, %v5064
        %v5545 = vpack.c.b16 %v5073, %v5065
        %v5546 = vpack.c.b16 %v5074, %v5066
        %v5547 = vpack.c.b16 %v5075, %v5067
        %v5548 = vpack.c.b16 %v5076, %v5068
        %v5549 = vpack.c.b16 %v5077, %v5069
        %v5550 = vpack.c.b16 %v5078, %v5070
        %v5551 = vpack.c.b16 %v5087, %v5079
        %v5552 = vpack.c.b16 %v5088, %v5080
        %v5553 = vpack.c.b16 %v5089, %v5081
        %v5554 = vpack.c.b16 %v5090, %v5082
        %v5555 = vpack.c.b16 %v5091, %v5083
        %v5556 = vpack.c.b16 %v5092, %v5084
        %v5557 = vpack.c.b16 %v5093, %v5085
        %v5558 = vpack.c.b16 %v5094, %v5086
        %v5559 = vpack.c.b16 %v5103, %v5095
        %v5560 = vpack.c.b16 %v5104, %v5096
        %v5561 = vpack.c.b16 %v5105, %v5097
        %v5562 = vpack.c.b16 %v5106, %v5098
        %v5563 = vpack.c.b16 %v5107, %v5099
        %v5564 = vpack.c.b16 %v5108, %v5100
        %v5565 = vpack.c.b16 %v5109, %v5101
        %v5566 = vpack.c.b16 %v5110, %v5102
        %v5567 = vpack.c.b16 %v5119, %v5111
        %v5568 = vpack.c.b16 %v5120, %v5112
        %v5569 = vpack.c.b16 %v5121, %v5113
        %v5570 = vpack.c.b16 %v5122, %v5114
        %v5571 = vpack.c.b16 %v5123, %v5115
        %v5572 = vpack.c.b16 %v5124, %v5116
        %v5573 = vpack.c.b16 %v5125, %v5117
        %v5574 = vpack.c.b16 %v5126, %v5118
        %v5575 = vpack.c.b16 %v5135, %v5127
        %v5576 = vpack.c.b16 %v5136, %v5128
        %v5577 = vpack.c.b16 %v5137, %v5129
        %v5578 = vpack.c.b16 %v5138, %v5130
        %v5579 = vpack.c.b16 %v5139, %v5131
        %v5580 = vpack.c.b16 %v5140, %v5132
        %v5581 = vpack.c.b16 %v5141, %v5133
        %v5582 = vpack.c.b16 %v5142, %v5134
        %v5583 = vpack.c.b16 %v5151, %v5143
        %v5584 = vpack.c.b16 %v5152, %v5144
        %v5585 = vpack.c.b16 %v5153, %v5145
        %v5586 = vpack.c.b16 %v5154, %v5146
        %v5587 = vpack.c.b16 %v5155, %v5147
        %v5588 = vpack.c.b16 %v5156, %v5148
        %v5589 = vpack.c.b16 %v5157, %v5149
        %v5590 = vpack.c.b16 %v5158, %v5150
        %v5591 = vpack.c.b16 %v5167, %v5159
        %v5592 = vpack.c.b16 %v5168, %v5160
        %v5593 = vpack.c.b16 %v5169, %v5161
        %v5594 = vpack.c.b16 %v5170, %v5162
        %v5595 = vpack.c.b16 %v5171, %v5163
        %v5596 = vpack.c.b16 %v5172, %v5164
        %v5597 = vpack.c.b16 %v5173, %v5165
        %v5598 = vpack.c.b16 %v5174, %v5166
        %v5599 = vpack.c.b16 %v5183, %v5175
        %v5600 = vpack.c.b16 %v5184, %v5176
        %v5601 = vpack.c.b16 %v5185, %v5177
        %v5602 = vpack.c.b16 %v5186, %v5178
        %v5603 = vpack.c.b16 %v5187, %v5179
        %v5604 = vpack.c.b16 %v5188, %v5180
        %v5605 = vpack.c.b16 %v5189, %v5181
        %v5606 = vpack.c.b16 %v5190, %v5182
        %v5607 = vpack.c.b16 %v5199, %v5191
        %v5608 = vpack.c.b16 %v5200, %v5192
        %v5609 = vpack.c.b16 %v5201, %v5193
        %v5610 = vpack.c.b16 %v5202, %v5194
        %v5611 = vpack.c.b16 %v5203, %v5195
        %v5612 = vpack.c.b16 %v5204, %v5196
        %v5613 = vpack.c.b16 %v5205, %v5197
        %v5614 = vpack.c.b16 %v5206, %v5198
        %v5615 = vpack.c.b16 %v5215, %v5207
        %v5616 = vpack.c.b16 %v5216, %v5208
        %v5617 = vpack.c.b16 %v5217, %v5209
        %v5618 = vpack.c.b16 %v5218, %v5210
        %v5619 = vpack.c.b16 %v5219, %v5211
        %v5620 = vpack.c.b16 %v5220, %v5212
        %v5621 = vpack.c.b16 %v5221, %v5213
        %v5622 = vpack.c.b16 %v5222, %v5214
        %v5623 = vpack.c.b16 %v5231, %v5223
        %v5624 = vpack.c.b16 %v5232, %v5224
        %v5625 = vpack.c.b16 %v5233, %v5225
        %v5626 = vpack.c.b16 %v5234, %v5226
        %v5627 = vpack.c.b16 %v5235, %v5227
        %v5628 = vpack.c.b16 %v5236, %v5228
        %v5629 = vpack.c.b16 %v5237, %v5229
        %v5630 = vpack.c.b16 %v5238, %v5230
        %v5631 = vpack.c.b16 %v5247, %v5239
        %v5632 = vpack.c.b16 %v5248, %v5240
        %v5633 = vpack.c.b16 %v5249, %v5241
        %v5634 = vpack.c.b16 %v5250, %v5242
        %v5635 = vpack.c.b16 %v5251, %v5243
        %v5636 = vpack.c.b16 %v5252, %v5244
        %v5637 = vpack.c.b16 %v5253, %v5245
        %v5638 = vpack.c.b16 %v5254, %v5246
        %v5639 = vpack.c.b16 %v5263, %v5255
        %v5640 = vpack.c.b16 %v5264, %v5256
        %v5641 = vpack.c.b16 %v5265, %v5257
        %v5642 = vpack.c.b16 %v5266, %v5258
        %v5643 = vpack.c.b16 %v5267, %v5259
        %v5644 = vpack.c.b16 %v5268, %v5260
        %v5645 = vpack.c.b16 %v5269, %v5261
        %v5646 = vpack.c.b16 %v5270, %v5262
        %v5647 = vpack.c.b16 %v5279, %v5271
        %v5648 = vpack.c.b16 %v5280, %v5272
        %v5649 = vpack.c.b16 %v5281, %v5273
        %v5650 = vpack.c.b16 %v5282, %v5274
        %v5651 = vpack.c.b16 %v5283, %v5275
        %v5652 = vpack.c.b16 %v5284, %v5276
        %v5653 = vpack.c.b16 %v5285, %v5277
        %v5654 = vpack.c.b16 %v5286, %v5278
        %v5655 = vpack.c.b16 %v5295, %v5287
        %v5656 = vpack.c.b16 %v5296, %v5288
        %v5657 = vpack.c.b16 %v5297, %v5289
        %v5658 = vpack.c.b16 %v5298, %v5290
        %v5659 = vpack.c.b16 %v5299, %v5291
        %v5660 = vpack.c.b16 %v5300, %v5292
        %v5661 = vpack.c.b16 %v5301, %v5293
        %v5662 = vpack.c.b16 %v5302, %v5294
        %v5663 = vpack.c.b16 %v5311, %v5303
        %v5664 = vpack.c.b16 %v5312, %v5304
        %v5665 = vpack.c.b16 %v5313, %v5305
        %v5666 = vpack.c.b16 %v5314, %v5306
        %v5667 = vpack.c.b16 %v5315, %v5307
        %v5668 = vpack.c.b16 %v5316, %v5308
        %v5669 = vpack.c.b16 %v5317, %v5309
        %v5670 = vpack.c.b16 %v5318, %v5310
        %v5671 = vpack.c.b16 %v5327, %v5319
        %v5672 = vpack.c.b16 %v5328, %v5320
        %v5673 = vpack.c.b16 %v5329, %v5321
        %v5674 = vpack.c.b16 %v5330, %v5322
        %v5675 = vpack.c.b16 %v5331, %v5323
        %v5676 = vpack.c.b16 %v5332, %v5324
        %v5677 = vpack.c.b16 %v5333, %v5325
        %v5678 = vpack.c.b16 %v5334, %v5326
        %v5679 = vpack.c.b16 %v5343, %v5335
        %v5680 = vpack.c.b16 %v5344, %v5336
        %v5681 = vpack.c.b16 %v5345, %v5337
        %v5682 = vpack.c.b16 %v5346, %v5338
        %v5683 = vpack.c.b16 %v5347, %v5339
        %v5684 = vpack.c.b16 %v5348, %v5340
        %v5685 = vpack.c.b16 %v5349, %v5341
        %v5686 = vpack.c.b16 %v5350, %v5342
        %v5687 = vpack.c.b16 %v5359, %v5351
        %v5688 = vpack.c.b16 %v5360, %v5352
        %v5689 = vpack.c.b16 %v5361, %v5353
        %v5690 = vpack.c.b16 %v5362, %v5354
        %v5691 = vpack.c.b16 %v5363, %v5355
        %v5692 = vpack.c.b16 %v5364, %v5356
        %v5693 = vpack.c.b16 %v5365, %v5357
        %v5694 = vpack.c.b16 %v5366, %v5358
        %v5695 = vpack.c.b16 %v5375, %v5367
        %v5696 = vpack.c.b16 %v5376, %v5368
        %v5697 = vpack.c.b16 %v5377, %v5369
        %v5698 = vpack.c.b16 %v5378, %v5370
        %v5699 = vpack.c.b16 %v5379, %v5371
        %v5700 = vpack.c.b16 %v5380, %v5372
        %v5701 = vpack.c.b16 %v5381, %v5373
        %v5702 = vpack.c.b16 %v5382, %v5374
        %v5703 = vpack.c.b16 %v5391, %v5383
        %v5704 = vpack.c.b16 %v5392, %v5384
        %v5705 = vpack.c.b16 %v5393, %v5385
        %v5706 = vpack.c.b16 %v5394, %v5386
        %v5707 = vpack.c.b16 %v5395, %v5387
        %v5708 = vpack.c.b16 %v5396, %v5388
        %v5709 = vpack.c.b16 %v5397, %v5389
        %v5710 = vpack.c.b16 %v5398, %v5390
        %v5711 = vpack.c.b16 %v5407, %v5399
        %v5712 = vpack.c.b16 %v5408, %v5400
        %v5713 = vpack.c.b16 %v5409, %v5401
        %v5714 = vpack.c.b16 %v5410, %v5402
        %v5715 = vpack.c.b16 %v5411, %v5403
        %v5716 = vpack.c.b16 %v5412, %v5404
        %v5717 = vpack.c.b16 %v5413, %v5405
        %v5718 = vpack.c.b16 %v5414, %v5406
        %v5719 = vpack.c.b16 %v5423, %v5415
        %v5720 = vpack.c.b16 %v5424, %v5416
        %v5721 = vpack.c.b16 %v5425, %v5417
        %v5722 = vpack.c.b16 %v5426, %v5418
        %v5723 = vpack.c.b16 %v5427, %v5419
        %v5724 = vpack.c.b16 %v5428, %v5420
        %v5725 = vpack.c.b16 %v5429, %v5421
        %v5726 = vpack.c.b16 %v5430, %v5422
        %v5727 = vpack.c.b16 %v5439, %v5431
        %v5728 = vpack.c.b16 %v5440, %v5432
        %v5729 = vpack.c.b16 %v5441, %v5433
        %v5730 = vpack.c.b16 %v5442, %v5434
        %v5731 = vpack.c.b16 %v5443, %v5435
        %v5732 = vpack.c.b16 %v5444, %v5436
        %v5733 = vpack.c.b16 %v5445, %v5437
        %v5734 = vpack.c.b16 %v5446, %v5438
        %v5735 = vpack.c.b16 %v5455, %v5447
        %v5736 = vpack.c.b16 %v5456, %v5448
        %v5737 = vpack.c.b16 %v5457, %v5449
        %v5738 = vpack.c.b16 %v5458, %v5450
        %v5739 = vpack.c.b16 %v5459, %v5451
        %v5740 = vpack.c.b16 %v5460, %v5452
        %v5741 = vpack.c.b16 %v5461, %v5453
        %v5742 = vpack.c.b16 %v5462, %v5454
        %v5743 = vpack.c.b16 %v5471, %v5463
        %v5744 = vpack.c.b16 %v5472, %v5464
        %v5745 = vpack.c.b16 %v5473, %v5465
        %v5746 = vpack.c.b16 %v5474, %v5466
        %v5747 = vpack.c.b16 %v5475, %v5467
        %v5748 = vpack.c.b16 %v5476, %v5468
        %v5749 = vpack.c.b16 %v5477, %v5469
        %v5750 = vpack.c.b16 %v5478, %v5470
        %v5751 = vpack.c.b16 %v5487, %v5479
        %v5752 = vpack.c.b16 %v5488, %v5480
        %v5753 = vpack.c.b16 %v5489, %v5481
        %v5754 = vpack.c.b16 %v5490, %v5482
        %v5755 = vpack.c.b16 %v5491, %v5483
        %v5756 = vpack.c.b16 %v5492, %v5484
        %v5757 = vpack.c.b16 %v5493, %v5485
        %v5758 = vpack.c.b16 %v5494, %v5486
        %v5759 = vpack.c.b16 %v5503, %v5495
        %v5760 = vpack.c.b16 %v5504, %v5496
        %v5761 = vpack.c.b16 %v5505, %v5497
        %v5762 = vpack.c.b16 %v5506, %v5498
        %v5763 = vpack.c.b16 %v5507, %v5499
        %v5764 = vpack.c.b16 %v5508, %v5500
        %v5765 = vpack.c.b16 %v5509, %v5501
        %v5766 = vpack.c.b16 %v5510, %v5502
        %6023 = vmatpush.bf16.msra.mxu0 %v5567
        %6024 = vmatpush.bf16.msra.mxu0 %v5559
        %6025 = vmatpush.bf16.msra.mxu0 %v5551
        %6026 = vmatpush.bf16.msra.mxu0 %v5543
        %6027 = vmatpush.bf16.msra.mxu0 %v5535
        %6028 = vmatpush.bf16.msra.mxu0 %v5527
        %6029 = vmatpush.bf16.msra.mxu0 %v5519
        %6030 = vmatpush.bf16.msra.mxu0 %v5511
        %6031 = vmatmul.bf16.gmra.mxu0 %v4465
        %v6032 = vpop.f32.mrf.mxu0
        %v6033 = vadd.f32 %v4727, %v6032
        %v6034 = vpop.f32.mrf.mxu0
        %6035 = vdwg.mxu0
        %6036 = vmatpush.bf16.msra.mxu0 %v5631
        %6037 = vmatpush.bf16.msra.mxu0 %v5623
        %6038 = vmatpush.bf16.msra.mxu0 %v5615
        %6039 = vmatpush.bf16.msra.mxu0 %v5607
        %6040 = vmatpush.bf16.msra.mxu0 %v5599
        %6041 = vmatpush.bf16.msra.mxu0 %v5591
        %6042 = vmatpush.bf16.msra.mxu0 %v5583
        %6043 = vmatpush.bf16.msra.mxu0 %v5575
        %6044 = vmatmul.bf16.gmra.mxu0 %v4466
        %v6045 = vpop.f32.mrf.mxu0
        %v6046 = vadd.f32 %v6033, %v6045
        %v6047 = vpop.f32.mrf.mxu0
        %6048 = vdwg.mxu0
        %6049 = vmatpush.bf16.msra.mxu0 %v5695
        %6050 = vmatpush.bf16.msra.mxu0 %v5687
        %6051 = vmatpush.bf16.msra.mxu0 %v5679
        %6052 = vmatpush.bf16.msra.mxu0 %v5671
        %6053 = vmatpush.bf16.msra.mxu0 %v5663
        %6054 = vmatpush.bf16.msra.mxu0 %v5655
        %6055 = vmatpush.bf16.msra.mxu0 %v5647
        %6056 = vmatpush.bf16.msra.mxu0 %v5639
        %6057 = vmatmul.bf16.gmra.mxu0 %v4467
        %v6058 = vpop.f32.mrf.mxu0
        %v6059 = vadd.f32 %v6046, %v6058
        %v6060 = vpop.f32.mrf.mxu0
        %6061 = vdwg.mxu0
        %6062 = vmatpush.bf16.msra.mxu0 %v5759
        %6063 = vmatpush.bf16.msra.mxu0 %v5751
        %6064 = vmatpush.bf16.msra.mxu0 %v5743
        %6065 = vmatpush.bf16.msra.mxu0 %v5735
        %6066 = vmatpush.bf16.msra.mxu0 %v5727
        %6067 = vmatpush.bf16.msra.mxu0 %v5719
        %6068 = vmatpush.bf16.msra.mxu0 %v5711
        %6069 = vmatpush.bf16.msra.mxu0 %v5703
        %6070 = vmatmul.bf16.gmra.mxu0 %v4468
        %v6071 = vpop.f32.mrf.mxu0
        %v6072 = vadd.f32 %v6059, %v6071
        %v6073 = vpop.f32.mrf.mxu0
        %6074 = vdwg.mxu0
        %6075 = vmatpush.bf16.msra.mxu0 %v5568
        %6076 = vmatpush.bf16.msra.mxu0 %v5560
        %6077 = vmatpush.bf16.msra.mxu0 %v5552
        %6078 = vmatpush.bf16.msra.mxu0 %v5544
        %6079 = vmatpush.bf16.msra.mxu0 %v5536
        %6080 = vmatpush.bf16.msra.mxu0 %v5528
        %6081 = vmatpush.bf16.msra.mxu0 %v5520
        %6082 = vmatpush.bf16.msra.mxu0 %v5512
        %6083 = vmatmul.bf16.gmra.mxu0 %v4465
        %v6084 = vpop.f32.mrf.mxu0
        %v6085 = vadd.f32 %v4728, %v6084
        %v6086 = vpop.f32.mrf.mxu0
        %6087 = vdwg.mxu0
        %6088 = vmatpush.bf16.msra.mxu0 %v5632
        %6089 = vmatpush.bf16.msra.mxu0 %v5624
        %6090 = vmatpush.bf16.msra.mxu0 %v5616
        %6091 = vmatpush.bf16.msra.mxu0 %v5608
        %6092 = vmatpush.bf16.msra.mxu0 %v5600
        %6093 = vmatpush.bf16.msra.mxu0 %v5592
        %6094 = vmatpush.bf16.msra.mxu0 %v5584
        %6095 = vmatpush.bf16.msra.mxu0 %v5576
        %6096 = vmatmul.bf16.gmra.mxu0 %v4466
        %v6097 = vpop.f32.mrf.mxu0
        %v6098 = vadd.f32 %v6085, %v6097
        %v6099 = vpop.f32.mrf.mxu0
        %6100 = vdwg.mxu0
        %6101 = vmatpush.bf16.msra.mxu0 %v5696
        %6102 = vmatpush.bf16.msra.mxu0 %v5688
        %6103 = vmatpush.bf16.msra.mxu0 %v5680
        %6104 = vmatpush.bf16.msra.mxu0 %v5672
        %6105 = vmatpush.bf16.msra.mxu0 %v5664
        %6106 = vmatpush.bf16.msra.mxu0 %v5656
        %6107 = vmatpush.bf16.msra.mxu0 %v5648
        %6108 = vmatpush.bf16.msra.mxu0 %v5640
        %6109 = vmatmul.bf16.gmra.mxu0 %v4467
        %v6110 = vpop.f32.mrf.mxu0
        %v6111 = vadd.f32 %v6098, %v6110
        %v6112 = vpop.f32.mrf.mxu0
        %6113 = vdwg.mxu0
        %6114 = vmatpush.bf16.msra.mxu0 %v5760
        %6115 = vmatpush.bf16.msra.mxu0 %v5752
        %6116 = vmatpush.bf16.msra.mxu0 %v5744
        %6117 = vmatpush.bf16.msra.mxu0 %v5736
        %6118 = vmatpush.bf16.msra.mxu0 %v5728
        %6119 = vmatpush.bf16.msra.mxu0 %v5720
        %6120 = vmatpush.bf16.msra.mxu0 %v5712
        %6121 = vmatpush.bf16.msra.mxu0 %v5704
        %6122 = vmatmul.bf16.gmra.mxu0 %v4468
        %v6123 = vpop.f32.mrf.mxu0
        %v6124 = vadd.f32 %v6111, %v6123
        %v6125 = vpop.f32.mrf.mxu0
        %6126 = vdwg.mxu0
        %6127 = vmatpush.bf16.msra.mxu0 %v5569
        %6128 = vmatpush.bf16.msra.mxu0 %v5561
        %6129 = vmatpush.bf16.msra.mxu0 %v5553
        %6130 = vmatpush.bf16.msra.mxu0 %v5545
        %6131 = vmatpush.bf16.msra.mxu0 %v5537
        %6132 = vmatpush.bf16.msra.mxu0 %v5529
        %6133 = vmatpush.bf16.msra.mxu0 %v5521
        %6134 = vmatpush.bf16.msra.mxu0 %v5513
        %6135 = vmatmul.bf16.gmra.mxu0 %v4465
        %v6136 = vpop.f32.mrf.mxu0
        %v6137 = vadd.f32 %v4729, %v6136
        %v6138 = vpop.f32.mrf.mxu0
        %6139 = vdwg.mxu0
        %6140 = vmatpush.bf16.msra.mxu0 %v5633
        %6141 = vmatpush.bf16.msra.mxu0 %v5625
        %6142 = vmatpush.bf16.msra.mxu0 %v5617
        %6143 = vmatpush.bf16.msra.mxu0 %v5609
        %6144 = vmatpush.bf16.msra.mxu0 %v5601
        %6145 = vmatpush.bf16.msra.mxu0 %v5593
        %6146 = vmatpush.bf16.msra.mxu0 %v5585
        %6147 = vmatpush.bf16.msra.mxu0 %v5577
        %6148 = vmatmul.bf16.gmra.mxu0 %v4466
        %v6149 = vpop.f32.mrf.mxu0
        %v6150 = vadd.f32 %v6137, %v6149
        %v6151 = vpop.f32.mrf.mxu0
        %6152 = vdwg.mxu0
        %6153 = vmatpush.bf16.msra.mxu0 %v5697
        %6154 = vmatpush.bf16.msra.mxu0 %v5689
        %6155 = vmatpush.bf16.msra.mxu0 %v5681
        %6156 = vmatpush.bf16.msra.mxu0 %v5673
        %6157 = vmatpush.bf16.msra.mxu0 %v5665
        %6158 = vmatpush.bf16.msra.mxu0 %v5657
        %6159 = vmatpush.bf16.msra.mxu0 %v5649
        %6160 = vmatpush.bf16.msra.mxu0 %v5641
        %6161 = vmatmul.bf16.gmra.mxu0 %v4467
        %v6162 = vpop.f32.mrf.mxu0
        %v6163 = vadd.f32 %v6150, %v6162
        %v6164 = vpop.f32.mrf.mxu0
        %6165 = vdwg.mxu0
        %6166 = vmatpush.bf16.msra.mxu0 %v5761
        %6167 = vmatpush.bf16.msra.mxu0 %v5753
        %6168 = vmatpush.bf16.msra.mxu0 %v5745
        %6169 = vmatpush.bf16.msra.mxu0 %v5737
        %6170 = vmatpush.bf16.msra.mxu0 %v5729
        %6171 = vmatpush.bf16.msra.mxu0 %v5721
        %6172 = vmatpush.bf16.msra.mxu0 %v5713
        %6173 = vmatpush.bf16.msra.mxu0 %v5705
        %6174 = vmatmul.bf16.gmra.mxu0 %v4468
        %v6175 = vpop.f32.mrf.mxu0
        %v6176 = vadd.f32 %v6163, %v6175
        %v6177 = vpop.f32.mrf.mxu0
        %6178 = vdwg.mxu0
        %6179 = vmatpush.bf16.msra.mxu0 %v5570
        %6180 = vmatpush.bf16.msra.mxu0 %v5562
        %6181 = vmatpush.bf16.msra.mxu0 %v5554
        %6182 = vmatpush.bf16.msra.mxu0 %v5546
        %6183 = vmatpush.bf16.msra.mxu0 %v5538
        %6184 = vmatpush.bf16.msra.mxu0 %v5530
        %6185 = vmatpush.bf16.msra.mxu0 %v5522
        %6186 = vmatpush.bf16.msra.mxu0 %v5514
        %6187 = vmatmul.bf16.gmra.mxu0 %v4465
        %v6188 = vpop.f32.mrf.mxu0
        %v6189 = vadd.f32 %v4730, %v6188
        %v6190 = vpop.f32.mrf.mxu0
        %6191 = vdwg.mxu0
        %6192 = vmatpush.bf16.msra.mxu0 %v5634
        %6193 = vmatpush.bf16.msra.mxu0 %v5626
        %6194 = vmatpush.bf16.msra.mxu0 %v5618
        %6195 = vmatpush.bf16.msra.mxu0 %v5610
        %6196 = vmatpush.bf16.msra.mxu0 %v5602
        %6197 = vmatpush.bf16.msra.mxu0 %v5594
        %6198 = vmatpush.bf16.msra.mxu0 %v5586
        %6199 = vmatpush.bf16.msra.mxu0 %v5578
        %6200 = vmatmul.bf16.gmra.mxu0 %v4466
        %v6201 = vpop.f32.mrf.mxu0
        %v6202 = vadd.f32 %v6189, %v6201
        %v6203 = vpop.f32.mrf.mxu0
        %6204 = vdwg.mxu0
        %6205 = vmatpush.bf16.msra.mxu0 %v5698
        %6206 = vmatpush.bf16.msra.mxu0 %v5690
        %6207 = vmatpush.bf16.msra.mxu0 %v5682
        %6208 = vmatpush.bf16.msra.mxu0 %v5674
        %6209 = vmatpush.bf16.msra.mxu0 %v5666
        %6210 = vmatpush.bf16.msra.mxu0 %v5658
        %6211 = vmatpush.bf16.msra.mxu0 %v5650
        %6212 = vmatpush.bf16.msra.mxu0 %v5642
        %6213 = vmatmul.bf16.gmra.mxu0 %v4467
        %v6214 = vpop.f32.mrf.mxu0
        %v6215 = vadd.f32 %v6202, %v6214
        %v6216 = vpop.f32.mrf.mxu0
        %6217 = vdwg.mxu0
        %6218 = vmatpush.bf16.msra.mxu0 %v5762
        %6219 = vmatpush.bf16.msra.mxu0 %v5754
        %6220 = vmatpush.bf16.msra.mxu0 %v5746
        %6221 = vmatpush.bf16.msra.mxu0 %v5738
        %6222 = vmatpush.bf16.msra.mxu0 %v5730
        %6223 = vmatpush.bf16.msra.mxu0 %v5722
        %6224 = vmatpush.bf16.msra.mxu0 %v5714
        %6225 = vmatpush.bf16.msra.mxu0 %v5706
        %6226 = vmatmul.bf16.gmra.mxu0 %v4468
        %v6227 = vpop.f32.mrf.mxu0
        %v6228 = vadd.f32 %v6215, %v6227
        %v6229 = vpop.f32.mrf.mxu0
        %6230 = vdwg.mxu0
        %6231 = vmatpush.bf16.msra.mxu0 %v5571
        %6232 = vmatpush.bf16.msra.mxu0 %v5563
        %6233 = vmatpush.bf16.msra.mxu0 %v5555
        %6234 = vmatpush.bf16.msra.mxu0 %v5547
        %6235 = vmatpush.bf16.msra.mxu0 %v5539
        %6236 = vmatpush.bf16.msra.mxu0 %v5531
        %6237 = vmatpush.bf16.msra.mxu0 %v5523
        %6238 = vmatpush.bf16.msra.mxu0 %v5515
        %6239 = vmatmul.bf16.gmra.mxu0 %v4465
        %v6240 = vpop.f32.mrf.mxu0
        %v6241 = vadd.f32 %v4731, %v6240
        %v6242 = vpop.f32.mrf.mxu0
        %6243 = vdwg.mxu0
        %6244 = vmatpush.bf16.msra.mxu0 %v5635
        %6245 = vmatpush.bf16.msra.mxu0 %v5627
        %6246 = vmatpush.bf16.msra.mxu0 %v5619
        %6247 = vmatpush.bf16.msra.mxu0 %v5611
        %6248 = vmatpush.bf16.msra.mxu0 %v5603
        %6249 = vmatpush.bf16.msra.mxu0 %v5595
        %6250 = vmatpush.bf16.msra.mxu0 %v5587
        %6251 = vmatpush.bf16.msra.mxu0 %v5579
        %6252 = vmatmul.bf16.gmra.mxu0 %v4466
        %v6253 = vpop.f32.mrf.mxu0
        %v6254 = vadd.f32 %v6241, %v6253
        %v6255 = vpop.f32.mrf.mxu0
        %6256 = vdwg.mxu0
        %6257 = vmatpush.bf16.msra.mxu0 %v5699
        %6258 = vmatpush.bf16.msra.mxu0 %v5691
        %6259 = vmatpush.bf16.msra.mxu0 %v5683
        %6260 = vmatpush.bf16.msra.mxu0 %v5675
        %6261 = vmatpush.bf16.msra.mxu0 %v5667
        %6262 = vmatpush.bf16.msra.mxu0 %v5659
        %6263 = vmatpush.bf16.msra.mxu0 %v5651
        %6264 = vmatpush.bf16.msra.mxu0 %v5643
        %6265 = vmatmul.bf16.gmra.mxu0 %v4467
        %v6266 = vpop.f32.mrf.mxu0
        %v6267 = vadd.f32 %v6254, %v6266
        %v6268 = vpop.f32.mrf.mxu0
        %6269 = vdwg.mxu0
        %6270 = vmatpush.bf16.msra.mxu0 %v5763
        %6271 = vmatpush.bf16.msra.mxu0 %v5755
        %6272 = vmatpush.bf16.msra.mxu0 %v5747
        %6273 = vmatpush.bf16.msra.mxu0 %v5739
        %6274 = vmatpush.bf16.msra.mxu0 %v5731
        %6275 = vmatpush.bf16.msra.mxu0 %v5723
        %6276 = vmatpush.bf16.msra.mxu0 %v5715
        %6277 = vmatpush.bf16.msra.mxu0 %v5707
        %6278 = vmatmul.bf16.gmra.mxu0 %v4468
        %v6279 = vpop.f32.mrf.mxu0
        %v6280 = vadd.f32 %v6267, %v6279
        %v6281 = vpop.f32.mrf.mxu0
        %6282 = vdwg.mxu0
        %6283 = vmatpush.bf16.msra.mxu0 %v5572
        %6284 = vmatpush.bf16.msra.mxu0 %v5564
        %6285 = vmatpush.bf16.msra.mxu0 %v5556
        %6286 = vmatpush.bf16.msra.mxu0 %v5548
        %6287 = vmatpush.bf16.msra.mxu0 %v5540
        %6288 = vmatpush.bf16.msra.mxu0 %v5532
        %6289 = vmatpush.bf16.msra.mxu0 %v5524
        %6290 = vmatpush.bf16.msra.mxu0 %v5516
        %6291 = vmatmul.bf16.gmra.mxu0 %v4465
        %v6292 = vpop.f32.mrf.mxu0
        %v6293 = vadd.f32 %v4732, %v6292
        %v6294 = vpop.f32.mrf.mxu0
        %6295 = vdwg.mxu0
        %6296 = vmatpush.bf16.msra.mxu0 %v5636
        %6297 = vmatpush.bf16.msra.mxu0 %v5628
        %6298 = vmatpush.bf16.msra.mxu0 %v5620
        %6299 = vmatpush.bf16.msra.mxu0 %v5612
        %6300 = vmatpush.bf16.msra.mxu0 %v5604
        %6301 = vmatpush.bf16.msra.mxu0 %v5596
        %6302 = vmatpush.bf16.msra.mxu0 %v5588
        %6303 = vmatpush.bf16.msra.mxu0 %v5580
        %6304 = vmatmul.bf16.gmra.mxu0 %v4466
        %v6305 = vpop.f32.mrf.mxu0
        %v6306 = vadd.f32 %v6293, %v6305
        %v6307 = vpop.f32.mrf.mxu0
        %6308 = vdwg.mxu0
        %6309 = vmatpush.bf16.msra.mxu0 %v5700
        %6310 = vmatpush.bf16.msra.mxu0 %v5692
        %6311 = vmatpush.bf16.msra.mxu0 %v5684
        %6312 = vmatpush.bf16.msra.mxu0 %v5676
        %6313 = vmatpush.bf16.msra.mxu0 %v5668
        %6314 = vmatpush.bf16.msra.mxu0 %v5660
        %6315 = vmatpush.bf16.msra.mxu0 %v5652
        %6316 = vmatpush.bf16.msra.mxu0 %v5644
        %6317 = vmatmul.bf16.gmra.mxu0 %v4467
        %v6318 = vpop.f32.mrf.mxu0
        %v6319 = vadd.f32 %v6306, %v6318
        %v6320 = vpop.f32.mrf.mxu0
        %6321 = vdwg.mxu0
        %6322 = vmatpush.bf16.msra.mxu0 %v5764
        %6323 = vmatpush.bf16.msra.mxu0 %v5756
        %6324 = vmatpush.bf16.msra.mxu0 %v5748
        %6325 = vmatpush.bf16.msra.mxu0 %v5740
        %6326 = vmatpush.bf16.msra.mxu0 %v5732
        %6327 = vmatpush.bf16.msra.mxu0 %v5724
        %6328 = vmatpush.bf16.msra.mxu0 %v5716
        %6329 = vmatpush.bf16.msra.mxu0 %v5708
        %6330 = vmatmul.bf16.gmra.mxu0 %v4468
        %v6331 = vpop.f32.mrf.mxu0
        %v6332 = vadd.f32 %v6319, %v6331
        %v6333 = vpop.f32.mrf.mxu0
        %6334 = vdwg.mxu0
        %6335 = vmatpush.bf16.msra.mxu0 %v5573
        %6336 = vmatpush.bf16.msra.mxu0 %v5565
        %6337 = vmatpush.bf16.msra.mxu0 %v5557
        %6338 = vmatpush.bf16.msra.mxu0 %v5549
        %6339 = vmatpush.bf16.msra.mxu0 %v5541
        %6340 = vmatpush.bf16.msra.mxu0 %v5533
        %6341 = vmatpush.bf16.msra.mxu0 %v5525
        %6342 = vmatpush.bf16.msra.mxu0 %v5517
        %6343 = vmatmul.bf16.gmra.mxu0 %v4465
        %v6344 = vpop.f32.mrf.mxu0
        %v6345 = vadd.f32 %v4733, %v6344
        %v6346 = vpop.f32.mrf.mxu0
        %6347 = vdwg.mxu0
        %6348 = vmatpush.bf16.msra.mxu0 %v5637
        %6349 = vmatpush.bf16.msra.mxu0 %v5629
        %6350 = vmatpush.bf16.msra.mxu0 %v5621
        %6351 = vmatpush.bf16.msra.mxu0 %v5613
        %6352 = vmatpush.bf16.msra.mxu0 %v5605
        %6353 = vmatpush.bf16.msra.mxu0 %v5597
        %6354 = vmatpush.bf16.msra.mxu0 %v5589
        %6355 = vmatpush.bf16.msra.mxu0 %v5581
        %6356 = vmatmul.bf16.gmra.mxu0 %v4466
        %v6357 = vpop.f32.mrf.mxu0
        %v6358 = vadd.f32 %v6345, %v6357
        %v6359 = vpop.f32.mrf.mxu0
        %6360 = vdwg.mxu0
        %6361 = vmatpush.bf16.msra.mxu0 %v5701
        %6362 = vmatpush.bf16.msra.mxu0 %v5693
        %6363 = vmatpush.bf16.msra.mxu0 %v5685
        %6364 = vmatpush.bf16.msra.mxu0 %v5677
        %6365 = vmatpush.bf16.msra.mxu0 %v5669
        %6366 = vmatpush.bf16.msra.mxu0 %v5661
        %6367 = vmatpush.bf16.msra.mxu0 %v5653
        %6368 = vmatpush.bf16.msra.mxu0 %v5645
        %6369 = vmatmul.bf16.gmra.mxu0 %v4467
        %v6370 = vpop.f32.mrf.mxu0
        %v6371 = vadd.f32 %v6358, %v6370
        %v6372 = vpop.f32.mrf.mxu0
        %6373 = vdwg.mxu0
        %6374 = vmatpush.bf16.msra.mxu0 %v5765
        %6375 = vmatpush.bf16.msra.mxu0 %v5757
        %6376 = vmatpush.bf16.msra.mxu0 %v5749
        %6377 = vmatpush.bf16.msra.mxu0 %v5741
        %6378 = vmatpush.bf16.msra.mxu0 %v5733
        %6379 = vmatpush.bf16.msra.mxu0 %v5725
        %6380 = vmatpush.bf16.msra.mxu0 %v5717
        %6381 = vmatpush.bf16.msra.mxu0 %v5709
        %6382 = vmatmul.bf16.gmra.mxu0 %v4468
        %v6383 = vpop.f32.mrf.mxu0
        %v6384 = vadd.f32 %v6371, %v6383
        %v6385 = vpop.f32.mrf.mxu0
        %6386 = vdwg.mxu0
        %6387 = vmatpush.bf16.msra.mxu0 %v5574
        %6388 = vmatpush.bf16.msra.mxu0 %v5566
        %6389 = vmatpush.bf16.msra.mxu0 %v5558
        %6390 = vmatpush.bf16.msra.mxu0 %v5550
        %6391 = vmatpush.bf16.msra.mxu0 %v5542
        %6392 = vmatpush.bf16.msra.mxu0 %v5534
        %6393 = vmatpush.bf16.msra.mxu0 %v5526
        %6394 = vmatpush.bf16.msra.mxu0 %v5518
        %6395 = vmatmul.bf16.gmra.mxu0 %v4465
        %v6396 = vpop.f32.mrf.mxu0
        %v6397 = vadd.f32 %v4734, %v6396
        %v6398 = vpop.f32.mrf.mxu0
        %6399 = vdwg.mxu0
        %6400 = vmatpush.bf16.msra.mxu0 %v5638
        %6401 = vmatpush.bf16.msra.mxu0 %v5630
        %6402 = vmatpush.bf16.msra.mxu0 %v5622
        %6403 = vmatpush.bf16.msra.mxu0 %v5614
        %6404 = vmatpush.bf16.msra.mxu0 %v5606
        %6405 = vmatpush.bf16.msra.mxu0 %v5598
        %6406 = vmatpush.bf16.msra.mxu0 %v5590
        %6407 = vmatpush.bf16.msra.mxu0 %v5582
        %6408 = vmatmul.bf16.gmra.mxu0 %v4466
        %v6409 = vpop.f32.mrf.mxu0
        %v6410 = vadd.f32 %v6397, %v6409
        %v6411 = vpop.f32.mrf.mxu0
        %6412 = vdwg.mxu0
        %6413 = vmatpush.bf16.msra.mxu0 %v5702
        %6414 = vmatpush.bf16.msra.mxu0 %v5694
        %6415 = vmatpush.bf16.msra.mxu0 %v5686
        %6416 = vmatpush.bf16.msra.mxu0 %v5678
        %6417 = vmatpush.bf16.msra.mxu0 %v5670
        %6418 = vmatpush.bf16.msra.mxu0 %v5662
        %6419 = vmatpush.bf16.msra.mxu0 %v5654
        %6420 = vmatpush.bf16.msra.mxu0 %v5646
        %6421 = vmatmul.bf16.gmra.mxu0 %v4467
        %v6422 = vpop.f32.mrf.mxu0
        %v6423 = vadd.f32 %v6410, %v6422
        %v6424 = vpop.f32.mrf.mxu0
        %6425 = vdwg.mxu0
        %6426 = vmatpush.bf16.msra.mxu0 %v5766
        %6427 = vmatpush.bf16.msra.mxu0 %v5758
        %6428 = vmatpush.bf16.msra.mxu0 %v5750
        %6429 = vmatpush.bf16.msra.mxu0 %v5742
        %6430 = vmatpush.bf16.msra.mxu0 %v5734
        %6431 = vmatpush.bf16.msra.mxu0 %v5726
        %6432 = vmatpush.bf16.msra.mxu0 %v5718
        %6433 = vmatpush.bf16.msra.mxu0 %v5710
        %6434 = vmatmul.bf16.gmra.mxu0 %v4468
        %v6435 = vpop.f32.mrf.mxu0
        %v6436 = vadd.f32 %v6423, %v6435
        %v6437 = vpop.f32.mrf.mxu0
        %6438 = vdwg.mxu0
        %v6439 = vmax.f32 %v6072, 0.0
        %v6440 = vmax.f32 %v6124, 0.0
        %v6441 = vmax.f32 %v6176, 0.0
        %v6442 = vmax.f32 %v6228, 0.0
        %v6443 = vmax.f32 %v6280, 0.0
        %v6444 = vmax.f32 %v6332, 0.0
        %v6445 = vmax.f32 %v6384, 0.0
        %v6446 = vmax.f32 %v6436, 0.0
        %v6447 = vsel %vm1800, %v6439, 0.0
        %v6448 = vrot.slane %v6447, 4
        %v6449 = vadd.f32 %v6447, %v6448
        %v6450 = vrot.slane %v6449, 2
        %v6451 = vadd.f32 %v6449, %v6450
        %v6452 = vrot.slane %v6451, 1
        %v6453 = vadd.f32 %v6451, %v6452
        %v6454 = vsel %vm1800, %v6440, 0.0
        %v6455 = vrot.slane %v6454, 4
        %v6456 = vadd.f32 %v6454, %v6455
        %v6457 = vrot.slane %v6456, 2
        %v6458 = vadd.f32 %v6456, %v6457
        %v6459 = vrot.slane %v6458, 1
        %v6460 = vadd.f32 %v6458, %v6459
        %v6461 = vsel %vm1800, %v6441, 0.0
        %v6462 = vrot.slane %v6461, 4
        %v6463 = vadd.f32 %v6461, %v6462
        %v6464 = vrot.slane %v6463, 2
        %v6465 = vadd.f32 %v6463, %v6464
        %v6466 = vrot.slane %v6465, 1
        %v6467 = vadd.f32 %v6465, %v6466
        %v6468 = vsel %vm1800, %v6442, 0.0
        %v6469 = vrot.slane %v6468, 4
        %v6470 = vadd.f32 %v6468, %v6469
        %v6471 = vrot.slane %v6470, 2
        %v6472 = vadd.f32 %v6470, %v6471
        %v6473 = vrot.slane %v6472, 1
        %v6474 = vadd.f32 %v6472, %v6473
        %v6475 = vsel %vm1800, %v6443, 0.0
        %v6476 = vrot.slane %v6475, 4
        %v6477 = vadd.f32 %v6475, %v6476
        %v6478 = vrot.slane %v6477, 2
        %v6479 = vadd.f32 %v6477, %v6478
        %v6480 = vrot.slane %v6479, 1
        %v6481 = vadd.f32 %v6479, %v6480
        %v6482 = vsel %vm1800, %v6444, 0.0
        %v6483 = vrot.slane %v6482, 4
        %v6484 = vadd.f32 %v6482, %v6483
        %v6485 = vrot.slane %v6484, 2
        %v6486 = vadd.f32 %v6484, %v6485
        %v6487 = vrot.slane %v6486, 1
        %v6488 = vadd.f32 %v6486, %v6487
        %v6489 = vsel %vm1800, %v6445, 0.0
        %v6490 = vrot.slane %v6489, 4
        %v6491 = vadd.f32 %v6489, %v6490
        %v6492 = vrot.slane %v6491, 2
        %v6493 = vadd.f32 %v6491, %v6492
        %v6494 = vrot.slane %v6493, 1
        %v6495 = vadd.f32 %v6493, %v6494
        %v6496 = vsel %vm1800, %v6446, 0.0
        %v6497 = vrot.slane %v6496, 4
        %v6498 = vadd.f32 %v6496, %v6497
        %v6499 = vrot.slane %v6498, 2
        %v6500 = vadd.f32 %v6498, %v6499
        %v6501 = vrot.slane %v6500, 1
        %v6502 = vadd.f32 %v6500, %v6501
        %v6503 = vpack.c.bf16 %v6453, %v6453
        %v6504 = vpack.c.bf16 %v6460, %v6460
        %v6505 = vpack.c.bf16 %v6467, %v6467
        %v6506 = vpack.c.bf16 %v6474, %v6474
        %v6507 = vpack.c.bf16 %v6481, %v6481
        %v6508 = vpack.c.bf16 %v6488, %v6488
        %v6509 = vpack.c.bf16 %v6495, %v6495
        %v6510 = vpack.c.bf16 %v6502, %v6502
        %v6511 = vld [vmem:[%s14] sm:$0xf]
        %v6512 = vld [vmem:[%s14 + $0x4] sm:$0xf]
        %v6513 = vld [vmem:[%s14 + $0x8] sm:$0xf]
        %v6514 = vld [vmem:[%s14 + $0xc] sm:$0xf]
        %v6515 = vld [vmem:[%s14 + $0x10] sm:$0xf]
        %v6516 = vld [vmem:[%s14 + $0x14] sm:$0xf]
        %v6517 = vld [vmem:[%s14 + $0x18] sm:$0xf]
        %v6518 = vld [vmem:[%s14 + $0x1c] sm:$0xf]
        %v6519 = vld [vmem:[%s14 + $0x20] sm:$0xf]
        %v6520 = vld [vmem:[%s14 + $0x24] sm:$0xf]
        %v6521 = vld [vmem:[%s14 + $0x28] sm:$0xf]
        %v6522 = vld [vmem:[%s14 + $0x2c] sm:$0xf]
        %v6523 = vld [vmem:[%s14 + $0x30] sm:$0xf]
        %v6524 = vld [vmem:[%s14 + $0x34] sm:$0xf]
        %v6525 = vld [vmem:[%s14 + $0x38] sm:$0xf]
        %v6526 = vld [vmem:[%s14 + $0x3c] sm:$0xf]
        %v6527 = vld [vmem:[%s14 + $0x40] sm:$0xf]
        %v6528 = vld [vmem:[%s14 + $0x44] sm:$0xf]
        %v6529 = vld [vmem:[%s14 + $0x48] sm:$0xf]
        %v6530 = vld [vmem:[%s14 + $0x4c] sm:$0xf]
        %v6531 = vld [vmem:[%s14 + $0x50] sm:$0xf]
        %v6532 = vld [vmem:[%s14 + $0x54] sm:$0xf]
        %v6533 = vld [vmem:[%s14 + $0x58] sm:$0xf]
        %v6534 = vld [vmem:[%s14 + $0x5c] sm:$0xf]
        %v6535 = vld [vmem:[%s14 + $0x60] sm:$0xf]
        %v6536 = vld [vmem:[%s14 + $0x64] sm:$0xf]
        %v6537 = vld [vmem:[%s14 + $0x68] sm:$0xf]
        %v6538 = vld [vmem:[%s14 + $0x6c] sm:$0xf]
        %v6539 = vld [vmem:[%s14 + $0x70] sm:$0xf]
        %v6540 = vld [vmem:[%s14 + $0x74] sm:$0xf]
        %v6541 = vld [vmem:[%s14 + $0x78] sm:$0xf]
        %v6542 = vld [vmem:[%s14 + $0x7c] sm:$0xf]
        %v6543 = vld [vmem:[%s14 + $0x80] sm:$0xf]
        %v6544 = vld [vmem:[%s14 + $0x84] sm:$0xf]
        %v6545 = vld [vmem:[%s14 + $0x88] sm:$0xf]
        %v6546 = vld [vmem:[%s14 + $0x8c] sm:$0xf]
        %v6547 = vld [vmem:[%s14 + $0x90] sm:$0xf]
        %v6548 = vld [vmem:[%s14 + $0x94] sm:$0xf]
        %v6549 = vld [vmem:[%s14 + $0x98] sm:$0xf]
        %v6550 = vld [vmem:[%s14 + $0x9c] sm:$0xf]
        %v6551 = vld [vmem:[%s14 + $0xa0] sm:$0xf]
        %v6552 = vld [vmem:[%s14 + $0xa4] sm:$0xf]
        %v6553 = vld [vmem:[%s14 + $0xa8] sm:$0xf]
        %v6554 = vld [vmem:[%s14 + $0xac] sm:$0xf]
        %v6555 = vld [vmem:[%s14 + $0xb0] sm:$0xf]
        %v6556 = vld [vmem:[%s14 + $0xb4] sm:$0xf]
        %v6557 = vld [vmem:[%s14 + $0xb8] sm:$0xf]
        %v6558 = vld [vmem:[%s14 + $0xbc] sm:$0xf]
        %v6559 = vld [vmem:[%s14 + $0xc0] sm:$0xf]
        %v6560 = vld [vmem:[%s14 + $0xc4] sm:$0xf]
        %v6561 = vld [vmem:[%s14 + $0xc8] sm:$0xf]
        %v6562 = vld [vmem:[%s14 + $0xcc] sm:$0xf]
        %v6563 = vld [vmem:[%s14 + $0xd0] sm:$0xf]
        %v6564 = vld [vmem:[%s14 + $0xd4] sm:$0xf]
        %v6565 = vld [vmem:[%s14 + $0xd8] sm:$0xf]
        %v6566 = vld [vmem:[%s14 + $0xdc] sm:$0xf]
        %v6567 = vld [vmem:[%s14 + $0xe0] sm:$0xf]
        %v6568 = vld [vmem:[%s14 + $0xe4] sm:$0xf]
        %v6569 = vld [vmem:[%s14 + $0xe8] sm:$0xf]
        %v6570 = vld [vmem:[%s14 + $0xec] sm:$0xf]
        %v6571 = vld [vmem:[%s14 + $0xf0] sm:$0xf]
        %v6572 = vld [vmem:[%s14 + $0xf4] sm:$0xf]
        %v6573 = vld [vmem:[%s14 + $0xf8] sm:$0xf]
        %v6574 = vld [vmem:[%s14 + $0xfc] sm:$0xf]
        %v6575 = vld [vmem:[%s14 + $0x100] sm:$0xf]
        %v6576 = vld [vmem:[%s14 + $0x104] sm:$0xf]
        %v6577 = vld [vmem:[%s14 + $0x108] sm:$0xf]
        %v6578 = vld [vmem:[%s14 + $0x10c] sm:$0xf]
        %v6579 = vld [vmem:[%s14 + $0x110] sm:$0xf]
        %v6580 = vld [vmem:[%s14 + $0x114] sm:$0xf]
        %v6581 = vld [vmem:[%s14 + $0x118] sm:$0xf]
        %v6582 = vld [vmem:[%s14 + $0x11c] sm:$0xf]
        %v6583 = vld [vmem:[%s14 + $0x120] sm:$0xf]
        %v6584 = vld [vmem:[%s14 + $0x124] sm:$0xf]
        %v6585 = vld [vmem:[%s14 + $0x128] sm:$0xf]
        %v6586 = vld [vmem:[%s14 + $0x12c] sm:$0xf]
        %v6587 = vld [vmem:[%s14 + $0x130] sm:$0xf]
        %v6588 = vld [vmem:[%s14 + $0x134] sm:$0xf]
        %v6589 = vld [vmem:[%s14 + $0x138] sm:$0xf]
        %v6590 = vld [vmem:[%s14 + $0x13c] sm:$0xf]
        %v6591 = vld [vmem:[%s14 + $0x140] sm:$0xf]
        %v6592 = vld [vmem:[%s14 + $0x144] sm:$0xf]
        %v6593 = vld [vmem:[%s14 + $0x148] sm:$0xf]
        %v6594 = vld [vmem:[%s14 + $0x14c] sm:$0xf]
        %v6595 = vld [vmem:[%s14 + $0x150] sm:$0xf]
        %v6596 = vld [vmem:[%s14 + $0x154] sm:$0xf]
        %v6597 = vld [vmem:[%s14 + $0x158] sm:$0xf]
        %v6598 = vld [vmem:[%s14 + $0x15c] sm:$0xf]
        %v6599 = vld [vmem:[%s14 + $0x160] sm:$0xf]
        %v6600 = vld [vmem:[%s14 + $0x164] sm:$0xf]
        %v6601 = vld [vmem:[%s14 + $0x168] sm:$0xf]
        %v6602 = vld [vmem:[%s14 + $0x16c] sm:$0xf]
        %v6603 = vld [vmem:[%s14 + $0x170] sm:$0xf]
        %v6604 = vld [vmem:[%s14 + $0x174] sm:$0xf]
        %v6605 = vld [vmem:[%s14 + $0x178] sm:$0xf]
        %v6606 = vld [vmem:[%s14 + $0x17c] sm:$0xf]
        %v6607 = vld [vmem:[%s14 + $0x180] sm:$0xf]
        %v6608 = vld [vmem:[%s14 + $0x184] sm:$0xf]
        %v6609 = vld [vmem:[%s14 + $0x188] sm:$0xf]
        %v6610 = vld [vmem:[%s14 + $0x18c] sm:$0xf]
        %v6611 = vld [vmem:[%s14 + $0x190] sm:$0xf]
        %v6612 = vld [vmem:[%s14 + $0x194] sm:$0xf]
        %v6613 = vld [vmem:[%s14 + $0x198] sm:$0xf]
        %v6614 = vld [vmem:[%s14 + $0x19c] sm:$0xf]
        %v6615 = vld [vmem:[%s14 + $0x1a0] sm:$0xf]
        %v6616 = vld [vmem:[%s14 + $0x1a4] sm:$0xf]
        %v6617 = vld [vmem:[%s14 + $0x1a8] sm:$0xf]
        %v6618 = vld [vmem:[%s14 + $0x1ac] sm:$0xf]
        %v6619 = vld [vmem:[%s14 + $0x1b0] sm:$0xf]
        %v6620 = vld [vmem:[%s14 + $0x1b4] sm:$0xf]
        %v6621 = vld [vmem:[%s14 + $0x1b8] sm:$0xf]
        %v6622 = vld [vmem:[%s14 + $0x1bc] sm:$0xf]
        %v6623 = vld [vmem:[%s14 + $0x1c0] sm:$0xf]
        %v6624 = vld [vmem:[%s14 + $0x1c4] sm:$0xf]
        %v6625 = vld [vmem:[%s14 + $0x1c8] sm:$0xf]
        %v6626 = vld [vmem:[%s14 + $0x1cc] sm:$0xf]
        %v6627 = vld [vmem:[%s14 + $0x1d0] sm:$0xf]
        %v6628 = vld [vmem:[%s14 + $0x1d4] sm:$0xf]
        %v6629 = vld [vmem:[%s14 + $0x1d8] sm:$0xf]
        %v6630 = vld [vmem:[%s14 + $0x1dc] sm:$0xf]
        %v6631 = vld [vmem:[%s14 + $0x1e0] sm:$0xf]
        %v6632 = vld [vmem:[%s14 + $0x1e4] sm:$0xf]
        %v6633 = vld [vmem:[%s14 + $0x1e8] sm:$0xf]
        %v6634 = vld [vmem:[%s14 + $0x1ec] sm:$0xf]
        %v6635 = vld [vmem:[%s14 + $0x1f0] sm:$0xf]
        %v6636 = vld [vmem:[%s14 + $0x1f4] sm:$0xf]
        %v6637 = vld [vmem:[%s14 + $0x1f8] sm:$0xf]
        %v6638 = vld [vmem:[%s14 + $0x1fc] sm:$0xf]
        %v6767 = vunpack.c.l.b16 %v6511
        %v6768 = vunpack.c.l.b16 %v6512
        %v6769 = vunpack.c.l.b16 %v6513
        %v6770 = vunpack.c.l.b16 %v6514
        %v6771 = vunpack.c.l.b16 %v6515
        %v6772 = vunpack.c.l.b16 %v6516
        %v6773 = vunpack.c.l.b16 %v6517
        %v6774 = vunpack.c.l.b16 %v6518
        %v6775 = vunpack.c.l.b16 %v6519
        %v6776 = vunpack.c.l.b16 %v6520
        %v6777 = vunpack.c.l.b16 %v6521
        %v6778 = vunpack.c.l.b16 %v6522
        %v6779 = vunpack.c.l.b16 %v6523
        %v6780 = vunpack.c.l.b16 %v6524
        %v6781 = vunpack.c.l.b16 %v6525
        %v6782 = vunpack.c.l.b16 %v6526
        %v6783 = vunpack.c.l.b16 %v6527
        %v6784 = vunpack.c.l.b16 %v6528
        %v6785 = vunpack.c.l.b16 %v6529
        %v6786 = vunpack.c.l.b16 %v6530
        %v6787 = vunpack.c.l.b16 %v6531
        %v6788 = vunpack.c.l.b16 %v6532
        %v6789 = vunpack.c.l.b16 %v6533
        %v6790 = vunpack.c.l.b16 %v6534
        %v6791 = vunpack.c.l.b16 %v6535
        %v6792 = vunpack.c.l.b16 %v6536
        %v6793 = vunpack.c.l.b16 %v6537
        %v6794 = vunpack.c.l.b16 %v6538
        %v6795 = vunpack.c.l.b16 %v6539
        %v6796 = vunpack.c.l.b16 %v6540
        %v6797 = vunpack.c.l.b16 %v6541
        %v6798 = vunpack.c.l.b16 %v6542
        %v6799 = vunpack.c.l.b16 %v6543
        %v6800 = vunpack.c.l.b16 %v6544
        %v6801 = vunpack.c.l.b16 %v6545
        %v6802 = vunpack.c.l.b16 %v6546
        %v6803 = vunpack.c.l.b16 %v6547
        %v6804 = vunpack.c.l.b16 %v6548
        %v6805 = vunpack.c.l.b16 %v6549
        %v6806 = vunpack.c.l.b16 %v6550
        %v6807 = vunpack.c.l.b16 %v6551
        %v6808 = vunpack.c.l.b16 %v6552
        %v6809 = vunpack.c.l.b16 %v6553
        %v6810 = vunpack.c.l.b16 %v6554
        %v6811 = vunpack.c.l.b16 %v6555
        %v6812 = vunpack.c.l.b16 %v6556
        %v6813 = vunpack.c.l.b16 %v6557
        %v6814 = vunpack.c.l.b16 %v6558
        %v6815 = vunpack.c.l.b16 %v6559
        %v6816 = vunpack.c.l.b16 %v6560
        %v6817 = vunpack.c.l.b16 %v6561
        %v6818 = vunpack.c.l.b16 %v6562
        %v6819 = vunpack.c.l.b16 %v6563
        %v6820 = vunpack.c.l.b16 %v6564
        %v6821 = vunpack.c.l.b16 %v6565
        %v6822 = vunpack.c.l.b16 %v6566
        %v6823 = vunpack.c.l.b16 %v6567
        %v6824 = vunpack.c.l.b16 %v6568
        %v6825 = vunpack.c.l.b16 %v6569
        %v6826 = vunpack.c.l.b16 %v6570
        %v6827 = vunpack.c.l.b16 %v6571
        %v6828 = vunpack.c.l.b16 %v6572
        %v6829 = vunpack.c.l.b16 %v6573
        %v6830 = vunpack.c.l.b16 %v6574
        %v6831 = vunpack.c.l.b16 %v6575
        %v6832 = vunpack.c.l.b16 %v6576
        %v6833 = vunpack.c.l.b16 %v6577
        %v6834 = vunpack.c.l.b16 %v6578
        %v6835 = vunpack.c.l.b16 %v6579
        %v6836 = vunpack.c.l.b16 %v6580
        %v6837 = vunpack.c.l.b16 %v6581
        %v6838 = vunpack.c.l.b16 %v6582
        %v6839 = vunpack.c.l.b16 %v6583
        %v6840 = vunpack.c.l.b16 %v6584
        %v6841 = vunpack.c.l.b16 %v6585
        %v6842 = vunpack.c.l.b16 %v6586
        %v6843 = vunpack.c.l.b16 %v6587
        %v6844 = vunpack.c.l.b16 %v6588
        %v6845 = vunpack.c.l.b16 %v6589
        %v6846 = vunpack.c.l.b16 %v6590
        %v6847 = vunpack.c.l.b16 %v6591
        %v6848 = vunpack.c.l.b16 %v6592
        %v6849 = vunpack.c.l.b16 %v6593
        %v6850 = vunpack.c.l.b16 %v6594
        %v6851 = vunpack.c.l.b16 %v6595
        %v6852 = vunpack.c.l.b16 %v6596
        %v6853 = vunpack.c.l.b16 %v6597
        %v6854 = vunpack.c.l.b16 %v6598
        %v6855 = vunpack.c.l.b16 %v6599
        %v6856 = vunpack.c.l.b16 %v6600
        %v6857 = vunpack.c.l.b16 %v6601
        %v6858 = vunpack.c.l.b16 %v6602
        %v6859 = vunpack.c.l.b16 %v6603
        %v6860 = vunpack.c.l.b16 %v6604
        %v6861 = vunpack.c.l.b16 %v6605
        %v6862 = vunpack.c.l.b16 %v6606
        %v6863 = vunpack.c.l.b16 %v6607
        %v6864 = vunpack.c.l.b16 %v6608
        %v6865 = vunpack.c.l.b16 %v6609
        %v6866 = vunpack.c.l.b16 %v6610
        %v6867 = vunpack.c.l.b16 %v6611
        %v6868 = vunpack.c.l.b16 %v6612
        %v6869 = vunpack.c.l.b16 %v6613
        %v6870 = vunpack.c.l.b16 %v6614
        %v6871 = vunpack.c.l.b16 %v6615
        %v6872 = vunpack.c.l.b16 %v6616
        %v6873 = vunpack.c.l.b16 %v6617
        %v6874 = vunpack.c.l.b16 %v6618
        %v6875 = vunpack.c.l.b16 %v6619
        %v6876 = vunpack.c.l.b16 %v6620
        %v6877 = vunpack.c.l.b16 %v6621
        %v6878 = vunpack.c.l.b16 %v6622
        %v6879 = vunpack.c.l.b16 %v6623
        %v6880 = vunpack.c.l.b16 %v6624
        %v6881 = vunpack.c.l.b16 %v6625
        %v6882 = vunpack.c.l.b16 %v6626
        %v6883 = vunpack.c.l.b16 %v6627
        %v6884 = vunpack.c.l.b16 %v6628
        %v6885 = vunpack.c.l.b16 %v6629
        %v6886 = vunpack.c.l.b16 %v6630
        %v6887 = vunpack.c.l.b16 %v6631
        %v6888 = vunpack.c.l.b16 %v6632
        %v6889 = vunpack.c.l.b16 %v6633
        %v6890 = vunpack.c.l.b16 %v6634
        %v6891 = vunpack.c.l.b16 %v6635
        %v6892 = vunpack.c.l.b16 %v6636
        %v6893 = vunpack.c.l.b16 %v6637
        %v6894 = vunpack.c.l.b16 %v6638
        %v6895 = vpack.c.b16 %v6768, %v6767
        %v6896 = vpack.c.b16 %v6770, %v6769
        %v6897 = vpack.c.b16 %v6772, %v6771
        %v6898 = vpack.c.b16 %v6774, %v6773
        %v6899 = vpack.c.b16 %v6776, %v6775
        %v6900 = vpack.c.b16 %v6778, %v6777
        %v6901 = vpack.c.b16 %v6780, %v6779
        %v6902 = vpack.c.b16 %v6782, %v6781
        %v6903 = vpack.c.b16 %v6784, %v6783
        %v6904 = vpack.c.b16 %v6786, %v6785
        %v6905 = vpack.c.b16 %v6788, %v6787
        %v6906 = vpack.c.b16 %v6790, %v6789
        %v6907 = vpack.c.b16 %v6792, %v6791
        %v6908 = vpack.c.b16 %v6794, %v6793
        %v6909 = vpack.c.b16 %v6796, %v6795
        %v6910 = vpack.c.b16 %v6798, %v6797
        %v6911 = vpack.c.b16 %v6800, %v6799
        %v6912 = vpack.c.b16 %v6802, %v6801
        %v6913 = vpack.c.b16 %v6804, %v6803
        %v6914 = vpack.c.b16 %v6806, %v6805
        %v6915 = vpack.c.b16 %v6808, %v6807
        %v6916 = vpack.c.b16 %v6810, %v6809
        %v6917 = vpack.c.b16 %v6812, %v6811
        %v6918 = vpack.c.b16 %v6814, %v6813
        %v6919 = vpack.c.b16 %v6816, %v6815
        %v6920 = vpack.c.b16 %v6818, %v6817
        %v6921 = vpack.c.b16 %v6820, %v6819
        %v6922 = vpack.c.b16 %v6822, %v6821
        %v6923 = vpack.c.b16 %v6824, %v6823
        %v6924 = vpack.c.b16 %v6826, %v6825
        %v6925 = vpack.c.b16 %v6828, %v6827
        %v6926 = vpack.c.b16 %v6830, %v6829
        %v6927 = vpack.c.b16 %v6832, %v6831
        %v6928 = vpack.c.b16 %v6834, %v6833
        %v6929 = vpack.c.b16 %v6836, %v6835
        %v6930 = vpack.c.b16 %v6838, %v6837
        %v6931 = vpack.c.b16 %v6840, %v6839
        %v6932 = vpack.c.b16 %v6842, %v6841
        %v6933 = vpack.c.b16 %v6844, %v6843
        %v6934 = vpack.c.b16 %v6846, %v6845
        %v6935 = vpack.c.b16 %v6848, %v6847
        %v6936 = vpack.c.b16 %v6850, %v6849
        %v6937 = vpack.c.b16 %v6852, %v6851
        %v6938 = vpack.c.b16 %v6854, %v6853
        %v6939 = vpack.c.b16 %v6856, %v6855
        %v6940 = vpack.c.b16 %v6858, %v6857
        %v6941 = vpack.c.b16 %v6860, %v6859
        %v6942 = vpack.c.b16 %v6862, %v6861
        %v6943 = vpack.c.b16 %v6864, %v6863
        %v6944 = vpack.c.b16 %v6866, %v6865
        %v6945 = vpack.c.b16 %v6868, %v6867
        %v6946 = vpack.c.b16 %v6870, %v6869
        %v6947 = vpack.c.b16 %v6872, %v6871
        %v6948 = vpack.c.b16 %v6874, %v6873
        %v6949 = vpack.c.b16 %v6876, %v6875
        %v6950 = vpack.c.b16 %v6878, %v6877
        %v6951 = vpack.c.b16 %v6880, %v6879
        %v6952 = vpack.c.b16 %v6882, %v6881
        %v6953 = vpack.c.b16 %v6884, %v6883
        %v6954 = vpack.c.b16 %v6886, %v6885
        %v6955 = vpack.c.b16 %v6888, %v6887
        %v6956 = vpack.c.b16 %v6890, %v6889
        %v6957 = vpack.c.b16 %v6892, %v6891
        %v6958 = vpack.c.b16 %v6894, %v6893
        %7023 = vmatpush.bf16.msra.mxu0 %v6902
        %7024 = vmatpush.bf16.msra.mxu0 %v6901
        %7025 = vmatpush.bf16.msra.mxu0 %v6900
        %7026 = vmatpush.bf16.msra.mxu0 %v6899
        %7027 = vmatpush.bf16.msra.mxu0 %v6898
        %7028 = vmatpush.bf16.msra.mxu0 %v6897
        %7029 = vmatpush.bf16.msra.mxu0 %v6896
        %7030 = vmatpush.bf16.msra.mxu0 %v6895
        %7031 = vmatmul.bf16.gmra.mxu0 %v6503
        %v7032 = vpop.f32.mrf.mxu0
        %v7033 = vadd.f32 0.0, %v7032
        %v7034 = vpop.f32.mrf.mxu0
        %7035 = vdwg.mxu0
        %7036 = vmatpush.bf16.msra.mxu0 %v6910
        %7037 = vmatpush.bf16.msra.mxu0 %v6909
        %7038 = vmatpush.bf16.msra.mxu0 %v6908
        %7039 = vmatpush.bf16.msra.mxu0 %v6907
        %7040 = vmatpush.bf16.msra.mxu0 %v6906
        %7041 = vmatpush.bf16.msra.mxu0 %v6905
        %7042 = vmatpush.bf16.msra.mxu0 %v6904
        %7043 = vmatpush.bf16.msra.mxu0 %v6903
        %7044 = vmatmul.bf16.gmra.mxu0 %v6504
        %v7045 = vpop.f32.mrf.mxu0
        %v7046 = vadd.f32 %v7033, %v7045
        %v7047 = vpop.f32.mrf.mxu0
        %7048 = vdwg.mxu0
        %7049 = vmatpush.bf16.msra.mxu0 %v6918
        %7050 = vmatpush.bf16.msra.mxu0 %v6917
        %7051 = vmatpush.bf16.msra.mxu0 %v6916
        %7052 = vmatpush.bf16.msra.mxu0 %v6915
        %7053 = vmatpush.bf16.msra.mxu0 %v6914
        %7054 = vmatpush.bf16.msra.mxu0 %v6913
        %7055 = vmatpush.bf16.msra.mxu0 %v6912
        %7056 = vmatpush.bf16.msra.mxu0 %v6911
        %7057 = vmatmul.bf16.gmra.mxu0 %v6505
        %v7058 = vpop.f32.mrf.mxu0
        %v7059 = vadd.f32 %v7046, %v7058
        %v7060 = vpop.f32.mrf.mxu0
        %7061 = vdwg.mxu0
        %7062 = vmatpush.bf16.msra.mxu0 %v6926
        %7063 = vmatpush.bf16.msra.mxu0 %v6925
        %7064 = vmatpush.bf16.msra.mxu0 %v6924
        %7065 = vmatpush.bf16.msra.mxu0 %v6923
        %7066 = vmatpush.bf16.msra.mxu0 %v6922
        %7067 = vmatpush.bf16.msra.mxu0 %v6921
        %7068 = vmatpush.bf16.msra.mxu0 %v6920
        %7069 = vmatpush.bf16.msra.mxu0 %v6919
        %7070 = vmatmul.bf16.gmra.mxu0 %v6506
        %v7071 = vpop.f32.mrf.mxu0
        %v7072 = vadd.f32 %v7059, %v7071
        %v7073 = vpop.f32.mrf.mxu0
        %7074 = vdwg.mxu0
        %7075 = vmatpush.bf16.msra.mxu0 %v6934
        %7076 = vmatpush.bf16.msra.mxu0 %v6933
        %7077 = vmatpush.bf16.msra.mxu0 %v6932
        %7078 = vmatpush.bf16.msra.mxu0 %v6931
        %7079 = vmatpush.bf16.msra.mxu0 %v6930
        %7080 = vmatpush.bf16.msra.mxu0 %v6929
        %7081 = vmatpush.bf16.msra.mxu0 %v6928
        %7082 = vmatpush.bf16.msra.mxu0 %v6927
        %7083 = vmatmul.bf16.gmra.mxu0 %v6507
        %v7084 = vpop.f32.mrf.mxu0
        %v7085 = vadd.f32 %v7072, %v7084
        %v7086 = vpop.f32.mrf.mxu0
        %7087 = vdwg.mxu0
        %7088 = vmatpush.bf16.msra.mxu0 %v6942
        %7089 = vmatpush.bf16.msra.mxu0 %v6941
        %7090 = vmatpush.bf16.msra.mxu0 %v6940
        %7091 = vmatpush.bf16.msra.mxu0 %v6939
        %7092 = vmatpush.bf16.msra.mxu0 %v6938
        %7093 = vmatpush.bf16.msra.mxu0 %v6937
        %7094 = vmatpush.bf16.msra.mxu0 %v6936
        %7095 = vmatpush.bf16.msra.mxu0 %v6935
        %7096 = vmatmul.bf16.gmra.mxu0 %v6508
        %v7097 = vpop.f32.mrf.mxu0
        %v7098 = vadd.f32 %v7085, %v7097
        %v7099 = vpop.f32.mrf.mxu0
        %7100 = vdwg.mxu0
        %7101 = vmatpush.bf16.msra.mxu0 %v6950
        %7102 = vmatpush.bf16.msra.mxu0 %v6949
        %7103 = vmatpush.bf16.msra.mxu0 %v6948
        %7104 = vmatpush.bf16.msra.mxu0 %v6947
        %7105 = vmatpush.bf16.msra.mxu0 %v6946
        %7106 = vmatpush.bf16.msra.mxu0 %v6945
        %7107 = vmatpush.bf16.msra.mxu0 %v6944
        %7108 = vmatpush.bf16.msra.mxu0 %v6943
        %7109 = vmatmul.bf16.gmra.mxu0 %v6509
        %v7110 = vpop.f32.mrf.mxu0
        %v7111 = vadd.f32 %v7098, %v7110
        %v7112 = vpop.f32.mrf.mxu0
        %7113 = vdwg.mxu0
        %7114 = vmatpush.bf16.msra.mxu0 %v6958
        %7115 = vmatpush.bf16.msra.mxu0 %v6957
        %7116 = vmatpush.bf16.msra.mxu0 %v6956
        %7117 = vmatpush.bf16.msra.mxu0 %v6955
        %7118 = vmatpush.bf16.msra.mxu0 %v6954
        %7119 = vmatpush.bf16.msra.mxu0 %v6953
        %7120 = vmatpush.bf16.msra.mxu0 %v6952
        %7121 = vmatpush.bf16.msra.mxu0 %v6951
        %7122 = vmatmul.bf16.gmra.mxu0 %v6510
        %v7123 = vpop.f32.mrf.mxu0
        %v7124 = vadd.f32 %v7111, %v7123
        %v7125 = vpop.f32.mrf.mxu0
        %7126 = vdwg.mxu0
        %v7127 = vmul.f32 %v7124, 0.03125
        %v7128 = vpack.c.bf16 %v7127, %v7127
        %v7130 = vsel %vm1572, %v7128, 0
        %v7133 = vsel %vm1572, %v6895, 0
        %v7136 = vsel %vm1572, %v6896, 0
        %v7139 = vsel %vm1572, %v6897, 0
        %v7142 = vsel %vm1572, %v6898, 0
        %v7145 = vsel %vm1572, %v6899, 0
        %v7148 = vsel %vm1572, %v6900, 0
        %v7151 = vsel %vm1572, %v6901, 0
        %v7154 = vsel %vm1572, %v6902, 0
        %v7157 = vsel %vm1572, %v6903, 0
        %v7160 = vsel %vm1572, %v6904, 0
        %v7163 = vsel %vm1572, %v6905, 0
        %v7166 = vsel %vm1572, %v6906, 0
        %v7169 = vsel %vm1572, %v6907, 0
        %v7172 = vsel %vm1572, %v6908, 0
        %v7175 = vsel %vm1572, %v6909, 0
        %v7178 = vsel %vm1572, %v6910, 0
        %v7181 = vsel %vm1572, %v6911, 0
        %v7184 = vsel %vm1572, %v6912, 0
        %v7187 = vsel %vm1572, %v6913, 0
        %v7190 = vsel %vm1572, %v6914, 0
        %v7193 = vsel %vm1572, %v6915, 0
        %v7196 = vsel %vm1572, %v6916, 0
        %v7199 = vsel %vm1572, %v6917, 0
        %v7202 = vsel %vm1572, %v6918, 0
        %v7205 = vsel %vm1572, %v6919, 0
        %v7208 = vsel %vm1572, %v6920, 0
        %v7211 = vsel %vm1572, %v6921, 0
        %v7214 = vsel %vm1572, %v6922, 0
        %v7217 = vsel %vm1572, %v6923, 0
        %v7220 = vsel %vm1572, %v6924, 0
        %v7223 = vsel %vm1572, %v6925, 0
        %v7226 = vsel %vm1572, %v6926, 0
        %v7229 = vsel %vm1572, %v6927, 0
        %v7232 = vsel %vm1572, %v6928, 0
        %v7235 = vsel %vm1572, %v6929, 0
        %v7238 = vsel %vm1572, %v6930, 0
        %v7241 = vsel %vm1572, %v6931, 0
        %v7244 = vsel %vm1572, %v6932, 0
        %v7247 = vsel %vm1572, %v6933, 0
        %v7250 = vsel %vm1572, %v6934, 0
        %v7253 = vsel %vm1572, %v6935, 0
        %v7256 = vsel %vm1572, %v6936, 0
        %v7259 = vsel %vm1572, %v6937, 0
        %v7262 = vsel %vm1572, %v6938, 0
        %v7265 = vsel %vm1572, %v6939, 0
        %v7268 = vsel %vm1572, %v6940, 0
        %v7271 = vsel %vm1572, %v6941, 0
        %v7274 = vsel %vm1572, %v6942, 0
        %v7277 = vsel %vm1572, %v6943, 0
        %v7280 = vsel %vm1572, %v6944, 0
        %v7283 = vsel %vm1572, %v6945, 0
        %v7286 = vsel %vm1572, %v6946, 0
        %v7289 = vsel %vm1572, %v6947, 0
        %v7292 = vsel %vm1572, %v6948, 0
        %v7295 = vsel %vm1572, %v6949, 0
        %v7298 = vsel %vm1572, %v6950, 0
        %v7301 = vsel %vm1572, %v6951, 0
        %v7304 = vsel %vm1572, %v6952, 0
        %v7307 = vsel %vm1572, %v6953, 0
        %v7310 = vsel %vm1572, %v6954, 0
        %v7313 = vsel %vm1572, %v6955, 0
        %v7316 = vsel %vm1572, %v6956, 0
        %v7319 = vsel %vm1572, %v6957, 0
        %v7322 = vsel %vm1572, %v6958, 0
        %7324 = vmatpush.bf16.xpose.msra.mxu0 %v7154
        %7325 = vmatpush.bf16.xpose.msra.mxu0 %v7151
        %7326 = vmatpush.bf16.xpose.msra.mxu0 %v7148
        %7327 = vmatpush.bf16.xpose.msra.mxu0 %v7145
        %7328 = vmatpush.bf16.xpose.msra.mxu0 %v7142
        %7329 = vmatpush.bf16.xpose.msra.mxu0 %v7139
        %7330 = vmatpush.bf16.xpose.msra.mxu0 %v7136
        %7331 = vmatpush.bf16.xpose.msra.mxu0 %v7133
        %7332 = vmatmul.bf16.gmra.mxu0 %v7130
        %v7333 = vpop.f32.mrf.mxu0
        %v7334 = vadd.f32 0.0, %v7333
        %v7335 = vpop.f32.mrf.mxu0
        %7336 = vdwg.mxu0
        %7337 = vmatpush.bf16.xpose.msra.mxu0 %v7178
        %7338 = vmatpush.bf16.xpose.msra.mxu0 %v7175
        %7339 = vmatpush.bf16.xpose.msra.mxu0 %v7172
        %7340 = vmatpush.bf16.xpose.msra.mxu0 %v7169
        %7341 = vmatpush.bf16.xpose.msra.mxu0 %v7166
        %7342 = vmatpush.bf16.xpose.msra.mxu0 %v7163
        %7343 = vmatpush.bf16.xpose.msra.mxu0 %v7160
        %7344 = vmatpush.bf16.xpose.msra.mxu0 %v7157
        %7345 = vmatmul.bf16.gmra.mxu0 %v7130
        %v7346 = vpop.f32.mrf.mxu0
        %v7347 = vadd.f32 0.0, %v7346
        %v7348 = vpop.f32.mrf.mxu0
        %7349 = vdwg.mxu0
        %7350 = vmatpush.bf16.xpose.msra.mxu0 %v7202
        %7351 = vmatpush.bf16.xpose.msra.mxu0 %v7199
        %7352 = vmatpush.bf16.xpose.msra.mxu0 %v7196
        %7353 = vmatpush.bf16.xpose.msra.mxu0 %v7193
        %7354 = vmatpush.bf16.xpose.msra.mxu0 %v7190
        %7355 = vmatpush.bf16.xpose.msra.mxu0 %v7187
        %7356 = vmatpush.bf16.xpose.msra.mxu0 %v7184
        %7357 = vmatpush.bf16.xpose.msra.mxu0 %v7181
        %7358 = vmatmul.bf16.gmra.mxu0 %v7130
        %v7359 = vpop.f32.mrf.mxu0
        %v7360 = vadd.f32 0.0, %v7359
        %v7361 = vpop.f32.mrf.mxu0
        %7362 = vdwg.mxu0
        %7363 = vmatpush.bf16.xpose.msra.mxu0 %v7226
        %7364 = vmatpush.bf16.xpose.msra.mxu0 %v7223
        %7365 = vmatpush.bf16.xpose.msra.mxu0 %v7220
        %7366 = vmatpush.bf16.xpose.msra.mxu0 %v7217
        %7367 = vmatpush.bf16.xpose.msra.mxu0 %v7214
        %7368 = vmatpush.bf16.xpose.msra.mxu0 %v7211
        %7369 = vmatpush.bf16.xpose.msra.mxu0 %v7208
        %7370 = vmatpush.bf16.xpose.msra.mxu0 %v7205
        %7371 = vmatmul.bf16.gmra.mxu0 %v7130
        %v7372 = vpop.f32.mrf.mxu0
        %v7373 = vadd.f32 0.0, %v7372
        %v7374 = vpop.f32.mrf.mxu0
        %7375 = vdwg.mxu0
        %7376 = vmatpush.bf16.xpose.msra.mxu0 %v7250
        %7377 = vmatpush.bf16.xpose.msra.mxu0 %v7247
        %7378 = vmatpush.bf16.xpose.msra.mxu0 %v7244
        %7379 = vmatpush.bf16.xpose.msra.mxu0 %v7241
        %7380 = vmatpush.bf16.xpose.msra.mxu0 %v7238
        %7381 = vmatpush.bf16.xpose.msra.mxu0 %v7235
        %7382 = vmatpush.bf16.xpose.msra.mxu0 %v7232
        %7383 = vmatpush.bf16.xpose.msra.mxu0 %v7229
        %7384 = vmatmul.bf16.gmra.mxu0 %v7130
        %v7385 = vpop.f32.mrf.mxu0
        %v7386 = vadd.f32 0.0, %v7385
        %v7387 = vpop.f32.mrf.mxu0
        %7388 = vdwg.mxu0
        %7389 = vmatpush.bf16.xpose.msra.mxu0 %v7274
        %7390 = vmatpush.bf16.xpose.msra.mxu0 %v7271
        %7391 = vmatpush.bf16.xpose.msra.mxu0 %v7268
        %7392 = vmatpush.bf16.xpose.msra.mxu0 %v7265
        %7393 = vmatpush.bf16.xpose.msra.mxu0 %v7262
        %7394 = vmatpush.bf16.xpose.msra.mxu0 %v7259
        %7395 = vmatpush.bf16.xpose.msra.mxu0 %v7256
        %7396 = vmatpush.bf16.xpose.msra.mxu0 %v7253
        %7397 = vmatmul.bf16.gmra.mxu0 %v7130
        %v7398 = vpop.f32.mrf.mxu0
        %v7399 = vadd.f32 0.0, %v7398
        %v7400 = vpop.f32.mrf.mxu0
        %7401 = vdwg.mxu0
        %7402 = vmatpush.bf16.xpose.msra.mxu0 %v7298
        %7403 = vmatpush.bf16.xpose.msra.mxu0 %v7295
        %7404 = vmatpush.bf16.xpose.msra.mxu0 %v7292
        %7405 = vmatpush.bf16.xpose.msra.mxu0 %v7289
        %7406 = vmatpush.bf16.xpose.msra.mxu0 %v7286
        %7407 = vmatpush.bf16.xpose.msra.mxu0 %v7283
        %7408 = vmatpush.bf16.xpose.msra.mxu0 %v7280
        %7409 = vmatpush.bf16.xpose.msra.mxu0 %v7277
        %7410 = vmatmul.bf16.gmra.mxu0 %v7130
        %v7411 = vpop.f32.mrf.mxu0
        %v7412 = vadd.f32 0.0, %v7411
        %v7413 = vpop.f32.mrf.mxu0
        %7414 = vdwg.mxu0
        %7415 = vmatpush.bf16.xpose.msra.mxu0 %v7322
        %7416 = vmatpush.bf16.xpose.msra.mxu0 %v7319
        %7417 = vmatpush.bf16.xpose.msra.mxu0 %v7316
        %7418 = vmatpush.bf16.xpose.msra.mxu0 %v7313
        %7419 = vmatpush.bf16.xpose.msra.mxu0 %v7310
        %7420 = vmatpush.bf16.xpose.msra.mxu0 %v7307
        %7421 = vmatpush.bf16.xpose.msra.mxu0 %v7304
        %7422 = vmatpush.bf16.xpose.msra.mxu0 %v7301
        %7423 = vmatmul.bf16.gmra.mxu0 %v7130
        %v7424 = vpop.f32.mrf.mxu0
        %v7425 = vadd.f32 0.0, %v7424
        %v7426 = vpop.f32.mrf.mxu0
        %7427 = vdwg.mxu0
        %v7428 = vperm.slane %v7334, 0
        %v7429 = vperm.slane %v7347, 0
        %v7430 = vperm.slane %v7360, 0
        %v7431 = vperm.slane %v7373, 0
        %v7432 = vperm.slane %v7386, 0
        %v7433 = vperm.slane %v7399, 0
        %v7434 = vperm.slane %v7412, 0
        %v7435 = vperm.slane %v7425, 0
        %v7436 = vsub.f32 %v6439, %v7428
        %v7437 = vsub.f32 %v6440, %v7429
        %v7438 = vsub.f32 %v6441, %v7430
        %v7439 = vsub.f32 %v6442, %v7431
        %v7440 = vsub.f32 %v6443, %v7432
        %v7441 = vsub.f32 %v6444, %v7433
        %v7442 = vsub.f32 %v6445, %v7434
        %v7443 = vsub.f32 %v6446, %v7435
        %v7444 = vmul.f32 %v7436, %v7436
        %v7445 = vmul.f32 %v7437, %v7437
        %v7446 = vmul.f32 %v7438, %v7438
        %v7447 = vmul.f32 %v7439, %v7439
        %v7448 = vmul.f32 %v7440, %v7440
        %v7449 = vmul.f32 %v7441, %v7441
        %v7450 = vmul.f32 %v7442, %v7442
        %v7451 = vmul.f32 %v7443, %v7443
        %v7452 = vsel %vm1800, %v7444, 0.0
        %v7453 = vrot.slane %v7452, 4
        %v7454 = vadd.f32 %v7452, %v7453
        %v7455 = vrot.slane %v7454, 2
        %v7456 = vadd.f32 %v7454, %v7455
        %v7457 = vrot.slane %v7456, 1
        %v7458 = vadd.f32 %v7456, %v7457
        %v7459 = vsel %vm1800, %v7445, 0.0
        %v7460 = vrot.slane %v7459, 4
        %v7461 = vadd.f32 %v7459, %v7460
        %v7462 = vrot.slane %v7461, 2
        %v7463 = vadd.f32 %v7461, %v7462
        %v7464 = vrot.slane %v7463, 1
        %v7465 = vadd.f32 %v7463, %v7464
        %v7466 = vsel %vm1800, %v7446, 0.0
        %v7467 = vrot.slane %v7466, 4
        %v7468 = vadd.f32 %v7466, %v7467
        %v7469 = vrot.slane %v7468, 2
        %v7470 = vadd.f32 %v7468, %v7469
        %v7471 = vrot.slane %v7470, 1
        %v7472 = vadd.f32 %v7470, %v7471
        %v7473 = vsel %vm1800, %v7447, 0.0
        %v7474 = vrot.slane %v7473, 4
        %v7475 = vadd.f32 %v7473, %v7474
        %v7476 = vrot.slane %v7475, 2
        %v7477 = vadd.f32 %v7475, %v7476
        %v7478 = vrot.slane %v7477, 1
        %v7479 = vadd.f32 %v7477, %v7478
        %v7480 = vsel %vm1800, %v7448, 0.0
        %v7481 = vrot.slane %v7480, 4
        %v7482 = vadd.f32 %v7480, %v7481
        %v7483 = vrot.slane %v7482, 2
        %v7484 = vadd.f32 %v7482, %v7483
        %v7485 = vrot.slane %v7484, 1
        %v7486 = vadd.f32 %v7484, %v7485
        %v7487 = vsel %vm1800, %v7449, 0.0
        %v7488 = vrot.slane %v7487, 4
        %v7489 = vadd.f32 %v7487, %v7488
        %v7490 = vrot.slane %v7489, 2
        %v7491 = vadd.f32 %v7489, %v7490
        %v7492 = vrot.slane %v7491, 1
        %v7493 = vadd.f32 %v7491, %v7492
        %v7494 = vsel %vm1800, %v7450, 0.0
        %v7495 = vrot.slane %v7494, 4
        %v7496 = vadd.f32 %v7494, %v7495
        %v7497 = vrot.slane %v7496, 2
        %v7498 = vadd.f32 %v7496, %v7497
        %v7499 = vrot.slane %v7498, 1
        %v7500 = vadd.f32 %v7498, %v7499
        %v7501 = vsel %vm1800, %v7451, 0.0
        %v7502 = vrot.slane %v7501, 4
        %v7503 = vadd.f32 %v7501, %v7502
        %v7504 = vrot.slane %v7503, 2
        %v7505 = vadd.f32 %v7503, %v7504
        %v7506 = vrot.slane %v7505, 1
        %v7507 = vadd.f32 %v7505, %v7506
        %v7508 = vpack.c.bf16 %v7458, %v7458
        %v7509 = vpack.c.bf16 %v7465, %v7465
        %v7510 = vpack.c.bf16 %v7472, %v7472
        %v7511 = vpack.c.bf16 %v7479, %v7479
        %v7512 = vpack.c.bf16 %v7486, %v7486
        %v7513 = vpack.c.bf16 %v7493, %v7493
        %v7514 = vpack.c.bf16 %v7500, %v7500
        %v7515 = vpack.c.bf16 %v7507, %v7507
        %7516 = vmatpush.bf16.msra.mxu0 %v6902
        %7517 = vmatpush.bf16.msra.mxu0 %v6901
        %7518 = vmatpush.bf16.msra.mxu0 %v6900
        %7519 = vmatpush.bf16.msra.mxu0 %v6899
        %7520 = vmatpush.bf16.msra.mxu0 %v6898
        %7521 = vmatpush.bf16.msra.mxu0 %v6897
        %7522 = vmatpush.bf16.msra.mxu0 %v6896
        %7523 = vmatpush.bf16.msra.mxu0 %v6895
        %7524 = vmatmul.bf16.gmra.mxu0 %v7508
        %v7525 = vpop.f32.mrf.mxu0
        %v7526 = vadd.f32 0.0, %v7525
        %v7527 = vpop.f32.mrf.mxu0
        %7528 = vdwg.mxu0
        %7529 = vmatpush.bf16.msra.mxu0 %v6910
        %7530 = vmatpush.bf16.msra.mxu0 %v6909
        %7531 = vmatpush.bf16.msra.mxu0 %v6908
        %7532 = vmatpush.bf16.msra.mxu0 %v6907
        %7533 = vmatpush.bf16.msra.mxu0 %v6906
        %7534 = vmatpush.bf16.msra.mxu0 %v6905
        %7535 = vmatpush.bf16.msra.mxu0 %v6904
        %7536 = vmatpush.bf16.msra.mxu0 %v6903
        %7537 = vmatmul.bf16.gmra.mxu0 %v7509
        %v7538 = vpop.f32.mrf.mxu0
        %v7539 = vadd.f32 %v7526, %v7538
        %v7540 = vpop.f32.mrf.mxu0
        %7541 = vdwg.mxu0
        %7542 = vmatpush.bf16.msra.mxu0 %v6918
        %7543 = vmatpush.bf16.msra.mxu0 %v6917
        %7544 = vmatpush.bf16.msra.mxu0 %v6916
        %7545 = vmatpush.bf16.msra.mxu0 %v6915
        %7546 = vmatpush.bf16.msra.mxu0 %v6914
        %7547 = vmatpush.bf16.msra.mxu0 %v6913
        %7548 = vmatpush.bf16.msra.mxu0 %v6912
        %7549 = vmatpush.bf16.msra.mxu0 %v6911
        %7550 = vmatmul.bf16.gmra.mxu0 %v7510
        %v7551 = vpop.f32.mrf.mxu0
        %v7552 = vadd.f32 %v7539, %v7551
        %v7553 = vpop.f32.mrf.mxu0
        %7554 = vdwg.mxu0
        %7555 = vmatpush.bf16.msra.mxu0 %v6926
        %7556 = vmatpush.bf16.msra.mxu0 %v6925
        %7557 = vmatpush.bf16.msra.mxu0 %v6924
        %7558 = vmatpush.bf16.msra.mxu0 %v6923
        %7559 = vmatpush.bf16.msra.mxu0 %v6922
        %7560 = vmatpush.bf16.msra.mxu0 %v6921
        %7561 = vmatpush.bf16.msra.mxu0 %v6920
        %7562 = vmatpush.bf16.msra.mxu0 %v6919
        %7563 = vmatmul.bf16.gmra.mxu0 %v7511
        %v7564 = vpop.f32.mrf.mxu0
        %v7565 = vadd.f32 %v7552, %v7564
        %v7566 = vpop.f32.mrf.mxu0
        %7567 = vdwg.mxu0
        %7568 = vmatpush.bf16.msra.mxu0 %v6934
        %7569 = vmatpush.bf16.msra.mxu0 %v6933
        %7570 = vmatpush.bf16.msra.mxu0 %v6932
        %7571 = vmatpush.bf16.msra.mxu0 %v6931
        %7572 = vmatpush.bf16.msra.mxu0 %v6930
        %7573 = vmatpush.bf16.msra.mxu0 %v6929
        %7574 = vmatpush.bf16.msra.mxu0 %v6928
        %7575 = vmatpush.bf16.msra.mxu0 %v6927
        %7576 = vmatmul.bf16.gmra.mxu0 %v7512
        %v7577 = vpop.f32.mrf.mxu0
        %v7578 = vadd.f32 %v7565, %v7577
        %v7579 = vpop.f32.mrf.mxu0
        %7580 = vdwg.mxu0
        %7581 = vmatpush.bf16.msra.mxu0 %v6942
        %7582 = vmatpush.bf16.msra.mxu0 %v6941
        %7583 = vmatpush.bf16.msra.mxu0 %v6940
        %7584 = vmatpush.bf16.msra.mxu0 %v6939
        %7585 = vmatpush.bf16.msra.mxu0 %v6938
        %7586 = vmatpush.bf16.msra.mxu0 %v6937
        %7587 = vmatpush.bf16.msra.mxu0 %v6936
        %7588 = vmatpush.bf16.msra.mxu0 %v6935
        %7589 = vmatmul.bf16.gmra.mxu0 %v7513
        %v7590 = vpop.f32.mrf.mxu0
        %v7591 = vadd.f32 %v7578, %v7590
        %v7592 = vpop.f32.mrf.mxu0
        %7593 = vdwg.mxu0
        %7594 = vmatpush.bf16.msra.mxu0 %v6950
        %7595 = vmatpush.bf16.msra.mxu0 %v6949
        %7596 = vmatpush.bf16.msra.mxu0 %v6948
        %7597 = vmatpush.bf16.msra.mxu0 %v6947
        %7598 = vmatpush.bf16.msra.mxu0 %v6946
        %7599 = vmatpush.bf16.msra.mxu0 %v6945
        %7600 = vmatpush.bf16.msra.mxu0 %v6944
        %7601 = vmatpush.bf16.msra.mxu0 %v6943
        %7602 = vmatmul.bf16.gmra.mxu0 %v7514
        %v7603 = vpop.f32.mrf.mxu0
        %v7604 = vadd.f32 %v7591, %v7603
        %v7605 = vpop.f32.mrf.mxu0
        %7606 = vdwg.mxu0
        %7607 = vmatpush.bf16.msra.mxu0 %v6958
        %7608 = vmatpush.bf16.msra.mxu0 %v6957
        %7609 = vmatpush.bf16.msra.mxu0 %v6956
        %7610 = vmatpush.bf16.msra.mxu0 %v6955
        %7611 = vmatpush.bf16.msra.mxu0 %v6954
        %7612 = vmatpush.bf16.msra.mxu0 %v6953
        %7613 = vmatpush.bf16.msra.mxu0 %v6952
        %7614 = vmatpush.bf16.msra.mxu0 %v6951
        %7615 = vmatmul.bf16.gmra.mxu0 %v7515
        %v7616 = vpop.f32.mrf.mxu0
        %v7617 = vadd.f32 %v7604, %v7616
        %v7618 = vpop.f32.mrf.mxu0
        %7619 = vdwg.mxu0
        %v7620 = vmul.f32 %v7617, 0.03125
        %v7621 = vld [vmem:[%s967] sm:$0x1]
        %v7622 = vadd.f32 %v7620, 1e-05
        %v7623 = vrsqrt.pop %v7622
        %v7624 = vmul.f32 %v7623, %v7622
        %v7625 = vmul.f32 %v7624, %v7623
        %v7626 = vmul.f32 0.5, %v7625
        %v7627 = vsub.f32 1.5, %v7626
        %v7628 = vmul.f32 %v7623, %v7627
        %vm7629 = vweird.f32 %v7622
        %vm7630 = vweird.f32 %v7623
        %vm7631 = vmor %vm7629, %vm7630
        %v7632 = vsel %vm7631, %v7623, %v7628
        %v7633 = vmul.f32 %v7621, %v7632
        %v7634 = vpack.c.bf16 %v7633, %v7633
        %v7636 = vsel %vm1572, %v7634, 0
        %7638 = vmatpush.bf16.xpose.msra.mxu0 %v7154
        %7639 = vmatpush.bf16.xpose.msra.mxu0 %v7151
        %7640 = vmatpush.bf16.xpose.msra.mxu0 %v7148
        %7641 = vmatpush.bf16.xpose.msra.mxu0 %v7145
        %7642 = vmatpush.bf16.xpose.msra.mxu0 %v7142
        %7643 = vmatpush.bf16.xpose.msra.mxu0 %v7139
        %7644 = vmatpush.bf16.xpose.msra.mxu0 %v7136
        %7645 = vmatpush.bf16.xpose.msra.mxu0 %v7133
        %7646 = vmatmul.bf16.gmra.mxu0 %v7636
        %v7647 = vpop.f32.mrf.mxu0
        %v7648 = vadd.f32 0.0, %v7647
        %v7649 = vpop.f32.mrf.mxu0
        %7650 = vdwg.mxu0
        %7651 = vmatpush.bf16.xpose.msra.mxu0 %v7178
        %7652 = vmatpush.bf16.xpose.msra.mxu0 %v7175
        %7653 = vmatpush.bf16.xpose.msra.mxu0 %v7172
        %7654 = vmatpush.bf16.xpose.msra.mxu0 %v7169
        %7655 = vmatpush.bf16.xpose.msra.mxu0 %v7166
        %7656 = vmatpush.bf16.xpose.msra.mxu0 %v7163
        %7657 = vmatpush.bf16.xpose.msra.mxu0 %v7160
        %7658 = vmatpush.bf16.xpose.msra.mxu0 %v7157
        %7659 = vmatmul.bf16.gmra.mxu0 %v7636
        %v7660 = vpop.f32.mrf.mxu0
        %v7661 = vadd.f32 0.0, %v7660
        %v7662 = vpop.f32.mrf.mxu0
        %7663 = vdwg.mxu0
        %7664 = vmatpush.bf16.xpose.msra.mxu0 %v7202
        %7665 = vmatpush.bf16.xpose.msra.mxu0 %v7199
        %7666 = vmatpush.bf16.xpose.msra.mxu0 %v7196
        %7667 = vmatpush.bf16.xpose.msra.mxu0 %v7193
        %7668 = vmatpush.bf16.xpose.msra.mxu0 %v7190
        %7669 = vmatpush.bf16.xpose.msra.mxu0 %v7187
        %7670 = vmatpush.bf16.xpose.msra.mxu0 %v7184
        %7671 = vmatpush.bf16.xpose.msra.mxu0 %v7181
        %7672 = vmatmul.bf16.gmra.mxu0 %v7636
        %v7673 = vpop.f32.mrf.mxu0
        %v7674 = vadd.f32 0.0, %v7673
        %v7675 = vpop.f32.mrf.mxu0
        %7676 = vdwg.mxu0
        %7677 = vmatpush.bf16.xpose.msra.mxu0 %v7226
        %7678 = vmatpush.bf16.xpose.msra.mxu0 %v7223
        %7679 = vmatpush.bf16.xpose.msra.mxu0 %v7220
        %7680 = vmatpush.bf16.xpose.msra.mxu0 %v7217
        %7681 = vmatpush.bf16.xpose.msra.mxu0 %v7214
        %7682 = vmatpush.bf16.xpose.msra.mxu0 %v7211
        %7683 = vmatpush.bf16.xpose.msra.mxu0 %v7208
        %7684 = vmatpush.bf16.xpose.msra.mxu0 %v7205
        %7685 = vmatmul.bf16.gmra.mxu0 %v7636
        %v7686 = vpop.f32.mrf.mxu0
        %v7687 = vadd.f32 0.0, %v7686
        %v7688 = vpop.f32.mrf.mxu0
        %7689 = vdwg.mxu0
        %7690 = vmatpush.bf16.xpose.msra.mxu0 %v7250
        %7691 = vmatpush.bf16.xpose.msra.mxu0 %v7247
        %7692 = vmatpush.bf16.xpose.msra.mxu0 %v7244
        %7693 = vmatpush.bf16.xpose.msra.mxu0 %v7241
        %7694 = vmatpush.bf16.xpose.msra.mxu0 %v7238
        %7695 = vmatpush.bf16.xpose.msra.mxu0 %v7235
        %7696 = vmatpush.bf16.xpose.msra.mxu0 %v7232
        %7697 = vmatpush.bf16.xpose.msra.mxu0 %v7229
        %7698 = vmatmul.bf16.gmra.mxu0 %v7636
        %v7699 = vpop.f32.mrf.mxu0
        %v7700 = vadd.f32 0.0, %v7699
        %v7701 = vpop.f32.mrf.mxu0
        %7702 = vdwg.mxu0
        %7703 = vmatpush.bf16.xpose.msra.mxu0 %v7274
        %7704 = vmatpush.bf16.xpose.msra.mxu0 %v7271
        %7705 = vmatpush.bf16.xpose.msra.mxu0 %v7268
        %7706 = vmatpush.bf16.xpose.msra.mxu0 %v7265
        %7707 = vmatpush.bf16.xpose.msra.mxu0 %v7262
        %7708 = vmatpush.bf16.xpose.msra.mxu0 %v7259
        %7709 = vmatpush.bf16.xpose.msra.mxu0 %v7256
        %7710 = vmatpush.bf16.xpose.msra.mxu0 %v7253
        %7711 = vmatmul.bf16.gmra.mxu0 %v7636
        %v7712 = vpop.f32.mrf.mxu0
        %v7713 = vadd.f32 0.0, %v7712
        %v7714 = vpop.f32.mrf.mxu0
        %7715 = vdwg.mxu0
        %7716 = vmatpush.bf16.xpose.msra.mxu0 %v7298
        %7717 = vmatpush.bf16.xpose.msra.mxu0 %v7295
        %7718 = vmatpush.bf16.xpose.msra.mxu0 %v7292
        %7719 = vmatpush.bf16.xpose.msra.mxu0 %v7289
        %7720 = vmatpush.bf16.xpose.msra.mxu0 %v7286
        %7721 = vmatpush.bf16.xpose.msra.mxu0 %v7283
        %7722 = vmatpush.bf16.xpose.msra.mxu0 %v7280
        %7723 = vmatpush.bf16.xpose.msra.mxu0 %v7277
        %7724 = vmatmul.bf16.gmra.mxu0 %v7636
        %v7725 = vpop.f32.mrf.mxu0
        %v7726 = vadd.f32 0.0, %v7725
        %v7727 = vpop.f32.mrf.mxu0
        %7728 = vdwg.mxu0
        %7729 = vmatpush.bf16.xpose.msra.mxu0 %v7322
        %7730 = vmatpush.bf16.xpose.msra.mxu0 %v7319
        %7731 = vmatpush.bf16.xpose.msra.mxu0 %v7316
        %7732 = vmatpush.bf16.xpose.msra.mxu0 %v7313
        %7733 = vmatpush.bf16.xpose.msra.mxu0 %v7310
        %7734 = vmatpush.bf16.xpose.msra.mxu0 %v7307
        %7735 = vmatpush.bf16.xpose.msra.mxu0 %v7304
        %7736 = vmatpush.bf16.xpose.msra.mxu0 %v7301
        %7737 = vmatmul.bf16.gmra.mxu0 %v7636
        %v7738 = vpop.f32.mrf.mxu0
        %v7739 = vadd.f32 0.0, %v7738
        %v7740 = vpop.f32.mrf.mxu0
        %7741 = vdwg.mxu0
        %v7742 = vperm.slane %v7648, 0
        %v7743 = vperm.slane %v7661, 0
        %v7744 = vperm.slane %v7674, 0
        %v7745 = vperm.slane %v7687, 0
        %v7746 = vperm.slane %v7700, 0
        %v7747 = vperm.slane %v7713, 0
        %v7748 = vperm.slane %v7726, 0
        %v7749 = vperm.slane %v7739, 0
        %v7750 = vmul.f32 %v7436, %v7742
        %v7751 = vmul.f32 %v7437, %v7743
        %v7752 = vmul.f32 %v7438, %v7744
        %v7753 = vmul.f32 %v7439, %v7745
        %v7754 = vmul.f32 %v7440, %v7746
        %v7755 = vmul.f32 %v7441, %v7747
        %v7756 = vmul.f32 %v7442, %v7748
        %v7757 = vmul.f32 %v7443, %v7749
        %v7758 = vld [vmem:[%s977] sm:$0xff]
        %v7760 = vperm.slane %v7758, 0
        %v7761 = vperm.slane %v7758, 1
        %v7762 = vperm.slane %v7758, 2
        %v7763 = vperm.slane %v7758, 3
        %v7764 = vperm.slane %v7758, 4
        %v7765 = vperm.slane %v7758, 5
        %v7766 = vperm.slane %v7758, 6
        %v7767 = vperm.slane %v7758, 7
        %v7776 = vadd.f32 %v7750, %v7760
        %v7777 = vadd.f32 %v7751, %v7761
        %v7778 = vadd.f32 %v7752, %v7762
        %v7779 = vadd.f32 %v7753, %v7763
        %v7780 = vadd.f32 %v7754, %v7764
        %v7781 = vadd.f32 %v7755, %v7765
        %v7782 = vadd.f32 %v7756, %v7766
        %v7783 = vadd.f32 %v7757, %v7767
        %v7784 = vmax.f32 %v7776, %v7778
        %v7785 = vmax.f32 %v7777, %v7779
        %v7786 = vmax.f32 %v7780, %v7782
        %v7787 = vmax.f32 %v7781, %v7783
        %v7788 = vmax.f32 %v7784, %v7786
        %v7789 = vmax.f32 %v7785, %v7787
        %v7790 = vpack.c.bf16 %v7788, %v7788
        %v7791 = vpack.c.bf16 %v7789, %v7789
        %v7792 = vld [vmem:[%s987] sm:$0xff]
        %v7793 = vld [vmem:[%s987 + $0x8] sm:$0xff]
        %v7794 = vld [vmem:[%s987 + $0x10] sm:$0xff]
        %v7795 = vld [vmem:[%s987 + $0x18] sm:$0xff]
        %v7796 = vld [vmem:[%s987 + $0x20] sm:$0xff]
        %v7797 = vld [vmem:[%s987 + $0x28] sm:$0xff]
        %v7798 = vld [vmem:[%s987 + $0x30] sm:$0xff]
        %v7799 = vld [vmem:[%s987 + $0x38] sm:$0xff]
        %v7800 = vld [vmem:[%s987 + $0x40] sm:$0xff]
        %v7801 = vld [vmem:[%s987 + $0x48] sm:$0xff]
        %v7802 = vld [vmem:[%s987 + $0x50] sm:$0xff]
        %v7803 = vld [vmem:[%s987 + $0x58] sm:$0xff]
        %v7804 = vld [vmem:[%s987 + $0x60] sm:$0xff]
        %v7805 = vld [vmem:[%s987 + $0x68] sm:$0xff]
        %v7806 = vld [vmem:[%s987 + $0x70] sm:$0xff]
        %v7807 = vld [vmem:[%s987 + $0x78] sm:$0xff]
        %v7808 = vld [vmem:[%s987 + $0x80] sm:$0xff]
        %v7809 = vld [vmem:[%s987 + $0x88] sm:$0xff]
        %v7810 = vld [vmem:[%s987 + $0x90] sm:$0xff]
        %v7811 = vld [vmem:[%s987 + $0x98] sm:$0xff]
        %v7812 = vld [vmem:[%s987 + $0xa0] sm:$0xff]
        %v7813 = vld [vmem:[%s987 + $0xa8] sm:$0xff]
        %v7814 = vld [vmem:[%s987 + $0xb0] sm:$0xff]
        %v7815 = vld [vmem:[%s987 + $0xb8] sm:$0xff]
        %v7816 = vld [vmem:[%s987 + $0xc0] sm:$0xff]
        %v7817 = vld [vmem:[%s987 + $0xc8] sm:$0xff]
        %v7818 = vld [vmem:[%s987 + $0xd0] sm:$0xff]
        %v7819 = vld [vmem:[%s987 + $0xd8] sm:$0xff]
        %v7820 = vld [vmem:[%s987 + $0xe0] sm:$0xff]
        %v7821 = vld [vmem:[%s987 + $0xe8] sm:$0xff]
        %v7822 = vld [vmem:[%s987 + $0xf0] sm:$0xff]
        %v7823 = vld [vmem:[%s987 + $0xf8] sm:$0xff]
        %v7824 = vld [vmem:[%s987 + $0x100] sm:$0xff]
        %v7825 = vld [vmem:[%s987 + $0x108] sm:$0xff]
        %v7826 = vld [vmem:[%s987 + $0x110] sm:$0xff]
        %v7827 = vld [vmem:[%s987 + $0x118] sm:$0xff]
        %v7828 = vld [vmem:[%s987 + $0x120] sm:$0xff]
        %v7829 = vld [vmem:[%s987 + $0x128] sm:$0xff]
        %v7830 = vld [vmem:[%s987 + $0x130] sm:$0xff]
        %v7831 = vld [vmem:[%s987 + $0x138] sm:$0xff]
        %v7832 = vld [vmem:[%s987 + $0x140] sm:$0xff]
        %v7833 = vld [vmem:[%s987 + $0x148] sm:$0xff]
        %v7834 = vld [vmem:[%s987 + $0x150] sm:$0xff]
        %v7835 = vld [vmem:[%s987 + $0x158] sm:$0xff]
        %v7836 = vld [vmem:[%s987 + $0x160] sm:$0xff]
        %v7837 = vld [vmem:[%s987 + $0x168] sm:$0xff]
        %v7838 = vld [vmem:[%s987 + $0x170] sm:$0xff]
        %v7839 = vld [vmem:[%s987 + $0x178] sm:$0xff]
        %v7840 = vld [vmem:[%s987 + $0x180] sm:$0xff]
        %v7841 = vld [vmem:[%s987 + $0x188] sm:$0xff]
        %v7842 = vld [vmem:[%s987 + $0x190] sm:$0xff]
        %v7843 = vld [vmem:[%s987 + $0x198] sm:$0xff]
        %v7844 = vld [vmem:[%s987 + $0x1a0] sm:$0xff]
        %v7845 = vld [vmem:[%s987 + $0x1a8] sm:$0xff]
        %v7846 = vld [vmem:[%s987 + $0x1b0] sm:$0xff]
        %v7847 = vld [vmem:[%s987 + $0x1b8] sm:$0xff]
        %v7848 = vld [vmem:[%s987 + $0x1c0] sm:$0xff]
        %v7849 = vld [vmem:[%s987 + $0x1c8] sm:$0xff]
        %v7850 = vld [vmem:[%s987 + $0x1d0] sm:$0xff]
        %v7851 = vld [vmem:[%s987 + $0x1d8] sm:$0xff]
        %v7852 = vld [vmem:[%s987 + $0x1e0] sm:$0xff]
        %v7853 = vld [vmem:[%s987 + $0x1e8] sm:$0xff]
        %v7854 = vld [vmem:[%s987 + $0x1f0] sm:$0xff]
        %v7855 = vld [vmem:[%s987 + $0x1f8] sm:$0xff]
        %v7856 = vld [vmem:[%s997] sm:$0xf]
        %v7858 = vperm.slane %v7856, 0
        %v7859 = vperm.slane %v7856, 1
        %v7860 = vperm.slane %v7856, 2
        %v7861 = vperm.slane %v7856, 3
        %v7930 = vunpack.c.l.b16 %v7792
        %v7931 = vunpack.c.h.b16 %v7792
        %v7932 = vunpack.c.l.b16 %v7793
        %v7933 = vunpack.c.h.b16 %v7793
        %v7934 = vunpack.c.l.b16 %v7794
        %v7935 = vunpack.c.h.b16 %v7794
        %v7936 = vunpack.c.l.b16 %v7795
        %v7937 = vunpack.c.h.b16 %v7795
        %v7938 = vunpack.c.l.b16 %v7796
        %v7939 = vunpack.c.h.b16 %v7796
        %v7940 = vunpack.c.l.b16 %v7797
        %v7941 = vunpack.c.h.b16 %v7797
        %v7942 = vunpack.c.l.b16 %v7798
        %v7943 = vunpack.c.h.b16 %v7798
        %v7944 = vunpack.c.l.b16 %v7799
        %v7945 = vunpack.c.h.b16 %v7799
        %v7946 = vunpack.c.l.b16 %v7800
        %v7947 = vunpack.c.h.b16 %v7800
        %v7948 = vunpack.c.l.b16 %v7801
        %v7949 = vunpack.c.h.b16 %v7801
        %v7950 = vunpack.c.l.b16 %v7802
        %v7951 = vunpack.c.h.b16 %v7802
        %v7952 = vunpack.c.l.b16 %v7803
        %v7953 = vunpack.c.h.b16 %v7803
        %v7954 = vunpack.c.l.b16 %v7804
        %v7955 = vunpack.c.h.b16 %v7804
        %v7956 = vunpack.c.l.b16 %v7805
        %v7957 = vunpack.c.h.b16 %v7805
        %v7958 = vunpack.c.l.b16 %v7806
        %v7959 = vunpack.c.h.b16 %v7806
        %v7960 = vunpack.c.l.b16 %v7807
        %v7961 = vunpack.c.h.b16 %v7807
        %v7962 = vunpack.c.l.b16 %v7808
        %v7963 = vunpack.c.h.b16 %v7808
        %v7964 = vunpack.c.l.b16 %v7809
        %v7965 = vunpack.c.h.b16 %v7809
        %v7966 = vunpack.c.l.b16 %v7810
        %v7967 = vunpack.c.h.b16 %v7810
        %v7968 = vunpack.c.l.b16 %v7811
        %v7969 = vunpack.c.h.b16 %v7811
        %v7970 = vunpack.c.l.b16 %v7812
        %v7971 = vunpack.c.h.b16 %v7812
        %v7972 = vunpack.c.l.b16 %v7813
        %v7973 = vunpack.c.h.b16 %v7813
        %v7974 = vunpack.c.l.b16 %v7814
        %v7975 = vunpack.c.h.b16 %v7814
        %v7976 = vunpack.c.l.b16 %v7815
        %v7977 = vunpack.c.h.b16 %v7815
        %v7978 = vunpack.c.l.b16 %v7816
        %v7979 = vunpack.c.h.b16 %v7816
        %v7980 = vunpack.c.l.b16 %v7817
        %v7981 = vunpack.c.h.b16 %v7817
        %v7982 = vunpack.c.l.b16 %v7818
        %v7983 = vunpack.c.h.b16 %v7818
        %v7984 = vunpack.c.l.b16 %v7819
        %v7985 = vunpack.c.h.b16 %v7819
        %v7986 = vunpack.c.l.b16 %v7820
        %v7987 = vunpack.c.h.b16 %v7820
        %v7988 = vunpack.c.l.b16 %v7821
        %v7989 = vunpack.c.h.b16 %v7821
        %v7990 = vunpack.c.l.b16 %v7822
        %v7991 = vunpack.c.h.b16 %v7822
        %v7992 = vunpack.c.l.b16 %v7823
        %v7993 = vunpack.c.h.b16 %v7823
        %v7994 = vunpack.c.l.b16 %v7824
        %v7995 = vunpack.c.h.b16 %v7824
        %v7996 = vunpack.c.l.b16 %v7825
        %v7997 = vunpack.c.h.b16 %v7825
        %v7998 = vunpack.c.l.b16 %v7826
        %v7999 = vunpack.c.h.b16 %v7826
        %v8000 = vunpack.c.l.b16 %v7827
        %v8001 = vunpack.c.h.b16 %v7827
        %v8002 = vunpack.c.l.b16 %v7828
        %v8003 = vunpack.c.h.b16 %v7828
        %v8004 = vunpack.c.l.b16 %v7829
        %v8005 = vunpack.c.h.b16 %v7829
        %v8006 = vunpack.c.l.b16 %v7830
        %v8007 = vunpack.c.h.b16 %v7830
        %v8008 = vunpack.c.l.b16 %v7831
        %v8009 = vunpack.c.h.b16 %v7831
        %v8010 = vunpack.c.l.b16 %v7832
        %v8011 = vunpack.c.h.b16 %v7832
        %v8012 = vunpack.c.l.b16 %v7833
        %v8013 = vunpack.c.h.b16 %v7833
        %v8014 = vunpack.c.l.b16 %v7834
        %v8015 = vunpack.c.h.b16 %v7834
        %v8016 = vunpack.c.l.b16 %v7835
        %v8017 = vunpack.c.h.b16 %v7835
        %v8018 = vunpack.c.l.b16 %v7836
        %v8019 = vunpack.c.h.b16 %v7836
        %v8020 = vunpack.c.l.b16 %v7837
        %v8021 = vunpack.c.h.b16 %v7837
        %v8022 = vunpack.c.l.b16 %v7838
        %v8023 = vunpack.c.h.b16 %v7838
        %v8024 = vunpack.c.l.b16 %v7839
        %v8025 = vunpack.c.h.b16 %v7839
        %v8026 = vunpack.c.l.b16 %v7840
        %v8027 = vunpack.c.h.b16 %v7840
        %v8028 = vunpack.c.l.b16 %v7841
        %v8029 = vunpack.c.h.b16 %v7841
        %v8030 = vunpack.c.l.b16 %v7842
        %v8031 = vunpack.c.h.b16 %v7842
        %v8032 = vunpack.c.l.b16 %v7843
        %v8033 = vunpack.c.h.b16 %v7843
        %v8034 = vunpack.c.l.b16 %v7844
        %v8035 = vunpack.c.h.b16 %v7844
        %v8036 = vunpack.c.l.b16 %v7845
        %v8037 = vunpack.c.h.b16 %v7845
        %v8038 = vunpack.c.l.b16 %v7846
        %v8039 = vunpack.c.h.b16 %v7846
        %v8040 = vunpack.c.l.b16 %v7847
        %v8041 = vunpack.c.h.b16 %v7847
        %v8042 = vunpack.c.l.b16 %v7848
        %v8043 = vunpack.c.h.b16 %v7848
        %v8044 = vunpack.c.l.b16 %v7849
        %v8045 = vunpack.c.h.b16 %v7849
        %v8046 = vunpack.c.l.b16 %v7850
        %v8047 = vunpack.c.h.b16 %v7850
        %v8048 = vunpack.c.l.b16 %v7851
        %v8049 = vunpack.c.h.b16 %v7851
        %v8050 = vunpack.c.l.b16 %v7852
        %v8051 = vunpack.c.h.b16 %v7852
        %v8052 = vunpack.c.l.b16 %v7853
        %v8053 = vunpack.c.h.b16 %v7853
        %v8054 = vunpack.c.l.b16 %v7854
        %v8055 = vunpack.c.h.b16 %v7854
        %v8056 = vunpack.c.l.b16 %v7855
        %v8057 = vunpack.c.h.b16 %v7855
        %v8058 = vpack.c.b16 %v7934, %v7930
        %v8059 = vpack.c.b16 %v7935, %v7931
        %v8060 = vpack.c.b16 %v7936, %v7932
        %v8061 = vpack.c.b16 %v7937, %v7933
        %v8062 = vpack.c.b16 %v7942, %v7938
        %v8063 = vpack.c.b16 %v7943, %v7939
        %v8064 = vpack.c.b16 %v7944, %v7940
        %v8065 = vpack.c.b16 %v7945, %v7941
        %v8066 = vpack.c.b16 %v7950, %v7946
        %v8067 = vpack.c.b16 %v7951, %v7947
        %v8068 = vpack.c.b16 %v7952, %v7948
        %v8069 = vpack.c.b16 %v7953, %v7949
        %v8070 = vpack.c.b16 %v7958, %v7954
        %v8071 = vpack.c.b16 %v7959, %v7955
        %v8072 = vpack.c.b16 %v7960, %v7956
        %v8073 = vpack.c.b16 %v7961, %v7957
        %v8074 = vpack.c.b16 %v7966, %v7962
        %v8075 = vpack.c.b16 %v7967, %v7963
        %v8076 = vpack.c.b16 %v7968, %v7964
        %v8077 = vpack.c.b16 %v7969, %v7965
        %v8078 = vpack.c.b16 %v7974, %v7970
        %v8079 = vpack.c.b16 %v7975, %v7971
        %v8080 = vpack.c.b16 %v7976, %v7972
        %v8081 = vpack.c.b16 %v7977, %v7973
        %v8082 = vpack.c.b16 %v7982, %v7978
        %v8083 = vpack.c.b16 %v7983, %v7979
        %v8084 = vpack.c.b16 %v7984, %v7980
        %v8085 = vpack.c.b16 %v7985, %v7981
        %v8086 = vpack.c.b16 %v7990, %v7986
        %v8087 = vpack.c.b16 %v7991, %v7987
        %v8088 = vpack.c.b16 %v7992, %v7988
        %v8089 = vpack.c.b16 %v7993, %v7989
        %v8090 = vpack.c.b16 %v7998, %v7994
        %v8091 = vpack.c.b16 %v7999, %v7995
        %v8092 = vpack.c.b16 %v8000, %v7996
        %v8093 = vpack.c.b16 %v8001, %v7997
        %v8094 = vpack.c.b16 %v8006, %v8002
        %v8095 = vpack.c.b16 %v8007, %v8003
        %v8096 = vpack.c.b16 %v8008, %v8004
        %v8097 = vpack.c.b16 %v8009, %v8005
        %v8098 = vpack.c.b16 %v8014, %v8010
        %v8099 = vpack.c.b16 %v8015, %v8011
        %v8100 = vpack.c.b16 %v8016, %v8012
        %v8101 = vpack.c.b16 %v8017, %v8013
        %v8102 = vpack.c.b16 %v8022, %v8018
        %v8103 = vpack.c.b16 %v8023, %v8019
        %v8104 = vpack.c.b16 %v8024, %v8020
        %v8105 = vpack.c.b16 %v8025, %v8021
        %v8106 = vpack.c.b16 %v8030, %v8026
        %v8107 = vpack.c.b16 %v8031, %v8027
        %v8108 = vpack.c.b16 %v8032, %v8028
        %v8109 = vpack.c.b16 %v8033, %v8029
        %v8110 = vpack.c.b16 %v8038, %v8034
        %v8111 = vpack.c.b16 %v8039, %v8035
        %v8112 = vpack.c.b16 %v8040, %v8036
        %v8113 = vpack.c.b16 %v8041, %v8037
        %v8114 = vpack.c.b16 %v8046, %v8042
        %v8115 = vpack.c.b16 %v8047, %v8043
        %v8116 = vpack.c.b16 %v8048, %v8044
        %v8117 = vpack.c.b16 %v8049, %v8045
        %v8118 = vpack.c.b16 %v8054, %v8050
        %v8119 = vpack.c.b16 %v8055, %v8051
        %v8120 = vpack.c.b16 %v8056, %v8052
        %v8121 = vpack.c.b16 %v8057, %v8053
        %8186 = vmatpush.bf16.msra.mxu0 %v8086
        %8187 = vmatpush.bf16.msra.mxu0 %v8082
        %8188 = vmatpush.bf16.msra.mxu0 %v8078
        %8189 = vmatpush.bf16.msra.mxu0 %v8074
        %8190 = vmatpush.bf16.msra.mxu0 %v8070
        %8191 = vmatpush.bf16.msra.mxu0 %v8066
        %8192 = vmatpush.bf16.msra.mxu0 %v8062
        %8193 = vmatpush.bf16.msra.mxu0 %v8058
        %8194 = vmatmul.bf16.gmra.mxu0 %v7790
        %v8195 = vpop.f32.mrf.mxu0
        %v8196 = vadd.f32 %v7858, %v8195
        %v8197 = vpop.f32.mrf.mxu0
        %8198 = vdwg.mxu0
        %8199 = vmatpush.bf16.msra.mxu0 %v8118
        %8200 = vmatpush.bf16.msra.mxu0 %v8114
        %8201 = vmatpush.bf16.msra.mxu0 %v8110
        %8202 = vmatpush.bf16.msra.mxu0 %v8106
        %8203 = vmatpush.bf16.msra.mxu0 %v8102
        %8204 = vmatpush.bf16.msra.mxu0 %v8098
        %8205 = vmatpush.bf16.msra.mxu0 %v8094
        %8206 = vmatpush.bf16.msra.mxu0 %v8090
        %8207 = vmatmul.bf16.gmra.mxu0 %v7791
        %v8208 = vpop.f32.mrf.mxu0
        %v8209 = vadd.f32 %v8196, %v8208
        %v8210 = vpop.f32.mrf.mxu0
        %8211 = vdwg.mxu0
        %8212 = vmatpush.bf16.msra.mxu0 %v8087
        %8213 = vmatpush.bf16.msra.mxu0 %v8083
        %8214 = vmatpush.bf16.msra.mxu0 %v8079
        %8215 = vmatpush.bf16.msra.mxu0 %v8075
        %8216 = vmatpush.bf16.msra.mxu0 %v8071
        %8217 = vmatpush.bf16.msra.mxu0 %v8067
        %8218 = vmatpush.bf16.msra.mxu0 %v8063
        %8219 = vmatpush.bf16.msra.mxu0 %v8059
        %8220 = vmatmul.bf16.gmra.mxu0 %v7790
        %v8221 = vpop.f32.mrf.mxu0
        %v8222 = vadd.f32 %v7859, %v8221
        %v8223 = vpop.f32.mrf.mxu0
        %8224 = vdwg.mxu0
        %8225 = vmatpush.bf16.msra.mxu0 %v8119
        %8226 = vmatpush.bf16.msra.mxu0 %v8115
        %8227 = vmatpush.bf16.msra.mxu0 %v8111
        %8228 = vmatpush.bf16.msra.mxu0 %v8107
        %8229 = vmatpush.bf16.msra.mxu0 %v8103
        %8230 = vmatpush.bf16.msra.mxu0 %v8099
        %8231 = vmatpush.bf16.msra.mxu0 %v8095
        %8232 = vmatpush.bf16.msra.mxu0 %v8091
        %8233 = vmatmul.bf16.gmra.mxu0 %v7791
        %v8234 = vpop.f32.mrf.mxu0
        %v8235 = vadd.f32 %v8222, %v8234
        %v8236 = vpop.f32.mrf.mxu0
        %8237 = vdwg.mxu0
        %8238 = vmatpush.bf16.msra.mxu0 %v8088
        %8239 = vmatpush.bf16.msra.mxu0 %v8084
        %8240 = vmatpush.bf16.msra.mxu0 %v8080
        %8241 = vmatpush.bf16.msra.mxu0 %v8076
        %8242 = vmatpush.bf16.msra.mxu0 %v8072
        %8243 = vmatpush.bf16.msra.mxu0 %v8068
        %8244 = vmatpush.bf16.msra.mxu0 %v8064
        %8245 = vmatpush.bf16.msra.mxu0 %v8060
        %8246 = vmatmul.bf16.gmra.mxu0 %v7790
        %v8247 = vpop.f32.mrf.mxu0
        %v8248 = vadd.f32 %v7860, %v8247
        %v8249 = vpop.f32.mrf.mxu0
        %8250 = vdwg.mxu0
        %8251 = vmatpush.bf16.msra.mxu0 %v8120
        %8252 = vmatpush.bf16.msra.mxu0 %v8116
        %8253 = vmatpush.bf16.msra.mxu0 %v8112
        %8254 = vmatpush.bf16.msra.mxu0 %v8108
        %8255 = vmatpush.bf16.msra.mxu0 %v8104
        %8256 = vmatpush.bf16.msra.mxu0 %v8100
        %8257 = vmatpush.bf16.msra.mxu0 %v8096
        %8258 = vmatpush.bf16.msra.mxu0 %v8092
        %8259 = vmatmul.bf16.gmra.mxu0 %v7791
        %v8260 = vpop.f32.mrf.mxu0
        %v8261 = vadd.f32 %v8248, %v8260
        %v8262 = vpop.f32.mrf.mxu0
        %8263 = vdwg.mxu0
        %8264 = vmatpush.bf16.msra.mxu0 %v8089
        %8265 = vmatpush.bf16.msra.mxu0 %v8085
        %8266 = vmatpush.bf16.msra.mxu0 %v8081
        %8267 = vmatpush.bf16.msra.mxu0 %v8077
        %8268 = vmatpush.bf16.msra.mxu0 %v8073
        %8269 = vmatpush.bf16.msra.mxu0 %v8069
        %8270 = vmatpush.bf16.msra.mxu0 %v8065
        %8271 = vmatpush.bf16.msra.mxu0 %v8061
        %8272 = vmatmul.bf16.gmra.mxu0 %v7790
        %v8273 = vpop.f32.mrf.mxu0
        %v8274 = vadd.f32 %v7861, %v8273
        %v8275 = vpop.f32.mrf.mxu0
        %8276 = vdwg.mxu0
        %8277 = vmatpush.bf16.msra.mxu0 %v8121
        %8278 = vmatpush.bf16.msra.mxu0 %v8117
        %8279 = vmatpush.bf16.msra.mxu0 %v8113
        %8280 = vmatpush.bf16.msra.mxu0 %v8109
        %8281 = vmatpush.bf16.msra.mxu0 %v8105
        %8282 = vmatpush.bf16.msra.mxu0 %v8101
        %8283 = vmatpush.bf16.msra.mxu0 %v8097
        %8284 = vmatpush.bf16.msra.mxu0 %v8093
        %8285 = vmatmul.bf16.gmra.mxu0 %v7791
        %v8286 = vpop.f32.mrf.mxu0
        %v8287 = vadd.f32 %v8274, %v8286
        %v8288 = vpop.f32.mrf.mxu0
        %8289 = vdwg.mxu0
        %v8290 = vmax.f32 %v8209, 0.0
        %v8291 = vmax.f32 %v8235, 0.0
        %v8292 = vmax.f32 %v8261, 0.0
        %v8293 = vmax.f32 %v8287, 0.0
        %v8294 = vadd.f32 %v8290, %v8291
        %v8295 = vadd.f32 %v8294, %v8292
        %v8296 = vadd.f32 %v8295, %v8293
        %v8297 = vsel %vm1800, %v8296, 0.0
        %v8298 = vrot.slane %v8297, 4
        %v8299 = vadd.f32 %v8297, %v8298
        %v8300 = vrot.slane %v8299, 2
        %v8301 = vadd.f32 %v8299, %v8300
        %v8302 = vrot.slane %v8301, 1
        %v8303 = vadd.f32 %v8301, %v8302
        %v8304 = vmul.f32 %v8303, 0.125
        %v8305 = vsub.f32 %v8290, %v8304
        %v8306 = vsub.f32 %v8291, %v8304
        %v8307 = vsub.f32 %v8292, %v8304
        %v8308 = vsub.f32 %v8293, %v8304
        %v8309 = vmul.f32 %v8305, %v8305
        %v8310 = vmul.f32 %v8306, %v8306
        %v8311 = vadd.f32 %v8309, %v8310
        %v8312 = vmul.f32 %v8307, %v8307
        %v8313 = vadd.f32 %v8311, %v8312
        %v8314 = vmul.f32 %v8308, %v8308
        %v8315 = vadd.f32 %v8313, %v8314
        %v8316 = vsel %vm1800, %v8315, 0.0
        %v8317 = vrot.slane %v8316, 4
        %v8318 = vadd.f32 %v8316, %v8317
        %v8319 = vrot.slane %v8318, 2
        %v8320 = vadd.f32 %v8318, %v8319
        %v8321 = vrot.slane %v8320, 1
        %v8322 = vadd.f32 %v8320, %v8321
        %v8323 = vmul.f32 %v8322, 0.125
        %v8324 = vld [vmem:[%s1006] sm:$0x1]
        %v8325 = vadd.f32 %v8323, 1e-05
        %v8326 = vrsqrt.pop %v8325
        %v8327 = vmul.f32 %v8326, %v8325
        %v8328 = vmul.f32 %v8327, %v8326
        %v8329 = vmul.f32 0.5, %v8328
        %v8330 = vsub.f32 1.5, %v8329
        %v8331 = vmul.f32 %v8326, %v8330
        %vm8332 = vweird.f32 %v8325
        %vm8333 = vweird.f32 %v8326
        %vm8334 = vmor %vm8332, %vm8333
        %v8335 = vsel %vm8334, %v8326, %v8331
        %v8336 = vmul.f32 %v8324, %v8335
        %v8337 = vld [vmem:[%s1015] sm:$0x1]
        %v8339 = vperm.slane %v8336, 0
        %v8341 = vmul.f32 %v8305, %v8339
        %v8343 = vperm.slane %v8337, 0
        %v8345 = vadd.f32 %v8341, %v8343
        %v8346 = vmul.f32 %v8306, %v8339
        %v8347 = vadd.f32 %v8346, %v8343
        %v8348 = vmul.f32 %v8307, %v8339
        %v8349 = vadd.f32 %v8348, %v8343
        %v8350 = vmul.f32 %v8308, %v8339
        %v8351 = vadd.f32 %v8350, %v8343
        %v8352 = vmax.f32 %v8345, %v8347
        %v8353 = vmax.f32 %v8349, %v8351
        %v8354 = vmax.f32 %v8352, %v8353
        %p8355 = scmp.eq.s32.totalorder %s57, 0
        // Predicated region
        $region169: #{no_w_net_forward.1} parent=103 // pred_check
          %p8356 = pneg %p8355
        $region170: #{no_w_net_forward.1} parent=103 // pred_check_branch
          %8358 = sbr.rel (%p8356) target = $region172
        $region171: #{no_w_net_forward.1} parent=103 // pred_region
          %8359 = vst [vmem:[#allocation2] sm:$0x3] %v8354
        $region172: #{no_w_net_forward.1} parent=103 // pred_fallthru
          _
        %p8360 = scmp.eq.s32.totalorder %s57, 1
        // Predicated region
        $region173: #{no_w_net_forward.1} parent=103 // pred_check
          %p8361 = pneg %p8360
        $region174: #{no_w_net_forward.1} parent=103 // pred_check_branch
          %8363 = sbr.rel (%p8361) target = $region176
        $region175: #{no_w_net_forward.1} parent=103 // pred_region
          %v8364 = vld [vmem:[#allocation2] sm:$0x3]
          %v8365 = vpack.c.bf16 %v8364, %v8364
          %v8366 = vpack.c.bf16 %v8354, %v8354
          %v8367 = vld [vmem:[#allocation23] sm:$0xf]
          %v8368 = vld [vmem:[#allocation23 + $0x4] sm:$0xf]
          %v8369 = vld [vmem:[#allocation23 + $0x8] sm:$0xf]
          %v8370 = vld [vmem:[#allocation23 + $0xc] sm:$0xf]
          %v8371 = vld [vmem:[#allocation23 + $0x10] sm:$0xf]
          %v8372 = vld [vmem:[#allocation23 + $0x14] sm:$0xf]
          %v8373 = vld [vmem:[#allocation23 + $0x18] sm:$0xf]
          %v8374 = vld [vmem:[#allocation23 + $0x1c] sm:$0xf]
          %v8375 = vld [vmem:[#allocation23 + $0x20] sm:$0xf]
          %v8376 = vld [vmem:[#allocation23 + $0x24] sm:$0xf]
          %v8377 = vld [vmem:[#allocation23 + $0x28] sm:$0xf]
          %v8378 = vld [vmem:[#allocation23 + $0x2c] sm:$0xf]
          %v8379 = vld [vmem:[#allocation23 + $0x30] sm:$0xf]
          %v8380 = vld [vmem:[#allocation23 + $0x34] sm:$0xf]
          %v8381 = vld [vmem:[#allocation23 + $0x38] sm:$0xf]
          %v8382 = vld [vmem:[#allocation23 + $0x3c] sm:$0xf]
          %v8383 = vld [vmem:[#allocation23 + $0x40] sm:$0xf]
          %v8384 = vld [vmem:[#allocation23 + $0x44] sm:$0xf]
          %v8385 = vld [vmem:[#allocation23 + $0x48] sm:$0xf]
          %v8386 = vld [vmem:[#allocation23 + $0x4c] sm:$0xf]
          %v8387 = vld [vmem:[#allocation23 + $0x50] sm:$0xf]
          %v8388 = vld [vmem:[#allocation23 + $0x54] sm:$0xf]
          %v8389 = vld [vmem:[#allocation23 + $0x58] sm:$0xf]
          %v8390 = vld [vmem:[#allocation23 + $0x5c] sm:$0xf]
          %v8391 = vld [vmem:[#allocation23 + $0x60] sm:$0xf]
          %v8392 = vld [vmem:[#allocation23 + $0x64] sm:$0xf]
          %v8393 = vld [vmem:[#allocation23 + $0x68] sm:$0xf]
          %v8394 = vld [vmem:[#allocation23 + $0x6c] sm:$0xf]
          %v8395 = vld [vmem:[#allocation23 + $0x70] sm:$0xf]
          %v8396 = vld [vmem:[#allocation23 + $0x74] sm:$0xf]
          %v8397 = vld [vmem:[#allocation23 + $0x78] sm:$0xf]
          %v8398 = vld [vmem:[#allocation23 + $0x7c] sm:$0xf]
          %v8399 = vld [vmem:[#allocation24] sm:$0x1]
          %v8401 = vperm.slane %v8399, 0
          %v8435 = vunpack.c.l.b16 %v8367
          %v8436 = vunpack.c.l.b16 %v8368
          %v8437 = vunpack.c.l.b16 %v8369
          %v8438 = vunpack.c.l.b16 %v8370
          %v8439 = vunpack.c.l.b16 %v8371
          %v8440 = vunpack.c.l.b16 %v8372
          %v8441 = vunpack.c.l.b16 %v8373
          %v8442 = vunpack.c.l.b16 %v8374
          %v8443 = vunpack.c.l.b16 %v8375
          %v8444 = vunpack.c.l.b16 %v8376
          %v8445 = vunpack.c.l.b16 %v8377
          %v8446 = vunpack.c.l.b16 %v8378
          %v8447 = vunpack.c.l.b16 %v8379
          %v8448 = vunpack.c.l.b16 %v8380
          %v8449 = vunpack.c.l.b16 %v8381
          %v8450 = vunpack.c.l.b16 %v8382
          %v8451 = vunpack.c.l.b16 %v8383
          %v8452 = vunpack.c.l.b16 %v8384
          %v8453 = vunpack.c.l.b16 %v8385
          %v8454 = vunpack.c.l.b16 %v8386
          %v8455 = vunpack.c.l.b16 %v8387
          %v8456 = vunpack.c.l.b16 %v8388
          %v8457 = vunpack.c.l.b16 %v8389
          %v8458 = vunpack.c.l.b16 %v8390
          %v8459 = vunpack.c.l.b16 %v8391
          %v8460 = vunpack.c.l.b16 %v8392
          %v8461 = vunpack.c.l.b16 %v8393
          %v8462 = vunpack.c.l.b16 %v8394
          %v8463 = vunpack.c.l.b16 %v8395
          %v8464 = vunpack.c.l.b16 %v8396
          %v8465 = vunpack.c.l.b16 %v8397
          %v8466 = vunpack.c.l.b16 %v8398
          %v8467 = vpack.c.b16 %v8436, %v8435
          %v8468 = vpack.c.b16 %v8438, %v8437
          %v8469 = vpack.c.b16 %v8440, %v8439
          %v8470 = vpack.c.b16 %v8442, %v8441
          %v8471 = vpack.c.b16 %v8444, %v8443
          %v8472 = vpack.c.b16 %v8446, %v8445
          %v8473 = vpack.c.b16 %v8448, %v8447
          %v8474 = vpack.c.b16 %v8450, %v8449
          %v8475 = vpack.c.b16 %v8452, %v8451
          %v8476 = vpack.c.b16 %v8454, %v8453
          %v8477 = vpack.c.b16 %v8456, %v8455
          %v8478 = vpack.c.b16 %v8458, %v8457
          %v8479 = vpack.c.b16 %v8460, %v8459
          %v8480 = vpack.c.b16 %v8462, %v8461
          %v8481 = vpack.c.b16 %v8464, %v8463
          %v8482 = vpack.c.b16 %v8466, %v8465
          %8499 = vmatpush.bf16.msra.mxu0 %v8474
          %8500 = vmatpush.bf16.msra.mxu0 %v8473
          %8501 = vmatpush.bf16.msra.mxu0 %v8472
          %8502 = vmatpush.bf16.msra.mxu0 %v8471
          %8503 = vmatpush.bf16.msra.mxu0 %v8470
          %8504 = vmatpush.bf16.msra.mxu0 %v8469
          %8505 = vmatpush.bf16.msra.mxu0 %v8468
          %8506 = vmatpush.bf16.msra.mxu0 %v8467
          %8507 = vmatmul.bf16.gmra.mxu0 %v8365
          %v8508 = vpop.f32.mrf.mxu0
          %v8509 = vadd.f32 %v8401, %v8508
          %v8510 = vpop.f32.mrf.mxu0
          %8511 = vdwg.mxu0
          %8512 = vmatpush.bf16.msra.mxu0 %v8482
          %8513 = vmatpush.bf16.msra.mxu0 %v8481
          %8514 = vmatpush.bf16.msra.mxu0 %v8480
          %8515 = vmatpush.bf16.msra.mxu0 %v8479
          %8516 = vmatpush.bf16.msra.mxu0 %v8478
          %8517 = vmatpush.bf16.msra.mxu0 %v8477
          %8518 = vmatpush.bf16.msra.mxu0 %v8476
          %8519 = vmatpush.bf16.msra.mxu0 %v8475
          %8520 = vmatmul.bf16.gmra.mxu0 %v8366
          %v8521 = vpop.f32.mrf.mxu0
          %v8522 = vadd.f32 %v8509, %v8521
          %v8523 = vpop.f32.mrf.mxu0
          %8524 = vdwg.mxu0
          %v8525 = vmax.f32 %v8522, 0.0
          %v8526 = vpack.c.bf16 %v8525, %v8525
          %v8527 = vld [vmem:[#allocation26] sm:$0xf]
          %v8528 = vld [vmem:[#allocation26 + $0x4] sm:$0xf]
          %v8529 = vld [vmem:[#allocation26 + $0x8] sm:$0xf]
          %v8530 = vld [vmem:[#allocation26 + $0xc] sm:$0xf]
          %v8531 = vld [vmem:[#allocation26 + $0x10] sm:$0xf]
          %v8532 = vld [vmem:[#allocation26 + $0x14] sm:$0xf]
          %v8533 = vld [vmem:[#allocation26 + $0x18] sm:$0xf]
          %v8534 = vld [vmem:[#allocation26 + $0x1c] sm:$0xf]
          %v8535 = vld [vmem:[#allocation26 + $0x20] sm:$0xf]
          %v8536 = vld [vmem:[#allocation26 + $0x24] sm:$0xf]
          %v8537 = vld [vmem:[#allocation26 + $0x28] sm:$0xf]
          %v8538 = vld [vmem:[#allocation26 + $0x2c] sm:$0xf]
          %v8539 = vld [vmem:[#allocation26 + $0x30] sm:$0xf]
          %v8540 = vld [vmem:[#allocation26 + $0x34] sm:$0xf]
          %v8541 = vld [vmem:[#allocation26 + $0x38] sm:$0xf]
          %v8542 = vld [vmem:[#allocation26 + $0x3c] sm:$0xf]
          %v8543 = vld [vmem:[#allocation27] sm:$0x1]
          %v8545 = vperm.slane %v8543, 0
          %v8563 = vunpack.c.l.b16 %v8527
          %v8564 = vunpack.c.l.b16 %v8528
          %v8565 = vunpack.c.l.b16 %v8529
          %v8566 = vunpack.c.l.b16 %v8530
          %v8567 = vunpack.c.l.b16 %v8531
          %v8568 = vunpack.c.l.b16 %v8532
          %v8569 = vunpack.c.l.b16 %v8533
          %v8570 = vunpack.c.l.b16 %v8534
          %v8571 = vunpack.c.l.b16 %v8535
          %v8572 = vunpack.c.l.b16 %v8536
          %v8573 = vunpack.c.l.b16 %v8537
          %v8574 = vunpack.c.l.b16 %v8538
          %v8575 = vunpack.c.l.b16 %v8539
          %v8576 = vunpack.c.l.b16 %v8540
          %v8577 = vunpack.c.l.b16 %v8541
          %v8578 = vunpack.c.l.b16 %v8542
          %v8579 = vpack.c.b16 %v8564, %v8563
          %v8580 = vpack.c.b16 %v8566, %v8565
          %v8581 = vpack.c.b16 %v8568, %v8567
          %v8582 = vpack.c.b16 %v8570, %v8569
          %v8583 = vpack.c.b16 %v8572, %v8571
          %v8584 = vpack.c.b16 %v8574, %v8573
          %v8585 = vpack.c.b16 %v8576, %v8575
          %v8586 = vpack.c.b16 %v8578, %v8577
          %8595 = vmatpush.bf16.msra.mxu0 %v8586
          %8596 = vmatpush.bf16.msra.mxu0 %v8585
          %8597 = vmatpush.bf16.msra.mxu0 %v8584
          %8598 = vmatpush.bf16.msra.mxu0 %v8583
          %8599 = vmatpush.bf16.msra.mxu0 %v8582
          %8600 = vmatpush.bf16.msra.mxu0 %v8581
          %8601 = vmatpush.bf16.msra.mxu0 %v8580
          %8602 = vmatpush.bf16.msra.mxu0 %v8579
          %8603 = vmatmul.bf16.gmra.mxu0 %v8526
          %v8604 = vpop.f32.mrf.mxu0
          %v8605 = vadd.f32 %v8545, %v8604
          %v8606 = vpop.f32.mrf.mxu0
          %8607 = vdwg.mxu0
          %v8608 = vmax.f32 %v8605, 0.0
          %v8609 = vpack.c.bf16 %v8608, %v8608
          %v8610 = vld [vmem:[%s19] sm:$0xf]
          %v8611 = vld [vmem:[%s19 + $0x4] sm:$0xf]
          %v8612 = vld [vmem:[%s19 + $0x8] sm:$0xf]
          %v8613 = vld [vmem:[%s19 + $0xc] sm:$0xf]
          %v8614 = vld [vmem:[%s19 + $0x10] sm:$0xf]
          %v8615 = vld [vmem:[%s19 + $0x14] sm:$0xf]
          %v8616 = vld [vmem:[%s19 + $0x18] sm:$0xf]
          %v8617 = vld [vmem:[%s19 + $0x1c] sm:$0xf]
          %v8618 = vld [vmem:[%s19 + $0x20] sm:$0xf]
          %v8619 = vld [vmem:[%s19 + $0x24] sm:$0xf]
          %v8620 = vld [vmem:[%s19 + $0x28] sm:$0xf]
          %v8621 = vld [vmem:[%s19 + $0x2c] sm:$0xf]
          %v8622 = vld [vmem:[%s19 + $0x30] sm:$0xf]
          %v8623 = vld [vmem:[%s19 + $0x34] sm:$0xf]
          %v8624 = vld [vmem:[%s19 + $0x38] sm:$0xf]
          %v8625 = vld [vmem:[%s19 + $0x3c] sm:$0xf]
          %v8626 = vld [vmem:[#allocation3] sm:$0x1]
          %v8628 = vperm.slane %v8626, 0
          %v8646 = vunpack.c.l.b16 %v8610
          %v8647 = vunpack.c.l.b16 %v8611
          %v8648 = vunpack.c.l.b16 %v8612
          %v8649 = vunpack.c.l.b16 %v8613
          %v8650 = vunpack.c.l.b16 %v8614
          %v8651 = vunpack.c.l.b16 %v8615
          %v8652 = vunpack.c.l.b16 %v8616
          %v8653 = vunpack.c.l.b16 %v8617
          %v8654 = vunpack.c.l.b16 %v8618
          %v8655 = vunpack.c.l.b16 %v8619
          %v8656 = vunpack.c.l.b16 %v8620
          %v8657 = vunpack.c.l.b16 %v8621
          %v8658 = vunpack.c.l.b16 %v8622
          %v8659 = vunpack.c.l.b16 %v8623
          %v8660 = vunpack.c.l.b16 %v8624
          %v8661 = vunpack.c.l.b16 %v8625
          %v8662 = vpack.c.b16 %v8647, %v8646
          %v8663 = vpack.c.b16 %v8649, %v8648
          %v8664 = vpack.c.b16 %v8651, %v8650
          %v8665 = vpack.c.b16 %v8653, %v8652
          %v8666 = vpack.c.b16 %v8655, %v8654
          %v8667 = vpack.c.b16 %v8657, %v8656
          %v8668 = vpack.c.b16 %v8659, %v8658
          %v8669 = vpack.c.b16 %v8661, %v8660
          %8678 = vmatpush.bf16.msra.mxu0 %v8669
          %8679 = vmatpush.bf16.msra.mxu0 %v8668
          %8680 = vmatpush.bf16.msra.mxu0 %v8667
          %8681 = vmatpush.bf16.msra.mxu0 %v8666
          %8682 = vmatpush.bf16.msra.mxu0 %v8665
          %8683 = vmatpush.bf16.msra.mxu0 %v8664
          %8684 = vmatpush.bf16.msra.mxu0 %v8663
          %8685 = vmatpush.bf16.msra.mxu0 %v8662
          %8686 = vmatmul.bf16.gmra.mxu0 %v8609
          %v8687 = vpop.f32.mrf.mxu0
          %v8688 = vadd.f32 %v8628, %v8687
          %v8689 = vpop.f32.mrf.mxu0
          %8690 = vdwg.mxu0
          %v8691 = vand.u32 2147483647, %v8688
          %v8692 = vsub.f32 0.0, %v8691
          %v8693 = vmul.f32 %v8692, 1.442695
          %v8694 = vpow.pop %v8693
          %v8695 = vadd.f32 %v8694, 1.0
          %v8696 = vrcp.pop %v8695
          %vm8697 = vcmp.ge.f32.partialorder %v8688, 0.0
          %v8698 = vmul.f32 %v8694, %v8696
          %v8699 = vsel %vm8697, %v8696, %v8698
          %vm8700 = vcmask 1024
          %8701 = vst.msk [vmem:[%s21] sm:$0x3] %vm8700, %v8699
        $region176: #{no_w_net_forward.1} parent=103 // pred_fallthru
          _
        // Predicated region
        $region177: #{no_w_net_forward.1} parent=103 // pred_check
          %p8702 = pneg %p576
        $region178: #{no_w_net_forward.1} parent=103 // pred_check_branch
          %8704 = sbr.rel (%p8702) target = $region180
        $region179: #{no_w_net_forward.1} parent=103 // pred_region
          _
        $region180: #{no_w_net_forward.1} parent=103 // pred_fallthru
          _
        // Predicated region
        $region181: #{no_w_net_forward.1} parent=103 // pred_check
          %p8705 = pneg %p576
        $region182: #{no_w_net_forward.1} parent=103 // pred_check_branch
          %8707 = sbr.rel (%p8705) target = $region184
        $region183: #{no_w_net_forward.1} parent=103 // pred_region
          _
        $region184: #{no_w_net_forward.1} parent=103 // pred_fallthru
          _
      $region104: #{no_w_net_forward.1} parent=5 // pred_fallthru
        _
      %p8708 = scmp.le.s32.totalorder 2, %s52
      // Predicated region
      $region185: #{no_w_net_forward.1} parent=5 // pred_check
        %p8709 = pneg %p8708
      $region186: #{no_w_net_forward.1} parent=5 // pred_check_branch
        %8711 = sbr.rel (%p8709) target = $region188
      $region187: #{no_w_net_forward.1} parent=5 // pred_region
        %s8712 = ssub.s32 %s52, 2
      $region188: #{no_w_net_forward.1} parent=5 // pred_fallthru
        _
    $region6: #{no_w_net_forward.1} parent=1 // loop_footer
      %s56 = sadd.s32 1, %s52
    $region7: #{no_w_net_forward.1} parent=1 // loop_footer_branch
      %51 = sbr.rel target = $region3
    $region8: #{no_w_net_forward.1} parent=1 // loop_exit
      _
    %8713 = vsyncpa [#allocation5], 1
    %s8714 = scalar_lea.sflag [#allocation5], 1
    %8715 = vsyncpa %s8714, 1
    %8716 = vsyncpa [#allocation7], 1
    %s8717 = scalar_lea.sflag [#allocation7], 1
    %8718 = vsyncpa %s8717, 1
    %8719 = vsyncpa [#allocation10], 1
    %s8720 = scalar_lea.sflag [#allocation10], 1
    %8721 = vsyncpa %s8720, 1
    %8722 = vsyncpa [#allocation13], 1
    %s8723 = scalar_lea.sflag [#allocation13], 1
    %8724 = vsyncpa %s8723, 1
    %8725 = vsyncpa [#allocation16], 1
    %s8726 = scalar_lea.sflag [#allocation16], 1
    %8727 = vsyncpa %s8726, 1
    %8728 = vsyncpa [#allocation19], 1
    %s8729 = scalar_lea.sflag [#allocation19], 1
    %8730 = vsyncpa %s8729, 1
    %8731 = vsyncpa [#allocation22], 1
    %s8732 = scalar_lea.sflag [#allocation22], 1
    %8733 = vsyncpa %s8732, 1
    %8734 = vsyncpa [#allocation25], 1
    %8735 = vsyncpa [#allocation28], 1

</llo_original>
